<compile_context>
chip_gen: v6e
topology: v6e:2x2x1
jax: 0.10.0
libtpu: 0.0.40
codegen_flags: <defaults>
</compile_context>

<pallas_src>
import functools

import jax
import jax.numpy as jnp
from jax import lax
from jax.experimental import pallas as pl
from jax.experimental.pallas import tpu as pltpu


def pattern_nn_kernel(xflat_ref,                     # (T*B, I)
                      wih0_ref, b0_ref,              # (I, 4Hp), (1, 4Hp)
                      wblk_ref,                      # (2Hp, 8Hp) bf16 block RHS
                      b1_ref,                        # (1, 4Hp)
                      bn1s_ref, bn1b_ref,            # (1, Hp), (1, Hp)
                      wfc1_ref, bfc1_ref,            # (Hp, H2p), (1, H2p)
                      bn2s_ref, bn2b_ref,            # (1, H2p), (1, H2p)
                      wfc2_ref, bfc2_ref,            # (H2p, O), (1, O)
                      out_ref,                       # (B, O)
                      proj_ref,                      # scratch: (T*B, 4Hp)
                      *, T, B, Hp):
    G = 4 * Hp

    # Phase 1: batched layer-0 input projection, bias folded in (one MXU op,
    # off the per-step critical path; kept fp32, K=input_size is tiny).
    proj_ref[...] = (jnp.dot(xflat_ref[...], wih0_ref[...],
                             preferred_element_type=jnp.float32)
                     + b0_ref[...])

    b1 = b1_ref[...]
    zeros = jnp.zeros((B, Hp), dtype=jnp.float32)

    def cell(gates, c):
        # PyTorch gate order i, f, g, o; every slice is a whole 128-lane vreg.
        # sigmoid(x) = 0.5*(tanh(0.5x)+1): single EUP op per gate, no divide.
        i = 0.5 * (jnp.tanh(0.5 * gates[:, 0 * Hp:1 * Hp]) + 1.0)
        f = 0.5 * (jnp.tanh(0.5 * gates[:, 1 * Hp:2 * Hp]) + 1.0)
        g = jnp.tanh(gates[:, 2 * Hp:3 * Hp])
        o = 0.5 * (jnp.tanh(0.5 * gates[:, 3 * Hp:4 * Hp]) + 1.0)
        c_new = f * c + i * g
        h_new = o * jnp.tanh(c_new)
        return h_new, c_new

    def fused_matmul(h0, h1):
        # One (B,2Hp)x(2Hp,8Hp) matmul per wavefront step; bf16 operands,
        # f32 accumulation. RHS is streamed from VMEM (not held in vregs).
        lhs = jnp.concatenate([h0, h1], axis=1).astype(jnp.bfloat16)
        return jnp.dot(lhs, wblk_ref[...], preferred_element_type=jnp.float32)

    # Peeled t = 0: layer-0 step 0 (h0[-1] = c0[-1] = 0 -> no matmul needed).
    h0, c0 = cell(proj_ref[pl.ds(0, B), :], zeros)
    h1, c1 = zeros, zeros

    # Wavefront loop t = 1 .. T-1:
    #   carry = (h0[t-1], c0[t-1], h1[t-2], c1[t-2])
    #   computes layer-0 step t and layer-1 step t-1 from one fused matmul.
    def wave_step(t, carry):
        h0, c0, h1, c1 = carry
        r = fused_matmul(h0, h1)
        row = t * B                      # B multiple of 8 -> sublane aligned
        gates0 = r[:, :G] + proj_ref[pl.ds(row, B), :]
        gates1 = r[:, G:] + b1
        h0n, c0n = cell(gates0, c0)
        h1n, c1n = cell(gates1, c1)
        return (h0n, c0n, h1n, c1n)

    h0, c0, h1, c1 = lax.fori_loop(1, T, wave_step, (h0, c0, h1, c1),
                                   unroll=True)

    # Peeled t = T: layer-1 step T-1 only (final top-layer hidden state).
    r = fused_matmul(h0, h1)
    h_last, _ = cell(r[:, G:] + b1, c1)

    # Head (runs once): folded eval-mode BN -> Linear -> BN -> ReLU -> Linear.
    # All tensors stay zero-padded consistently; kept fp32 for accuracy.
    feat = h_last * bn1s_ref[...] + bn1b_ref[...]
    z = jnp.dot(feat, wfc1_ref[...], preferred_element_type=jnp.float32) + bfc1_ref[...]
    z = z * bn2s_ref[...] + bn2b_ref[...]
    z = jnp.maximum(z, 0.0)              # ReLU  (Dropout = identity in eval)
    out = jnp.dot(z, wfc2_ref[...], preferred_element_type=jnp.float32) + bfc2_ref[...]
    out_ref[...] = out.astype(out_ref.dtype)


def _fold_bn(gamma, beta, running_mean, running_var, eps=1e-5):
    scale = gamma / jnp.sqrt(running_var + eps)
    shift = beta - running_mean * scale
    return scale, shift


def _pad_gate_cols(w_t, H, Hp):
    """(in_dim, 4H) -> (in_dim, 4Hp): zero-pad each gate's H columns to Hp."""
    in_dim = w_t.shape[0]
    w4 = w_t.reshape(in_dim, 4, H)
    return jnp.pad(w4, ((0, 0), (0, 0), (0, Hp - H))).reshape(in_dim, 4 * Hp)


def init_params(key, input_size=5, hidden_size=64, output_size=3):
    """Deterministic init matching PatternNN._initialize_weights (eval mode)."""
    H, I, O = hidden_size, input_size, output_size
    H2 = H // 2
    ks = jax.random.split(key, 8)

    def xavier(k, shape):
        fan_in, fan_out = shape[1], shape[0]
        a = jnp.sqrt(6.0 / (fan_in + fan_out))
        return jax.random.uniform(k, shape, jnp.float32, -a, a)

    def kaiming(k, shape):
        fan_in = shape[1]
        a = jnp.sqrt(6.0 / fan_in)
        return jax.random.uniform(k, shape, jnp.float32, -a, a)

    p = {}
    # LSTM layer 0 / 1 (PyTorch shapes: W_ih (4H, in), W_hh (4H, H), biases (4H,))
    p['w_ih0'] = xavier(ks[0], (4 * H, I))
    p['w_hh0'] = xavier(ks[1], (4 * H, H))
    p['b0'] = jnp.zeros((4 * H,), jnp.float32)      # b_ih0 + b_hh0 (both zero here;
    p['w_ih1'] = xavier(ks[2], (4 * H, H))          # real checkpoints: sum the two)
    p['w_hh1'] = xavier(ks[3], (4 * H, H))
    p['b1'] = jnp.zeros((4 * H,), jnp.float32)
    # BatchNorm1d(H): gamma=1, beta=0, running stats (0, 1)
    p['bn1'] = (jnp.ones((H,)), jnp.zeros((H,)), jnp.zeros((H,)), jnp.ones((H,)))
    # classifier
    p['w_fc1'] = kaiming(ks[4], (H2, H))
    p['b_fc1'] = jnp.zeros((H2,), jnp.float32)
    p['bn2'] = (jnp.ones((H2,)), jnp.zeros((H2,)), jnp.zeros((H2,)), jnp.ones((H2,)))
    p['w_fc2'] = kaiming(ks[5], (O, H2))
    p['b_fc2'] = jnp.zeros((O,), jnp.float32)
    return p


@jax.jit
def pattern_nn_forward(x, params):
    """x: (B, T, input_size) float32 -> logits (B, output_size)."""
    B, T, I = x.shape
    H = params['w_hh0'].shape[1]
    H2 = params['w_fc1'].shape[0]
    O = params['w_fc2'].shape[0]
    HP = 128                       # lane-aligned padded hidden width per gate
    H2P = 128                      # lane-aligned padded classifier hidden width
    BP = max(8, -(-B // 8) * 8)    # pad batch to f32 sublane multiple

    # --- glue: layout, zero-padding, BN folding (no heavy compute) ---
    x_tm = jnp.transpose(x, (1, 0, 2)).astype(jnp.float32)        # (T, B, I)
    x_tm = jnp.pad(x_tm, ((0, 0), (0, BP - B), (0, 0)))           # (T, BP, I)
    x_flat = x_tm.reshape(T * BP, I)

    wih0p = _pad_gate_cols(params['w_ih0'].T, H, HP)                                   # (I, 4HP)
    b0p = jnp.pad(params['b0'].reshape(4, H), ((0, 0), (0, HP - H))).reshape(1, 4 * HP)

    whh0p = jnp.pad(_pad_gate_cols(params['w_hh0'].T, H, HP), ((0, HP - H), (0, 0)))   # (HP, 4HP)
    wih1p = jnp.pad(_pad_gate_cols(params['w_ih1'].T, H, HP), ((0, HP - H), (0, 0)))   # (HP, 4HP)
    whh1p = jnp.pad(_pad_gate_cols(params['w_hh1'].T, H, HP), ((0, HP - H), (0, 0)))   # (HP, 4HP)
    b1p = jnp.pad(params['b1'].reshape(4, H), ((0, 0), (0, HP - H))).reshape(1, 4 * HP)

    # Fused wavefront block RHS: [[whh0 | wih1], [0 | whh1]]  (2HP, 8HP), bf16.
    wblk = jnp.concatenate([
        jnp.concatenate([whh0p, wih1p], axis=1),
        jnp.concatenate([jnp.zeros((HP, 4 * HP), jnp.float32), whh1p], axis=1),
    ], axis=0).astype(jnp.bfloat16)

    bn1_scale, bn1_shift = _fold_bn(*params['bn1'])
    bn1s = jnp.pad(bn1_scale, (0, HP - H))[None, :]
    bn1b = jnp.pad(bn1_shift, (0, HP - H))[None, :]

    wfc1p = jnp.pad(params['w_fc1'].T, ((0, HP - H), (0, H2P - H2)))                   # (HP, H2P)
    bfc1p = jnp.pad(params['b_fc1'], (0, H2P - H2))[None, :]
    bn2_scale, bn2_shift = _fold_bn(*params['bn2'])
    bn2s = jnp.pad(bn2_scale, (0, H2P - H2))[None, :]
    bn2b = jnp.pad(bn2_shift, (0, H2P - H2))[None, :]
    wfc2p = jnp.pad(params['w_fc2'].T, ((0, H2P - H2), (0, 0)))                        # (H2P, O)
    bfc2 = params['b_fc2'][None, :]

    args = (
        x_flat,
        wih0p, b0p,
        wblk, b1p,
        bn1s, bn1b,
        wfc1p, bfc1p,
        bn2s, bn2b,
        wfc2p, bfc2,
    )

    # Everything whole-array resident in VMEM (~1 MiB total); no grid needed.
    # TODO(synk): for batch >> 8 add a ("parallel",) batch grid (2 TCs on v7x
    # and VMEM scaling); irrelevant at this size.
    vmem_spec = pl.BlockSpec(memory_space=pltpu.MemorySpace.VMEM)
    out_padded = pl.pallas_call(
        functools.partial(pattern_nn_kernel, T=T, B=BP, Hp=HP),
        out_shape=jax.ShapeDtypeStruct((BP, O), jnp.float32),
        in_specs=[vmem_spec] * len(args),
        out_specs=vmem_spec,
        scratch_shapes=[
            pltpu.VMEM((T * BP, 4 * HP), jnp.float32),   # batched layer-0 gate projections
        ],
    )(*args)
    return out_padded[:B]


def pattern_nn_reference(x, params):
    """Pure-JAX fp32 reference of the PyTorch eval-mode forward."""
    B, T, I = x.shape
    H = params['w_hh0'].shape[1]

    def lstm_layer(seq, w_ih, w_hh, b):
        def step(carry, xt):
            h, c = carry
            gates = xt @ w_ih.T + h @ w_hh.T + b
            i, f, g, o = jnp.split(gates, 4, axis=-1)
            i = jax.nn.sigmoid(i)
            f = jax.nn.sigmoid(f)
            g = jnp.tanh(g)
            o = jax.nn.sigmoid(o)
            c = f * c + i * g
            h = o * jnp.tanh(c)
            return (h, c), h

        h0 = jnp.zeros((B, H), jnp.float32)
        c0 = jnp.zeros((B, H), jnp.float32)
        _, hs = lax.scan(step, (h0, c0), jnp.transpose(seq, (1, 0, 2)))
        return jnp.transpose(hs, (1, 0, 2))

    h0seq = lstm_layer(x, params['w_ih0'], params['w_hh0'], params['b0'])
    h1seq = lstm_layer(h0seq, params['w_ih1'], params['w_hh1'], params['b1'])
    last = h1seq[:, -1, :]
    s1, sh1 = _fold_bn(*params['bn1'])
    feat = last * s1 + sh1
    z = feat @ params['w_fc1'].T + params['b_fc1']
    s2, sh2 = _fold_bn(*params['bn2'])
    z = jnp.maximum(z * s2 + sh2, 0.0)
    return z @ params['w_fc2'].T + params['b_fc2']


if __name__ == "__main__":
    key = jax.random.PRNGKey(0)
    k_param, k_x = jax.random.split(key)

    B, T, I = 4, 20, 5          # batch, sequence_length, input_size (default config)
    params = init_params(k_param, input_size=I, hidden_size=64, output_size=3)
    x = jax.random.normal(k_x, (B, T, I), dtype=jnp.float32)

    logits = pattern_nn_forward(x, params)
    jax.block_until_ready(logits)
    assert logits.shape == (B, 3), logits.shape
    assert bool(jnp.all(jnp.isfinite(logits)))

    # Numerical check against a pure-JAX fp32 reference (bf16 recurrent
    # operands introduce small, bounded drift).
    ref = pattern_nn_reference(x, params)
    assert bool(jnp.allclose(logits, ref, atol=5e-2, rtol=5e-2)), (
        float(jnp.max(jnp.abs(logits - ref))))

    # TODO(synk): PyTorch-side input validation / logging / training-mode BN &
    # dropout are host/runtime behavior, not part of the inference kernel.
    print("KERNEL_OK")
</pallas_src>

<mosaic_0001>
module attributes {stable_mosaic.version = 11 : i64} {
  func.func @pattern_nn_kernel(%arg0: memref<160x5xf32, #tpu.memory_space<vmem>>, %arg1: memref<5x512xf32, #tpu.memory_space<vmem>>, %arg2: memref<1x512xf32, #tpu.memory_space<vmem>>, %arg3: memref<256x1024xbf16, #tpu.memory_space<vmem>>, %arg4: memref<1x512xf32, #tpu.memory_space<vmem>>, %arg5: memref<1x128xf32, #tpu.memory_space<vmem>>, %arg6: memref<1x128xf32, #tpu.memory_space<vmem>>, %arg7: memref<128x128xf32, #tpu.memory_space<vmem>>, %arg8: memref<1x128xf32, #tpu.memory_space<vmem>>, %arg9: memref<1x128xf32, #tpu.memory_space<vmem>>, %arg10: memref<1x128xf32, #tpu.memory_space<vmem>>, %arg11: memref<128x3xf32, #tpu.memory_space<vmem>>, %arg12: memref<1x3xf32, #tpu.memory_space<vmem>>, %arg13: memref<8x3xf32, #tpu.memory_space<vmem>>, %arg14: memref<160x512xf32, #tpu.memory_space<vmem>>) attributes {dimension_semantics = [], scalar_prefetch = 0 : i64, scratch_operands = 1 : i64, tpu.core_type = #tpu.core_type<tc>} {
    %c0 = arith.constant 0 : index
    %c0_0 = arith.constant 0 : index
    %0 = vector.load %arg0[%c0, %c0_0] : memref<160x5xf32, #tpu.memory_space<vmem>>, vector<160x5xf32>
    %c0_1 = arith.constant 0 : index
    %c0_2 = arith.constant 0 : index
    %1 = vector.load %arg1[%c0_1, %c0_2] : memref<5x512xf32, #tpu.memory_space<vmem>>, vector<5x512xf32>
    %cst = arith.constant dense<0.000000e+00> : vector<160x512xf32>
    %2 = tpu.matmul %0, %1, %cst {dimension_numbers = #tpu.dot_dimension_numbers<[1], [0], [0], [1], [0, 0, 1, 1], [], []>} : vector<160x5xf32>, vector<5x512xf32>, vector<160x512xf32> -> vector<160x512xf32>
    %c0_3 = arith.constant 0 : index
    %c0_4 = arith.constant 0 : index
    %3 = vector.load %arg2[%c0_3, %c0_4] : memref<1x512xf32, #tpu.memory_space<vmem>>, vector<1x512xf32>
    %4 = vector.broadcast %3 : vector<1x512xf32> to vector<160x512xf32>
    %5 = arith.addf %2, %4 : vector<160x512xf32>
    %c0_5 = arith.constant 0 : index
    %c0_6 = arith.constant 0 : index
    %6 = vector.load %arg14[%c0_5, %c0_6] : memref<160x512xf32, #tpu.memory_space<vmem>>, vector<160x512xf32>
    tpu.vector_store %arg14[%c0_5, %c0_6], %5 {strides = array<i32>} : memref<160x512xf32, #tpu.memory_space<vmem>>, vector<160x512xf32>,
    %c0_7 = arith.constant 0 : index
    %c0_8 = arith.constant 0 : index
    %7 = vector.load %arg4[%c0_7, %c0_8] : memref<1x512xf32, #tpu.memory_space<vmem>>, vector<1x512xf32>
    %cst_9 = arith.constant 0.000000e+00 : f32
    %8 = vector.broadcast %cst_9 : f32 to vector<8x128xf32>
    %c0_10 = arith.constant 0 : index
    %c0_11 = arith.constant 0 : index
    %9 = vector.load %arg14[%c0_10, %c0_11] : memref<160x512xf32, #tpu.memory_space<vmem>>, vector<8x512xf32>
    %10 = vector.extract_strided_slice %9 {offsets = [0, 0], sizes = [8, 128], strides = [1, 1]} : vector<8x512xf32> to vector<8x128xf32>
    %cst_12 = arith.constant 5.000000e-01 : f32
    %11 = vector.broadcast %cst_12 : f32 to vector<8x128xf32>
    %12 = arith.mulf %11, %10 : vector<8x128xf32>
    %13 = math.tanh %12 : vector<8x128xf32>
    %cst_13 = arith.constant 1.000000e+00 : f32
    %14 = vector.broadcast %cst_13 : f32 to vector<8x128xf32>
    %15 = arith.addf %13, %14 : vector<8x128xf32>
    %cst_14 = arith.constant 5.000000e-01 : f32
    %16 = vector.broadcast %cst_14 : f32 to vector<8x128xf32>
    %17 = arith.mulf %16, %15 : vector<8x128xf32>
    %18 = vector.extract_strided_slice %9 {offsets = [0, 128], sizes = [8, 128], strides = [1, 1]} : vector<8x512xf32> to vector<8x128xf32>
    %cst_15 = arith.constant 5.000000e-01 : f32
    %19 = vector.broadcast %cst_15 : f32 to vector<8x128xf32>
    %20 = arith.mulf %19, %18 : vector<8x128xf32>
    %21 = math.tanh %20 : vector<8x128xf32>
    %cst_16 = arith.constant 1.000000e+00 : f32
    %22 = vector.broadcast %cst_16 : f32 to vector<8x128xf32>
    %23 = arith.addf %21, %22 : vector<8x128xf32>
    %cst_17 = arith.constant 5.000000e-01 : f32
    %24 = vector.broadcast %cst_17 : f32 to vector<8x128xf32>
    %25 = arith.mulf %24, %23 : vector<8x128xf32>
    %26 = vector.extract_strided_slice %9 {offsets = [0, 256], sizes = [8, 128], strides = [1, 1]} : vector<8x512xf32> to vector<8x128xf32>
    %27 = math.tanh %26 : vector<8x128xf32>
    %28 = vector.extract_strided_slice %9 {offsets = [0, 384], sizes = [8, 128], strides = [1, 1]} : vector<8x512xf32> to vector<8x128xf32>
    %cst_18 = arith.constant 5.000000e-01 : f32
    %29 = vector.broadcast %cst_18 : f32 to vector<8x128xf32>
    %30 = arith.mulf %29, %28 : vector<8x128xf32>
    %31 = math.tanh %30 : vector<8x128xf32>
    %cst_19 = arith.constant 1.000000e+00 : f32
    %32 = vector.broadcast %cst_19 : f32 to vector<8x128xf32>
    %33 = arith.addf %31, %32 : vector<8x128xf32>
    %cst_20 = arith.constant 5.000000e-01 : f32
    %34 = vector.broadcast %cst_20 : f32 to vector<8x128xf32>
    %35 = arith.mulf %34, %33 : vector<8x128xf32>
    %36 = arith.mulf %25, %8 : vector<8x128xf32>
    %37 = arith.mulf %17, %27 : vector<8x128xf32>
    %38 = arith.addf %36, %37 : vector<8x128xf32>
    %39 = math.tanh %38 : vector<8x128xf32>
    %40 = arith.mulf %35, %39 : vector<8x128xf32>
    %c1_i32 = arith.constant 1 : i32
    %41 = tpu.concatenate %40, %8 in 1 : vector<8x128xf32>, vector<8x128xf32> -> vector<8x256xf32>
    %42 = arith.truncf %41 : vector<8x256xf32> to vector<8x256xbf16>
    %c0_21 = arith.constant 0 : index
    %c0_22 = arith.constant 0 : index
    %43 = vector.load %arg3[%c0_21, %c0_22] : memref<256x1024xbf16, #tpu.memory_space<vmem>>, vector<256x1024xbf16>
    %cst_23 = arith.constant dense<0.000000e+00> : vector<8x1024xf32>
    %44 = tpu.matmul %42, %43, %cst_23 {dimension_numbers = #tpu.dot_dimension_numbers<[1], [0], [0], [1], [0, 0, 1, 1], [], []>} : vector<8x256xbf16>, vector<256x1024xbf16>, vector<8x1024xf32> -> vector<8x1024xf32>
    %c8_i32 = arith.constant 8 : i32
    %45 = arith.muli %c1_i32, %c8_i32 : i32
    %46 = vector.extract_strided_slice %44 {offsets = [0, 0], sizes = [8, 512], strides = [1, 1]} : vector<8x1024xf32> to vector<8x512xf32>
    %47 = arith.index_cast %45 : i32 to index
    %c0_24 = arith.constant 0 : index
    %48 = vector.load %arg14[%47, %c0_24] : memref<160x512xf32, #tpu.memory_space<vmem>>, vector<8x512xf32>
    %49 = arith.addf %46, %48 : vector<8x512xf32>
    %50 = vector.extract_strided_slice %44 {offsets = [0, 512], sizes = [8, 512], strides = [1, 1]} : vector<8x1024xf32> to vector<8x512xf32>
    %51 = vector.broadcast %7 : vector<1x512xf32> to vector<8x512xf32>
    %52 = arith.addf %50, %51 : vector<8x512xf32>
    %53 = vector.extract_strided_slice %49 {offsets = [0, 0], sizes = [8, 128], strides = [1, 1]} : vector<8x512xf32> to vector<8x128xf32>
    %cst_25 = arith.constant 5.000000e-01 : f32
    %54 = vector.broadcast %cst_25 : f32 to vector<8x128xf32>
    %55 = arith.mulf %54, %53 : vector<8x128xf32>
    %56 = math.tanh %55 : vector<8x128xf32>
    %cst_26 = arith.constant 1.000000e+00 : f32
    %57 = vector.broadcast %cst_26 : f32 to vector<8x128xf32>
    %58 = arith.addf %56, %57 : vector<8x128xf32>
    %cst_27 = arith.constant 5.000000e-01 : f32
    %59 = vector.broadcast %cst_27 : f32 to vector<8x128xf32>
    %60 = arith.mulf %59, %58 : vector<8x128xf32>
    %61 = vector.extract_strided_slice %49 {offsets = [0, 128], sizes = [8, 128], strides = [1, 1]} : vector<8x512xf32> to vector<8x128xf32>
    %cst_28 = arith.constant 5.000000e-01 : f32
    %62 = vector.broadcast %cst_28 : f32 to vector<8x128xf32>
    %63 = arith.mulf %62, %61 : vector<8x128xf32>
    %64 = math.tanh %63 : vector<8x128xf32>
    %cst_29 = arith.constant 1.000000e+00 : f32
    %65 = vector.broadcast %cst_29 : f32 to vector<8x128xf32>
    %66 = arith.addf %64, %65 : vector<8x128xf32>
    %cst_30 = arith.constant 5.000000e-01 : f32
    %67 = vector.broadcast %cst_30 : f32 to vector<8x128xf32>
    %68 = arith.mulf %67, %66 : vector<8x128xf32>
    %69 = vector.extract_strided_slice %49 {offsets = [0, 256], sizes = [8, 128], strides = [1, 1]} : vector<8x512xf32> to vector<8x128xf32>
    %70 = math.tanh %69 : vector<8x128xf32>
    %71 = vector.extract_strided_slice %49 {offsets = [0, 384], sizes = [8, 128], strides = [1, 1]} : vector<8x512xf32> to vector<8x128xf32>
    %cst_31 = arith.constant 5.000000e-01 : f32
    %72 = vector.broadcast %cst_31 : f32 to vector<8x128xf32>
    %73 = arith.mulf %72, %71 : vector<8x128xf32>
    %74 = math.tanh %73 : vector<8x128xf32>
    %cst_32 = arith.constant 1.000000e+00 : f32
    %75 = vector.broadcast %cst_32 : f32 to vector<8x128xf32>
    %76 = arith.addf %74, %75 : vector<8x128xf32>
    %cst_33 = arith.constant 5.000000e-01 : f32
    %77 = vector.broadcast %cst_33 : f32 to vector<8x128xf32>
    %78 = arith.mulf %77, %76 : vector<8x128xf32>
    %79 = arith.mulf %68, %38 : vector<8x128xf32>
    %80 = arith.mulf %60, %70 : vector<8x128xf32>
    %81 = arith.addf %79, %80 : vector<8x128xf32>
    %82 = math.tanh %81 : vector<8x128xf32>
    %83 = arith.mulf %78, %82 : vector<8x128xf32>
    %84 = vector.extract_strided_slice %52 {offsets = [0, 0], sizes = [8, 128], strides = [1, 1]} : vector<8x512xf32> to vector<8x128xf32>
    %cst_34 = arith.constant 5.000000e-01 : f32
    %85 = vector.broadcast %cst_34 : f32 to vector<8x128xf32>
    %86 = arith.mulf %85, %84 : vector<8x128xf32>
    %87 = math.tanh %86 : vector<8x128xf32>
    %cst_35 = arith.constant 1.000000e+00 : f32
    %88 = vector.broadcast %cst_35 : f32 to vector<8x128xf32>
    %89 = arith.addf %87, %88 : vector<8x128xf32>
    %cst_36 = arith.constant 5.000000e-01 : f32
    %90 = vector.broadcast %cst_36 : f32 to vector<8x128xf32>
    %91 = arith.mulf %90, %89 : vector<8x128xf32>
    %92 = vector.extract_strided_slice %52 {offsets = [0, 128], sizes = [8, 128], strides = [1, 1]} : vector<8x512xf32> to vector<8x128xf32>
    %cst_37 = arith.constant 5.000000e-01 : f32
    %93 = vector.broadcast %cst_37 : f32 to vector<8x128xf32>
    %94 = arith.mulf %93, %92 : vector<8x128xf32>
    %95 = math.tanh %94 : vector<8x128xf32>
    %cst_38 = arith.constant 1.000000e+00 : f32
    %96 = vector.broadcast %cst_38 : f32 to vector<8x128xf32>
    %97 = arith.addf %95, %96 : vector<8x128xf32>
    %cst_39 = arith.constant 5.000000e-01 : f32
    %98 = vector.broadcast %cst_39 : f32 to vector<8x128xf32>
    %99 = arith.mulf %98, %97 : vector<8x128xf32>
    %100 = vector.extract_strided_slice %52 {offsets = [0, 256], sizes = [8, 128], strides = [1, 1]} : vector<8x512xf32> to vector<8x128xf32>
    %101 = math.tanh %100 : vector<8x128xf32>
    %102 = vector.extract_strided_slice %52 {offsets = [0, 384], sizes = [8, 128], strides = [1, 1]} : vector<8x512xf32> to vector<8x128xf32>
    %cst_40 = arith.constant 5.000000e-01 : f32
    %103 = vector.broadcast %cst_40 : f32 to vector<8x128xf32>
    %104 = arith.mulf %103, %102 : vector<8x128xf32>
    %105 = math.tanh %104 : vector<8x128xf32>
    %cst_41 = arith.constant 1.000000e+00 : f32
    %106 = vector.broadcast %cst_41 : f32 to vector<8x128xf32>
    %107 = arith.addf %105, %106 : vector<8x128xf32>
    %cst_42 = arith.constant 5.000000e-01 : f32
    %108 = vector.broadcast %cst_42 : f32 to vector<8x128xf32>
    %109 = arith.mulf %108, %107 : vector<8x128xf32>
    %110 = arith.mulf %99, %8 : vector<8x128xf32>
    %111 = arith.mulf %91, %101 : vector<8x128xf32>
    %112 = arith.addf %110, %111 : vector<8x128xf32>
    %113 = math.tanh %112 : vector<8x128xf32>
    %114 = arith.mulf %109, %113 : vector<8x128xf32>
    %c2_i32 = arith.constant 2 : i32
    %115 = tpu.concatenate %83, %114 in 1 : vector<8x128xf32>, vector<8x128xf32> -> vector<8x256xf32>
    %116 = arith.truncf %115 : vector<8x256xf32> to vector<8x256xbf16>
    %c0_43 = arith.constant 0 : index
    %c0_44 = arith.constant 0 : index
    %117 = vector.load %arg3[%c0_43, %c0_44] : memref<256x1024xbf16, #tpu.memory_space<vmem>>, vector<256x1024xbf16>
    %cst_45 = arith.constant dense<0.000000e+00> : vector<8x1024xf32>
    %118 = tpu.matmul %116, %117, %cst_45 {dimension_numbers = #tpu.dot_dimension_numbers<[1], [0], [0], [1], [0, 0, 1, 1], [], []>} : vector<8x256xbf16>, vector<256x1024xbf16>, vector<8x1024xf32> -> vector<8x1024xf32>
    %c8_i32_46 = arith.constant 8 : i32
    %119 = arith.muli %c2_i32, %c8_i32_46 : i32
    %120 = vector.extract_strided_slice %118 {offsets = [0, 0], sizes = [8, 512], strides = [1, 1]} : vector<8x1024xf32> to vector<8x512xf32>
    %121 = arith.index_cast %119 : i32 to index
    %c0_47 = arith.constant 0 : index
    %122 = vector.load %arg14[%121, %c0_47] : memref<160x512xf32, #tpu.memory_space<vmem>>, vector<8x512xf32>
    %123 = arith.addf %120, %122 : vector<8x512xf32>
    %124 = vector.extract_strided_slice %118 {offsets = [0, 512], sizes = [8, 512], strides = [1, 1]} : vector<8x1024xf32> to vector<8x512xf32>
    %125 = vector.broadcast %7 : vector<1x512xf32> to vector<8x512xf32>
    %126 = arith.addf %124, %125 : vector<8x512xf32>
    %127 = vector.extract_strided_slice %123 {offsets = [0, 0], sizes = [8, 128], strides = [1, 1]} : vector<8x512xf32> to vector<8x128xf32>
    %cst_48 = arith.constant 5.000000e-01 : f32
    %128 = vector.broadcast %cst_48 : f32 to vector<8x128xf32>
    %129 = arith.mulf %128, %127 : vector<8x128xf32>
    %130 = math.tanh %129 : vector<8x128xf32>
    %cst_49 = arith.constant 1.000000e+00 : f32
    %131 = vector.broadcast %cst_49 : f32 to vector<8x128xf32>
    %132 = arith.addf %130, %131 : vector<8x128xf32>
    %cst_50 = arith.constant 5.000000e-01 : f32
    %133 = vector.broadcast %cst_50 : f32 to vector<8x128xf32>
    %134 = arith.mulf %133, %132 : vector<8x128xf32>
    %135 = vector.extract_strided_slice %123 {offsets = [0, 128], sizes = [8, 128], strides = [1, 1]} : vector<8x512xf32> to vector<8x128xf32>
    %cst_51 = arith.constant 5.000000e-01 : f32
    %136 = vector.broadcast %cst_51 : f32 to vector<8x128xf32>
    %137 = arith.mulf %136, %135 : vector<8x128xf32>
    %138 = math.tanh %137 : vector<8x128xf32>
    %cst_52 = arith.constant 1.000000e+00 : f32
    %139 = vector.broadcast %cst_52 : f32 to vector<8x128xf32>
    %140 = arith.addf %138, %139 : vector<8x128xf32>
    %cst_53 = arith.constant 5.000000e-01 : f32
    %141 = vector.broadcast %cst_53 : f32 to vector<8x128xf32>
    %142 = arith.mulf %141, %140 : vector<8x128xf32>
    %143 = vector.extract_strided_slice %123 {offsets = [0, 256], sizes = [8, 128], strides = [1, 1]} : vector<8x512xf32> to vector<8x128xf32>
    %144 = math.tanh %143 : vector<8x128xf32>
    %145 = vector.extract_strided_slice %123 {offsets = [0, 384], sizes = [8, 128], strides = [1, 1]} : vector<8x512xf32> to vector<8x128xf32>
    %cst_54 = arith.constant 5.000000e-01 : f32
    %146 = vector.broadcast %cst_54 : f32 to vector<8x128xf32>
    %147 = arith.mulf %146, %145 : vector<8x128xf32>
    %148 = math.tanh %147 : vector<8x128xf32>
    %cst_55 = arith.constant 1.000000e+00 : f32
    %149 = vector.broadcast %cst_55 : f32 to vector<8x128xf32>
    %150 = arith.addf %148, %149 : vector<8x128xf32>
    %cst_56 = arith.constant 5.000000e-01 : f32
    %151 = vector.broadcast %cst_56 : f32 to vector<8x128xf32>
    %152 = arith.mulf %151, %150 : vector<8x128xf32>
    %153 = arith.mulf %142, %81 : vector<8x128xf32>
    %154 = arith.mulf %134, %144 : vector<8x128xf32>
    %155 = arith.addf %153, %154 : vector<8x128xf32>
    %156 = math.tanh %155 : vector<8x128xf32>
    %157 = arith.mulf %152, %156 : vector<8x128xf32>
    %158 = vector.extract_strided_slice %126 {offsets = [0, 0], sizes = [8, 128], strides = [1, 1]} : vector<8x512xf32> to vector<8x128xf32>
    %cst_57 = arith.constant 5.000000e-01 : f32
    %159 = vector.broadcast %cst_57 : f32 to vector<8x128xf32>
    %160 = arith.mulf %159, %158 : vector<8x128xf32>
    %161 = math.tanh %160 : vector<8x128xf32>
    %cst_58 = arith.constant 1.000000e+00 : f32
    %162 = vector.broadcast %cst_58 : f32 to vector<8x128xf32>
    %163 = arith.addf %161, %162 : vector<8x128xf32>
    %cst_59 = arith.constant 5.000000e-01 : f32
    %164 = vector.broadcast %cst_59 : f32 to vector<8x128xf32>
    %165 = arith.mulf %164, %163 : vector<8x128xf32>
    %166 = vector.extract_strided_slice %126 {offsets = [0, 128], sizes = [8, 128], strides = [1, 1]} : vector<8x512xf32> to vector<8x128xf32>
    %cst_60 = arith.constant 5.000000e-01 : f32
    %167 = vector.broadcast %cst_60 : f32 to vector<8x128xf32>
    %168 = arith.mulf %167, %166 : vector<8x128xf32>
    %169 = math.tanh %168 : vector<8x128xf32>
    %cst_61 = arith.constant 1.000000e+00 : f32
    %170 = vector.broadcast %cst_61 : f32 to vector<8x128xf32>
    %171 = arith.addf %169, %170 : vector<8x128xf32>
    %cst_62 = arith.constant 5.000000e-01 : f32
    %172 = vector.broadcast %cst_62 : f32 to vector<8x128xf32>
    %173 = arith.mulf %172, %171 : vector<8x128xf32>
    %174 = vector.extract_strided_slice %126 {offsets = [0, 256], sizes = [8, 128], strides = [1, 1]} : vector<8x512xf32> to vector<8x128xf32>
    %175 = math.tanh %174 : vector<8x128xf32>
    %176 = vector.extract_strided_slice %126 {offsets = [0, 384], sizes = [8, 128], strides = [1, 1]} : vector<8x512xf32> to vector<8x128xf32>
    %cst_63 = arith.constant 5.000000e-01 : f32
    %177 = vector.broadcast %cst_63 : f32 to vector<8x128xf32>
    %178 = arith.mulf %177, %176 : vector<8x128xf32>
    %179 = math.tanh %178 : vector<8x128xf32>
    %cst_64 = arith.constant 1.000000e+00 : f32
    %180 = vector.broadcast %cst_64 : f32 to vector<8x128xf32>
    %181 = arith.addf %179, %180 : vector<8x128xf32>
    %cst_65 = arith.constant 5.000000e-01 : f32
    %182 = vector.broadcast %cst_65 : f32 to vector<8x128xf32>
    %183 = arith.mulf %182, %181 : vector<8x128xf32>
    %184 = arith.mulf %173, %112 : vector<8x128xf32>
    %185 = arith.mulf %165, %175 : vector<8x128xf32>
    %186 = arith.addf %184, %185 : vector<8x128xf32>
    %187 = math.tanh %186 : vector<8x128xf32>
    %188 = arith.mulf %183, %187 : vector<8x128xf32>
    %c3_i32 = arith.constant 3 : i32
    %189 = tpu.concatenate %157, %188 in 1 : vector<8x128xf32>, vector<8x128xf32> -> vector<8x256xf32>
    %190 = arith.truncf %189 : vector<8x256xf32> to vector<8x256xbf16>
    %c0_66 = arith.constant 0 : index
    %c0_67 = arith.constant 0 : index
    %191 = vector.load %arg3[%c0_66, %c0_67] : memref<256x1024xbf16, #tpu.memory_space<vmem>>, vector<256x1024xbf16>
    %cst_68 = arith.constant dense<0.000000e+00> : vector<8x1024xf32>
    %192 = tpu.matmul %190, %191, %cst_68 {dimension_numbers = #tpu.dot_dimension_numbers<[1], [0], [0], [1], [0, 0, 1, 1], [], []>} : vector<8x256xbf16>, vector<256x1024xbf16>, vector<8x1024xf32> -> vector<8x1024xf32>
    %c8_i32_69 = arith.constant 8 : i32
    %193 = arith.muli %c3_i32, %c8_i32_69 : i32
    %194 = vector.extract_strided_slice %192 {offsets = [0, 0], sizes = [8, 512], strides = [1, 1]} : vector<8x1024xf32> to vector<8x512xf32>
    %195 = arith.index_cast %193 : i32 to index
    %c0_70 = arith.constant 0 : index
    %196 = vector.load %arg14[%195, %c0_70] : memref<160x512xf32, #tpu.memory_space<vmem>>, vector<8x512xf32>
    %197 = arith.addf %194, %196 : vector<8x512xf32>
    %198 = vector.extract_strided_slice %192 {offsets = [0, 512], sizes = [8, 512], strides = [1, 1]} : vector<8x1024xf32> to vector<8x512xf32>
    %199 = vector.broadcast %7 : vector<1x512xf32> to vector<8x512xf32>
    %200 = arith.addf %198, %199 : vector<8x512xf32>
    %201 = vector.extract_strided_slice %197 {offsets = [0, 0], sizes = [8, 128], strides = [1, 1]} : vector<8x512xf32> to vector<8x128xf32>
    %cst_71 = arith.constant 5.000000e-01 : f32
    %202 = vector.broadcast %cst_71 : f32 to vector<8x128xf32>
    %203 = arith.mulf %202, %201 : vector<8x128xf32>
    %204 = math.tanh %203 : vector<8x128xf32>
    %cst_72 = arith.constant 1.000000e+00 : f32
    %205 = vector.broadcast %cst_72 : f32 to vector<8x128xf32>
    %206 = arith.addf %204, %205 : vector<8x128xf32>
    %cst_73 = arith.constant 5.000000e-01 : f32
    %207 = vector.broadcast %cst_73 : f32 to vector<8x128xf32>
    %208 = arith.mulf %207, %206 : vector<8x128xf32>
    %209 = vector.extract_strided_slice %197 {offsets = [0, 128], sizes = [8, 128], strides = [1, 1]} : vector<8x512xf32> to vector<8x128xf32>
    %cst_74 = arith.constant 5.000000e-01 : f32
    %210 = vector.broadcast %cst_74 : f32 to vector<8x128xf32>
    %211 = arith.mulf %210, %209 : vector<8x128xf32>
    %212 = math.tanh %211 : vector<8x128xf32>
    %cst_75 = arith.constant 1.000000e+00 : f32
    %213 = vector.broadcast %cst_75 : f32 to vector<8x128xf32>
    %214 = arith.addf %212, %213 : vector<8x128xf32>
    %cst_76 = arith.constant 5.000000e-01 : f32
    %215 = vector.broadcast %cst_76 : f32 to vector<8x128xf32>
    %216 = arith.mulf %215, %214 : vector<8x128xf32>
    %217 = vector.extract_strided_slice %197 {offsets = [0, 256], sizes = [8, 128], strides = [1, 1]} : vector<8x512xf32> to vector<8x128xf32>
    %218 = math.tanh %217 : vector<8x128xf32>
    %219 = vector.extract_strided_slice %197 {offsets = [0, 384], sizes = [8, 128], strides = [1, 1]} : vector<8x512xf32> to vector<8x128xf32>
    %cst_77 = arith.constant 5.000000e-01 : f32
    %220 = vector.broadcast %cst_77 : f32 to vector<8x128xf32>
    %221 = arith.mulf %220, %219 : vector<8x128xf32>
    %222 = math.tanh %221 : vector<8x128xf32>
    %cst_78 = arith.constant 1.000000e+00 : f32
    %223 = vector.broadcast %cst_78 : f32 to vector<8x128xf32>
    %224 = arith.addf %222, %223 : vector<8x128xf32>
    %cst_79 = arith.constant 5.000000e-01 : f32
    %225 = vector.broadcast %cst_79 : f32 to vector<8x128xf32>
    %226 = arith.mulf %225, %224 : vector<8x128xf32>
    %227 = arith.mulf %216, %155 : vector<8x128xf32>
    %228 = arith.mulf %208, %218 : vector<8x128xf32>
    %229 = arith.addf %227, %228 : vector<8x128xf32>
    %230 = math.tanh %229 : vector<8x128xf32>
    %231 = arith.mulf %226, %230 : vector<8x128xf32>
    %232 = vector.extract_strided_slice %200 {offsets = [0, 0], sizes = [8, 128], strides = [1, 1]} : vector<8x512xf32> to vector<8x128xf32>
    %cst_80 = arith.constant 5.000000e-01 : f32
    %233 = vector.broadcast %cst_80 : f32 to vector<8x128xf32>
    %234 = arith.mulf %233, %232 : vector<8x128xf32>
    %235 = math.tanh %234 : vector<8x128xf32>
    %cst_81 = arith.constant 1.000000e+00 : f32
    %236 = vector.broadcast %cst_81 : f32 to vector<8x128xf32>
    %237 = arith.addf %235, %236 : vector<8x128xf32>
    %cst_82 = arith.constant 5.000000e-01 : f32
    %238 = vector.broadcast %cst_82 : f32 to vector<8x128xf32>
    %239 = arith.mulf %238, %237 : vector<8x128xf32>
    %240 = vector.extract_strided_slice %200 {offsets = [0, 128], sizes = [8, 128], strides = [1, 1]} : vector<8x512xf32> to vector<8x128xf32>
    %cst_83 = arith.constant 5.000000e-01 : f32
    %241 = vector.broadcast %cst_83 : f32 to vector<8x128xf32>
    %242 = arith.mulf %241, %240 : vector<8x128xf32>
    %243 = math.tanh %242 : vector<8x128xf32>
    %cst_84 = arith.constant 1.000000e+00 : f32
    %244 = vector.broadcast %cst_84 : f32 to vector<8x128xf32>
    %245 = arith.addf %243, %244 : vector<8x128xf32>
    %cst_85 = arith.constant 5.000000e-01 : f32
    %246 = vector.broadcast %cst_85 : f32 to vector<8x128xf32>
    %247 = arith.mulf %246, %245 : vector<8x128xf32>
    %248 = vector.extract_strided_slice %200 {offsets = [0, 256], sizes = [8, 128], strides = [1, 1]} : vector<8x512xf32> to vector<8x128xf32>
    %249 = math.tanh %248 : vector<8x128xf32>
    %250 = vector.extract_strided_slice %200 {offsets = [0, 384], sizes = [8, 128], strides = [1, 1]} : vector<8x512xf32> to vector<8x128xf32>
    %cst_86 = arith.constant 5.000000e-01 : f32
    %251 = vector.broadcast %cst_86 : f32 to vector<8x128xf32>
    %252 = arith.mulf %251, %250 : vector<8x128xf32>
    %253 = math.tanh %252 : vector<8x128xf32>
    %cst_87 = arith.constant 1.000000e+00 : f32
    %254 = vector.broadcast %cst_87 : f32 to vector<8x128xf32>
    %255 = arith.addf %253, %254 : vector<8x128xf32>
    %cst_88 = arith.constant 5.000000e-01 : f32
    %256 = vector.broadcast %cst_88 : f32 to vector<8x128xf32>
    %257 = arith.mulf %256, %255 : vector<8x128xf32>
    %258 = arith.mulf %247, %186 : vector<8x128xf32>
    %259 = arith.mulf %239, %249 : vector<8x128xf32>
    %260 = arith.addf %258, %259 : vector<8x128xf32>
    %261 = math.tanh %260 : vector<8x128xf32>
    %262 = arith.mulf %257, %261 : vector<8x128xf32>
    %c4_i32 = arith.constant 4 : i32
    %263 = tpu.concatenate %231, %262 in 1 : vector<8x128xf32>, vector<8x128xf32> -> vector<8x256xf32>
    %264 = arith.truncf %263 : vector<8x256xf32> to vector<8x256xbf16>
    %c0_89 = arith.constant 0 : index
    %c0_90 = arith.constant 0 : index
    %265 = vector.load %arg3[%c0_89, %c0_90] : memref<256x1024xbf16, #tpu.memory_space<vmem>>, vector<256x1024xbf16>
    %cst_91 = arith.constant dense<0.000000e+00> : vector<8x1024xf32>
    %266 = tpu.matmul %264, %265, %cst_91 {dimension_numbers = #tpu.dot_dimension_numbers<[1], [0], [0], [1], [0, 0, 1, 1], [], []>} : vector<8x256xbf16>, vector<256x1024xbf16>, vector<8x1024xf32> -> vector<8x1024xf32>
    %c8_i32_92 = arith.constant 8 : i32
    %267 = arith.muli %c4_i32, %c8_i32_92 : i32
    %268 = vector.extract_strided_slice %266 {offsets = [0, 0], sizes = [8, 512], strides = [1, 1]} : vector<8x1024xf32> to vector<8x512xf32>
    %269 = arith.index_cast %267 : i32 to index
    %c0_93 = arith.constant 0 : index
    %270 = vector.load %arg14[%269, %c0_93] : memref<160x512xf32, #tpu.memory_space<vmem>>, vector<8x512xf32>
    %271 = arith.addf %268, %270 : vector<8x512xf32>
    %272 = vector.extract_strided_slice %266 {offsets = [0, 512], sizes = [8, 512], strides = [1, 1]} : vector<8x1024xf32> to vector<8x512xf32>
    %273 = vector.broadcast %7 : vector<1x512xf32> to vector<8x512xf32>
    %274 = arith.addf %272, %273 : vector<8x512xf32>
    %275 = vector.extract_strided_slice %271 {offsets = [0, 0], sizes = [8, 128], strides = [1, 1]} : vector<8x512xf32> to vector<8x128xf32>
    %cst_94 = arith.constant 5.000000e-01 : f32
    %276 = vector.broadcast %cst_94 : f32 to vector<8x128xf32>
    %277 = arith.mulf %276, %275 : vector<8x128xf32>
    %278 = math.tanh %277 : vector<8x128xf32>
    %cst_95 = arith.constant 1.000000e+00 : f32
    %279 = vector.broadcast %cst_95 : f32 to vector<8x128xf32>
    %280 = arith.addf %278, %279 : vector<8x128xf32>
    %cst_96 = arith.constant 5.000000e-01 : f32
    %281 = vector.broadcast %cst_96 : f32 to vector<8x128xf32>
    %282 = arith.mulf %281, %280 : vector<8x128xf32>
    %283 = vector.extract_strided_slice %271 {offsets = [0, 128], sizes = [8, 128], strides = [1, 1]} : vector<8x512xf32> to vector<8x128xf32>
    %cst_97 = arith.constant 5.000000e-01 : f32
    %284 = vector.broadcast %cst_97 : f32 to vector<8x128xf32>
    %285 = arith.mulf %284, %283 : vector<8x128xf32>
    %286 = math.tanh %285 : vector<8x128xf32>
    %cst_98 = arith.constant 1.000000e+00 : f32
    %287 = vector.broadcast %cst_98 : f32 to vector<8x128xf32>
    %288 = arith.addf %286, %287 : vector<8x128xf32>
    %cst_99 = arith.constant 5.000000e-01 : f32
    %289 = vector.broadcast %cst_99 : f32 to vector<8x128xf32>
    %290 = arith.mulf %289, %288 : vector<8x128xf32>
    %291 = vector.extract_strided_slice %271 {offsets = [0, 256], sizes = [8, 128], strides = [1, 1]} : vector<8x512xf32> to vector<8x128xf32>
    %292 = math.tanh %291 : vector<8x128xf32>
    %293 = vector.extract_strided_slice %271 {offsets = [0, 384], sizes = [8, 128], strides = [1, 1]} : vector<8x512xf32> to vector<8x128xf32>
    %cst_100 = arith.constant 5.000000e-01 : f32
    %294 = vector.broadcast %cst_100 : f32 to vector<8x128xf32>
    %295 = arith.mulf %294, %293 : vector<8x128xf32>
    %296 = math.tanh %295 : vector<8x128xf32>
    %cst_101 = arith.constant 1.000000e+00 : f32
    %297 = vector.broadcast %cst_101 : f32 to vector<8x128xf32>
    %298 = arith.addf %296, %297 : vector<8x128xf32>
    %cst_102 = arith.constant 5.000000e-01 : f32
    %299 = vector.broadcast %cst_102 : f32 to vector<8x128xf32>
    %300 = arith.mulf %299, %298 : vector<8x128xf32>
    %301 = arith.mulf %290, %229 : vector<8x128xf32>
    %302 = arith.mulf %282, %292 : vector<8x128xf32>
    %303 = arith.addf %301, %302 : vector<8x128xf32>
    %304 = math.tanh %303 : vector<8x128xf32>
    %305 = arith.mulf %300, %304 : vector<8x128xf32>
    %306 = vector.extract_strided_slice %274 {offsets = [0, 0], sizes = [8, 128], strides = [1, 1]} : vector<8x512xf32> to vector<8x128xf32>
    %cst_103 = arith.constant 5.000000e-01 : f32
    %307 = vector.broadcast %cst_103 : f32 to vector<8x128xf32>
    %308 = arith.mulf %307, %306 : vector<8x128xf32>
    %309 = math.tanh %308 : vector<8x128xf32>
    %cst_104 = arith.constant 1.000000e+00 : f32
    %310 = vector.broadcast %cst_104 : f32 to vector<8x128xf32>
    %311 = arith.addf %309, %310 : vector<8x128xf32>
    %cst_105 = arith.constant 5.000000e-01 : f32
    %312 = vector.broadcast %cst_105 : f32 to vector<8x128xf32>
    %313 = arith.mulf %312, %311 : vector<8x128xf32>
    %314 = vector.extract_strided_slice %274 {offsets = [0, 128], sizes = [8, 128], strides = [1, 1]} : vector<8x512xf32> to vector<8x128xf32>
    %cst_106 = arith.constant 5.000000e-01 : f32
    %315 = vector.broadcast %cst_106 : f32 to vector<8x128xf32>
    %316 = arith.mulf %315, %314 : vector<8x128xf32>
    %317 = math.tanh %316 : vector<8x128xf32>
    %cst_107 = arith.constant 1.000000e+00 : f32
    %318 = vector.broadcast %cst_107 : f32 to vector<8x128xf32>
    %319 = arith.addf %317, %318 : vector<8x128xf32>
    %cst_108 = arith.constant 5.000000e-01 : f32
    %320 = vector.broadcast %cst_108 : f32 to vector<8x128xf32>
    %321 = arith.mulf %320, %319 : vector<8x128xf32>
    %322 = vector.extract_strided_slice %274 {offsets = [0, 256], sizes = [8, 128], strides = [1, 1]} : vector<8x512xf32> to vector<8x128xf32>
    %323 = math.tanh %322 : vector<8x128xf32>
    %324 = vector.extract_strided_slice %274 {offsets = [0, 384], sizes = [8, 128], strides = [1, 1]} : vector<8x512xf32> to vector<8x128xf32>
    %cst_109 = arith.constant 5.000000e-01 : f32
    %325 = vector.broadcast %cst_109 : f32 to vector<8x128xf32>
    %326 = arith.mulf %325, %324 : vector<8x128xf32>
    %327 = math.tanh %326 : vector<8x128xf32>
    %cst_110 = arith.constant 1.000000e+00 : f32
    %328 = vector.broadcast %cst_110 : f32 to vector<8x128xf32>
    %329 = arith.addf %327, %328 : vector<8x128xf32>
    %cst_111 = arith.constant 5.000000e-01 : f32
    %330 = vector.broadcast %cst_111 : f32 to vector<8x128xf32>
    %331 = arith.mulf %330, %329 : vector<8x128xf32>
    %332 = arith.mulf %321, %260 : vector<8x128xf32>
    %333 = arith.mulf %313, %323 : vector<8x128xf32>
    %334 = arith.addf %332, %333 : vector<8x128xf32>
    %335 = math.tanh %334 : vector<8x128xf32>
    %336 = arith.mulf %331, %335 : vector<8x128xf32>
    %c5_i32 = arith.constant 5 : i32
    %337 = tpu.concatenate %305, %336 in 1 : vector<8x128xf32>, vector<8x128xf32> -> vector<8x256xf32>
    %338 = arith.truncf %337 : vector<8x256xf32> to vector<8x256xbf16>
    %c0_112 = arith.constant 0 : index
    %c0_113 = arith.constant 0 : index
    %339 = vector.load %arg3[%c0_112, %c0_113] : memref<256x1024xbf16, #tpu.memory_space<vmem>>, vector<256x1024xbf16>
    %cst_114 = arith.constant dense<0.000000e+00> : vector<8x1024xf32>
    %340 = tpu.matmul %338, %339, %cst_114 {dimension_numbers = #tpu.dot_dimension_numbers<[1], [0], [0], [1], [0, 0, 1, 1], [], []>} : vector<8x256xbf16>, vector<256x1024xbf16>, vector<8x1024xf32> -> vector<8x1024xf32>
    %c8_i32_115 = arith.constant 8 : i32
    %341 = arith.muli %c5_i32, %c8_i32_115 : i32
    %342 = vector.extract_strided_slice %340 {offsets = [0, 0], sizes = [8, 512], strides = [1, 1]} : vector<8x1024xf32> to vector<8x512xf32>
    %343 = arith.index_cast %341 : i32 to index
    %c0_116 = arith.constant 0 : index
    %344 = vector.load %arg14[%343, %c0_116] : memref<160x512xf32, #tpu.memory_space<vmem>>, vector<8x512xf32>
    %345 = arith.addf %342, %344 : vector<8x512xf32>
    %346 = vector.extract_strided_slice %340 {offsets = [0, 512], sizes = [8, 512], strides = [1, 1]} : vector<8x1024xf32> to vector<8x512xf32>
    %347 = vector.broadcast %7 : vector<1x512xf32> to vector<8x512xf32>
    %348 = arith.addf %346, %347 : vector<8x512xf32>
    %349 = vector.extract_strided_slice %345 {offsets = [0, 0], sizes = [8, 128], strides = [1, 1]} : vector<8x512xf32> to vector<8x128xf32>
    %cst_117 = arith.constant 5.000000e-01 : f32
    %350 = vector.broadcast %cst_117 : f32 to vector<8x128xf32>
    %351 = arith.mulf %350, %349 : vector<8x128xf32>
    %352 = math.tanh %351 : vector<8x128xf32>
    %cst_118 = arith.constant 1.000000e+00 : f32
    %353 = vector.broadcast %cst_118 : f32 to vector<8x128xf32>
    %354 = arith.addf %352, %353 : vector<8x128xf32>
    %cst_119 = arith.constant 5.000000e-01 : f32
    %355 = vector.broadcast %cst_119 : f32 to vector<8x128xf32>
    %356 = arith.mulf %355, %354 : vector<8x128xf32>
    %357 = vector.extract_strided_slice %345 {offsets = [0, 128], sizes = [8, 128], strides = [1, 1]} : vector<8x512xf32> to vector<8x128xf32>
    %cst_120 = arith.constant 5.000000e-01 : f32
    %358 = vector.broadcast %cst_120 : f32 to vector<8x128xf32>
    %359 = arith.mulf %358, %357 : vector<8x128xf32>
    %360 = math.tanh %359 : vector<8x128xf32>
    %cst_121 = arith.constant 1.000000e+00 : f32
    %361 = vector.broadcast %cst_121 : f32 to vector<8x128xf32>
    %362 = arith.addf %360, %361 : vector<8x128xf32>
    %cst_122 = arith.constant 5.000000e-01 : f32
    %363 = vector.broadcast %cst_122 : f32 to vector<8x128xf32>
    %364 = arith.mulf %363, %362 : vector<8x128xf32>
    %365 = vector.extract_strided_slice %345 {offsets = [0, 256], sizes = [8, 128], strides = [1, 1]} : vector<8x512xf32> to vector<8x128xf32>
    %366 = math.tanh %365 : vector<8x128xf32>
    %367 = vector.extract_strided_slice %345 {offsets = [0, 384], sizes = [8, 128], strides = [1, 1]} : vector<8x512xf32> to vector<8x128xf32>
    %cst_123 = arith.constant 5.000000e-01 : f32
    %368 = vector.broadcast %cst_123 : f32 to vector<8x128xf32>
    %369 = arith.mulf %368, %367 : vector<8x128xf32>
    %370 = math.tanh %369 : vector<8x128xf32>
    %cst_124 = arith.constant 1.000000e+00 : f32
    %371 = vector.broadcast %cst_124 : f32 to vector<8x128xf32>
    %372 = arith.addf %370, %371 : vector<8x128xf32>
    %cst_125 = arith.constant 5.000000e-01 : f32
    %373 = vector.broadcast %cst_125 : f32 to vector<8x128xf32>
    %374 = arith.mulf %373, %372 : vector<8x128xf32>
    %375 = arith.mulf %364, %303 : vector<8x128xf32>
    %376 = arith.mulf %356, %366 : vector<8x128xf32>
    %377 = arith.addf %375, %376 : vector<8x128xf32>
    %378 = math.tanh %377 : vector<8x128xf32>
    %379 = arith.mulf %374, %378 : vector<8x128xf32>
    %380 = vector.extract_strided_slice %348 {offsets = [0, 0], sizes = [8, 128], strides = [1, 1]} : vector<8x512xf32> to vector<8x128xf32>
    %cst_126 = arith.constant 5.000000e-01 : f32
    %381 = vector.broadcast %cst_126 : f32 to vector<8x128xf32>
    %382 = arith.mulf %381, %380 : vector<8x128xf32>
    %383 = math.tanh %382 : vector<8x128xf32>
    %cst_127 = arith.constant 1.000000e+00 : f32
    %384 = vector.broadcast %cst_127 : f32 to vector<8x128xf32>
    %385 = arith.addf %383, %384 : vector<8x128xf32>
    %cst_128 = arith.constant 5.000000e-01 : f32
    %386 = vector.broadcast %cst_128 : f32 to vector<8x128xf32>
    %387 = arith.mulf %386, %385 : vector<8x128xf32>
    %388 = vector.extract_strided_slice %348 {offsets = [0, 128], sizes = [8, 128], strides = [1, 1]} : vector<8x512xf32> to vector<8x128xf32>
    %cst_129 = arith.constant 5.000000e-01 : f32
    %389 = vector.broadcast %cst_129 : f32 to vector<8x128xf32>
    %390 = arith.mulf %389, %388 : vector<8x128xf32>
    %391 = math.tanh %390 : vector<8x128xf32>
    %cst_130 = arith.constant 1.000000e+00 : f32
    %392 = vector.broadcast %cst_130 : f32 to vector<8x128xf32>
    %393 = arith.addf %391, %392 : vector<8x128xf32>
    %cst_131 = arith.constant 5.000000e-01 : f32
    %394 = vector.broadcast %cst_131 : f32 to vector<8x128xf32>
    %395 = arith.mulf %394, %393 : vector<8x128xf32>
    %396 = vector.extract_strided_slice %348 {offsets = [0, 256], sizes = [8, 128], strides = [1, 1]} : vector<8x512xf32> to vector<8x128xf32>
    %397 = math.tanh %396 : vector<8x128xf32>
    %398 = vector.extract_strided_slice %348 {offsets = [0, 384], sizes = [8, 128], strides = [1, 1]} : vector<8x512xf32> to vector<8x128xf32>
    %cst_132 = arith.constant 5.000000e-01 : f32
    %399 = vector.broadcast %cst_132 : f32 to vector<8x128xf32>
    %400 = arith.mulf %399, %398 : vector<8x128xf32>
    %401 = math.tanh %400 : vector<8x128xf32>
    %cst_133 = arith.constant 1.000000e+00 : f32
    %402 = vector.broadcast %cst_133 : f32 to vector<8x128xf32>
    %403 = arith.addf %401, %402 : vector<8x128xf32>
    %cst_134 = arith.constant 5.000000e-01 : f32
    %404 = vector.broadcast %cst_134 : f32 to vector<8x128xf32>
    %405 = arith.mulf %404, %403 : vector<8x128xf32>
    %406 = arith.mulf %395, %334 : vector<8x128xf32>
    %407 = arith.mulf %387, %397 : vector<8x128xf32>
    %408 = arith.addf %406, %407 : vector<8x128xf32>
    %409 = math.tanh %408 : vector<8x128xf32>
    %410 = arith.mulf %405, %409 : vector<8x128xf32>
    %c6_i32 = arith.constant 6 : i32
    %411 = tpu.concatenate %379, %410 in 1 : vector<8x128xf32>, vector<8x128xf32> -> vector<8x256xf32>
    %412 = arith.truncf %411 : vector<8x256xf32> to vector<8x256xbf16>
    %c0_135 = arith.constant 0 : index
    %c0_136 = arith.constant 0 : index
    %413 = vector.load %arg3[%c0_135, %c0_136] : memref<256x1024xbf16, #tpu.memory_space<vmem>>, vector<256x1024xbf16>
    %cst_137 = arith.constant dense<0.000000e+00> : vector<8x1024xf32>
    %414 = tpu.matmul %412, %413, %cst_137 {dimension_numbers = #tpu.dot_dimension_numbers<[1], [0], [0], [1], [0, 0, 1, 1], [], []>} : vector<8x256xbf16>, vector<256x1024xbf16>, vector<8x1024xf32> -> vector<8x1024xf32>
    %c8_i32_138 = arith.constant 8 : i32
    %415 = arith.muli %c6_i32, %c8_i32_138 : i32
    %416 = vector.extract_strided_slice %414 {offsets = [0, 0], sizes = [8, 512], strides = [1, 1]} : vector<8x1024xf32> to vector<8x512xf32>
    %417 = arith.index_cast %415 : i32 to index
    %c0_139 = arith.constant 0 : index
    %418 = vector.load %arg14[%417, %c0_139] : memref<160x512xf32, #tpu.memory_space<vmem>>, vector<8x512xf32>
    %419 = arith.addf %416, %418 : vector<8x512xf32>
    %420 = vector.extract_strided_slice %414 {offsets = [0, 512], sizes = [8, 512], strides = [1, 1]} : vector<8x1024xf32> to vector<8x512xf32>
    %421 = vector.broadcast %7 : vector<1x512xf32> to vector<8x512xf32>
    %422 = arith.addf %420, %421 : vector<8x512xf32>
    %423 = vector.extract_strided_slice %419 {offsets = [0, 0], sizes = [8, 128], strides = [1, 1]} : vector<8x512xf32> to vector<8x128xf32>
    %cst_140 = arith.constant 5.000000e-01 : f32
    %424 = vector.broadcast %cst_140 : f32 to vector<8x128xf32>
    %425 = arith.mulf %424, %423 : vector<8x128xf32>
    %426 = math.tanh %425 : vector<8x128xf32>
    %cst_141 = arith.constant 1.000000e+00 : f32
    %427 = vector.broadcast %cst_141 : f32 to vector<8x128xf32>
    %428 = arith.addf %426, %427 : vector<8x128xf32>
    %cst_142 = arith.constant 5.000000e-01 : f32
    %429 = vector.broadcast %cst_142 : f32 to vector<8x128xf32>
    %430 = arith.mulf %429, %428 : vector<8x128xf32>
    %431 = vector.extract_strided_slice %419 {offsets = [0, 128], sizes = [8, 128], strides = [1, 1]} : vector<8x512xf32> to vector<8x128xf32>
    %cst_143 = arith.constant 5.000000e-01 : f32
    %432 = vector.broadcast %cst_143 : f32 to vector<8x128xf32>
    %433 = arith.mulf %432, %431 : vector<8x128xf32>
    %434 = math.tanh %433 : vector<8x128xf32>
    %cst_144 = arith.constant 1.000000e+00 : f32
    %435 = vector.broadcast %cst_144 : f32 to vector<8x128xf32>
    %436 = arith.addf %434, %435 : vector<8x128xf32>
    %cst_145 = arith.constant 5.000000e-01 : f32
    %437 = vector.broadcast %cst_145 : f32 to vector<8x128xf32>
    %438 = arith.mulf %437, %436 : vector<8x128xf32>
    %439 = vector.extract_strided_slice %419 {offsets = [0, 256], sizes = [8, 128], strides = [1, 1]} : vector<8x512xf32> to vector<8x128xf32>
    %440 = math.tanh %439 : vector<8x128xf32>
    %441 = vector.extract_strided_slice %419 {offsets = [0, 384], sizes = [8, 128], strides = [1, 1]} : vector<8x512xf32> to vector<8x128xf32>
    %cst_146 = arith.constant 5.000000e-01 : f32
    %442 = vector.broadcast %cst_146 : f32 to vector<8x128xf32>
    %443 = arith.mulf %442, %441 : vector<8x128xf32>
    %444 = math.tanh %443 : vector<8x128xf32>
    %cst_147 = arith.constant 1.000000e+00 : f32
    %445 = vector.broadcast %cst_147 : f32 to vector<8x128xf32>
    %446 = arith.addf %444, %445 : vector<8x128xf32>
    %cst_148 = arith.constant 5.000000e-01 : f32
    %447 = vector.broadcast %cst_148 : f32 to vector<8x128xf32>
    %448 = arith.mulf %447, %446 : vector<8x128xf32>
    %449 = arith.mulf %438, %377 : vector<8x128xf32>
    %450 = arith.mulf %430, %440 : vector<8x128xf32>
    %451 = arith.addf %449, %450 : vector<8x128xf32>
    %452 = math.tanh %451 : vector<8x128xf32>
    %453 = arith.mulf %448, %452 : vector<8x128xf32>
    %454 = vector.extract_strided_slice %422 {offsets = [0, 0], sizes = [8, 128], strides = [1, 1]} : vector<8x512xf32> to vector<8x128xf32>
    %cst_149 = arith.constant 5.000000e-01 : f32
    %455 = vector.broadcast %cst_149 : f32 to vector<8x128xf32>
    %456 = arith.mulf %455, %454 : vector<8x128xf32>
    %457 = math.tanh %456 : vector<8x128xf32>
    %cst_150 = arith.constant 1.000000e+00 : f32
    %458 = vector.broadcast %cst_150 : f32 to vector<8x128xf32>
    %459 = arith.addf %457, %458 : vector<8x128xf32>
    %cst_151 = arith.constant 5.000000e-01 : f32
    %460 = vector.broadcast %cst_151 : f32 to vector<8x128xf32>
    %461 = arith.mulf %460, %459 : vector<8x128xf32>
    %462 = vector.extract_strided_slice %422 {offsets = [0, 128], sizes = [8, 128], strides = [1, 1]} : vector<8x512xf32> to vector<8x128xf32>
    %cst_152 = arith.constant 5.000000e-01 : f32
    %463 = vector.broadcast %cst_152 : f32 to vector<8x128xf32>
    %464 = arith.mulf %463, %462 : vector<8x128xf32>
    %465 = math.tanh %464 : vector<8x128xf32>
    %cst_153 = arith.constant 1.000000e+00 : f32
    %466 = vector.broadcast %cst_153 : f32 to vector<8x128xf32>
    %467 = arith.addf %465, %466 : vector<8x128xf32>
    %cst_154 = arith.constant 5.000000e-01 : f32
    %468 = vector.broadcast %cst_154 : f32 to vector<8x128xf32>
    %469 = arith.mulf %468, %467 : vector<8x128xf32>
    %470 = vector.extract_strided_slice %422 {offsets = [0, 256], sizes = [8, 128], strides = [1, 1]} : vector<8x512xf32> to vector<8x128xf32>
    %471 = math.tanh %470 : vector<8x128xf32>
    %472 = vector.extract_strided_slice %422 {offsets = [0, 384], sizes = [8, 128], strides = [1, 1]} : vector<8x512xf32> to vector<8x128xf32>
    %cst_155 = arith.constant 5.000000e-01 : f32
    %473 = vector.broadcast %cst_155 : f32 to vector<8x128xf32>
    %474 = arith.mulf %473, %472 : vector<8x128xf32>
    %475 = math.tanh %474 : vector<8x128xf32>
    %cst_156 = arith.constant 1.000000e+00 : f32
    %476 = vector.broadcast %cst_156 : f32 to vector<8x128xf32>
    %477 = arith.addf %475, %476 : vector<8x128xf32>
    %cst_157 = arith.constant 5.000000e-01 : f32
    %478 = vector.broadcast %cst_157 : f32 to vector<8x128xf32>
    %479 = arith.mulf %478, %477 : vector<8x128xf32>
    %480 = arith.mulf %469, %408 : vector<8x128xf32>
    %481 = arith.mulf %461, %471 : vector<8x128xf32>
    %482 = arith.addf %480, %481 : vector<8x128xf32>
    %483 = math.tanh %482 : vector<8x128xf32>
    %484 = arith.mulf %479, %483 : vector<8x128xf32>
    %c7_i32 = arith.constant 7 : i32
    %485 = tpu.concatenate %453, %484 in 1 : vector<8x128xf32>, vector<8x128xf32> -> vector<8x256xf32>
    %486 = arith.truncf %485 : vector<8x256xf32> to vector<8x256xbf16>
    %c0_158 = arith.constant 0 : index
    %c0_159 = arith.constant 0 : index
    %487 = vector.load %arg3[%c0_158, %c0_159] : memref<256x1024xbf16, #tpu.memory_space<vmem>>, vector<256x1024xbf16>
    %cst_160 = arith.constant dense<0.000000e+00> : vector<8x1024xf32>
    %488 = tpu.matmul %486, %487, %cst_160 {dimension_numbers = #tpu.dot_dimension_numbers<[1], [0], [0], [1], [0, 0, 1, 1], [], []>} : vector<8x256xbf16>, vector<256x1024xbf16>, vector<8x1024xf32> -> vector<8x1024xf32>
    %c8_i32_161 = arith.constant 8 : i32
    %489 = arith.muli %c7_i32, %c8_i32_161 : i32
    %490 = vector.extract_strided_slice %488 {offsets = [0, 0], sizes = [8, 512], strides = [1, 1]} : vector<8x1024xf32> to vector<8x512xf32>
    %491 = arith.index_cast %489 : i32 to index
    %c0_162 = arith.constant 0 : index
    %492 = vector.load %arg14[%491, %c0_162] : memref<160x512xf32, #tpu.memory_space<vmem>>, vector<8x512xf32>
    %493 = arith.addf %490, %492 : vector<8x512xf32>
    %494 = vector.extract_strided_slice %488 {offsets = [0, 512], sizes = [8, 512], strides = [1, 1]} : vector<8x1024xf32> to vector<8x512xf32>
    %495 = vector.broadcast %7 : vector<1x512xf32> to vector<8x512xf32>
    %496 = arith.addf %494, %495 : vector<8x512xf32>
    %497 = vector.extract_strided_slice %493 {offsets = [0, 0], sizes = [8, 128], strides = [1, 1]} : vector<8x512xf32> to vector<8x128xf32>
    %cst_163 = arith.constant 5.000000e-01 : f32
    %498 = vector.broadcast %cst_163 : f32 to vector<8x128xf32>
    %499 = arith.mulf %498, %497 : vector<8x128xf32>
    %500 = math.tanh %499 : vector<8x128xf32>
    %cst_164 = arith.constant 1.000000e+00 : f32
    %501 = vector.broadcast %cst_164 : f32 to vector<8x128xf32>
    %502 = arith.addf %500, %501 : vector<8x128xf32>
    %cst_165 = arith.constant 5.000000e-01 : f32
    %503 = vector.broadcast %cst_165 : f32 to vector<8x128xf32>
    %504 = arith.mulf %503, %502 : vector<8x128xf32>
    %505 = vector.extract_strided_slice %493 {offsets = [0, 128], sizes = [8, 128], strides = [1, 1]} : vector<8x512xf32> to vector<8x128xf32>
    %cst_166 = arith.constant 5.000000e-01 : f32
    %506 = vector.broadcast %cst_166 : f32 to vector<8x128xf32>
    %507 = arith.mulf %506, %505 : vector<8x128xf32>
    %508 = math.tanh %507 : vector<8x128xf32>
    %cst_167 = arith.constant 1.000000e+00 : f32
    %509 = vector.broadcast %cst_167 : f32 to vector<8x128xf32>
    %510 = arith.addf %508, %509 : vector<8x128xf32>
    %cst_168 = arith.constant 5.000000e-01 : f32
    %511 = vector.broadcast %cst_168 : f32 to vector<8x128xf32>
    %512 = arith.mulf %511, %510 : vector<8x128xf32>
    %513 = vector.extract_strided_slice %493 {offsets = [0, 256], sizes = [8, 128], strides = [1, 1]} : vector<8x512xf32> to vector<8x128xf32>
    %514 = math.tanh %513 : vector<8x128xf32>
    %515 = vector.extract_strided_slice %493 {offsets = [0, 384], sizes = [8, 128], strides = [1, 1]} : vector<8x512xf32> to vector<8x128xf32>
    %cst_169 = arith.constant 5.000000e-01 : f32
    %516 = vector.broadcast %cst_169 : f32 to vector<8x128xf32>
    %517 = arith.mulf %516, %515 : vector<8x128xf32>
    %518 = math.tanh %517 : vector<8x128xf32>
    %cst_170 = arith.constant 1.000000e+00 : f32
    %519 = vector.broadcast %cst_170 : f32 to vector<8x128xf32>
    %520 = arith.addf %518, %519 : vector<8x128xf32>
    %cst_171 = arith.constant 5.000000e-01 : f32
    %521 = vector.broadcast %cst_171 : f32 to vector<8x128xf32>
    %522 = arith.mulf %521, %520 : vector<8x128xf32>
    %523 = arith.mulf %512, %451 : vector<8x128xf32>
    %524 = arith.mulf %504, %514 : vector<8x128xf32>
    %525 = arith.addf %523, %524 : vector<8x128xf32>
    %526 = math.tanh %525 : vector<8x128xf32>
    %527 = arith.mulf %522, %526 : vector<8x128xf32>
    %528 = vector.extract_strided_slice %496 {offsets = [0, 0], sizes = [8, 128], strides = [1, 1]} : vector<8x512xf32> to vector<8x128xf32>
    %cst_172 = arith.constant 5.000000e-01 : f32
    %529 = vector.broadcast %cst_172 : f32 to vector<8x128xf32>
    %530 = arith.mulf %529, %528 : vector<8x128xf32>
    %531 = math.tanh %530 : vector<8x128xf32>
    %cst_173 = arith.constant 1.000000e+00 : f32
    %532 = vector.broadcast %cst_173 : f32 to vector<8x128xf32>
    %533 = arith.addf %531, %532 : vector<8x128xf32>
    %cst_174 = arith.constant 5.000000e-01 : f32
    %534 = vector.broadcast %cst_174 : f32 to vector<8x128xf32>
    %535 = arith.mulf %534, %533 : vector<8x128xf32>
    %536 = vector.extract_strided_slice %496 {offsets = [0, 128], sizes = [8, 128], strides = [1, 1]} : vector<8x512xf32> to vector<8x128xf32>
    %cst_175 = arith.constant 5.000000e-01 : f32
    %537 = vector.broadcast %cst_175 : f32 to vector<8x128xf32>
    %538 = arith.mulf %537, %536 : vector<8x128xf32>
    %539 = math.tanh %538 : vector<8x128xf32>
    %cst_176 = arith.constant 1.000000e+00 : f32
    %540 = vector.broadcast %cst_176 : f32 to vector<8x128xf32>
    %541 = arith.addf %539, %540 : vector<8x128xf32>
    %cst_177 = arith.constant 5.000000e-01 : f32
    %542 = vector.broadcast %cst_177 : f32 to vector<8x128xf32>
    %543 = arith.mulf %542, %541 : vector<8x128xf32>
    %544 = vector.extract_strided_slice %496 {offsets = [0, 256], sizes = [8, 128], strides = [1, 1]} : vector<8x512xf32> to vector<8x128xf32>
    %545 = math.tanh %544 : vector<8x128xf32>
    %546 = vector.extract_strided_slice %496 {offsets = [0, 384], sizes = [8, 128], strides = [1, 1]} : vector<8x512xf32> to vector<8x128xf32>
    %cst_178 = arith.constant 5.000000e-01 : f32
    %547 = vector.broadcast %cst_178 : f32 to vector<8x128xf32>
    %548 = arith.mulf %547, %546 : vector<8x128xf32>
    %549 = math.tanh %548 : vector<8x128xf32>
    %cst_179 = arith.constant 1.000000e+00 : f32
    %550 = vector.broadcast %cst_179 : f32 to vector<8x128xf32>
    %551 = arith.addf %549, %550 : vector<8x128xf32>
    %cst_180 = arith.constant 5.000000e-01 : f32
    %552 = vector.broadcast %cst_180 : f32 to vector<8x128xf32>
    %553 = arith.mulf %552, %551 : vector<8x128xf32>
    %554 = arith.mulf %543, %482 : vector<8x128xf32>
    %555 = arith.mulf %535, %545 : vector<8x128xf32>
    %556 = arith.addf %554, %555 : vector<8x128xf32>
    %557 = math.tanh %556 : vector<8x128xf32>
    %558 = arith.mulf %553, %557 : vector<8x128xf32>
    %c8_i32_181 = arith.constant 8 : i32
    %559 = tpu.concatenate %527, %558 in 1 : vector<8x128xf32>, vector<8x128xf32> -> vector<8x256xf32>
    %560 = arith.truncf %559 : vector<8x256xf32> to vector<8x256xbf16>
    %c0_182 = arith.constant 0 : index
    %c0_183 = arith.constant 0 : index
    %561 = vector.load %arg3[%c0_182, %c0_183] : memref<256x1024xbf16, #tpu.memory_space<vmem>>, vector<256x1024xbf16>
    %cst_184 = arith.constant dense<0.000000e+00> : vector<8x1024xf32>
    %562 = tpu.matmul %560, %561, %cst_184 {dimension_numbers = #tpu.dot_dimension_numbers<[1], [0], [0], [1], [0, 0, 1, 1], [], []>} : vector<8x256xbf16>, vector<256x1024xbf16>, vector<8x1024xf32> -> vector<8x1024xf32>
    %c8_i32_185 = arith.constant 8 : i32
    %563 = arith.muli %c8_i32_181, %c8_i32_185 : i32
    %564 = vector.extract_strided_slice %562 {offsets = [0, 0], sizes = [8, 512], strides = [1, 1]} : vector<8x1024xf32> to vector<8x512xf32>
    %565 = arith.index_cast %563 : i32 to index
    %c0_186 = arith.constant 0 : index
    %566 = vector.load %arg14[%565, %c0_186] : memref<160x512xf32, #tpu.memory_space<vmem>>, vector<8x512xf32>
    %567 = arith.addf %564, %566 : vector<8x512xf32>
    %568 = vector.extract_strided_slice %562 {offsets = [0, 512], sizes = [8, 512], strides = [1, 1]} : vector<8x1024xf32> to vector<8x512xf32>
    %569 = vector.broadcast %7 : vector<1x512xf32> to vector<8x512xf32>
    %570 = arith.addf %568, %569 : vector<8x512xf32>
    %571 = vector.extract_strided_slice %567 {offsets = [0, 0], sizes = [8, 128], strides = [1, 1]} : vector<8x512xf32> to vector<8x128xf32>
    %cst_187 = arith.constant 5.000000e-01 : f32
    %572 = vector.broadcast %cst_187 : f32 to vector<8x128xf32>
    %573 = arith.mulf %572, %571 : vector<8x128xf32>
    %574 = math.tanh %573 : vector<8x128xf32>
    %cst_188 = arith.constant 1.000000e+00 : f32
    %575 = vector.broadcast %cst_188 : f32 to vector<8x128xf32>
    %576 = arith.addf %574, %575 : vector<8x128xf32>
    %cst_189 = arith.constant 5.000000e-01 : f32
    %577 = vector.broadcast %cst_189 : f32 to vector<8x128xf32>
    %578 = arith.mulf %577, %576 : vector<8x128xf32>
    %579 = vector.extract_strided_slice %567 {offsets = [0, 128], sizes = [8, 128], strides = [1, 1]} : vector<8x512xf32> to vector<8x128xf32>
    %cst_190 = arith.constant 5.000000e-01 : f32
    %580 = vector.broadcast %cst_190 : f32 to vector<8x128xf32>
    %581 = arith.mulf %580, %579 : vector<8x128xf32>
    %582 = math.tanh %581 : vector<8x128xf32>
    %cst_191 = arith.constant 1.000000e+00 : f32
    %583 = vector.broadcast %cst_191 : f32 to vector<8x128xf32>
    %584 = arith.addf %582, %583 : vector<8x128xf32>
    %cst_192 = arith.constant 5.000000e-01 : f32
    %585 = vector.broadcast %cst_192 : f32 to vector<8x128xf32>
    %586 = arith.mulf %585, %584 : vector<8x128xf32>
    %587 = vector.extract_strided_slice %567 {offsets = [0, 256], sizes = [8, 128], strides = [1, 1]} : vector<8x512xf32> to vector<8x128xf32>
    %588 = math.tanh %587 : vector<8x128xf32>
    %589 = vector.extract_strided_slice %567 {offsets = [0, 384], sizes = [8, 128], strides = [1, 1]} : vector<8x512xf32> to vector<8x128xf32>
    %cst_193 = arith.constant 5.000000e-01 : f32
    %590 = vector.broadcast %cst_193 : f32 to vector<8x128xf32>
    %591 = arith.mulf %590, %589 : vector<8x128xf32>
    %592 = math.tanh %591 : vector<8x128xf32>
    %cst_194 = arith.constant 1.000000e+00 : f32
    %593 = vector.broadcast %cst_194 : f32 to vector<8x128xf32>
    %594 = arith.addf %592, %593 : vector<8x128xf32>
    %cst_195 = arith.constant 5.000000e-01 : f32
    %595 = vector.broadcast %cst_195 : f32 to vector<8x128xf32>
    %596 = arith.mulf %595, %594 : vector<8x128xf32>
    %597 = arith.mulf %586, %525 : vector<8x128xf32>
    %598 = arith.mulf %578, %588 : vector<8x128xf32>
    %599 = arith.addf %597, %598 : vector<8x128xf32>
    %600 = math.tanh %599 : vector<8x128xf32>
    %601 = arith.mulf %596, %600 : vector<8x128xf32>
    %602 = vector.extract_strided_slice %570 {offsets = [0, 0], sizes = [8, 128], strides = [1, 1]} : vector<8x512xf32> to vector<8x128xf32>
    %cst_196 = arith.constant 5.000000e-01 : f32
    %603 = vector.broadcast %cst_196 : f32 to vector<8x128xf32>
    %604 = arith.mulf %603, %602 : vector<8x128xf32>
    %605 = math.tanh %604 : vector<8x128xf32>
    %cst_197 = arith.constant 1.000000e+00 : f32
    %606 = vector.broadcast %cst_197 : f32 to vector<8x128xf32>
    %607 = arith.addf %605, %606 : vector<8x128xf32>
    %cst_198 = arith.constant 5.000000e-01 : f32
    %608 = vector.broadcast %cst_198 : f32 to vector<8x128xf32>
    %609 = arith.mulf %608, %607 : vector<8x128xf32>
    %610 = vector.extract_strided_slice %570 {offsets = [0, 128], sizes = [8, 128], strides = [1, 1]} : vector<8x512xf32> to vector<8x128xf32>
    %cst_199 = arith.constant 5.000000e-01 : f32
    %611 = vector.broadcast %cst_199 : f32 to vector<8x128xf32>
    %612 = arith.mulf %611, %610 : vector<8x128xf32>
    %613 = math.tanh %612 : vector<8x128xf32>
    %cst_200 = arith.constant 1.000000e+00 : f32
    %614 = vector.broadcast %cst_200 : f32 to vector<8x128xf32>
    %615 = arith.addf %613, %614 : vector<8x128xf32>
    %cst_201 = arith.constant 5.000000e-01 : f32
    %616 = vector.broadcast %cst_201 : f32 to vector<8x128xf32>
    %617 = arith.mulf %616, %615 : vector<8x128xf32>
    %618 = vector.extract_strided_slice %570 {offsets = [0, 256], sizes = [8, 128], strides = [1, 1]} : vector<8x512xf32> to vector<8x128xf32>
    %619 = math.tanh %618 : vector<8x128xf32>
    %620 = vector.extract_strided_slice %570 {offsets = [0, 384], sizes = [8, 128], strides = [1, 1]} : vector<8x512xf32> to vector<8x128xf32>
    %cst_202 = arith.constant 5.000000e-01 : f32
    %621 = vector.broadcast %cst_202 : f32 to vector<8x128xf32>
    %622 = arith.mulf %621, %620 : vector<8x128xf32>
    %623 = math.tanh %622 : vector<8x128xf32>
    %cst_203 = arith.constant 1.000000e+00 : f32
    %624 = vector.broadcast %cst_203 : f32 to vector<8x128xf32>
    %625 = arith.addf %623, %624 : vector<8x128xf32>
    %cst_204 = arith.constant 5.000000e-01 : f32
    %626 = vector.broadcast %cst_204 : f32 to vector<8x128xf32>
    %627 = arith.mulf %626, %625 : vector<8x128xf32>
    %628 = arith.mulf %617, %556 : vector<8x128xf32>
    %629 = arith.mulf %609, %619 : vector<8x128xf32>
    %630 = arith.addf %628, %629 : vector<8x128xf32>
    %631 = math.tanh %630 : vector<8x128xf32>
    %632 = arith.mulf %627, %631 : vector<8x128xf32>
    %c9_i32 = arith.constant 9 : i32
    %633 = tpu.concatenate %601, %632 in 1 : vector<8x128xf32>, vector<8x128xf32> -> vector<8x256xf32>
    %634 = arith.truncf %633 : vector<8x256xf32> to vector<8x256xbf16>
    %c0_205 = arith.constant 0 : index
    %c0_206 = arith.constant 0 : index
    %635 = vector.load %arg3[%c0_205, %c0_206] : memref<256x1024xbf16, #tpu.memory_space<vmem>>, vector<256x1024xbf16>
    %cst_207 = arith.constant dense<0.000000e+00> : vector<8x1024xf32>
    %636 = tpu.matmul %634, %635, %cst_207 {dimension_numbers = #tpu.dot_dimension_numbers<[1], [0], [0], [1], [0, 0, 1, 1], [], []>} : vector<8x256xbf16>, vector<256x1024xbf16>, vector<8x1024xf32> -> vector<8x1024xf32>
    %c8_i32_208 = arith.constant 8 : i32
    %637 = arith.muli %c9_i32, %c8_i32_208 : i32
    %638 = vector.extract_strided_slice %636 {offsets = [0, 0], sizes = [8, 512], strides = [1, 1]} : vector<8x1024xf32> to vector<8x512xf32>
    %639 = arith.index_cast %637 : i32 to index
    %c0_209 = arith.constant 0 : index
    %640 = vector.load %arg14[%639, %c0_209] : memref<160x512xf32, #tpu.memory_space<vmem>>, vector<8x512xf32>
    %641 = arith.addf %638, %640 : vector<8x512xf32>
    %642 = vector.extract_strided_slice %636 {offsets = [0, 512], sizes = [8, 512], strides = [1, 1]} : vector<8x1024xf32> to vector<8x512xf32>
    %643 = vector.broadcast %7 : vector<1x512xf32> to vector<8x512xf32>
    %644 = arith.addf %642, %643 : vector<8x512xf32>
    %645 = vector.extract_strided_slice %641 {offsets = [0, 0], sizes = [8, 128], strides = [1, 1]} : vector<8x512xf32> to vector<8x128xf32>
    %cst_210 = arith.constant 5.000000e-01 : f32
    %646 = vector.broadcast %cst_210 : f32 to vector<8x128xf32>
    %647 = arith.mulf %646, %645 : vector<8x128xf32>
    %648 = math.tanh %647 : vector<8x128xf32>
    %cst_211 = arith.constant 1.000000e+00 : f32
    %649 = vector.broadcast %cst_211 : f32 to vector<8x128xf32>
    %650 = arith.addf %648, %649 : vector<8x128xf32>
    %cst_212 = arith.constant 5.000000e-01 : f32
    %651 = vector.broadcast %cst_212 : f32 to vector<8x128xf32>
    %652 = arith.mulf %651, %650 : vector<8x128xf32>
    %653 = vector.extract_strided_slice %641 {offsets = [0, 128], sizes = [8, 128], strides = [1, 1]} : vector<8x512xf32> to vector<8x128xf32>
    %cst_213 = arith.constant 5.000000e-01 : f32
    %654 = vector.broadcast %cst_213 : f32 to vector<8x128xf32>
    %655 = arith.mulf %654, %653 : vector<8x128xf32>
    %656 = math.tanh %655 : vector<8x128xf32>
    %cst_214 = arith.constant 1.000000e+00 : f32
    %657 = vector.broadcast %cst_214 : f32 to vector<8x128xf32>
    %658 = arith.addf %656, %657 : vector<8x128xf32>
    %cst_215 = arith.constant 5.000000e-01 : f32
    %659 = vector.broadcast %cst_215 : f32 to vector<8x128xf32>
    %660 = arith.mulf %659, %658 : vector<8x128xf32>
    %661 = vector.extract_strided_slice %641 {offsets = [0, 256], sizes = [8, 128], strides = [1, 1]} : vector<8x512xf32> to vector<8x128xf32>
    %662 = math.tanh %661 : vector<8x128xf32>
    %663 = vector.extract_strided_slice %641 {offsets = [0, 384], sizes = [8, 128], strides = [1, 1]} : vector<8x512xf32> to vector<8x128xf32>
    %cst_216 = arith.constant 5.000000e-01 : f32
    %664 = vector.broadcast %cst_216 : f32 to vector<8x128xf32>
    %665 = arith.mulf %664, %663 : vector<8x128xf32>
    %666 = math.tanh %665 : vector<8x128xf32>
    %cst_217 = arith.constant 1.000000e+00 : f32
    %667 = vector.broadcast %cst_217 : f32 to vector<8x128xf32>
    %668 = arith.addf %666, %667 : vector<8x128xf32>
    %cst_218 = arith.constant 5.000000e-01 : f32
    %669 = vector.broadcast %cst_218 : f32 to vector<8x128xf32>
    %670 = arith.mulf %669, %668 : vector<8x128xf32>
    %671 = arith.mulf %660, %599 : vector<8x128xf32>
    %672 = arith.mulf %652, %662 : vector<8x128xf32>
    %673 = arith.addf %671, %672 : vector<8x128xf32>
    %674 = math.tanh %673 : vector<8x128xf32>
    %675 = arith.mulf %670, %674 : vector<8x128xf32>
    %676 = vector.extract_strided_slice %644 {offsets = [0, 0], sizes = [8, 128], strides = [1, 1]} : vector<8x512xf32> to vector<8x128xf32>
    %cst_219 = arith.constant 5.000000e-01 : f32
    %677 = vector.broadcast %cst_219 : f32 to vector<8x128xf32>
    %678 = arith.mulf %677, %676 : vector<8x128xf32>
    %679 = math.tanh %678 : vector<8x128xf32>
    %cst_220 = arith.constant 1.000000e+00 : f32
    %680 = vector.broadcast %cst_220 : f32 to vector<8x128xf32>
    %681 = arith.addf %679, %680 : vector<8x128xf32>
    %cst_221 = arith.constant 5.000000e-01 : f32
    %682 = vector.broadcast %cst_221 : f32 to vector<8x128xf32>
    %683 = arith.mulf %682, %681 : vector<8x128xf32>
    %684 = vector.extract_strided_slice %644 {offsets = [0, 128], sizes = [8, 128], strides = [1, 1]} : vector<8x512xf32> to vector<8x128xf32>
    %cst_222 = arith.constant 5.000000e-01 : f32
    %685 = vector.broadcast %cst_222 : f32 to vector<8x128xf32>
    %686 = arith.mulf %685, %684 : vector<8x128xf32>
    %687 = math.tanh %686 : vector<8x128xf32>
    %cst_223 = arith.constant 1.000000e+00 : f32
    %688 = vector.broadcast %cst_223 : f32 to vector<8x128xf32>
    %689 = arith.addf %687, %688 : vector<8x128xf32>
    %cst_224 = arith.constant 5.000000e-01 : f32
    %690 = vector.broadcast %cst_224 : f32 to vector<8x128xf32>
    %691 = arith.mulf %690, %689 : vector<8x128xf32>
    %692 = vector.extract_strided_slice %644 {offsets = [0, 256], sizes = [8, 128], strides = [1, 1]} : vector<8x512xf32> to vector<8x128xf32>
    %693 = math.tanh %692 : vector<8x128xf32>
    %694 = vector.extract_strided_slice %644 {offsets = [0, 384], sizes = [8, 128], strides = [1, 1]} : vector<8x512xf32> to vector<8x128xf32>
    %cst_225 = arith.constant 5.000000e-01 : f32
    %695 = vector.broadcast %cst_225 : f32 to vector<8x128xf32>
    %696 = arith.mulf %695, %694 : vector<8x128xf32>
    %697 = math.tanh %696 : vector<8x128xf32>
    %cst_226 = arith.constant 1.000000e+00 : f32
    %698 = vector.broadcast %cst_226 : f32 to vector<8x128xf32>
    %699 = arith.addf %697, %698 : vector<8x128xf32>
    %cst_227 = arith.constant 5.000000e-01 : f32
    %700 = vector.broadcast %cst_227 : f32 to vector<8x128xf32>
    %701 = arith.mulf %700, %699 : vector<8x128xf32>
    %702 = arith.mulf %691, %630 : vector<8x128xf32>
    %703 = arith.mulf %683, %693 : vector<8x128xf32>
    %704 = arith.addf %702, %703 : vector<8x128xf32>
    %705 = math.tanh %704 : vector<8x128xf32>
    %706 = arith.mulf %701, %705 : vector<8x128xf32>
    %c10_i32 = arith.constant 10 : i32
    %707 = tpu.concatenate %675, %706 in 1 : vector<8x128xf32>, vector<8x128xf32> -> vector<8x256xf32>
    %708 = arith.truncf %707 : vector<8x256xf32> to vector<8x256xbf16>
    %c0_228 = arith.constant 0 : index
    %c0_229 = arith.constant 0 : index
    %709 = vector.load %arg3[%c0_228, %c0_229] : memref<256x1024xbf16, #tpu.memory_space<vmem>>, vector<256x1024xbf16>
    %cst_230 = arith.constant dense<0.000000e+00> : vector<8x1024xf32>
    %710 = tpu.matmul %708, %709, %cst_230 {dimension_numbers = #tpu.dot_dimension_numbers<[1], [0], [0], [1], [0, 0, 1, 1], [], []>} : vector<8x256xbf16>, vector<256x1024xbf16>, vector<8x1024xf32> -> vector<8x1024xf32>
    %c8_i32_231 = arith.constant 8 : i32
    %711 = arith.muli %c10_i32, %c8_i32_231 : i32
    %712 = vector.extract_strided_slice %710 {offsets = [0, 0], sizes = [8, 512], strides = [1, 1]} : vector<8x1024xf32> to vector<8x512xf32>
    %713 = arith.index_cast %711 : i32 to index
    %c0_232 = arith.constant 0 : index
    %714 = vector.load %arg14[%713, %c0_232] : memref<160x512xf32, #tpu.memory_space<vmem>>, vector<8x512xf32>
    %715 = arith.addf %712, %714 : vector<8x512xf32>
    %716 = vector.extract_strided_slice %710 {offsets = [0, 512], sizes = [8, 512], strides = [1, 1]} : vector<8x1024xf32> to vector<8x512xf32>
    %717 = vector.broadcast %7 : vector<1x512xf32> to vector<8x512xf32>
    %718 = arith.addf %716, %717 : vector<8x512xf32>
    %719 = vector.extract_strided_slice %715 {offsets = [0, 0], sizes = [8, 128], strides = [1, 1]} : vector<8x512xf32> to vector<8x128xf32>
    %cst_233 = arith.constant 5.000000e-01 : f32
    %720 = vector.broadcast %cst_233 : f32 to vector<8x128xf32>
    %721 = arith.mulf %720, %719 : vector<8x128xf32>
    %722 = math.tanh %721 : vector<8x128xf32>
    %cst_234 = arith.constant 1.000000e+00 : f32
    %723 = vector.broadcast %cst_234 : f32 to vector<8x128xf32>
    %724 = arith.addf %722, %723 : vector<8x128xf32>
    %cst_235 = arith.constant 5.000000e-01 : f32
    %725 = vector.broadcast %cst_235 : f32 to vector<8x128xf32>
    %726 = arith.mulf %725, %724 : vector<8x128xf32>
    %727 = vector.extract_strided_slice %715 {offsets = [0, 128], sizes = [8, 128], strides = [1, 1]} : vector<8x512xf32> to vector<8x128xf32>
    %cst_236 = arith.constant 5.000000e-01 : f32
    %728 = vector.broadcast %cst_236 : f32 to vector<8x128xf32>
    %729 = arith.mulf %728, %727 : vector<8x128xf32>
    %730 = math.tanh %729 : vector<8x128xf32>
    %cst_237 = arith.constant 1.000000e+00 : f32
    %731 = vector.broadcast %cst_237 : f32 to vector<8x128xf32>
    %732 = arith.addf %730, %731 : vector<8x128xf32>
    %cst_238 = arith.constant 5.000000e-01 : f32
    %733 = vector.broadcast %cst_238 : f32 to vector<8x128xf32>
    %734 = arith.mulf %733, %732 : vector<8x128xf32>
    %735 = vector.extract_strided_slice %715 {offsets = [0, 256], sizes = [8, 128], strides = [1, 1]} : vector<8x512xf32> to vector<8x128xf32>
    %736 = math.tanh %735 : vector<8x128xf32>
    %737 = vector.extract_strided_slice %715 {offsets = [0, 384], sizes = [8, 128], strides = [1, 1]} : vector<8x512xf32> to vector<8x128xf32>
    %cst_239 = arith.constant 5.000000e-01 : f32
    %738 = vector.broadcast %cst_239 : f32 to vector<8x128xf32>
    %739 = arith.mulf %738, %737 : vector<8x128xf32>
    %740 = math.tanh %739 : vector<8x128xf32>
    %cst_240 = arith.constant 1.000000e+00 : f32
    %741 = vector.broadcast %cst_240 : f32 to vector<8x128xf32>
    %742 = arith.addf %740, %741 : vector<8x128xf32>
    %cst_241 = arith.constant 5.000000e-01 : f32
    %743 = vector.broadcast %cst_241 : f32 to vector<8x128xf32>
    %744 = arith.mulf %743, %742 : vector<8x128xf32>
    %745 = arith.mulf %734, %673 : vector<8x128xf32>
    %746 = arith.mulf %726, %736 : vector<8x128xf32>
    %747 = arith.addf %745, %746 : vector<8x128xf32>
    %748 = math.tanh %747 : vector<8x128xf32>
    %749 = arith.mulf %744, %748 : vector<8x128xf32>
    %750 = vector.extract_strided_slice %718 {offsets = [0, 0], sizes = [8, 128], strides = [1, 1]} : vector<8x512xf32> to vector<8x128xf32>
    %cst_242 = arith.constant 5.000000e-01 : f32
    %751 = vector.broadcast %cst_242 : f32 to vector<8x128xf32>
    %752 = arith.mulf %751, %750 : vector<8x128xf32>
    %753 = math.tanh %752 : vector<8x128xf32>
    %cst_243 = arith.constant 1.000000e+00 : f32
    %754 = vector.broadcast %cst_243 : f32 to vector<8x128xf32>
    %755 = arith.addf %753, %754 : vector<8x128xf32>
    %cst_244 = arith.constant 5.000000e-01 : f32
    %756 = vector.broadcast %cst_244 : f32 to vector<8x128xf32>
    %757 = arith.mulf %756, %755 : vector<8x128xf32>
    %758 = vector.extract_strided_slice %718 {offsets = [0, 128], sizes = [8, 128], strides = [1, 1]} : vector<8x512xf32> to vector<8x128xf32>
    %cst_245 = arith.constant 5.000000e-01 : f32
    %759 = vector.broadcast %cst_245 : f32 to vector<8x128xf32>
    %760 = arith.mulf %759, %758 : vector<8x128xf32>
    %761 = math.tanh %760 : vector<8x128xf32>
    %cst_246 = arith.constant 1.000000e+00 : f32
    %762 = vector.broadcast %cst_246 : f32 to vector<8x128xf32>
    %763 = arith.addf %761, %762 : vector<8x128xf32>
    %cst_247 = arith.constant 5.000000e-01 : f32
    %764 = vector.broadcast %cst_247 : f32 to vector<8x128xf32>
    %765 = arith.mulf %764, %763 : vector<8x128xf32>
    %766 = vector.extract_strided_slice %718 {offsets = [0, 256], sizes = [8, 128], strides = [1, 1]} : vector<8x512xf32> to vector<8x128xf32>
    %767 = math.tanh %766 : vector<8x128xf32>
    %768 = vector.extract_strided_slice %718 {offsets = [0, 384], sizes = [8, 128], strides = [1, 1]} : vector<8x512xf32> to vector<8x128xf32>
    %cst_248 = arith.constant 5.000000e-01 : f32
    %769 = vector.broadcast %cst_248 : f32 to vector<8x128xf32>
    %770 = arith.mulf %769, %768 : vector<8x128xf32>
    %771 = math.tanh %770 : vector<8x128xf32>
    %cst_249 = arith.constant 1.000000e+00 : f32
    %772 = vector.broadcast %cst_249 : f32 to vector<8x128xf32>
    %773 = arith.addf %771, %772 : vector<8x128xf32>
    %cst_250 = arith.constant 5.000000e-01 : f32
    %774 = vector.broadcast %cst_250 : f32 to vector<8x128xf32>
    %775 = arith.mulf %774, %773 : vector<8x128xf32>
    %776 = arith.mulf %765, %704 : vector<8x128xf32>
    %777 = arith.mulf %757, %767 : vector<8x128xf32>
    %778 = arith.addf %776, %777 : vector<8x128xf32>
    %779 = math.tanh %778 : vector<8x128xf32>
    %780 = arith.mulf %775, %779 : vector<8x128xf32>
    %c11_i32 = arith.constant 11 : i32
    %781 = tpu.concatenate %749, %780 in 1 : vector<8x128xf32>, vector<8x128xf32> -> vector<8x256xf32>
    %782 = arith.truncf %781 : vector<8x256xf32> to vector<8x256xbf16>
    %c0_251 = arith.constant 0 : index
    %c0_252 = arith.constant 0 : index
    %783 = vector.load %arg3[%c0_251, %c0_252] : memref<256x1024xbf16, #tpu.memory_space<vmem>>, vector<256x1024xbf16>
    %cst_253 = arith.constant dense<0.000000e+00> : vector<8x1024xf32>
    %784 = tpu.matmul %782, %783, %cst_253 {dimension_numbers = #tpu.dot_dimension_numbers<[1], [0], [0], [1], [0, 0, 1, 1], [], []>} : vector<8x256xbf16>, vector<256x1024xbf16>, vector<8x1024xf32> -> vector<8x1024xf32>
    %c8_i32_254 = arith.constant 8 : i32
    %785 = arith.muli %c11_i32, %c8_i32_254 : i32
    %786 = vector.extract_strided_slice %784 {offsets = [0, 0], sizes = [8, 512], strides = [1, 1]} : vector<8x1024xf32> to vector<8x512xf32>
    %787 = arith.index_cast %785 : i32 to index
    %c0_255 = arith.constant 0 : index
    %788 = vector.load %arg14[%787, %c0_255] : memref<160x512xf32, #tpu.memory_space<vmem>>, vector<8x512xf32>
    %789 = arith.addf %786, %788 : vector<8x512xf32>
    %790 = vector.extract_strided_slice %784 {offsets = [0, 512], sizes = [8, 512], strides = [1, 1]} : vector<8x1024xf32> to vector<8x512xf32>
    %791 = vector.broadcast %7 : vector<1x512xf32> to vector<8x512xf32>
    %792 = arith.addf %790, %791 : vector<8x512xf32>
    %793 = vector.extract_strided_slice %789 {offsets = [0, 0], sizes = [8, 128], strides = [1, 1]} : vector<8x512xf32> to vector<8x128xf32>
    %cst_256 = arith.constant 5.000000e-01 : f32
    %794 = vector.broadcast %cst_256 : f32 to vector<8x128xf32>
    %795 = arith.mulf %794, %793 : vector<8x128xf32>
    %796 = math.tanh %795 : vector<8x128xf32>
    %cst_257 = arith.constant 1.000000e+00 : f32
    %797 = vector.broadcast %cst_257 : f32 to vector<8x128xf32>
    %798 = arith.addf %796, %797 : vector<8x128xf32>
    %cst_258 = arith.constant 5.000000e-01 : f32
    %799 = vector.broadcast %cst_258 : f32 to vector<8x128xf32>
    %800 = arith.mulf %799, %798 : vector<8x128xf32>
    %801 = vector.extract_strided_slice %789 {offsets = [0, 128], sizes = [8, 128], strides = [1, 1]} : vector<8x512xf32> to vector<8x128xf32>
    %cst_259 = arith.constant 5.000000e-01 : f32
    %802 = vector.broadcast %cst_259 : f32 to vector<8x128xf32>
    %803 = arith.mulf %802, %801 : vector<8x128xf32>
    %804 = math.tanh %803 : vector<8x128xf32>
    %cst_260 = arith.constant 1.000000e+00 : f32
    %805 = vector.broadcast %cst_260 : f32 to vector<8x128xf32>
    %806 = arith.addf %804, %805 : vector<8x128xf32>
    %cst_261 = arith.constant 5.000000e-01 : f32
    %807 = vector.broadcast %cst_261 : f32 to vector<8x128xf32>
    %808 = arith.mulf %807, %806 : vector<8x128xf32>
    %809 = vector.extract_strided_slice %789 {offsets = [0, 256], sizes = [8, 128], strides = [1, 1]} : vector<8x512xf32> to vector<8x128xf32>
    %810 = math.tanh %809 : vector<8x128xf32>
    %811 = vector.extract_strided_slice %789 {offsets = [0, 384], sizes = [8, 128], strides = [1, 1]} : vector<8x512xf32> to vector<8x128xf32>
    %cst_262 = arith.constant 5.000000e-01 : f32
    %812 = vector.broadcast %cst_262 : f32 to vector<8x128xf32>
    %813 = arith.mulf %812, %811 : vector<8x128xf32>
    %814 = math.tanh %813 : vector<8x128xf32>
    %cst_263 = arith.constant 1.000000e+00 : f32
    %815 = vector.broadcast %cst_263 : f32 to vector<8x128xf32>
    %816 = arith.addf %814, %815 : vector<8x128xf32>
    %cst_264 = arith.constant 5.000000e-01 : f32
    %817 = vector.broadcast %cst_264 : f32 to vector<8x128xf32>
    %818 = arith.mulf %817, %816 : vector<8x128xf32>
    %819 = arith.mulf %808, %747 : vector<8x128xf32>
    %820 = arith.mulf %800, %810 : vector<8x128xf32>
    %821 = arith.addf %819, %820 : vector<8x128xf32>
    %822 = math.tanh %821 : vector<8x128xf32>
    %823 = arith.mulf %818, %822 : vector<8x128xf32>
    %824 = vector.extract_strided_slice %792 {offsets = [0, 0], sizes = [8, 128], strides = [1, 1]} : vector<8x512xf32> to vector<8x128xf32>
    %cst_265 = arith.constant 5.000000e-01 : f32
    %825 = vector.broadcast %cst_265 : f32 to vector<8x128xf32>
    %826 = arith.mulf %825, %824 : vector<8x128xf32>
    %827 = math.tanh %826 : vector<8x128xf32>
    %cst_266 = arith.constant 1.000000e+00 : f32
    %828 = vector.broadcast %cst_266 : f32 to vector<8x128xf32>
    %829 = arith.addf %827, %828 : vector<8x128xf32>
    %cst_267 = arith.constant 5.000000e-01 : f32
    %830 = vector.broadcast %cst_267 : f32 to vector<8x128xf32>
    %831 = arith.mulf %830, %829 : vector<8x128xf32>
    %832 = vector.extract_strided_slice %792 {offsets = [0, 128], sizes = [8, 128], strides = [1, 1]} : vector<8x512xf32> to vector<8x128xf32>
    %cst_268 = arith.constant 5.000000e-01 : f32
    %833 = vector.broadcast %cst_268 : f32 to vector<8x128xf32>
    %834 = arith.mulf %833, %832 : vector<8x128xf32>
    %835 = math.tanh %834 : vector<8x128xf32>
    %cst_269 = arith.constant 1.000000e+00 : f32
    %836 = vector.broadcast %cst_269 : f32 to vector<8x128xf32>
    %837 = arith.addf %835, %836 : vector<8x128xf32>
    %cst_270 = arith.constant 5.000000e-01 : f32
    %838 = vector.broadcast %cst_270 : f32 to vector<8x128xf32>
    %839 = arith.mulf %838, %837 : vector<8x128xf32>
    %840 = vector.extract_strided_slice %792 {offsets = [0, 256], sizes = [8, 128], strides = [1, 1]} : vector<8x512xf32> to vector<8x128xf32>
    %841 = math.tanh %840 : vector<8x128xf32>
    %842 = vector.extract_strided_slice %792 {offsets = [0, 384], sizes = [8, 128], strides = [1, 1]} : vector<8x512xf32> to vector<8x128xf32>
    %cst_271 = arith.constant 5.000000e-01 : f32
    %843 = vector.broadcast %cst_271 : f32 to vector<8x128xf32>
    %844 = arith.mulf %843, %842 : vector<8x128xf32>
    %845 = math.tanh %844 : vector<8x128xf32>
    %cst_272 = arith.constant 1.000000e+00 : f32
    %846 = vector.broadcast %cst_272 : f32 to vector<8x128xf32>
    %847 = arith.addf %845, %846 : vector<8x128xf32>
    %cst_273 = arith.constant 5.000000e-01 : f32
    %848 = vector.broadcast %cst_273 : f32 to vector<8x128xf32>
    %849 = arith.mulf %848, %847 : vector<8x128xf32>
    %850 = arith.mulf %839, %778 : vector<8x128xf32>
    %851 = arith.mulf %831, %841 : vector<8x128xf32>
    %852 = arith.addf %850, %851 : vector<8x128xf32>
    %853 = math.tanh %852 : vector<8x128xf32>
    %854 = arith.mulf %849, %853 : vector<8x128xf32>
    %c12_i32 = arith.constant 12 : i32
    %855 = tpu.concatenate %823, %854 in 1 : vector<8x128xf32>, vector<8x128xf32> -> vector<8x256xf32>
    %856 = arith.truncf %855 : vector<8x256xf32> to vector<8x256xbf16>
    %c0_274 = arith.constant 0 : index
    %c0_275 = arith.constant 0 : index
    %857 = vector.load %arg3[%c0_274, %c0_275] : memref<256x1024xbf16, #tpu.memory_space<vmem>>, vector<256x1024xbf16>
    %cst_276 = arith.constant dense<0.000000e+00> : vector<8x1024xf32>
    %858 = tpu.matmul %856, %857, %cst_276 {dimension_numbers = #tpu.dot_dimension_numbers<[1], [0], [0], [1], [0, 0, 1, 1], [], []>} : vector<8x256xbf16>, vector<256x1024xbf16>, vector<8x1024xf32> -> vector<8x1024xf32>
    %c8_i32_277 = arith.constant 8 : i32
    %859 = arith.muli %c12_i32, %c8_i32_277 : i32
    %860 = vector.extract_strided_slice %858 {offsets = [0, 0], sizes = [8, 512], strides = [1, 1]} : vector<8x1024xf32> to vector<8x512xf32>
    %861 = arith.index_cast %859 : i32 to index
    %c0_278 = arith.constant 0 : index
    %862 = vector.load %arg14[%861, %c0_278] : memref<160x512xf32, #tpu.memory_space<vmem>>, vector<8x512xf32>
    %863 = arith.addf %860, %862 : vector<8x512xf32>
    %864 = vector.extract_strided_slice %858 {offsets = [0, 512], sizes = [8, 512], strides = [1, 1]} : vector<8x1024xf32> to vector<8x512xf32>
    %865 = vector.broadcast %7 : vector<1x512xf32> to vector<8x512xf32>
    %866 = arith.addf %864, %865 : vector<8x512xf32>
    %867 = vector.extract_strided_slice %863 {offsets = [0, 0], sizes = [8, 128], strides = [1, 1]} : vector<8x512xf32> to vector<8x128xf32>
    %cst_279 = arith.constant 5.000000e-01 : f32
    %868 = vector.broadcast %cst_279 : f32 to vector<8x128xf32>
    %869 = arith.mulf %868, %867 : vector<8x128xf32>
    %870 = math.tanh %869 : vector<8x128xf32>
    %cst_280 = arith.constant 1.000000e+00 : f32
    %871 = vector.broadcast %cst_280 : f32 to vector<8x128xf32>
    %872 = arith.addf %870, %871 : vector<8x128xf32>
    %cst_281 = arith.constant 5.000000e-01 : f32
    %873 = vector.broadcast %cst_281 : f32 to vector<8x128xf32>
    %874 = arith.mulf %873, %872 : vector<8x128xf32>
    %875 = vector.extract_strided_slice %863 {offsets = [0, 128], sizes = [8, 128], strides = [1, 1]} : vector<8x512xf32> to vector<8x128xf32>
    %cst_282 = arith.constant 5.000000e-01 : f32
    %876 = vector.broadcast %cst_282 : f32 to vector<8x128xf32>
    %877 = arith.mulf %876, %875 : vector<8x128xf32>
    %878 = math.tanh %877 : vector<8x128xf32>
    %cst_283 = arith.constant 1.000000e+00 : f32
    %879 = vector.broadcast %cst_283 : f32 to vector<8x128xf32>
    %880 = arith.addf %878, %879 : vector<8x128xf32>
    %cst_284 = arith.constant 5.000000e-01 : f32
    %881 = vector.broadcast %cst_284 : f32 to vector<8x128xf32>
    %882 = arith.mulf %881, %880 : vector<8x128xf32>
    %883 = vector.extract_strided_slice %863 {offsets = [0, 256], sizes = [8, 128], strides = [1, 1]} : vector<8x512xf32> to vector<8x128xf32>
    %884 = math.tanh %883 : vector<8x128xf32>
    %885 = vector.extract_strided_slice %863 {offsets = [0, 384], sizes = [8, 128], strides = [1, 1]} : vector<8x512xf32> to vector<8x128xf32>
    %cst_285 = arith.constant 5.000000e-01 : f32
    %886 = vector.broadcast %cst_285 : f32 to vector<8x128xf32>
    %887 = arith.mulf %886, %885 : vector<8x128xf32>
    %888 = math.tanh %887 : vector<8x128xf32>
    %cst_286 = arith.constant 1.000000e+00 : f32
    %889 = vector.broadcast %cst_286 : f32 to vector<8x128xf32>
    %890 = arith.addf %888, %889 : vector<8x128xf32>
    %cst_287 = arith.constant 5.000000e-01 : f32
    %891 = vector.broadcast %cst_287 : f32 to vector<8x128xf32>
    %892 = arith.mulf %891, %890 : vector<8x128xf32>
    %893 = arith.mulf %882, %821 : vector<8x128xf32>
    %894 = arith.mulf %874, %884 : vector<8x128xf32>
    %895 = arith.addf %893, %894 : vector<8x128xf32>
    %896 = math.tanh %895 : vector<8x128xf32>
    %897 = arith.mulf %892, %896 : vector<8x128xf32>
    %898 = vector.extract_strided_slice %866 {offsets = [0, 0], sizes = [8, 128], strides = [1, 1]} : vector<8x512xf32> to vector<8x128xf32>
    %cst_288 = arith.constant 5.000000e-01 : f32
    %899 = vector.broadcast %cst_288 : f32 to vector<8x128xf32>
    %900 = arith.mulf %899, %898 : vector<8x128xf32>
    %901 = math.tanh %900 : vector<8x128xf32>
    %cst_289 = arith.constant 1.000000e+00 : f32
    %902 = vector.broadcast %cst_289 : f32 to vector<8x128xf32>
    %903 = arith.addf %901, %902 : vector<8x128xf32>
    %cst_290 = arith.constant 5.000000e-01 : f32
    %904 = vector.broadcast %cst_290 : f32 to vector<8x128xf32>
    %905 = arith.mulf %904, %903 : vector<8x128xf32>
    %906 = vector.extract_strided_slice %866 {offsets = [0, 128], sizes = [8, 128], strides = [1, 1]} : vector<8x512xf32> to vector<8x128xf32>
    %cst_291 = arith.constant 5.000000e-01 : f32
    %907 = vector.broadcast %cst_291 : f32 to vector<8x128xf32>
    %908 = arith.mulf %907, %906 : vector<8x128xf32>
    %909 = math.tanh %908 : vector<8x128xf32>
    %cst_292 = arith.constant 1.000000e+00 : f32
    %910 = vector.broadcast %cst_292 : f32 to vector<8x128xf32>
    %911 = arith.addf %909, %910 : vector<8x128xf32>
    %cst_293 = arith.constant 5.000000e-01 : f32
    %912 = vector.broadcast %cst_293 : f32 to vector<8x128xf32>
    %913 = arith.mulf %912, %911 : vector<8x128xf32>
    %914 = vector.extract_strided_slice %866 {offsets = [0, 256], sizes = [8, 128], strides = [1, 1]} : vector<8x512xf32> to vector<8x128xf32>
    %915 = math.tanh %914 : vector<8x128xf32>
    %916 = vector.extract_strided_slice %866 {offsets = [0, 384], sizes = [8, 128], strides = [1, 1]} : vector<8x512xf32> to vector<8x128xf32>
    %cst_294 = arith.constant 5.000000e-01 : f32
    %917 = vector.broadcast %cst_294 : f32 to vector<8x128xf32>
    %918 = arith.mulf %917, %916 : vector<8x128xf32>
    %919 = math.tanh %918 : vector<8x128xf32>
    %cst_295 = arith.constant 1.000000e+00 : f32
    %920 = vector.broadcast %cst_295 : f32 to vector<8x128xf32>
    %921 = arith.addf %919, %920 : vector<8x128xf32>
    %cst_296 = arith.constant 5.000000e-01 : f32
    %922 = vector.broadcast %cst_296 : f32 to vector<8x128xf32>
    %923 = arith.mulf %922, %921 : vector<8x128xf32>
    %924 = arith.mulf %913, %852 : vector<8x128xf32>
    %925 = arith.mulf %905, %915 : vector<8x128xf32>
    %926 = arith.addf %924, %925 : vector<8x128xf32>
    %927 = math.tanh %926 : vector<8x128xf32>
    %928 = arith.mulf %923, %927 : vector<8x128xf32>
    %c13_i32 = arith.constant 13 : i32
    %929 = tpu.concatenate %897, %928 in 1 : vector<8x128xf32>, vector<8x128xf32> -> vector<8x256xf32>
    %930 = arith.truncf %929 : vector<8x256xf32> to vector<8x256xbf16>
    %c0_297 = arith.constant 0 : index
    %c0_298 = arith.constant 0 : index
    %931 = vector.load %arg3[%c0_297, %c0_298] : memref<256x1024xbf16, #tpu.memory_space<vmem>>, vector<256x1024xbf16>
    %cst_299 = arith.constant dense<0.000000e+00> : vector<8x1024xf32>
    %932 = tpu.matmul %930, %931, %cst_299 {dimension_numbers = #tpu.dot_dimension_numbers<[1], [0], [0], [1], [0, 0, 1, 1], [], []>} : vector<8x256xbf16>, vector<256x1024xbf16>, vector<8x1024xf32> -> vector<8x1024xf32>
    %c8_i32_300 = arith.constant 8 : i32
    %933 = arith.muli %c13_i32, %c8_i32_300 : i32
    %934 = vector.extract_strided_slice %932 {offsets = [0, 0], sizes = [8, 512], strides = [1, 1]} : vector<8x1024xf32> to vector<8x512xf32>
    %935 = arith.index_cast %933 : i32 to index
    %c0_301 = arith.constant 0 : index
    %936 = vector.load %arg14[%935, %c0_301] : memref<160x512xf32, #tpu.memory_space<vmem>>, vector<8x512xf32>
    %937 = arith.addf %934, %936 : vector<8x512xf32>
    %938 = vector.extract_strided_slice %932 {offsets = [0, 512], sizes = [8, 512], strides = [1, 1]} : vector<8x1024xf32> to vector<8x512xf32>
    %939 = vector.broadcast %7 : vector<1x512xf32> to vector<8x512xf32>
    %940 = arith.addf %938, %939 : vector<8x512xf32>
    %941 = vector.extract_strided_slice %937 {offsets = [0, 0], sizes = [8, 128], strides = [1, 1]} : vector<8x512xf32> to vector<8x128xf32>
    %cst_302 = arith.constant 5.000000e-01 : f32
    %942 = vector.broadcast %cst_302 : f32 to vector<8x128xf32>
    %943 = arith.mulf %942, %941 : vector<8x128xf32>
    %944 = math.tanh %943 : vector<8x128xf32>
    %cst_303 = arith.constant 1.000000e+00 : f32
    %945 = vector.broadcast %cst_303 : f32 to vector<8x128xf32>
    %946 = arith.addf %944, %945 : vector<8x128xf32>
    %cst_304 = arith.constant 5.000000e-01 : f32
    %947 = vector.broadcast %cst_304 : f32 to vector<8x128xf32>
    %948 = arith.mulf %947, %946 : vector<8x128xf32>
    %949 = vector.extract_strided_slice %937 {offsets = [0, 128], sizes = [8, 128], strides = [1, 1]} : vector<8x512xf32> to vector<8x128xf32>
    %cst_305 = arith.constant 5.000000e-01 : f32
    %950 = vector.broadcast %cst_305 : f32 to vector<8x128xf32>
    %951 = arith.mulf %950, %949 : vector<8x128xf32>
    %952 = math.tanh %951 : vector<8x128xf32>
    %cst_306 = arith.constant 1.000000e+00 : f32
    %953 = vector.broadcast %cst_306 : f32 to vector<8x128xf32>
    %954 = arith.addf %952, %953 : vector<8x128xf32>
    %cst_307 = arith.constant 5.000000e-01 : f32
    %955 = vector.broadcast %cst_307 : f32 to vector<8x128xf32>
    %956 = arith.mulf %955, %954 : vector<8x128xf32>
    %957 = vector.extract_strided_slice %937 {offsets = [0, 256], sizes = [8, 128], strides = [1, 1]} : vector<8x512xf32> to vector<8x128xf32>
    %958 = math.tanh %957 : vector<8x128xf32>
    %959 = vector.extract_strided_slice %937 {offsets = [0, 384], sizes = [8, 128], strides = [1, 1]} : vector<8x512xf32> to vector<8x128xf32>
    %cst_308 = arith.constant 5.000000e-01 : f32
    %960 = vector.broadcast %cst_308 : f32 to vector<8x128xf32>
    %961 = arith.mulf %960, %959 : vector<8x128xf32>
    %962 = math.tanh %961 : vector<8x128xf32>
    %cst_309 = arith.constant 1.000000e+00 : f32
    %963 = vector.broadcast %cst_309 : f32 to vector<8x128xf32>
    %964 = arith.addf %962, %963 : vector<8x128xf32>
    %cst_310 = arith.constant 5.000000e-01 : f32
    %965 = vector.broadcast %cst_310 : f32 to vector<8x128xf32>
    %966 = arith.mulf %965, %964 : vector<8x128xf32>
    %967 = arith.mulf %956, %895 : vector<8x128xf32>
    %968 = arith.mulf %948, %958 : vector<8x128xf32>
    %969 = arith.addf %967, %968 : vector<8x128xf32>
    %970 = math.tanh %969 : vector<8x128xf32>
    %971 = arith.mulf %966, %970 : vector<8x128xf32>
    %972 = vector.extract_strided_slice %940 {offsets = [0, 0], sizes = [8, 128], strides = [1, 1]} : vector<8x512xf32> to vector<8x128xf32>
    %cst_311 = arith.constant 5.000000e-01 : f32
    %973 = vector.broadcast %cst_311 : f32 to vector<8x128xf32>
    %974 = arith.mulf %973, %972 : vector<8x128xf32>
    %975 = math.tanh %974 : vector<8x128xf32>
    %cst_312 = arith.constant 1.000000e+00 : f32
    %976 = vector.broadcast %cst_312 : f32 to vector<8x128xf32>
    %977 = arith.addf %975, %976 : vector<8x128xf32>
    %cst_313 = arith.constant 5.000000e-01 : f32
    %978 = vector.broadcast %cst_313 : f32 to vector<8x128xf32>
    %979 = arith.mulf %978, %977 : vector<8x128xf32>
    %980 = vector.extract_strided_slice %940 {offsets = [0, 128], sizes = [8, 128], strides = [1, 1]} : vector<8x512xf32> to vector<8x128xf32>
    %cst_314 = arith.constant 5.000000e-01 : f32
    %981 = vector.broadcast %cst_314 : f32 to vector<8x128xf32>
    %982 = arith.mulf %981, %980 : vector<8x128xf32>
    %983 = math.tanh %982 : vector<8x128xf32>
    %cst_315 = arith.constant 1.000000e+00 : f32
    %984 = vector.broadcast %cst_315 : f32 to vector<8x128xf32>
    %985 = arith.addf %983, %984 : vector<8x128xf32>
    %cst_316 = arith.constant 5.000000e-01 : f32
    %986 = vector.broadcast %cst_316 : f32 to vector<8x128xf32>
    %987 = arith.mulf %986, %985 : vector<8x128xf32>
    %988 = vector.extract_strided_slice %940 {offsets = [0, 256], sizes = [8, 128], strides = [1, 1]} : vector<8x512xf32> to vector<8x128xf32>
    %989 = math.tanh %988 : vector<8x128xf32>
    %990 = vector.extract_strided_slice %940 {offsets = [0, 384], sizes = [8, 128], strides = [1, 1]} : vector<8x512xf32> to vector<8x128xf32>
    %cst_317 = arith.constant 5.000000e-01 : f32
    %991 = vector.broadcast %cst_317 : f32 to vector<8x128xf32>
    %992 = arith.mulf %991, %990 : vector<8x128xf32>
    %993 = math.tanh %992 : vector<8x128xf32>
    %cst_318 = arith.constant 1.000000e+00 : f32
    %994 = vector.broadcast %cst_318 : f32 to vector<8x128xf32>
    %995 = arith.addf %993, %994 : vector<8x128xf32>
    %cst_319 = arith.constant 5.000000e-01 : f32
    %996 = vector.broadcast %cst_319 : f32 to vector<8x128xf32>
    %997 = arith.mulf %996, %995 : vector<8x128xf32>
    %998 = arith.mulf %987, %926 : vector<8x128xf32>
    %999 = arith.mulf %979, %989 : vector<8x128xf32>
    %1000 = arith.addf %998, %999 : vector<8x128xf32>
    %1001 = math.tanh %1000 : vector<8x128xf32>
    %1002 = arith.mulf %997, %1001 : vector<8x128xf32>
    %c14_i32 = arith.constant 14 : i32
    %1003 = tpu.concatenate %971, %1002 in 1 : vector<8x128xf32>, vector<8x128xf32> -> vector<8x256xf32>
    %1004 = arith.truncf %1003 : vector<8x256xf32> to vector<8x256xbf16>
    %c0_320 = arith.constant 0 : index
    %c0_321 = arith.constant 0 : index
    %1005 = vector.load %arg3[%c0_320, %c0_321] : memref<256x1024xbf16, #tpu.memory_space<vmem>>, vector<256x1024xbf16>
    %cst_322 = arith.constant dense<0.000000e+00> : vector<8x1024xf32>
    %1006 = tpu.matmul %1004, %1005, %cst_322 {dimension_numbers = #tpu.dot_dimension_numbers<[1], [0], [0], [1], [0, 0, 1, 1], [], []>} : vector<8x256xbf16>, vector<256x1024xbf16>, vector<8x1024xf32> -> vector<8x1024xf32>
    %c8_i32_323 = arith.constant 8 : i32
    %1007 = arith.muli %c14_i32, %c8_i32_323 : i32
    %1008 = vector.extract_strided_slice %1006 {offsets = [0, 0], sizes = [8, 512], strides = [1, 1]} : vector<8x1024xf32> to vector<8x512xf32>
    %1009 = arith.index_cast %1007 : i32 to index
    %c0_324 = arith.constant 0 : index
    %1010 = vector.load %arg14[%1009, %c0_324] : memref<160x512xf32, #tpu.memory_space<vmem>>, vector<8x512xf32>
    %1011 = arith.addf %1008, %1010 : vector<8x512xf32>
    %1012 = vector.extract_strided_slice %1006 {offsets = [0, 512], sizes = [8, 512], strides = [1, 1]} : vector<8x1024xf32> to vector<8x512xf32>
    %1013 = vector.broadcast %7 : vector<1x512xf32> to vector<8x512xf32>
    %1014 = arith.addf %1012, %1013 : vector<8x512xf32>
    %1015 = vector.extract_strided_slice %1011 {offsets = [0, 0], sizes = [8, 128], strides = [1, 1]} : vector<8x512xf32> to vector<8x128xf32>
    %cst_325 = arith.constant 5.000000e-01 : f32
    %1016 = vector.broadcast %cst_325 : f32 to vector<8x128xf32>
    %1017 = arith.mulf %1016, %1015 : vector<8x128xf32>
    %1018 = math.tanh %1017 : vector<8x128xf32>
    %cst_326 = arith.constant 1.000000e+00 : f32
    %1019 = vector.broadcast %cst_326 : f32 to vector<8x128xf32>
    %1020 = arith.addf %1018, %1019 : vector<8x128xf32>
    %cst_327 = arith.constant 5.000000e-01 : f32
    %1021 = vector.broadcast %cst_327 : f32 to vector<8x128xf32>
    %1022 = arith.mulf %1021, %1020 : vector<8x128xf32>
    %1023 = vector.extract_strided_slice %1011 {offsets = [0, 128], sizes = [8, 128], strides = [1, 1]} : vector<8x512xf32> to vector<8x128xf32>
    %cst_328 = arith.constant 5.000000e-01 : f32
    %1024 = vector.broadcast %cst_328 : f32 to vector<8x128xf32>
    %1025 = arith.mulf %1024, %1023 : vector<8x128xf32>
    %1026 = math.tanh %1025 : vector<8x128xf32>
    %cst_329 = arith.constant 1.000000e+00 : f32
    %1027 = vector.broadcast %cst_329 : f32 to vector<8x128xf32>
    %1028 = arith.addf %1026, %1027 : vector<8x128xf32>
    %cst_330 = arith.constant 5.000000e-01 : f32
    %1029 = vector.broadcast %cst_330 : f32 to vector<8x128xf32>
    %1030 = arith.mulf %1029, %1028 : vector<8x128xf32>
    %1031 = vector.extract_strided_slice %1011 {offsets = [0, 256], sizes = [8, 128], strides = [1, 1]} : vector<8x512xf32> to vector<8x128xf32>
    %1032 = math.tanh %1031 : vector<8x128xf32>
    %1033 = vector.extract_strided_slice %1011 {offsets = [0, 384], sizes = [8, 128], strides = [1, 1]} : vector<8x512xf32> to vector<8x128xf32>
    %cst_331 = arith.constant 5.000000e-01 : f32
    %1034 = vector.broadcast %cst_331 : f32 to vector<8x128xf32>
    %1035 = arith.mulf %1034, %1033 : vector<8x128xf32>
    %1036 = math.tanh %1035 : vector<8x128xf32>
    %cst_332 = arith.constant 1.000000e+00 : f32
    %1037 = vector.broadcast %cst_332 : f32 to vector<8x128xf32>
    %1038 = arith.addf %1036, %1037 : vector<8x128xf32>
    %cst_333 = arith.constant 5.000000e-01 : f32
    %1039 = vector.broadcast %cst_333 : f32 to vector<8x128xf32>
    %1040 = arith.mulf %1039, %1038 : vector<8x128xf32>
    %1041 = arith.mulf %1030, %969 : vector<8x128xf32>
    %1042 = arith.mulf %1022, %1032 : vector<8x128xf32>
    %1043 = arith.addf %1041, %1042 : vector<8x128xf32>
    %1044 = math.tanh %1043 : vector<8x128xf32>
    %1045 = arith.mulf %1040, %1044 : vector<8x128xf32>
    %1046 = vector.extract_strided_slice %1014 {offsets = [0, 0], sizes = [8, 128], strides = [1, 1]} : vector<8x512xf32> to vector<8x128xf32>
    %cst_334 = arith.constant 5.000000e-01 : f32
    %1047 = vector.broadcast %cst_334 : f32 to vector<8x128xf32>
    %1048 = arith.mulf %1047, %1046 : vector<8x128xf32>
    %1049 = math.tanh %1048 : vector<8x128xf32>
    %cst_335 = arith.constant 1.000000e+00 : f32
    %1050 = vector.broadcast %cst_335 : f32 to vector<8x128xf32>
    %1051 = arith.addf %1049, %1050 : vector<8x128xf32>
    %cst_336 = arith.constant 5.000000e-01 : f32
    %1052 = vector.broadcast %cst_336 : f32 to vector<8x128xf32>
    %1053 = arith.mulf %1052, %1051 : vector<8x128xf32>
    %1054 = vector.extract_strided_slice %1014 {offsets = [0, 128], sizes = [8, 128], strides = [1, 1]} : vector<8x512xf32> to vector<8x128xf32>
    %cst_337 = arith.constant 5.000000e-01 : f32
    %1055 = vector.broadcast %cst_337 : f32 to vector<8x128xf32>
    %1056 = arith.mulf %1055, %1054 : vector<8x128xf32>
    %1057 = math.tanh %1056 : vector<8x128xf32>
    %cst_338 = arith.constant 1.000000e+00 : f32
    %1058 = vector.broadcast %cst_338 : f32 to vector<8x128xf32>
    %1059 = arith.addf %1057, %1058 : vector<8x128xf32>
    %cst_339 = arith.constant 5.000000e-01 : f32
    %1060 = vector.broadcast %cst_339 : f32 to vector<8x128xf32>
    %1061 = arith.mulf %1060, %1059 : vector<8x128xf32>
    %1062 = vector.extract_strided_slice %1014 {offsets = [0, 256], sizes = [8, 128], strides = [1, 1]} : vector<8x512xf32> to vector<8x128xf32>
    %1063 = math.tanh %1062 : vector<8x128xf32>
    %1064 = vector.extract_strided_slice %1014 {offsets = [0, 384], sizes = [8, 128], strides = [1, 1]} : vector<8x512xf32> to vector<8x128xf32>
    %cst_340 = arith.constant 5.000000e-01 : f32
    %1065 = vector.broadcast %cst_340 : f32 to vector<8x128xf32>
    %1066 = arith.mulf %1065, %1064 : vector<8x128xf32>
    %1067 = math.tanh %1066 : vector<8x128xf32>
    %cst_341 = arith.constant 1.000000e+00 : f32
    %1068 = vector.broadcast %cst_341 : f32 to vector<8x128xf32>
    %1069 = arith.addf %1067, %1068 : vector<8x128xf32>
    %cst_342 = arith.constant 5.000000e-01 : f32
    %1070 = vector.broadcast %cst_342 : f32 to vector<8x128xf32>
    %1071 = arith.mulf %1070, %1069 : vector<8x128xf32>
    %1072 = arith.mulf %1061, %1000 : vector<8x128xf32>
    %1073 = arith.mulf %1053, %1063 : vector<8x128xf32>
    %1074 = arith.addf %1072, %1073 : vector<8x128xf32>
    %1075 = math.tanh %1074 : vector<8x128xf32>
    %1076 = arith.mulf %1071, %1075 : vector<8x128xf32>
    %c15_i32 = arith.constant 15 : i32
    %1077 = tpu.concatenate %1045, %1076 in 1 : vector<8x128xf32>, vector<8x128xf32> -> vector<8x256xf32>
    %1078 = arith.truncf %1077 : vector<8x256xf32> to vector<8x256xbf16>
    %c0_343 = arith.constant 0 : index
    %c0_344 = arith.constant 0 : index
    %1079 = vector.load %arg3[%c0_343, %c0_344] : memref<256x1024xbf16, #tpu.memory_space<vmem>>, vector<256x1024xbf16>
    %cst_345 = arith.constant dense<0.000000e+00> : vector<8x1024xf32>
    %1080 = tpu.matmul %1078, %1079, %cst_345 {dimension_numbers = #tpu.dot_dimension_numbers<[1], [0], [0], [1], [0, 0, 1, 1], [], []>} : vector<8x256xbf16>, vector<256x1024xbf16>, vector<8x1024xf32> -> vector<8x1024xf32>
    %c8_i32_346 = arith.constant 8 : i32
    %1081 = arith.muli %c15_i32, %c8_i32_346 : i32
    %1082 = vector.extract_strided_slice %1080 {offsets = [0, 0], sizes = [8, 512], strides = [1, 1]} : vector<8x1024xf32> to vector<8x512xf32>
    %1083 = arith.index_cast %1081 : i32 to index
    %c0_347 = arith.constant 0 : index
    %1084 = vector.load %arg14[%1083, %c0_347] : memref<160x512xf32, #tpu.memory_space<vmem>>, vector<8x512xf32>
    %1085 = arith.addf %1082, %1084 : vector<8x512xf32>
    %1086 = vector.extract_strided_slice %1080 {offsets = [0, 512], sizes = [8, 512], strides = [1, 1]} : vector<8x1024xf32> to vector<8x512xf32>
    %1087 = vector.broadcast %7 : vector<1x512xf32> to vector<8x512xf32>
    %1088 = arith.addf %1086, %1087 : vector<8x512xf32>
    %1089 = vector.extract_strided_slice %1085 {offsets = [0, 0], sizes = [8, 128], strides = [1, 1]} : vector<8x512xf32> to vector<8x128xf32>
    %cst_348 = arith.constant 5.000000e-01 : f32
    %1090 = vector.broadcast %cst_348 : f32 to vector<8x128xf32>
    %1091 = arith.mulf %1090, %1089 : vector<8x128xf32>
    %1092 = math.tanh %1091 : vector<8x128xf32>
    %cst_349 = arith.constant 1.000000e+00 : f32
    %1093 = vector.broadcast %cst_349 : f32 to vector<8x128xf32>
    %1094 = arith.addf %1092, %1093 : vector<8x128xf32>
    %cst_350 = arith.constant 5.000000e-01 : f32
    %1095 = vector.broadcast %cst_350 : f32 to vector<8x128xf32>
    %1096 = arith.mulf %1095, %1094 : vector<8x128xf32>
    %1097 = vector.extract_strided_slice %1085 {offsets = [0, 128], sizes = [8, 128], strides = [1, 1]} : vector<8x512xf32> to vector<8x128xf32>
    %cst_351 = arith.constant 5.000000e-01 : f32
    %1098 = vector.broadcast %cst_351 : f32 to vector<8x128xf32>
    %1099 = arith.mulf %1098, %1097 : vector<8x128xf32>
    %1100 = math.tanh %1099 : vector<8x128xf32>
    %cst_352 = arith.constant 1.000000e+00 : f32
    %1101 = vector.broadcast %cst_352 : f32 to vector<8x128xf32>
    %1102 = arith.addf %1100, %1101 : vector<8x128xf32>
    %cst_353 = arith.constant 5.000000e-01 : f32
    %1103 = vector.broadcast %cst_353 : f32 to vector<8x128xf32>
    %1104 = arith.mulf %1103, %1102 : vector<8x128xf32>
    %1105 = vector.extract_strided_slice %1085 {offsets = [0, 256], sizes = [8, 128], strides = [1, 1]} : vector<8x512xf32> to vector<8x128xf32>
    %1106 = math.tanh %1105 : vector<8x128xf32>
    %1107 = vector.extract_strided_slice %1085 {offsets = [0, 384], sizes = [8, 128], strides = [1, 1]} : vector<8x512xf32> to vector<8x128xf32>
    %cst_354 = arith.constant 5.000000e-01 : f32
    %1108 = vector.broadcast %cst_354 : f32 to vector<8x128xf32>
    %1109 = arith.mulf %1108, %1107 : vector<8x128xf32>
    %1110 = math.tanh %1109 : vector<8x128xf32>
    %cst_355 = arith.constant 1.000000e+00 : f32
    %1111 = vector.broadcast %cst_355 : f32 to vector<8x128xf32>
    %1112 = arith.addf %1110, %1111 : vector<8x128xf32>
    %cst_356 = arith.constant 5.000000e-01 : f32
    %1113 = vector.broadcast %cst_356 : f32 to vector<8x128xf32>
    %1114 = arith.mulf %1113, %1112 : vector<8x128xf32>
    %1115 = arith.mulf %1104, %1043 : vector<8x128xf32>
    %1116 = arith.mulf %1096, %1106 : vector<8x128xf32>
    %1117 = arith.addf %1115, %1116 : vector<8x128xf32>
    %1118 = math.tanh %1117 : vector<8x128xf32>
    %1119 = arith.mulf %1114, %1118 : vector<8x128xf32>
    %1120 = vector.extract_strided_slice %1088 {offsets = [0, 0], sizes = [8, 128], strides = [1, 1]} : vector<8x512xf32> to vector<8x128xf32>
    %cst_357 = arith.constant 5.000000e-01 : f32
    %1121 = vector.broadcast %cst_357 : f32 to vector<8x128xf32>
    %1122 = arith.mulf %1121, %1120 : vector<8x128xf32>
    %1123 = math.tanh %1122 : vector<8x128xf32>
    %cst_358 = arith.constant 1.000000e+00 : f32
    %1124 = vector.broadcast %cst_358 : f32 to vector<8x128xf32>
    %1125 = arith.addf %1123, %1124 : vector<8x128xf32>
    %cst_359 = arith.constant 5.000000e-01 : f32
    %1126 = vector.broadcast %cst_359 : f32 to vector<8x128xf32>
    %1127 = arith.mulf %1126, %1125 : vector<8x128xf32>
    %1128 = vector.extract_strided_slice %1088 {offsets = [0, 128], sizes = [8, 128], strides = [1, 1]} : vector<8x512xf32> to vector<8x128xf32>
    %cst_360 = arith.constant 5.000000e-01 : f32
    %1129 = vector.broadcast %cst_360 : f32 to vector<8x128xf32>
    %1130 = arith.mulf %1129, %1128 : vector<8x128xf32>
    %1131 = math.tanh %1130 : vector<8x128xf32>
    %cst_361 = arith.constant 1.000000e+00 : f32
    %1132 = vector.broadcast %cst_361 : f32 to vector<8x128xf32>
    %1133 = arith.addf %1131, %1132 : vector<8x128xf32>
    %cst_362 = arith.constant 5.000000e-01 : f32
    %1134 = vector.broadcast %cst_362 : f32 to vector<8x128xf32>
    %1135 = arith.mulf %1134, %1133 : vector<8x128xf32>
    %1136 = vector.extract_strided_slice %1088 {offsets = [0, 256], sizes = [8, 128], strides = [1, 1]} : vector<8x512xf32> to vector<8x128xf32>
    %1137 = math.tanh %1136 : vector<8x128xf32>
    %1138 = vector.extract_strided_slice %1088 {offsets = [0, 384], sizes = [8, 128], strides = [1, 1]} : vector<8x512xf32> to vector<8x128xf32>
    %cst_363 = arith.constant 5.000000e-01 : f32
    %1139 = vector.broadcast %cst_363 : f32 to vector<8x128xf32>
    %1140 = arith.mulf %1139, %1138 : vector<8x128xf32>
    %1141 = math.tanh %1140 : vector<8x128xf32>
    %cst_364 = arith.constant 1.000000e+00 : f32
    %1142 = vector.broadcast %cst_364 : f32 to vector<8x128xf32>
    %1143 = arith.addf %1141, %1142 : vector<8x128xf32>
    %cst_365 = arith.constant 5.000000e-01 : f32
    %1144 = vector.broadcast %cst_365 : f32 to vector<8x128xf32>
    %1145 = arith.mulf %1144, %1143 : vector<8x128xf32>
    %1146 = arith.mulf %1135, %1074 : vector<8x128xf32>
    %1147 = arith.mulf %1127, %1137 : vector<8x128xf32>
    %1148 = arith.addf %1146, %1147 : vector<8x128xf32>
    %1149 = math.tanh %1148 : vector<8x128xf32>
    %1150 = arith.mulf %1145, %1149 : vector<8x128xf32>
    %c16_i32 = arith.constant 16 : i32
    %1151 = tpu.concatenate %1119, %1150 in 1 : vector<8x128xf32>, vector<8x128xf32> -> vector<8x256xf32>
    %1152 = arith.truncf %1151 : vector<8x256xf32> to vector<8x256xbf16>
    %c0_366 = arith.constant 0 : index
    %c0_367 = arith.constant 0 : index
    %1153 = vector.load %arg3[%c0_366, %c0_367] : memref<256x1024xbf16, #tpu.memory_space<vmem>>, vector<256x1024xbf16>
    %cst_368 = arith.constant dense<0.000000e+00> : vector<8x1024xf32>
    %1154 = tpu.matmul %1152, %1153, %cst_368 {dimension_numbers = #tpu.dot_dimension_numbers<[1], [0], [0], [1], [0, 0, 1, 1], [], []>} : vector<8x256xbf16>, vector<256x1024xbf16>, vector<8x1024xf32> -> vector<8x1024xf32>
    %c8_i32_369 = arith.constant 8 : i32
    %1155 = arith.muli %c16_i32, %c8_i32_369 : i32
    %1156 = vector.extract_strided_slice %1154 {offsets = [0, 0], sizes = [8, 512], strides = [1, 1]} : vector<8x1024xf32> to vector<8x512xf32>
    %1157 = arith.index_cast %1155 : i32 to index
    %c0_370 = arith.constant 0 : index
    %1158 = vector.load %arg14[%1157, %c0_370] : memref<160x512xf32, #tpu.memory_space<vmem>>, vector<8x512xf32>
    %1159 = arith.addf %1156, %1158 : vector<8x512xf32>
    %1160 = vector.extract_strided_slice %1154 {offsets = [0, 512], sizes = [8, 512], strides = [1, 1]} : vector<8x1024xf32> to vector<8x512xf32>
    %1161 = vector.broadcast %7 : vector<1x512xf32> to vector<8x512xf32>
    %1162 = arith.addf %1160, %1161 : vector<8x512xf32>
    %1163 = vector.extract_strided_slice %1159 {offsets = [0, 0], sizes = [8, 128], strides = [1, 1]} : vector<8x512xf32> to vector<8x128xf32>
    %cst_371 = arith.constant 5.000000e-01 : f32
    %1164 = vector.broadcast %cst_371 : f32 to vector<8x128xf32>
    %1165 = arith.mulf %1164, %1163 : vector<8x128xf32>
    %1166 = math.tanh %1165 : vector<8x128xf32>
    %cst_372 = arith.constant 1.000000e+00 : f32
    %1167 = vector.broadcast %cst_372 : f32 to vector<8x128xf32>
    %1168 = arith.addf %1166, %1167 : vector<8x128xf32>
    %cst_373 = arith.constant 5.000000e-01 : f32
    %1169 = vector.broadcast %cst_373 : f32 to vector<8x128xf32>
    %1170 = arith.mulf %1169, %1168 : vector<8x128xf32>
    %1171 = vector.extract_strided_slice %1159 {offsets = [0, 128], sizes = [8, 128], strides = [1, 1]} : vector<8x512xf32> to vector<8x128xf32>
    %cst_374 = arith.constant 5.000000e-01 : f32
    %1172 = vector.broadcast %cst_374 : f32 to vector<8x128xf32>
    %1173 = arith.mulf %1172, %1171 : vector<8x128xf32>
    %1174 = math.tanh %1173 : vector<8x128xf32>
    %cst_375 = arith.constant 1.000000e+00 : f32
    %1175 = vector.broadcast %cst_375 : f32 to vector<8x128xf32>
    %1176 = arith.addf %1174, %1175 : vector<8x128xf32>
    %cst_376 = arith.constant 5.000000e-01 : f32
    %1177 = vector.broadcast %cst_376 : f32 to vector<8x128xf32>
    %1178 = arith.mulf %1177, %1176 : vector<8x128xf32>
    %1179 = vector.extract_strided_slice %1159 {offsets = [0, 256], sizes = [8, 128], strides = [1, 1]} : vector<8x512xf32> to vector<8x128xf32>
    %1180 = math.tanh %1179 : vector<8x128xf32>
    %1181 = vector.extract_strided_slice %1159 {offsets = [0, 384], sizes = [8, 128], strides = [1, 1]} : vector<8x512xf32> to vector<8x128xf32>
    %cst_377 = arith.constant 5.000000e-01 : f32
    %1182 = vector.broadcast %cst_377 : f32 to vector<8x128xf32>
    %1183 = arith.mulf %1182, %1181 : vector<8x128xf32>
    %1184 = math.tanh %1183 : vector<8x128xf32>
    %cst_378 = arith.constant 1.000000e+00 : f32
    %1185 = vector.broadcast %cst_378 : f32 to vector<8x128xf32>
    %1186 = arith.addf %1184, %1185 : vector<8x128xf32>
    %cst_379 = arith.constant 5.000000e-01 : f32
    %1187 = vector.broadcast %cst_379 : f32 to vector<8x128xf32>
    %1188 = arith.mulf %1187, %1186 : vector<8x128xf32>
    %1189 = arith.mulf %1178, %1117 : vector<8x128xf32>
    %1190 = arith.mulf %1170, %1180 : vector<8x128xf32>
    %1191 = arith.addf %1189, %1190 : vector<8x128xf32>
    %1192 = math.tanh %1191 : vector<8x128xf32>
    %1193 = arith.mulf %1188, %1192 : vector<8x128xf32>
    %1194 = vector.extract_strided_slice %1162 {offsets = [0, 0], sizes = [8, 128], strides = [1, 1]} : vector<8x512xf32> to vector<8x128xf32>
    %cst_380 = arith.constant 5.000000e-01 : f32
    %1195 = vector.broadcast %cst_380 : f32 to vector<8x128xf32>
    %1196 = arith.mulf %1195, %1194 : vector<8x128xf32>
    %1197 = math.tanh %1196 : vector<8x128xf32>
    %cst_381 = arith.constant 1.000000e+00 : f32
    %1198 = vector.broadcast %cst_381 : f32 to vector<8x128xf32>
    %1199 = arith.addf %1197, %1198 : vector<8x128xf32>
    %cst_382 = arith.constant 5.000000e-01 : f32
    %1200 = vector.broadcast %cst_382 : f32 to vector<8x128xf32>
    %1201 = arith.mulf %1200, %1199 : vector<8x128xf32>
    %1202 = vector.extract_strided_slice %1162 {offsets = [0, 128], sizes = [8, 128], strides = [1, 1]} : vector<8x512xf32> to vector<8x128xf32>
    %cst_383 = arith.constant 5.000000e-01 : f32
    %1203 = vector.broadcast %cst_383 : f32 to vector<8x128xf32>
    %1204 = arith.mulf %1203, %1202 : vector<8x128xf32>
    %1205 = math.tanh %1204 : vector<8x128xf32>
    %cst_384 = arith.constant 1.000000e+00 : f32
    %1206 = vector.broadcast %cst_384 : f32 to vector<8x128xf32>
    %1207 = arith.addf %1205, %1206 : vector<8x128xf32>
    %cst_385 = arith.constant 5.000000e-01 : f32
    %1208 = vector.broadcast %cst_385 : f32 to vector<8x128xf32>
    %1209 = arith.mulf %1208, %1207 : vector<8x128xf32>
    %1210 = vector.extract_strided_slice %1162 {offsets = [0, 256], sizes = [8, 128], strides = [1, 1]} : vector<8x512xf32> to vector<8x128xf32>
    %1211 = math.tanh %1210 : vector<8x128xf32>
    %1212 = vector.extract_strided_slice %1162 {offsets = [0, 384], sizes = [8, 128], strides = [1, 1]} : vector<8x512xf32> to vector<8x128xf32>
    %cst_386 = arith.constant 5.000000e-01 : f32
    %1213 = vector.broadcast %cst_386 : f32 to vector<8x128xf32>
    %1214 = arith.mulf %1213, %1212 : vector<8x128xf32>
    %1215 = math.tanh %1214 : vector<8x128xf32>
    %cst_387 = arith.constant 1.000000e+00 : f32
    %1216 = vector.broadcast %cst_387 : f32 to vector<8x128xf32>
    %1217 = arith.addf %1215, %1216 : vector<8x128xf32>
    %cst_388 = arith.constant 5.000000e-01 : f32
    %1218 = vector.broadcast %cst_388 : f32 to vector<8x128xf32>
    %1219 = arith.mulf %1218, %1217 : vector<8x128xf32>
    %1220 = arith.mulf %1209, %1148 : vector<8x128xf32>
    %1221 = arith.mulf %1201, %1211 : vector<8x128xf32>
    %1222 = arith.addf %1220, %1221 : vector<8x128xf32>
    %1223 = math.tanh %1222 : vector<8x128xf32>
    %1224 = arith.mulf %1219, %1223 : vector<8x128xf32>
    %c17_i32 = arith.constant 17 : i32
    %1225 = tpu.concatenate %1193, %1224 in 1 : vector<8x128xf32>, vector<8x128xf32> -> vector<8x256xf32>
    %1226 = arith.truncf %1225 : vector<8x256xf32> to vector<8x256xbf16>
    %c0_389 = arith.constant 0 : index
    %c0_390 = arith.constant 0 : index
    %1227 = vector.load %arg3[%c0_389, %c0_390] : memref<256x1024xbf16, #tpu.memory_space<vmem>>, vector<256x1024xbf16>
    %cst_391 = arith.constant dense<0.000000e+00> : vector<8x1024xf32>
    %1228 = tpu.matmul %1226, %1227, %cst_391 {dimension_numbers = #tpu.dot_dimension_numbers<[1], [0], [0], [1], [0, 0, 1, 1], [], []>} : vector<8x256xbf16>, vector<256x1024xbf16>, vector<8x1024xf32> -> vector<8x1024xf32>
    %c8_i32_392 = arith.constant 8 : i32
    %1229 = arith.muli %c17_i32, %c8_i32_392 : i32
    %1230 = vector.extract_strided_slice %1228 {offsets = [0, 0], sizes = [8, 512], strides = [1, 1]} : vector<8x1024xf32> to vector<8x512xf32>
    %1231 = arith.index_cast %1229 : i32 to index
    %c0_393 = arith.constant 0 : index
    %1232 = vector.load %arg14[%1231, %c0_393] : memref<160x512xf32, #tpu.memory_space<vmem>>, vector<8x512xf32>
    %1233 = arith.addf %1230, %1232 : vector<8x512xf32>
    %1234 = vector.extract_strided_slice %1228 {offsets = [0, 512], sizes = [8, 512], strides = [1, 1]} : vector<8x1024xf32> to vector<8x512xf32>
    %1235 = vector.broadcast %7 : vector<1x512xf32> to vector<8x512xf32>
    %1236 = arith.addf %1234, %1235 : vector<8x512xf32>
    %1237 = vector.extract_strided_slice %1233 {offsets = [0, 0], sizes = [8, 128], strides = [1, 1]} : vector<8x512xf32> to vector<8x128xf32>
    %cst_394 = arith.constant 5.000000e-01 : f32
    %1238 = vector.broadcast %cst_394 : f32 to vector<8x128xf32>
    %1239 = arith.mulf %1238, %1237 : vector<8x128xf32>
    %1240 = math.tanh %1239 : vector<8x128xf32>
    %cst_395 = arith.constant 1.000000e+00 : f32
    %1241 = vector.broadcast %cst_395 : f32 to vector<8x128xf32>
    %1242 = arith.addf %1240, %1241 : vector<8x128xf32>
    %cst_396 = arith.constant 5.000000e-01 : f32
    %1243 = vector.broadcast %cst_396 : f32 to vector<8x128xf32>
    %1244 = arith.mulf %1243, %1242 : vector<8x128xf32>
    %1245 = vector.extract_strided_slice %1233 {offsets = [0, 128], sizes = [8, 128], strides = [1, 1]} : vector<8x512xf32> to vector<8x128xf32>
    %cst_397 = arith.constant 5.000000e-01 : f32
    %1246 = vector.broadcast %cst_397 : f32 to vector<8x128xf32>
    %1247 = arith.mulf %1246, %1245 : vector<8x128xf32>
    %1248 = math.tanh %1247 : vector<8x128xf32>
    %cst_398 = arith.constant 1.000000e+00 : f32
    %1249 = vector.broadcast %cst_398 : f32 to vector<8x128xf32>
    %1250 = arith.addf %1248, %1249 : vector<8x128xf32>
    %cst_399 = arith.constant 5.000000e-01 : f32
    %1251 = vector.broadcast %cst_399 : f32 to vector<8x128xf32>
    %1252 = arith.mulf %1251, %1250 : vector<8x128xf32>
    %1253 = vector.extract_strided_slice %1233 {offsets = [0, 256], sizes = [8, 128], strides = [1, 1]} : vector<8x512xf32> to vector<8x128xf32>
    %1254 = math.tanh %1253 : vector<8x128xf32>
    %1255 = vector.extract_strided_slice %1233 {offsets = [0, 384], sizes = [8, 128], strides = [1, 1]} : vector<8x512xf32> to vector<8x128xf32>
    %cst_400 = arith.constant 5.000000e-01 : f32
    %1256 = vector.broadcast %cst_400 : f32 to vector<8x128xf32>
    %1257 = arith.mulf %1256, %1255 : vector<8x128xf32>
    %1258 = math.tanh %1257 : vector<8x128xf32>
    %cst_401 = arith.constant 1.000000e+00 : f32
    %1259 = vector.broadcast %cst_401 : f32 to vector<8x128xf32>
    %1260 = arith.addf %1258, %1259 : vector<8x128xf32>
    %cst_402 = arith.constant 5.000000e-01 : f32
    %1261 = vector.broadcast %cst_402 : f32 to vector<8x128xf32>
    %1262 = arith.mulf %1261, %1260 : vector<8x128xf32>
    %1263 = arith.mulf %1252, %1191 : vector<8x128xf32>
    %1264 = arith.mulf %1244, %1254 : vector<8x128xf32>
    %1265 = arith.addf %1263, %1264 : vector<8x128xf32>
    %1266 = math.tanh %1265 : vector<8x128xf32>
    %1267 = arith.mulf %1262, %1266 : vector<8x128xf32>
    %1268 = vector.extract_strided_slice %1236 {offsets = [0, 0], sizes = [8, 128], strides = [1, 1]} : vector<8x512xf32> to vector<8x128xf32>
    %cst_403 = arith.constant 5.000000e-01 : f32
    %1269 = vector.broadcast %cst_403 : f32 to vector<8x128xf32>
    %1270 = arith.mulf %1269, %1268 : vector<8x128xf32>
    %1271 = math.tanh %1270 : vector<8x128xf32>
    %cst_404 = arith.constant 1.000000e+00 : f32
    %1272 = vector.broadcast %cst_404 : f32 to vector<8x128xf32>
    %1273 = arith.addf %1271, %1272 : vector<8x128xf32>
    %cst_405 = arith.constant 5.000000e-01 : f32
    %1274 = vector.broadcast %cst_405 : f32 to vector<8x128xf32>
    %1275 = arith.mulf %1274, %1273 : vector<8x128xf32>
    %1276 = vector.extract_strided_slice %1236 {offsets = [0, 128], sizes = [8, 128], strides = [1, 1]} : vector<8x512xf32> to vector<8x128xf32>
    %cst_406 = arith.constant 5.000000e-01 : f32
    %1277 = vector.broadcast %cst_406 : f32 to vector<8x128xf32>
    %1278 = arith.mulf %1277, %1276 : vector<8x128xf32>
    %1279 = math.tanh %1278 : vector<8x128xf32>
    %cst_407 = arith.constant 1.000000e+00 : f32
    %1280 = vector.broadcast %cst_407 : f32 to vector<8x128xf32>
    %1281 = arith.addf %1279, %1280 : vector<8x128xf32>
    %cst_408 = arith.constant 5.000000e-01 : f32
    %1282 = vector.broadcast %cst_408 : f32 to vector<8x128xf32>
    %1283 = arith.mulf %1282, %1281 : vector<8x128xf32>
    %1284 = vector.extract_strided_slice %1236 {offsets = [0, 256], sizes = [8, 128], strides = [1, 1]} : vector<8x512xf32> to vector<8x128xf32>
    %1285 = math.tanh %1284 : vector<8x128xf32>
    %1286 = vector.extract_strided_slice %1236 {offsets = [0, 384], sizes = [8, 128], strides = [1, 1]} : vector<8x512xf32> to vector<8x128xf32>
    %cst_409 = arith.constant 5.000000e-01 : f32
    %1287 = vector.broadcast %cst_409 : f32 to vector<8x128xf32>
    %1288 = arith.mulf %1287, %1286 : vector<8x128xf32>
    %1289 = math.tanh %1288 : vector<8x128xf32>
    %cst_410 = arith.constant 1.000000e+00 : f32
    %1290 = vector.broadcast %cst_410 : f32 to vector<8x128xf32>
    %1291 = arith.addf %1289, %1290 : vector<8x128xf32>
    %cst_411 = arith.constant 5.000000e-01 : f32
    %1292 = vector.broadcast %cst_411 : f32 to vector<8x128xf32>
    %1293 = arith.mulf %1292, %1291 : vector<8x128xf32>
    %1294 = arith.mulf %1283, %1222 : vector<8x128xf32>
    %1295 = arith.mulf %1275, %1285 : vector<8x128xf32>
    %1296 = arith.addf %1294, %1295 : vector<8x128xf32>
    %1297 = math.tanh %1296 : vector<8x128xf32>
    %1298 = arith.mulf %1293, %1297 : vector<8x128xf32>
    %c18_i32 = arith.constant 18 : i32
    %1299 = tpu.concatenate %1267, %1298 in 1 : vector<8x128xf32>, vector<8x128xf32> -> vector<8x256xf32>
    %1300 = arith.truncf %1299 : vector<8x256xf32> to vector<8x256xbf16>
    %c0_412 = arith.constant 0 : index
    %c0_413 = arith.constant 0 : index
    %1301 = vector.load %arg3[%c0_412, %c0_413] : memref<256x1024xbf16, #tpu.memory_space<vmem>>, vector<256x1024xbf16>
    %cst_414 = arith.constant dense<0.000000e+00> : vector<8x1024xf32>
    %1302 = tpu.matmul %1300, %1301, %cst_414 {dimension_numbers = #tpu.dot_dimension_numbers<[1], [0], [0], [1], [0, 0, 1, 1], [], []>} : vector<8x256xbf16>, vector<256x1024xbf16>, vector<8x1024xf32> -> vector<8x1024xf32>
    %c8_i32_415 = arith.constant 8 : i32
    %1303 = arith.muli %c18_i32, %c8_i32_415 : i32
    %1304 = vector.extract_strided_slice %1302 {offsets = [0, 0], sizes = [8, 512], strides = [1, 1]} : vector<8x1024xf32> to vector<8x512xf32>
    %1305 = arith.index_cast %1303 : i32 to index
    %c0_416 = arith.constant 0 : index
    %1306 = vector.load %arg14[%1305, %c0_416] : memref<160x512xf32, #tpu.memory_space<vmem>>, vector<8x512xf32>
    %1307 = arith.addf %1304, %1306 : vector<8x512xf32>
    %1308 = vector.extract_strided_slice %1302 {offsets = [0, 512], sizes = [8, 512], strides = [1, 1]} : vector<8x1024xf32> to vector<8x512xf32>
    %1309 = vector.broadcast %7 : vector<1x512xf32> to vector<8x512xf32>
    %1310 = arith.addf %1308, %1309 : vector<8x512xf32>
    %1311 = vector.extract_strided_slice %1307 {offsets = [0, 0], sizes = [8, 128], strides = [1, 1]} : vector<8x512xf32> to vector<8x128xf32>
    %cst_417 = arith.constant 5.000000e-01 : f32
    %1312 = vector.broadcast %cst_417 : f32 to vector<8x128xf32>
    %1313 = arith.mulf %1312, %1311 : vector<8x128xf32>
    %1314 = math.tanh %1313 : vector<8x128xf32>
    %cst_418 = arith.constant 1.000000e+00 : f32
    %1315 = vector.broadcast %cst_418 : f32 to vector<8x128xf32>
    %1316 = arith.addf %1314, %1315 : vector<8x128xf32>
    %cst_419 = arith.constant 5.000000e-01 : f32
    %1317 = vector.broadcast %cst_419 : f32 to vector<8x128xf32>
    %1318 = arith.mulf %1317, %1316 : vector<8x128xf32>
    %1319 = vector.extract_strided_slice %1307 {offsets = [0, 128], sizes = [8, 128], strides = [1, 1]} : vector<8x512xf32> to vector<8x128xf32>
    %cst_420 = arith.constant 5.000000e-01 : f32
    %1320 = vector.broadcast %cst_420 : f32 to vector<8x128xf32>
    %1321 = arith.mulf %1320, %1319 : vector<8x128xf32>
    %1322 = math.tanh %1321 : vector<8x128xf32>
    %cst_421 = arith.constant 1.000000e+00 : f32
    %1323 = vector.broadcast %cst_421 : f32 to vector<8x128xf32>
    %1324 = arith.addf %1322, %1323 : vector<8x128xf32>
    %cst_422 = arith.constant 5.000000e-01 : f32
    %1325 = vector.broadcast %cst_422 : f32 to vector<8x128xf32>
    %1326 = arith.mulf %1325, %1324 : vector<8x128xf32>
    %1327 = vector.extract_strided_slice %1307 {offsets = [0, 256], sizes = [8, 128], strides = [1, 1]} : vector<8x512xf32> to vector<8x128xf32>
    %1328 = math.tanh %1327 : vector<8x128xf32>
    %1329 = vector.extract_strided_slice %1307 {offsets = [0, 384], sizes = [8, 128], strides = [1, 1]} : vector<8x512xf32> to vector<8x128xf32>
    %cst_423 = arith.constant 5.000000e-01 : f32
    %1330 = vector.broadcast %cst_423 : f32 to vector<8x128xf32>
    %1331 = arith.mulf %1330, %1329 : vector<8x128xf32>
    %1332 = math.tanh %1331 : vector<8x128xf32>
    %cst_424 = arith.constant 1.000000e+00 : f32
    %1333 = vector.broadcast %cst_424 : f32 to vector<8x128xf32>
    %1334 = arith.addf %1332, %1333 : vector<8x128xf32>
    %cst_425 = arith.constant 5.000000e-01 : f32
    %1335 = vector.broadcast %cst_425 : f32 to vector<8x128xf32>
    %1336 = arith.mulf %1335, %1334 : vector<8x128xf32>
    %1337 = arith.mulf %1326, %1265 : vector<8x128xf32>
    %1338 = arith.mulf %1318, %1328 : vector<8x128xf32>
    %1339 = arith.addf %1337, %1338 : vector<8x128xf32>
    %1340 = math.tanh %1339 : vector<8x128xf32>
    %1341 = arith.mulf %1336, %1340 : vector<8x128xf32>
    %1342 = vector.extract_strided_slice %1310 {offsets = [0, 0], sizes = [8, 128], strides = [1, 1]} : vector<8x512xf32> to vector<8x128xf32>
    %cst_426 = arith.constant 5.000000e-01 : f32
    %1343 = vector.broadcast %cst_426 : f32 to vector<8x128xf32>
    %1344 = arith.mulf %1343, %1342 : vector<8x128xf32>
    %1345 = math.tanh %1344 : vector<8x128xf32>
    %cst_427 = arith.constant 1.000000e+00 : f32
    %1346 = vector.broadcast %cst_427 : f32 to vector<8x128xf32>
    %1347 = arith.addf %1345, %1346 : vector<8x128xf32>
    %cst_428 = arith.constant 5.000000e-01 : f32
    %1348 = vector.broadcast %cst_428 : f32 to vector<8x128xf32>
    %1349 = arith.mulf %1348, %1347 : vector<8x128xf32>
    %1350 = vector.extract_strided_slice %1310 {offsets = [0, 128], sizes = [8, 128], strides = [1, 1]} : vector<8x512xf32> to vector<8x128xf32>
    %cst_429 = arith.constant 5.000000e-01 : f32
    %1351 = vector.broadcast %cst_429 : f32 to vector<8x128xf32>
    %1352 = arith.mulf %1351, %1350 : vector<8x128xf32>
    %1353 = math.tanh %1352 : vector<8x128xf32>
    %cst_430 = arith.constant 1.000000e+00 : f32
    %1354 = vector.broadcast %cst_430 : f32 to vector<8x128xf32>
    %1355 = arith.addf %1353, %1354 : vector<8x128xf32>
    %cst_431 = arith.constant 5.000000e-01 : f32
    %1356 = vector.broadcast %cst_431 : f32 to vector<8x128xf32>
    %1357 = arith.mulf %1356, %1355 : vector<8x128xf32>
    %1358 = vector.extract_strided_slice %1310 {offsets = [0, 256], sizes = [8, 128], strides = [1, 1]} : vector<8x512xf32> to vector<8x128xf32>
    %1359 = math.tanh %1358 : vector<8x128xf32>
    %1360 = vector.extract_strided_slice %1310 {offsets = [0, 384], sizes = [8, 128], strides = [1, 1]} : vector<8x512xf32> to vector<8x128xf32>
    %cst_432 = arith.constant 5.000000e-01 : f32
    %1361 = vector.broadcast %cst_432 : f32 to vector<8x128xf32>
    %1362 = arith.mulf %1361, %1360 : vector<8x128xf32>
    %1363 = math.tanh %1362 : vector<8x128xf32>
    %cst_433 = arith.constant 1.000000e+00 : f32
    %1364 = vector.broadcast %cst_433 : f32 to vector<8x128xf32>
    %1365 = arith.addf %1363, %1364 : vector<8x128xf32>
    %cst_434 = arith.constant 5.000000e-01 : f32
    %1366 = vector.broadcast %cst_434 : f32 to vector<8x128xf32>
    %1367 = arith.mulf %1366, %1365 : vector<8x128xf32>
    %1368 = arith.mulf %1357, %1296 : vector<8x128xf32>
    %1369 = arith.mulf %1349, %1359 : vector<8x128xf32>
    %1370 = arith.addf %1368, %1369 : vector<8x128xf32>
    %1371 = math.tanh %1370 : vector<8x128xf32>
    %1372 = arith.mulf %1367, %1371 : vector<8x128xf32>
    %c19_i32 = arith.constant 19 : i32
    %1373 = tpu.concatenate %1341, %1372 in 1 : vector<8x128xf32>, vector<8x128xf32> -> vector<8x256xf32>
    %1374 = arith.truncf %1373 : vector<8x256xf32> to vector<8x256xbf16>
    %c0_435 = arith.constant 0 : index
    %c0_436 = arith.constant 0 : index
    %1375 = vector.load %arg3[%c0_435, %c0_436] : memref<256x1024xbf16, #tpu.memory_space<vmem>>, vector<256x1024xbf16>
    %cst_437 = arith.constant dense<0.000000e+00> : vector<8x1024xf32>
    %1376 = tpu.matmul %1374, %1375, %cst_437 {dimension_numbers = #tpu.dot_dimension_numbers<[1], [0], [0], [1], [0, 0, 1, 1], [], []>} : vector<8x256xbf16>, vector<256x1024xbf16>, vector<8x1024xf32> -> vector<8x1024xf32>
    %c8_i32_438 = arith.constant 8 : i32
    %1377 = arith.muli %c19_i32, %c8_i32_438 : i32
    %1378 = vector.extract_strided_slice %1376 {offsets = [0, 0], sizes = [8, 512], strides = [1, 1]} : vector<8x1024xf32> to vector<8x512xf32>
    %1379 = arith.index_cast %1377 : i32 to index
    %c0_439 = arith.constant 0 : index
    %1380 = vector.load %arg14[%1379, %c0_439] : memref<160x512xf32, #tpu.memory_space<vmem>>, vector<8x512xf32>
    %1381 = arith.addf %1378, %1380 : vector<8x512xf32>
    %1382 = vector.extract_strided_slice %1376 {offsets = [0, 512], sizes = [8, 512], strides = [1, 1]} : vector<8x1024xf32> to vector<8x512xf32>
    %1383 = vector.broadcast %7 : vector<1x512xf32> to vector<8x512xf32>
    %1384 = arith.addf %1382, %1383 : vector<8x512xf32>
    %1385 = vector.extract_strided_slice %1381 {offsets = [0, 0], sizes = [8, 128], strides = [1, 1]} : vector<8x512xf32> to vector<8x128xf32>
    %cst_440 = arith.constant 5.000000e-01 : f32
    %1386 = vector.broadcast %cst_440 : f32 to vector<8x128xf32>
    %1387 = arith.mulf %1386, %1385 : vector<8x128xf32>
    %1388 = math.tanh %1387 : vector<8x128xf32>
    %cst_441 = arith.constant 1.000000e+00 : f32
    %1389 = vector.broadcast %cst_441 : f32 to vector<8x128xf32>
    %1390 = arith.addf %1388, %1389 : vector<8x128xf32>
    %cst_442 = arith.constant 5.000000e-01 : f32
    %1391 = vector.broadcast %cst_442 : f32 to vector<8x128xf32>
    %1392 = arith.mulf %1391, %1390 : vector<8x128xf32>
    %1393 = vector.extract_strided_slice %1381 {offsets = [0, 128], sizes = [8, 128], strides = [1, 1]} : vector<8x512xf32> to vector<8x128xf32>
    %cst_443 = arith.constant 5.000000e-01 : f32
    %1394 = vector.broadcast %cst_443 : f32 to vector<8x128xf32>
    %1395 = arith.mulf %1394, %1393 : vector<8x128xf32>
    %1396 = math.tanh %1395 : vector<8x128xf32>
    %cst_444 = arith.constant 1.000000e+00 : f32
    %1397 = vector.broadcast %cst_444 : f32 to vector<8x128xf32>
    %1398 = arith.addf %1396, %1397 : vector<8x128xf32>
    %cst_445 = arith.constant 5.000000e-01 : f32
    %1399 = vector.broadcast %cst_445 : f32 to vector<8x128xf32>
    %1400 = arith.mulf %1399, %1398 : vector<8x128xf32>
    %1401 = vector.extract_strided_slice %1381 {offsets = [0, 256], sizes = [8, 128], strides = [1, 1]} : vector<8x512xf32> to vector<8x128xf32>
    %1402 = math.tanh %1401 : vector<8x128xf32>
    %1403 = vector.extract_strided_slice %1381 {offsets = [0, 384], sizes = [8, 128], strides = [1, 1]} : vector<8x512xf32> to vector<8x128xf32>
    %cst_446 = arith.constant 5.000000e-01 : f32
    %1404 = vector.broadcast %cst_446 : f32 to vector<8x128xf32>
    %1405 = arith.mulf %1404, %1403 : vector<8x128xf32>
    %1406 = math.tanh %1405 : vector<8x128xf32>
    %cst_447 = arith.constant 1.000000e+00 : f32
    %1407 = vector.broadcast %cst_447 : f32 to vector<8x128xf32>
    %1408 = arith.addf %1406, %1407 : vector<8x128xf32>
    %cst_448 = arith.constant 5.000000e-01 : f32
    %1409 = vector.broadcast %cst_448 : f32 to vector<8x128xf32>
    %1410 = arith.mulf %1409, %1408 : vector<8x128xf32>
    %1411 = arith.mulf %1400, %1339 : vector<8x128xf32>
    %1412 = arith.mulf %1392, %1402 : vector<8x128xf32>
    %1413 = arith.addf %1411, %1412 : vector<8x128xf32>
    %1414 = math.tanh %1413 : vector<8x128xf32>
    %1415 = arith.mulf %1410, %1414 : vector<8x128xf32>
    %1416 = vector.extract_strided_slice %1384 {offsets = [0, 0], sizes = [8, 128], strides = [1, 1]} : vector<8x512xf32> to vector<8x128xf32>
    %cst_449 = arith.constant 5.000000e-01 : f32
    %1417 = vector.broadcast %cst_449 : f32 to vector<8x128xf32>
    %1418 = arith.mulf %1417, %1416 : vector<8x128xf32>
    %1419 = math.tanh %1418 : vector<8x128xf32>
    %cst_450 = arith.constant 1.000000e+00 : f32
    %1420 = vector.broadcast %cst_450 : f32 to vector<8x128xf32>
    %1421 = arith.addf %1419, %1420 : vector<8x128xf32>
    %cst_451 = arith.constant 5.000000e-01 : f32
    %1422 = vector.broadcast %cst_451 : f32 to vector<8x128xf32>
    %1423 = arith.mulf %1422, %1421 : vector<8x128xf32>
    %1424 = vector.extract_strided_slice %1384 {offsets = [0, 128], sizes = [8, 128], strides = [1, 1]} : vector<8x512xf32> to vector<8x128xf32>
    %cst_452 = arith.constant 5.000000e-01 : f32
    %1425 = vector.broadcast %cst_452 : f32 to vector<8x128xf32>
    %1426 = arith.mulf %1425, %1424 : vector<8x128xf32>
    %1427 = math.tanh %1426 : vector<8x128xf32>
    %cst_453 = arith.constant 1.000000e+00 : f32
    %1428 = vector.broadcast %cst_453 : f32 to vector<8x128xf32>
    %1429 = arith.addf %1427, %1428 : vector<8x128xf32>
    %cst_454 = arith.constant 5.000000e-01 : f32
    %1430 = vector.broadcast %cst_454 : f32 to vector<8x128xf32>
    %1431 = arith.mulf %1430, %1429 : vector<8x128xf32>
    %1432 = vector.extract_strided_slice %1384 {offsets = [0, 256], sizes = [8, 128], strides = [1, 1]} : vector<8x512xf32> to vector<8x128xf32>
    %1433 = math.tanh %1432 : vector<8x128xf32>
    %1434 = vector.extract_strided_slice %1384 {offsets = [0, 384], sizes = [8, 128], strides = [1, 1]} : vector<8x512xf32> to vector<8x128xf32>
    %cst_455 = arith.constant 5.000000e-01 : f32
    %1435 = vector.broadcast %cst_455 : f32 to vector<8x128xf32>
    %1436 = arith.mulf %1435, %1434 : vector<8x128xf32>
    %1437 = math.tanh %1436 : vector<8x128xf32>
    %cst_456 = arith.constant 1.000000e+00 : f32
    %1438 = vector.broadcast %cst_456 : f32 to vector<8x128xf32>
    %1439 = arith.addf %1437, %1438 : vector<8x128xf32>
    %cst_457 = arith.constant 5.000000e-01 : f32
    %1440 = vector.broadcast %cst_457 : f32 to vector<8x128xf32>
    %1441 = arith.mulf %1440, %1439 : vector<8x128xf32>
    %1442 = arith.mulf %1431, %1370 : vector<8x128xf32>
    %1443 = arith.mulf %1423, %1433 : vector<8x128xf32>
    %1444 = arith.addf %1442, %1443 : vector<8x128xf32>
    %1445 = math.tanh %1444 : vector<8x128xf32>
    %1446 = arith.mulf %1441, %1445 : vector<8x128xf32>
    %c19_i32_458 = arith.constant 19 : i32
    %1447 = tpu.concatenate %1415, %1446 in 1 : vector<8x128xf32>, vector<8x128xf32> -> vector<8x256xf32>
    %1448 = arith.truncf %1447 : vector<8x256xf32> to vector<8x256xbf16>
    %c0_459 = arith.constant 0 : index
    %c0_460 = arith.constant 0 : index
    %1449 = vector.load %arg3[%c0_459, %c0_460] : memref<256x1024xbf16, #tpu.memory_space<vmem>>, vector<256x1024xbf16>
    %cst_461 = arith.constant dense<0.000000e+00> : vector<8x1024xf32>
    %1450 = tpu.matmul %1448, %1449, %cst_461 {dimension_numbers = #tpu.dot_dimension_numbers<[1], [0], [0], [1], [0, 0, 1, 1], [], []>} : vector<8x256xbf16>, vector<256x1024xbf16>, vector<8x1024xf32> -> vector<8x1024xf32>
    %1451 = vector.extract_strided_slice %1450 {offsets = [0, 512], sizes = [8, 512], strides = [1, 1]} : vector<8x1024xf32> to vector<8x512xf32>
    %1452 = vector.broadcast %7 : vector<1x512xf32> to vector<8x512xf32>
    %1453 = arith.addf %1451, %1452 : vector<8x512xf32>
    %1454 = vector.extract_strided_slice %1453 {offsets = [0, 0], sizes = [8, 128], strides = [1, 1]} : vector<8x512xf32> to vector<8x128xf32>
    %cst_462 = arith.constant 5.000000e-01 : f32
    %1455 = vector.broadcast %cst_462 : f32 to vector<8x128xf32>
    %1456 = arith.mulf %1455, %1454 : vector<8x128xf32>
    %1457 = math.tanh %1456 : vector<8x128xf32>
    %cst_463 = arith.constant 1.000000e+00 : f32
    %1458 = vector.broadcast %cst_463 : f32 to vector<8x128xf32>
    %1459 = arith.addf %1457, %1458 : vector<8x128xf32>
    %cst_464 = arith.constant 5.000000e-01 : f32
    %1460 = vector.broadcast %cst_464 : f32 to vector<8x128xf32>
    %1461 = arith.mulf %1460, %1459 : vector<8x128xf32>
    %1462 = vector.extract_strided_slice %1453 {offsets = [0, 128], sizes = [8, 128], strides = [1, 1]} : vector<8x512xf32> to vector<8x128xf32>
    %cst_465 = arith.constant 5.000000e-01 : f32
    %1463 = vector.broadcast %cst_465 : f32 to vector<8x128xf32>
    %1464 = arith.mulf %1463, %1462 : vector<8x128xf32>
    %1465 = math.tanh %1464 : vector<8x128xf32>
    %cst_466 = arith.constant 1.000000e+00 : f32
    %1466 = vector.broadcast %cst_466 : f32 to vector<8x128xf32>
    %1467 = arith.addf %1465, %1466 : vector<8x128xf32>
    %cst_467 = arith.constant 5.000000e-01 : f32
    %1468 = vector.broadcast %cst_467 : f32 to vector<8x128xf32>
    %1469 = arith.mulf %1468, %1467 : vector<8x128xf32>
    %1470 = vector.extract_strided_slice %1453 {offsets = [0, 256], sizes = [8, 128], strides = [1, 1]} : vector<8x512xf32> to vector<8x128xf32>
    %1471 = math.tanh %1470 : vector<8x128xf32>
    %1472 = vector.extract_strided_slice %1453 {offsets = [0, 384], sizes = [8, 128], strides = [1, 1]} : vector<8x512xf32> to vector<8x128xf32>
    %cst_468 = arith.constant 5.000000e-01 : f32
    %1473 = vector.broadcast %cst_468 : f32 to vector<8x128xf32>
    %1474 = arith.mulf %1473, %1472 : vector<8x128xf32>
    %1475 = math.tanh %1474 : vector<8x128xf32>
    %cst_469 = arith.constant 1.000000e+00 : f32
    %1476 = vector.broadcast %cst_469 : f32 to vector<8x128xf32>
    %1477 = arith.addf %1475, %1476 : vector<8x128xf32>
    %cst_470 = arith.constant 5.000000e-01 : f32
    %1478 = vector.broadcast %cst_470 : f32 to vector<8x128xf32>
    %1479 = arith.mulf %1478, %1477 : vector<8x128xf32>
    %1480 = arith.mulf %1469, %1444 : vector<8x128xf32>
    %1481 = arith.mulf %1461, %1471 : vector<8x128xf32>
    %1482 = arith.addf %1480, %1481 : vector<8x128xf32>
    %1483 = math.tanh %1482 : vector<8x128xf32>
    %1484 = arith.mulf %1479, %1483 : vector<8x128xf32>
    %c0_471 = arith.constant 0 : index
    %c0_472 = arith.constant 0 : index
    %1485 = vector.load %arg5[%c0_471, %c0_472] : memref<1x128xf32, #tpu.memory_space<vmem>>, vector<1x128xf32>
    %1486 = vector.broadcast %1485 : vector<1x128xf32> to vector<8x128xf32>
    %1487 = arith.mulf %1484, %1486 : vector<8x128xf32>
    %c0_473 = arith.constant 0 : index
    %c0_474 = arith.constant 0 : index
    %1488 = vector.load %arg6[%c0_473, %c0_474] : memref<1x128xf32, #tpu.memory_space<vmem>>, vector<1x128xf32>
    %1489 = vector.broadcast %1488 : vector<1x128xf32> to vector<8x128xf32>
    %1490 = arith.addf %1487, %1489 : vector<8x128xf32>
    %c0_475 = arith.constant 0 : index
    %c0_476 = arith.constant 0 : index
    %1491 = vector.load %arg7[%c0_475, %c0_476] : memref<128x128xf32, #tpu.memory_space<vmem>>, vector<128x128xf32>
    %cst_477 = arith.constant dense<0.000000e+00> : vector<8x128xf32>
    %1492 = tpu.matmul %1490, %1491, %cst_477 {dimension_numbers = #tpu.dot_dimension_numbers<[1], [0], [0], [1], [0, 0, 1, 1], [], []>} : vector<8x128xf32>, vector<128x128xf32>, vector<8x128xf32> -> vector<8x128xf32>
    %c0_478 = arith.constant 0 : index
    %c0_479 = arith.constant 0 : index
    %1493 = vector.load %arg8[%c0_478, %c0_479] : memref<1x128xf32, #tpu.memory_space<vmem>>, vector<1x128xf32>
    %1494 = vector.broadcast %1493 : vector<1x128xf32> to vector<8x128xf32>
    %1495 = arith.addf %1492, %1494 : vector<8x128xf32>
    %c0_480 = arith.constant 0 : index
    %c0_481 = arith.constant 0 : index
    %1496 = vector.load %arg9[%c0_480, %c0_481] : memref<1x128xf32, #tpu.memory_space<vmem>>, vector<1x128xf32>
    %1497 = vector.broadcast %1496 : vector<1x128xf32> to vector<8x128xf32>
    %1498 = arith.mulf %1495, %1497 : vector<8x128xf32>
    %c0_482 = arith.constant 0 : index
    %c0_483 = arith.constant 0 : index
    %1499 = vector.load %arg10[%c0_482, %c0_483] : memref<1x128xf32, #tpu.memory_space<vmem>>, vector<1x128xf32>
    %1500 = vector.broadcast %1499 : vector<1x128xf32> to vector<8x128xf32>
    %1501 = arith.addf %1498, %1500 : vector<8x128xf32>
    %cst_484 = arith.constant 0.000000e+00 : f32
    %1502 = vector.broadcast %cst_484 : f32 to vector<8x128xf32>
    %1503 = arith.maximumf %1501, %1502 : vector<8x128xf32>
    %c0_485 = arith.constant 0 : index
    %c0_486 = arith.constant 0 : index
    %1504 = vector.load %arg11[%c0_485, %c0_486] : memref<128x3xf32, #tpu.memory_space<vmem>>, vector<128x3xf32>
    %cst_487 = arith.constant dense<0.000000e+00> : vector<8x3xf32>
    %1505 = tpu.matmul %1503, %1504, %cst_487 {dimension_numbers = #tpu.dot_dimension_numbers<[1], [0], [0], [1], [0, 0, 1, 1], [], []>} : vector<8x128xf32>, vector<128x3xf32>, vector<8x3xf32> -> vector<8x3xf32>
    %c0_488 = arith.constant 0 : index
    %c0_489 = arith.constant 0 : index
    %1506 = vector.load %arg12[%c0_488, %c0_489] : memref<1x3xf32, #tpu.memory_space<vmem>>, vector<1x3xf32>
    %1507 = vector.broadcast %1506 : vector<1x3xf32> to vector<8x3xf32>
    %1508 = arith.addf %1505, %1507 : vector<8x3xf32>
    %c0_490 = arith.constant 0 : index
    %c0_491 = arith.constant 0 : index
    %1509 = vector.load %arg13[%c0_490, %c0_491] : memref<8x3xf32, #tpu.memory_space<vmem>>, vector<8x3xf32>
    tpu.vector_store %arg13[%c0_490, %c0_491], %1508 {strides = array<i32>} : memref<8x3xf32, #tpu.memory_space<vmem>>, vector<8x3xf32>,
    return
  }
}

</mosaic_0001>

<llo_original>
// kernel: pattern_nn_forward.1
$region0: #{pattern_nn_forward.1}
  #allocation0 [shape = 'u32[]', space=smem, size = 0x4, offset = 0x4, fixed_abs, tag = 'smem constant byte address 0x4 - core index']
  #allocation1 [shape = 'u32[144,128]{1,0:T(1,128)}', space=vmem, size = 0x12000, scoped, tag = 'internal scratch']
  #allocation2 [shape = 'f32[160,512]{1,0:T(8,128)}', space=vmem, size = 0x50000, scoped, tag = 'scratch operand']
  %s0 = inlined_call_operand.vmem [shape: f32[160,5], index: 0, kind: input, shape index: {}]
  %s1 = inlined_call_operand.vmem [shape: f32[5,512], index: 1, kind: input, shape index: {}]
  %s2 = inlined_call_operand.vmem [shape: f32[1,512], index: 2, kind: input, shape index: {}]
  %s3 = inlined_call_operand.vmem [shape: bf16[256,1024], index: 3, kind: input, shape index: {}]
  %s4 = inlined_call_operand.vmem [shape: f32[1,512], index: 4, kind: input, shape index: {}]
  %s5 = inlined_call_operand.vmem [shape: f32[1,128], index: 5, kind: input, shape index: {}]
  %s6 = inlined_call_operand.vmem [shape: f32[1,128], index: 6, kind: input, shape index: {}]
  %s7 = inlined_call_operand.vmem [shape: f32[128,128], index: 7, kind: input, shape index: {}]
  %s8 = inlined_call_operand.vmem [shape: f32[1,128], index: 8, kind: input, shape index: {}]
  %s9 = inlined_call_operand.vmem [shape: f32[1,128], index: 9, kind: input, shape index: {}]
  %s10 = inlined_call_operand.vmem [shape: f32[1,128], index: 10, kind: input, shape index: {}]
  %s11 = inlined_call_operand.vmem [shape: f32[128,3], index: 11, kind: input, shape index: {}]
  %s12 = inlined_call_operand.vmem [shape: f32[1,3], index: 12, kind: input, shape index: {}]
  %s13 = inlined_call_operand.vmem [shape: f32[8,3], index: 13, kind: output, shape index: {}]
  %s14 = sld [smem:[#allocation0]]
  $region62: #{pattern_nn_forward.1} parent=0
    _
  %s16 = ssub.s32 1, %s14
  %s17 = scalar_select 0, %s16, %s14
  // Predicated region
  $region2: #{pattern_nn_forward.1} parent=0 // pred_check
    _
  $region3: #{pattern_nn_forward.1} parent=0 // pred_check_branch
    %19 = sbr.rel (0) target = $region5
  $region4: #{pattern_nn_forward.1} parent=0 // pred_region
    _
  $region5: #{pattern_nn_forward.1} parent=0 // pred_fallthru
    _
  // Predicated region
  $region6: #{pattern_nn_forward.1} parent=0 // pred_check
    _
  $region7: #{pattern_nn_forward.1} parent=0 // pred_check_branch
    %21 = sbr.rel (0) target = $region9
  $region8: #{pattern_nn_forward.1} parent=0 // pred_region
    _
  $region9: #{pattern_nn_forward.1} parent=0 // pred_fallthru
    _
  // Predicated region
  $region10: #{pattern_nn_forward.1} parent=0 // pred_check
    _
  $region11: #{pattern_nn_forward.1} parent=0 // pred_check_branch
    %23 = sbr.rel (0) target = $region13
  $region12: #{pattern_nn_forward.1} parent=0 // pred_region
    _
  $region13: #{pattern_nn_forward.1} parent=0 // pred_fallthru
    _
  // Predicated region
  $region14: #{pattern_nn_forward.1} parent=0 // pred_check
    _
  $region15: #{pattern_nn_forward.1} parent=0 // pred_check_branch
    %25 = sbr.rel (0) target = $region17
  $region16: #{pattern_nn_forward.1} parent=0 // pred_region
    _
  $region17: #{pattern_nn_forward.1} parent=0 // pred_fallthru
    _
  // Predicated region
  $region18: #{pattern_nn_forward.1} parent=0 // pred_check
    _
  $region19: #{pattern_nn_forward.1} parent=0 // pred_check_branch
    %27 = sbr.rel (0) target = $region21
  $region20: #{pattern_nn_forward.1} parent=0 // pred_region
    _
  $region21: #{pattern_nn_forward.1} parent=0 // pred_fallthru
    _
  // Predicated region
  $region22: #{pattern_nn_forward.1} parent=0 // pred_check
    _
  $region23: #{pattern_nn_forward.1} parent=0 // pred_check_branch
    %29 = sbr.rel (0) target = $region25
  $region24: #{pattern_nn_forward.1} parent=0 // pred_region
    _
  $region25: #{pattern_nn_forward.1} parent=0 // pred_fallthru
    _
  // Predicated region
  $region26: #{pattern_nn_forward.1} parent=0 // pred_check
    _
  $region27: #{pattern_nn_forward.1} parent=0 // pred_check_branch
    %31 = sbr.rel (0) target = $region29
  $region28: #{pattern_nn_forward.1} parent=0 // pred_region
    _
  $region29: #{pattern_nn_forward.1} parent=0 // pred_fallthru
    _
  // Predicated region
  $region30: #{pattern_nn_forward.1} parent=0 // pred_check
    _
  $region31: #{pattern_nn_forward.1} parent=0 // pred_check_branch
    %33 = sbr.rel (0) target = $region33
  $region32: #{pattern_nn_forward.1} parent=0 // pred_region
    _
  $region33: #{pattern_nn_forward.1} parent=0 // pred_fallthru
    _
  // Predicated region
  $region34: #{pattern_nn_forward.1} parent=0 // pred_check
    _
  $region35: #{pattern_nn_forward.1} parent=0 // pred_check_branch
    %35 = sbr.rel (0) target = $region37
  $region36: #{pattern_nn_forward.1} parent=0 // pred_region
    _
  $region37: #{pattern_nn_forward.1} parent=0 // pred_fallthru
    _
  // Predicated region
  $region38: #{pattern_nn_forward.1} parent=0 // pred_check
    _
  $region39: #{pattern_nn_forward.1} parent=0 // pred_check_branch
    %37 = sbr.rel (0) target = $region41
  $region40: #{pattern_nn_forward.1} parent=0 // pred_region
    _
  $region41: #{pattern_nn_forward.1} parent=0 // pred_fallthru
    _
  // Predicated region
  $region42: #{pattern_nn_forward.1} parent=0 // pred_check
    _
  $region43: #{pattern_nn_forward.1} parent=0 // pred_check_branch
    %39 = sbr.rel (0) target = $region45
  $region44: #{pattern_nn_forward.1} parent=0 // pred_region
    _
  $region45: #{pattern_nn_forward.1} parent=0 // pred_fallthru
    _
  // Predicated region
  $region46: #{pattern_nn_forward.1} parent=0 // pred_check
    _
  $region47: #{pattern_nn_forward.1} parent=0 // pred_check_branch
    %41 = sbr.rel (0) target = $region49
  $region48: #{pattern_nn_forward.1} parent=0 // pred_region
    _
  $region49: #{pattern_nn_forward.1} parent=0 // pred_fallthru
    _
  // Predicated region
  $region50: #{pattern_nn_forward.1} parent=0 // pred_check
    _
  $region51: #{pattern_nn_forward.1} parent=0 // pred_check_branch
    %43 = sbr.rel (0) target = $region53
  $region52: #{pattern_nn_forward.1} parent=0 // pred_region
    _
  $region53: #{pattern_nn_forward.1} parent=0 // pred_fallthru
    _
  %v44 = vld [vmem:[%s0] sm:$0xff]
  %v45 = vld [vmem:[%s0 + $0x8] sm:$0xff]
  %v46 = vld [vmem:[%s0 + $0x10] sm:$0xff]
  %v47 = vld [vmem:[%s0 + $0x18] sm:$0xff]
  %v48 = vld [vmem:[%s0 + $0x20] sm:$0xff]
  %v49 = vld [vmem:[%s0 + $0x28] sm:$0xff]
  %v50 = vld [vmem:[%s0 + $0x30] sm:$0xff]
  %v51 = vld [vmem:[%s0 + $0x38] sm:$0xff]
  %v52 = vld [vmem:[%s0 + $0x40] sm:$0xff]
  %v53 = vld [vmem:[%s0 + $0x48] sm:$0xff]
  %v54 = vld [vmem:[%s0 + $0x50] sm:$0xff]
  %v55 = vld [vmem:[%s0 + $0x58] sm:$0xff]
  %v56 = vld [vmem:[%s0 + $0x60] sm:$0xff]
  %v57 = vld [vmem:[%s0 + $0x68] sm:$0xff]
  %v58 = vld [vmem:[%s0 + $0x70] sm:$0xff]
  %v59 = vld [vmem:[%s0 + $0x78] sm:$0xff]
  %v60 = vld [vmem:[%s0 + $0x80] sm:$0xff]
  %v61 = vld [vmem:[%s0 + $0x88] sm:$0xff]
  %v62 = vld [vmem:[%s0 + $0x90] sm:$0xff]
  %v63 = vld [vmem:[%s0 + $0x98] sm:$0xff]
  %v64 = vld [vmem:[%s1] sm:$0x1f]
  %v65 = vld [vmem:[%s1 + $0x8] sm:$0x1f]
  %v66 = vld [vmem:[%s1 + $0x10] sm:$0x1f]
  %v67 = vld [vmem:[%s1 + $0x18] sm:$0x1f]
  %v68 = vld [vmem:[%s2] sm:$0xf]
  %v70 = vlaneseq
  %v71 = vshrl.u32 %v70, 7
  %v72 = vsub.s32 0, %v71
  %v73 = vrot.slane %v68, %v72
  %v74 = vlaneseq
  %v75 = vshrl.u32 %v74, 7
  %v76 = vsub.s32 1, %v75
  %v77 = vrot.slane %v68, %v76
  %v78 = vlaneseq
  %v79 = vshrl.u32 %v78, 7
  %v80 = vsub.s32 2, %v79
  %v81 = vrot.slane %v68, %v80
  %v82 = vlaneseq
  %v83 = vshrl.u32 %v82, 7
  %v84 = vsub.s32 3, %v83
  %v85 = vrot.slane %v68, %v84
  %vm90 = vcmask 39936
  %v92 = vsel %vm90, %v44, 0
  %v95 = vsel %vm90, %v45, 0
  %v98 = vsel %vm90, %v46, 0
  %v101 = vsel %vm90, %v47, 0
  %v104 = vsel %vm90, %v48, 0
  %v107 = vsel %vm90, %v49, 0
  %v110 = vsel %vm90, %v50, 0
  %v113 = vsel %vm90, %v51, 0
  %v116 = vsel %vm90, %v52, 0
  %v119 = vsel %vm90, %v53, 0
  %v122 = vsel %vm90, %v54, 0
  %v125 = vsel %vm90, %v55, 0
  %v128 = vsel %vm90, %v56, 0
  %v131 = vsel %vm90, %v57, 0
  %v134 = vsel %vm90, %v58, 0
  %v137 = vsel %vm90, %v59, 0
  %v140 = vsel %vm90, %v60, 0
  %v143 = vsel %vm90, %v61, 0
  %v146 = vsel %vm90, %v62, 0
  %v149 = vsel %vm90, %v63, 0
  %vm151 = vcmask 1044480
  %v153 = vsel %vm151, %v64, 0
  %v156 = vsel %vm151, %v65, 0
  %v159 = vsel %vm151, %v66, 0
  %v162 = vsel %vm151, %v67, 0
  %164 = vmatprep.subr.mxu0 0.0
  %165 = vmatpush1.msra.mxu0 0.0
  %166 = vmatprep.subr.mxu0 0.0
  %167 = vmatpush1.msra.mxu0 0.0
  %168 = vmatprep.subr.mxu0 0.0
  %169 = vmatpush1.msra.mxu0 0.0
  %170 = vmatprep.subr.mxu0 0.0
  %171 = vmatpush1.msra.mxu0 0.0
  %172 = vmatprep.subr.mxu0 0.0
  %173 = vmatpush1.msra.mxu0 0.0
  %174 = vmatprep.subr.mxu0 0.0
  %175 = vmatpush1.msra.mxu0 0.0
  %176 = vmatprep.subr.mxu0 0.0
  %177 = vmatpush1.msra.mxu0 0.0
  %178 = vmatprep.subr.mxu0 0.0
  %179 = vmatpush1.msra.mxu0 0.0
  %180 = vmatprep.subr.mxu0 0.0
  %181 = vmatpush1.msra.mxu0 0.0
  %182 = vmatprep.subr.mxu0 0.0
  %183 = vmatpush1.msra.mxu0 0.0
  %184 = vmatprep.subr.mxu0 0.0
  %185 = vmatpush1.msra.mxu0 0.0
  %186 = vmatprep.subr.mxu0 0.0
  %187 = vmatpush1.msra.mxu0 0.0
  %188 = vmatprep.subr.mxu0 0.0
  %189 = vmatpush1.msra.mxu0 0.0
  %190 = vmatprep.subr.mxu0 0.0
  %191 = vmatpush1.msra.mxu0 0.0
  %192 = vmatprep.subr.mxu0 0.0
  %193 = vmatpush1.msra.mxu0 0.0
  %194 = vmatprep.subr.mxu0 %v156
  %195 = vmatpush1.msra.mxu0 %v153
  %196 = vmatprep.subr.mxu0 0.0
  %197 = vmatpush2.msra.mxu0 0.0
  %198 = vmatprep.subr.mxu0 0.0
  %199 = vmatpush2.msra.mxu0 0.0
  %200 = vmatprep.subr.mxu0 0.0
  %201 = vmatpush2.msra.mxu0 0.0
  %202 = vmatprep.subr.mxu0 0.0
  %203 = vmatpush2.msra.mxu0 0.0
  %204 = vmatprep.subr.mxu0 0.0
  %205 = vmatpush2.msra.mxu0 0.0
  %206 = vmatprep.subr.mxu0 0.0
  %207 = vmatpush2.msra.mxu0 0.0
  %208 = vmatprep.subr.mxu0 0.0
  %209 = vmatpush2.msra.mxu0 0.0
  %210 = vmatprep.subr.mxu0 0.0
  %211 = vmatpush2.msra.mxu0 0.0
  %212 = vmatprep.subr.mxu0 0.0
  %213 = vmatpush2.msra.mxu0 0.0
  %214 = vmatprep.subr.mxu0 0.0
  %215 = vmatpush2.msra.mxu0 0.0
  %216 = vmatprep.subr.mxu0 0.0
  %217 = vmatpush2.msra.mxu0 0.0
  %218 = vmatprep.subr.mxu0 0.0
  %219 = vmatpush2.msra.mxu0 0.0
  %220 = vmatprep.subr.mxu0 0.0
  %221 = vmatpush2.msra.mxu0 0.0
  %222 = vmatprep.subr.mxu0 0.0
  %223 = vmatpush2.msra.mxu0 0.0
  %224 = vmatprep.subr.mxu0 0.0
  %225 = vmatpush2.msra.mxu0 0.0
  %226 = vmatprep.subr.mxu0 0.0
  %227 = vmatpush2.msra.mxu0 0.0
  %228 = vmatprep.mubr.f32.mxu0 0.0
  %229 = vmatmul.mubr.f32.gmra.mxu0 %v92
  %v230 = vpop.f32.mrf.mxu0
  %v231 = vadd.f32 %v73, %v230
  %v232 = vpop.f32.mrf.mxu0
  %v233 = vadd.f32 %v77, %v232
  %234 = vmatprep.mubr.f32.mxu0 0.0
  %235 = vmatmul.mubr.f32.gmra.mxu0 %v95
  %v236 = vpop.f32.mrf.mxu0
  %v237 = vadd.f32 %v73, %v236
  %v238 = vpop.f32.mrf.mxu0
  %v239 = vadd.f32 %v77, %v238
  %240 = vmatprep.mubr.f32.mxu0 0.0
  %241 = vmatmul.mubr.f32.gmra.mxu0 %v98
  %v242 = vpop.f32.mrf.mxu0
  %v243 = vadd.f32 %v73, %v242
  %v244 = vpop.f32.mrf.mxu0
  %v245 = vadd.f32 %v77, %v244
  %246 = vmatprep.mubr.f32.mxu0 0.0
  %247 = vmatmul.mubr.f32.gmra.mxu0 %v101
  %v248 = vpop.f32.mrf.mxu0
  %v249 = vadd.f32 %v73, %v248
  %v250 = vpop.f32.mrf.mxu0
  %v251 = vadd.f32 %v77, %v250
  %252 = vmatprep.mubr.f32.mxu0 0.0
  %253 = vmatmul.mubr.f32.gmra.mxu0 %v104
  %v254 = vpop.f32.mrf.mxu0
  %v255 = vadd.f32 %v73, %v254
  %v256 = vpop.f32.mrf.mxu0
  %v257 = vadd.f32 %v77, %v256
  %258 = vmatprep.mubr.f32.mxu0 0.0
  %259 = vmatmul.mubr.f32.gmra.mxu0 %v107
  %v260 = vpop.f32.mrf.mxu0
  %v261 = vadd.f32 %v73, %v260
  %v262 = vpop.f32.mrf.mxu0
  %v263 = vadd.f32 %v77, %v262
  %264 = vmatprep.mubr.f32.mxu0 0.0
  %265 = vmatmul.mubr.f32.gmra.mxu0 %v110
  %v266 = vpop.f32.mrf.mxu0
  %v267 = vadd.f32 %v73, %v266
  %v268 = vpop.f32.mrf.mxu0
  %v269 = vadd.f32 %v77, %v268
  %270 = vmatprep.mubr.f32.mxu0 0.0
  %271 = vmatmul.mubr.f32.gmra.mxu0 %v113
  %v272 = vpop.f32.mrf.mxu0
  %v273 = vadd.f32 %v73, %v272
  %v274 = vpop.f32.mrf.mxu0
  %v275 = vadd.f32 %v77, %v274
  %276 = vmatprep.mubr.f32.mxu0 0.0
  %277 = vmatmul.mubr.f32.gmra.mxu0 %v116
  %v278 = vpop.f32.mrf.mxu0
  %v279 = vadd.f32 %v73, %v278
  %v280 = vpop.f32.mrf.mxu0
  %v281 = vadd.f32 %v77, %v280
  %282 = vmatprep.mubr.f32.mxu0 0.0
  %283 = vmatmul.mubr.f32.gmra.mxu0 %v119
  %v284 = vpop.f32.mrf.mxu0
  %v285 = vadd.f32 %v73, %v284
  %v286 = vpop.f32.mrf.mxu0
  %v287 = vadd.f32 %v77, %v286
  %288 = vmatprep.mubr.f32.mxu0 0.0
  %289 = vmatmul.mubr.f32.gmra.mxu0 %v122
  %v290 = vpop.f32.mrf.mxu0
  %v291 = vadd.f32 %v73, %v290
  %v292 = vpop.f32.mrf.mxu0
  %v293 = vadd.f32 %v77, %v292
  %294 = vmatprep.mubr.f32.mxu0 0.0
  %295 = vmatmul.mubr.f32.gmra.mxu0 %v125
  %v296 = vpop.f32.mrf.mxu0
  %v297 = vadd.f32 %v73, %v296
  %v298 = vpop.f32.mrf.mxu0
  %v299 = vadd.f32 %v77, %v298
  %300 = vmatprep.mubr.f32.mxu0 0.0
  %301 = vmatmul.mubr.f32.gmra.mxu0 %v128
  %v302 = vpop.f32.mrf.mxu0
  %v303 = vadd.f32 %v73, %v302
  %v304 = vpop.f32.mrf.mxu0
  %v305 = vadd.f32 %v77, %v304
  %306 = vmatprep.mubr.f32.mxu0 0.0
  %307 = vmatmul.mubr.f32.gmra.mxu0 %v131
  %v308 = vpop.f32.mrf.mxu0
  %v309 = vadd.f32 %v73, %v308
  %v310 = vpop.f32.mrf.mxu0
  %v311 = vadd.f32 %v77, %v310
  %312 = vmatprep.mubr.f32.mxu0 0.0
  %313 = vmatmul.mubr.f32.gmra.mxu0 %v134
  %v314 = vpop.f32.mrf.mxu0
  %v315 = vadd.f32 %v73, %v314
  %v316 = vpop.f32.mrf.mxu0
  %v317 = vadd.f32 %v77, %v316
  %318 = vmatprep.mubr.f32.mxu0 0.0
  %319 = vmatmul.mubr.f32.gmra.mxu0 %v137
  %v320 = vpop.f32.mrf.mxu0
  %v321 = vadd.f32 %v73, %v320
  %v322 = vpop.f32.mrf.mxu0
  %v323 = vadd.f32 %v77, %v322
  %324 = vmatprep.mubr.f32.mxu0 0.0
  %325 = vmatmul.mubr.f32.gmra.mxu0 %v140
  %v326 = vpop.f32.mrf.mxu0
  %v327 = vadd.f32 %v73, %v326
  %v328 = vpop.f32.mrf.mxu0
  %v329 = vadd.f32 %v77, %v328
  %330 = vmatprep.mubr.f32.mxu0 0.0
  %331 = vmatmul.mubr.f32.gmra.mxu0 %v143
  %v332 = vpop.f32.mrf.mxu0
  %v333 = vadd.f32 %v73, %v332
  %v334 = vpop.f32.mrf.mxu0
  %v335 = vadd.f32 %v77, %v334
  %336 = vmatprep.mubr.f32.mxu0 0.0
  %337 = vmatmul.mubr.f32.gmra.mxu0 %v146
  %v338 = vpop.f32.mrf.mxu0
  %v339 = vadd.f32 %v73, %v338
  %v340 = vpop.f32.mrf.mxu0
  %v341 = vadd.f32 %v77, %v340
  %342 = vmatprep.mubr.f32.mxu0 0.0
  %343 = vmatmul.mubr.f32.gmra.mxu0 %v149
  %v344 = vpop.f32.mrf.mxu0
  %v345 = vadd.f32 %v73, %v344
  %v346 = vpop.f32.mrf.mxu0
  %v347 = vadd.f32 %v77, %v346
  %348 = vdwg.mxu0
  %349 = vmatprep.subr.mxu0 0.0
  %350 = vmatpush1.msra.mxu0 0.0
  %351 = vmatprep.subr.mxu0 0.0
  %352 = vmatpush1.msra.mxu0 0.0
  %353 = vmatprep.subr.mxu0 0.0
  %354 = vmatpush1.msra.mxu0 0.0
  %355 = vmatprep.subr.mxu0 0.0
  %356 = vmatpush1.msra.mxu0 0.0
  %357 = vmatprep.subr.mxu0 0.0
  %358 = vmatpush1.msra.mxu0 0.0
  %359 = vmatprep.subr.mxu0 0.0
  %360 = vmatpush1.msra.mxu0 0.0
  %361 = vmatprep.subr.mxu0 0.0
  %362 = vmatpush1.msra.mxu0 0.0
  %363 = vmatprep.subr.mxu0 0.0
  %364 = vmatpush1.msra.mxu0 0.0
  %365 = vmatprep.subr.mxu0 0.0
  %366 = vmatpush1.msra.mxu0 0.0
  %367 = vmatprep.subr.mxu0 0.0
  %368 = vmatpush1.msra.mxu0 0.0
  %369 = vmatprep.subr.mxu0 0.0
  %370 = vmatpush1.msra.mxu0 0.0
  %371 = vmatprep.subr.mxu0 0.0
  %372 = vmatpush1.msra.mxu0 0.0
  %373 = vmatprep.subr.mxu0 0.0
  %374 = vmatpush1.msra.mxu0 0.0
  %375 = vmatprep.subr.mxu0 0.0
  %376 = vmatpush1.msra.mxu0 0.0
  %377 = vmatprep.subr.mxu0 0.0
  %378 = vmatpush1.msra.mxu0 0.0
  %379 = vmatprep.subr.mxu0 %v162
  %380 = vmatpush1.msra.mxu0 %v159
  %381 = vmatprep.subr.mxu0 0.0
  %382 = vmatpush2.msra.mxu0 0.0
  %383 = vmatprep.subr.mxu0 0.0
  %384 = vmatpush2.msra.mxu0 0.0
  %385 = vmatprep.subr.mxu0 0.0
  %386 = vmatpush2.msra.mxu0 0.0
  %387 = vmatprep.subr.mxu0 0.0
  %388 = vmatpush2.msra.mxu0 0.0
  %389 = vmatprep.subr.mxu0 0.0
  %390 = vmatpush2.msra.mxu0 0.0
  %391 = vmatprep.subr.mxu0 0.0
  %392 = vmatpush2.msra.mxu0 0.0
  %393 = vmatprep.subr.mxu0 0.0
  %394 = vmatpush2.msra.mxu0 0.0
  %395 = vmatprep.subr.mxu0 0.0
  %396 = vmatpush2.msra.mxu0 0.0
  %397 = vmatprep.subr.mxu0 0.0
  %398 = vmatpush2.msra.mxu0 0.0
  %399 = vmatprep.subr.mxu0 0.0
  %400 = vmatpush2.msra.mxu0 0.0
  %401 = vmatprep.subr.mxu0 0.0
  %402 = vmatpush2.msra.mxu0 0.0
  %403 = vmatprep.subr.mxu0 0.0
  %404 = vmatpush2.msra.mxu0 0.0
  %405 = vmatprep.subr.mxu0 0.0
  %406 = vmatpush2.msra.mxu0 0.0
  %407 = vmatprep.subr.mxu0 0.0
  %408 = vmatpush2.msra.mxu0 0.0
  %409 = vmatprep.subr.mxu0 0.0
  %410 = vmatpush2.msra.mxu0 0.0
  %411 = vmatprep.subr.mxu0 0.0
  %412 = vmatpush2.msra.mxu0 0.0
  %413 = vmatprep.mubr.f32.mxu0 0.0
  %414 = vmatmul.mubr.f32.gmra.mxu0 %v92
  %v415 = vpop.f32.mrf.mxu0
  %v416 = vadd.f32 %v81, %v415
  %v417 = vpop.f32.mrf.mxu0
  %v418 = vadd.f32 %v85, %v417
  %419 = vmatprep.mubr.f32.mxu0 0.0
  %420 = vmatmul.mubr.f32.gmra.mxu0 %v95
  %v421 = vpop.f32.mrf.mxu0
  %v422 = vadd.f32 %v81, %v421
  %v423 = vpop.f32.mrf.mxu0
  %v424 = vadd.f32 %v85, %v423
  %425 = vmatprep.mubr.f32.mxu0 0.0
  %426 = vmatmul.mubr.f32.gmra.mxu0 %v98
  %v427 = vpop.f32.mrf.mxu0
  %v428 = vadd.f32 %v81, %v427
  %v429 = vpop.f32.mrf.mxu0
  %v430 = vadd.f32 %v85, %v429
  %431 = vmatprep.mubr.f32.mxu0 0.0
  %432 = vmatmul.mubr.f32.gmra.mxu0 %v101
  %v433 = vpop.f32.mrf.mxu0
  %v434 = vadd.f32 %v81, %v433
  %v435 = vpop.f32.mrf.mxu0
  %v436 = vadd.f32 %v85, %v435
  %437 = vmatprep.mubr.f32.mxu0 0.0
  %438 = vmatmul.mubr.f32.gmra.mxu0 %v104
  %v439 = vpop.f32.mrf.mxu0
  %v440 = vadd.f32 %v81, %v439
  %v441 = vpop.f32.mrf.mxu0
  %v442 = vadd.f32 %v85, %v441
  %443 = vmatprep.mubr.f32.mxu0 0.0
  %444 = vmatmul.mubr.f32.gmra.mxu0 %v107
  %v445 = vpop.f32.mrf.mxu0
  %v446 = vadd.f32 %v81, %v445
  %v447 = vpop.f32.mrf.mxu0
  %v448 = vadd.f32 %v85, %v447
  %449 = vmatprep.mubr.f32.mxu0 0.0
  %450 = vmatmul.mubr.f32.gmra.mxu0 %v110
  %v451 = vpop.f32.mrf.mxu0
  %v452 = vadd.f32 %v81, %v451
  %v453 = vpop.f32.mrf.mxu0
  %v454 = vadd.f32 %v85, %v453
  %455 = vmatprep.mubr.f32.mxu0 0.0
  %456 = vmatmul.mubr.f32.gmra.mxu0 %v113
  %v457 = vpop.f32.mrf.mxu0
  %v458 = vadd.f32 %v81, %v457
  %v459 = vpop.f32.mrf.mxu0
  %v460 = vadd.f32 %v85, %v459
  %461 = vmatprep.mubr.f32.mxu0 0.0
  %462 = vmatmul.mubr.f32.gmra.mxu0 %v116
  %v463 = vpop.f32.mrf.mxu0
  %v464 = vadd.f32 %v81, %v463
  %v465 = vpop.f32.mrf.mxu0
  %v466 = vadd.f32 %v85, %v465
  %467 = vmatprep.mubr.f32.mxu0 0.0
  %468 = vmatmul.mubr.f32.gmra.mxu0 %v119
  %v469 = vpop.f32.mrf.mxu0
  %v470 = vadd.f32 %v81, %v469
  %v471 = vpop.f32.mrf.mxu0
  %v472 = vadd.f32 %v85, %v471
  %473 = vmatprep.mubr.f32.mxu0 0.0
  %474 = vmatmul.mubr.f32.gmra.mxu0 %v122
  %v475 = vpop.f32.mrf.mxu0
  %v476 = vadd.f32 %v81, %v475
  %v477 = vpop.f32.mrf.mxu0
  %v478 = vadd.f32 %v85, %v477
  %479 = vmatprep.mubr.f32.mxu0 0.0
  %480 = vmatmul.mubr.f32.gmra.mxu0 %v125
  %v481 = vpop.f32.mrf.mxu0
  %v482 = vadd.f32 %v81, %v481
  %v483 = vpop.f32.mrf.mxu0
  %v484 = vadd.f32 %v85, %v483
  %485 = vmatprep.mubr.f32.mxu0 0.0
  %486 = vmatmul.mubr.f32.gmra.mxu0 %v128
  %v487 = vpop.f32.mrf.mxu0
  %v488 = vadd.f32 %v81, %v487
  %v489 = vpop.f32.mrf.mxu0
  %v490 = vadd.f32 %v85, %v489
  %491 = vmatprep.mubr.f32.mxu0 0.0
  %492 = vmatmul.mubr.f32.gmra.mxu0 %v131
  %v493 = vpop.f32.mrf.mxu0
  %v494 = vadd.f32 %v81, %v493
  %v495 = vpop.f32.mrf.mxu0
  %v496 = vadd.f32 %v85, %v495
  %497 = vmatprep.mubr.f32.mxu0 0.0
  %498 = vmatmul.mubr.f32.gmra.mxu0 %v134
  %v499 = vpop.f32.mrf.mxu0
  %v500 = vadd.f32 %v81, %v499
  %v501 = vpop.f32.mrf.mxu0
  %v502 = vadd.f32 %v85, %v501
  %503 = vmatprep.mubr.f32.mxu0 0.0
  %504 = vmatmul.mubr.f32.gmra.mxu0 %v137
  %v505 = vpop.f32.mrf.mxu0
  %v506 = vadd.f32 %v81, %v505
  %v507 = vpop.f32.mrf.mxu0
  %v508 = vadd.f32 %v85, %v507
  %509 = vmatprep.mubr.f32.mxu0 0.0
  %510 = vmatmul.mubr.f32.gmra.mxu0 %v140
  %v511 = vpop.f32.mrf.mxu0
  %v512 = vadd.f32 %v81, %v511
  %v513 = vpop.f32.mrf.mxu0
  %v514 = vadd.f32 %v85, %v513
  %515 = vmatprep.mubr.f32.mxu0 0.0
  %516 = vmatmul.mubr.f32.gmra.mxu0 %v143
  %v517 = vpop.f32.mrf.mxu0
  %v518 = vadd.f32 %v81, %v517
  %v519 = vpop.f32.mrf.mxu0
  %v520 = vadd.f32 %v85, %v519
  %521 = vmatprep.mubr.f32.mxu0 0.0
  %522 = vmatmul.mubr.f32.gmra.mxu0 %v146
  %v523 = vpop.f32.mrf.mxu0
  %v524 = vadd.f32 %v81, %v523
  %v525 = vpop.f32.mrf.mxu0
  %v526 = vadd.f32 %v85, %v525
  %527 = vmatprep.mubr.f32.mxu0 0.0
  %528 = vmatmul.mubr.f32.gmra.mxu0 %v149
  %v529 = vpop.f32.mrf.mxu0
  %v530 = vadd.f32 %v81, %v529
  %v531 = vpop.f32.mrf.mxu0
  %v532 = vadd.f32 %v85, %v531
  %533 = vdwg.mxu0
  %534 = vst [vmem:[#allocation2] sm:$0xff] %v231
  %535 = vst [vmem:[#allocation2 + $0x8] sm:$0xff] %v233
  %536 = vst [vmem:[#allocation2 + $0x10] sm:$0xff] %v416
  %537 = vst [vmem:[#allocation2 + $0x18] sm:$0xff] %v418
  %538 = vst [vmem:[#allocation2 + $0x20] sm:$0xff] %v237
  %539 = vst [vmem:[#allocation2 + $0x28] sm:$0xff] %v239
  %540 = vst [vmem:[#allocation2 + $0x30] sm:$0xff] %v422
  %541 = vst [vmem:[#allocation2 + $0x38] sm:$0xff] %v424
  %542 = vst [vmem:[#allocation2 + $0x40] sm:$0xff] %v243
  %543 = vst [vmem:[#allocation2 + $0x48] sm:$0xff] %v245
  %544 = vst [vmem:[#allocation2 + $0x50] sm:$0xff] %v428
  %545 = vst [vmem:[#allocation2 + $0x58] sm:$0xff] %v430
  %546 = vst [vmem:[#allocation2 + $0x60] sm:$0xff] %v249
  %547 = vst [vmem:[#allocation2 + $0x68] sm:$0xff] %v251
  %548 = vst [vmem:[#allocation2 + $0x70] sm:$0xff] %v434
  %549 = vst [vmem:[#allocation2 + $0x78] sm:$0xff] %v436
  %550 = vst [vmem:[#allocation2 + $0x80] sm:$0xff] %v255
  %551 = vst [vmem:[#allocation2 + $0x88] sm:$0xff] %v257
  %552 = vst [vmem:[#allocation2 + $0x90] sm:$0xff] %v440
  %553 = vst [vmem:[#allocation2 + $0x98] sm:$0xff] %v442
  %554 = vst [vmem:[#allocation2 + $0xa0] sm:$0xff] %v261
  %555 = vst [vmem:[#allocation2 + $0xa8] sm:$0xff] %v263
  %556 = vst [vmem:[#allocation2 + $0xb0] sm:$0xff] %v446
  %557 = vst [vmem:[#allocation2 + $0xb8] sm:$0xff] %v448
  %558 = vst [vmem:[#allocation2 + $0xc0] sm:$0xff] %v267
  %559 = vst [vmem:[#allocation2 + $0xc8] sm:$0xff] %v269
  %560 = vst [vmem:[#allocation2 + $0xd0] sm:$0xff] %v452
  %561 = vst [vmem:[#allocation2 + $0xd8] sm:$0xff] %v454
  %562 = vst [vmem:[#allocation2 + $0xe0] sm:$0xff] %v273
  %563 = vst [vmem:[#allocation2 + $0xe8] sm:$0xff] %v275
  %564 = vst [vmem:[#allocation2 + $0xf0] sm:$0xff] %v458
  %565 = vst [vmem:[#allocation2 + $0xf8] sm:$0xff] %v460
  %566 = vst [vmem:[#allocation2 + $0x100] sm:$0xff] %v279
  %567 = vst [vmem:[#allocation2 + $0x108] sm:$0xff] %v281
  %568 = vst [vmem:[#allocation2 + $0x110] sm:$0xff] %v464
  %569 = vst [vmem:[#allocation2 + $0x118] sm:$0xff] %v466
  %570 = vst [vmem:[#allocation2 + $0x120] sm:$0xff] %v285
  %571 = vst [vmem:[#allocation2 + $0x128] sm:$0xff] %v287
  %572 = vst [vmem:[#allocation2 + $0x130] sm:$0xff] %v470
  %573 = vst [vmem:[#allocation2 + $0x138] sm:$0xff] %v472
  %574 = vst [vmem:[#allocation2 + $0x140] sm:$0xff] %v291
  %575 = vst [vmem:[#allocation2 + $0x148] sm:$0xff] %v293
  %576 = vst [vmem:[#allocation2 + $0x150] sm:$0xff] %v476
  %577 = vst [vmem:[#allocation2 + $0x158] sm:$0xff] %v478
  %578 = vst [vmem:[#allocation2 + $0x160] sm:$0xff] %v297
  %579 = vst [vmem:[#allocation2 + $0x168] sm:$0xff] %v299
  %580 = vst [vmem:[#allocation2 + $0x170] sm:$0xff] %v482
  %581 = vst [vmem:[#allocation2 + $0x178] sm:$0xff] %v484
  %582 = vst [vmem:[#allocation2 + $0x180] sm:$0xff] %v303
  %583 = vst [vmem:[#allocation2 + $0x188] sm:$0xff] %v305
  %584 = vst [vmem:[#allocation2 + $0x190] sm:$0xff] %v488
  %585 = vst [vmem:[#allocation2 + $0x198] sm:$0xff] %v490
  %586 = vst [vmem:[#allocation2 + $0x1a0] sm:$0xff] %v309
  %587 = vst [vmem:[#allocation2 + $0x1a8] sm:$0xff] %v311
  %588 = vst [vmem:[#allocation2 + $0x1b0] sm:$0xff] %v494
  %589 = vst [vmem:[#allocation2 + $0x1b8] sm:$0xff] %v496
  %590 = vst [vmem:[#allocation2 + $0x1c0] sm:$0xff] %v315
  %591 = vst [vmem:[#allocation2 + $0x1c8] sm:$0xff] %v317
  %592 = vst [vmem:[#allocation2 + $0x1d0] sm:$0xff] %v500
  %593 = vst [vmem:[#allocation2 + $0x1d8] sm:$0xff] %v502
  %594 = vst [vmem:[#allocation2 + $0x1e0] sm:$0xff] %v321
  %595 = vst [vmem:[#allocation2 + $0x1e8] sm:$0xff] %v323
  %596 = vst [vmem:[#allocation2 + $0x1f0] sm:$0xff] %v506
  %597 = vst [vmem:[#allocation2 + $0x1f8] sm:$0xff] %v508
  %598 = vst [vmem:[#allocation2 + $0x200] sm:$0xff] %v327
  %599 = vst [vmem:[#allocation2 + $0x208] sm:$0xff] %v329
  %600 = vst [vmem:[#allocation2 + $0x210] sm:$0xff] %v512
  %601 = vst [vmem:[#allocation2 + $0x218] sm:$0xff] %v514
  %602 = vst [vmem:[#allocation2 + $0x220] sm:$0xff] %v333
  %603 = vst [vmem:[#allocation2 + $0x228] sm:$0xff] %v335
  %604 = vst [vmem:[#allocation2 + $0x230] sm:$0xff] %v518
  %605 = vst [vmem:[#allocation2 + $0x238] sm:$0xff] %v520
  %606 = vst [vmem:[#allocation2 + $0x240] sm:$0xff] %v339
  %607 = vst [vmem:[#allocation2 + $0x248] sm:$0xff] %v341
  %608 = vst [vmem:[#allocation2 + $0x250] sm:$0xff] %v524
  %609 = vst [vmem:[#allocation2 + $0x258] sm:$0xff] %v526
  %610 = vst [vmem:[#allocation2 + $0x260] sm:$0xff] %v345
  %611 = vst [vmem:[#allocation2 + $0x268] sm:$0xff] %v347
  %612 = vst [vmem:[#allocation2 + $0x270] sm:$0xff] %v530
  %613 = vst [vmem:[#allocation2 + $0x278] sm:$0xff] %v532
  %v614 = vld [vmem:[%s4] sm:$0xf]
  %v615 = vld [vmem:[#allocation2] sm:$0xff]
  %v616 = vld [vmem:[#allocation2 + $0x8] sm:$0xff]
  %v617 = vld [vmem:[#allocation2 + $0x10] sm:$0xff]
  %v618 = vld [vmem:[#allocation2 + $0x18] sm:$0xff]
  %v619 = vmul.f32 %v615, 0.5
  %v620 = vtanh.pop %v619
  %v621 = vadd.f32 %v620, 1.0
  %v622 = vmul.f32 %v621, 0.5
  %v623 = vmul.f32 %v616, 0.5
  %v624 = vtanh.pop %v623
  %v625 = vadd.f32 %v624, 1.0
  %v626 = vmul.f32 %v625, 0.5
  %v627 = vtanh.pop %v617
  %v628 = vmul.f32 %v618, 0.5
  %v629 = vtanh.pop %v628
  %v630 = vadd.f32 %v629, 1.0
  %v631 = vmul.f32 %v630, 0.5
  %v632 = vmul.f32 %v626, 0.0
  %v633 = vmul.f32 %v622, %v627
  %v634 = vadd.f32 %v632, %v633
  %v635 = vtanh.pop %v634
  %v636 = vmul.f32 %v631, %v635
  %v637 = vpack.c.bf16 %v636, %v636
  %v638 = vpack.c.bf16 0.0, 0.0
  %v639 = vld [vmem:[%s3] sm:$0xff]
  %v640 = vld [vmem:[%s3 + $0x8] sm:$0xff]
  %v641 = vld [vmem:[%s3 + $0x10] sm:$0xff]
  %v642 = vld [vmem:[%s3 + $0x18] sm:$0xff]
  %v643 = vld [vmem:[%s3 + $0x20] sm:$0xff]
  %v644 = vld [vmem:[%s3 + $0x28] sm:$0xff]
  %v645 = vld [vmem:[%s3 + $0x30] sm:$0xff]
  %v646 = vld [vmem:[%s3 + $0x38] sm:$0xff]
  %v647 = vld [vmem:[%s3 + $0x40] sm:$0xff]
  %v648 = vld [vmem:[%s3 + $0x48] sm:$0xff]
  %v649 = vld [vmem:[%s3 + $0x50] sm:$0xff]
  %v650 = vld [vmem:[%s3 + $0x58] sm:$0xff]
  %v651 = vld [vmem:[%s3 + $0x60] sm:$0xff]
  %v652 = vld [vmem:[%s3 + $0x68] sm:$0xff]
  %v653 = vld [vmem:[%s3 + $0x70] sm:$0xff]
  %v654 = vld [vmem:[%s3 + $0x78] sm:$0xff]
  %v655 = vld [vmem:[%s3 + $0x80] sm:$0xff]
  %v656 = vld [vmem:[%s3 + $0x88] sm:$0xff]
  %v657 = vld [vmem:[%s3 + $0x90] sm:$0xff]
  %v658 = vld [vmem:[%s3 + $0x98] sm:$0xff]
  %v659 = vld [vmem:[%s3 + $0xa0] sm:$0xff]
  %v660 = vld [vmem:[%s3 + $0xa8] sm:$0xff]
  %v661 = vld [vmem:[%s3 + $0xb0] sm:$0xff]
  %v662 = vld [vmem:[%s3 + $0xb8] sm:$0xff]
  %v663 = vld [vmem:[%s3 + $0xc0] sm:$0xff]
  %v664 = vld [vmem:[%s3 + $0xc8] sm:$0xff]
  %v665 = vld [vmem:[%s3 + $0xd0] sm:$0xff]
  %v666 = vld [vmem:[%s3 + $0xd8] sm:$0xff]
  %v667 = vld [vmem:[%s3 + $0xe0] sm:$0xff]
  %v668 = vld [vmem:[%s3 + $0xe8] sm:$0xff]
  %v669 = vld [vmem:[%s3 + $0xf0] sm:$0xff]
  %v670 = vld [vmem:[%s3 + $0xf8] sm:$0xff]
  %v671 = vld [vmem:[%s3 + $0x100] sm:$0xff]
  %v672 = vld [vmem:[%s3 + $0x108] sm:$0xff]
  %v673 = vld [vmem:[%s3 + $0x110] sm:$0xff]
  %v674 = vld [vmem:[%s3 + $0x118] sm:$0xff]
  %v675 = vld [vmem:[%s3 + $0x120] sm:$0xff]
  %v676 = vld [vmem:[%s3 + $0x128] sm:$0xff]
  %v677 = vld [vmem:[%s3 + $0x130] sm:$0xff]
  %v678 = vld [vmem:[%s3 + $0x138] sm:$0xff]
  %v679 = vld [vmem:[%s3 + $0x140] sm:$0xff]
  %v680 = vld [vmem:[%s3 + $0x148] sm:$0xff]
  %v681 = vld [vmem:[%s3 + $0x150] sm:$0xff]
  %v682 = vld [vmem:[%s3 + $0x158] sm:$0xff]
  %v683 = vld [vmem:[%s3 + $0x160] sm:$0xff]
  %v684 = vld [vmem:[%s3 + $0x168] sm:$0xff]
  %v685 = vld [vmem:[%s3 + $0x170] sm:$0xff]
  %v686 = vld [vmem:[%s3 + $0x178] sm:$0xff]
  %v687 = vld [vmem:[%s3 + $0x180] sm:$0xff]
  %v688 = vld [vmem:[%s3 + $0x188] sm:$0xff]
  %v689 = vld [vmem:[%s3 + $0x190] sm:$0xff]
  %v690 = vld [vmem:[%s3 + $0x198] sm:$0xff]
  %v691 = vld [vmem:[%s3 + $0x1a0] sm:$0xff]
  %v692 = vld [vmem:[%s3 + $0x1a8] sm:$0xff]
  %v693 = vld [vmem:[%s3 + $0x1b0] sm:$0xff]
  %v694 = vld [vmem:[%s3 + $0x1b8] sm:$0xff]
  %v695 = vld [vmem:[%s3 + $0x1c0] sm:$0xff]
  %v696 = vld [vmem:[%s3 + $0x1c8] sm:$0xff]
  %v697 = vld [vmem:[%s3 + $0x1d0] sm:$0xff]
  %v698 = vld [vmem:[%s3 + $0x1d8] sm:$0xff]
  %v699 = vld [vmem:[%s3 + $0x1e0] sm:$0xff]
  %v700 = vld [vmem:[%s3 + $0x1e8] sm:$0xff]
  %v701 = vld [vmem:[%s3 + $0x1f0] sm:$0xff]
  %v702 = vld [vmem:[%s3 + $0x1f8] sm:$0xff]
  %v703 = vld [vmem:[%s3 + $0x200] sm:$0xff]
  %v704 = vld [vmem:[%s3 + $0x208] sm:$0xff]
  %v705 = vld [vmem:[%s3 + $0x210] sm:$0xff]
  %v706 = vld [vmem:[%s3 + $0x218] sm:$0xff]
  %v707 = vld [vmem:[%s3 + $0x220] sm:$0xff]
  %v708 = vld [vmem:[%s3 + $0x228] sm:$0xff]
  %v709 = vld [vmem:[%s3 + $0x230] sm:$0xff]
  %v710 = vld [vmem:[%s3 + $0x238] sm:$0xff]
  %v711 = vld [vmem:[%s3 + $0x240] sm:$0xff]
  %v712 = vld [vmem:[%s3 + $0x248] sm:$0xff]
  %v713 = vld [vmem:[%s3 + $0x250] sm:$0xff]
  %v714 = vld [vmem:[%s3 + $0x258] sm:$0xff]
  %v715 = vld [vmem:[%s3 + $0x260] sm:$0xff]
  %v716 = vld [vmem:[%s3 + $0x268] sm:$0xff]
  %v717 = vld [vmem:[%s3 + $0x270] sm:$0xff]
  %v718 = vld [vmem:[%s3 + $0x278] sm:$0xff]
  %v719 = vld [vmem:[%s3 + $0x280] sm:$0xff]
  %v720 = vld [vmem:[%s3 + $0x288] sm:$0xff]
  %v721 = vld [vmem:[%s3 + $0x290] sm:$0xff]
  %v722 = vld [vmem:[%s3 + $0x298] sm:$0xff]
  %v723 = vld [vmem:[%s3 + $0x2a0] sm:$0xff]
  %v724 = vld [vmem:[%s3 + $0x2a8] sm:$0xff]
  %v725 = vld [vmem:[%s3 + $0x2b0] sm:$0xff]
  %v726 = vld [vmem:[%s3 + $0x2b8] sm:$0xff]
  %v727 = vld [vmem:[%s3 + $0x2c0] sm:$0xff]
  %v728 = vld [vmem:[%s3 + $0x2c8] sm:$0xff]
  %v729 = vld [vmem:[%s3 + $0x2d0] sm:$0xff]
  %v730 = vld [vmem:[%s3 + $0x2d8] sm:$0xff]
  %v731 = vld [vmem:[%s3 + $0x2e0] sm:$0xff]
  %v732 = vld [vmem:[%s3 + $0x2e8] sm:$0xff]
  %v733 = vld [vmem:[%s3 + $0x2f0] sm:$0xff]
  %v734 = vld [vmem:[%s3 + $0x2f8] sm:$0xff]
  %v735 = vld [vmem:[%s3 + $0x300] sm:$0xff]
  %v736 = vld [vmem:[%s3 + $0x308] sm:$0xff]
  %v737 = vld [vmem:[%s3 + $0x310] sm:$0xff]
  %v738 = vld [vmem:[%s3 + $0x318] sm:$0xff]
  %v739 = vld [vmem:[%s3 + $0x320] sm:$0xff]
  %v740 = vld [vmem:[%s3 + $0x328] sm:$0xff]
  %v741 = vld [vmem:[%s3 + $0x330] sm:$0xff]
  %v742 = vld [vmem:[%s3 + $0x338] sm:$0xff]
  %v743 = vld [vmem:[%s3 + $0x340] sm:$0xff]
  %v744 = vld [vmem:[%s3 + $0x348] sm:$0xff]
  %v745 = vld [vmem:[%s3 + $0x350] sm:$0xff]
  %v746 = vld [vmem:[%s3 + $0x358] sm:$0xff]
  %v747 = vld [vmem:[%s3 + $0x360] sm:$0xff]
  %v748 = vld [vmem:[%s3 + $0x368] sm:$0xff]
  %v749 = vld [vmem:[%s3 + $0x370] sm:$0xff]
  %v750 = vld [vmem:[%s3 + $0x378] sm:$0xff]
  %v751 = vld [vmem:[%s3 + $0x380] sm:$0xff]
  %v752 = vld [vmem:[%s3 + $0x388] sm:$0xff]
  %v753 = vld [vmem:[%s3 + $0x390] sm:$0xff]
  %v754 = vld [vmem:[%s3 + $0x398] sm:$0xff]
  %v755 = vld [vmem:[%s3 + $0x3a0] sm:$0xff]
  %v756 = vld [vmem:[%s3 + $0x3a8] sm:$0xff]
  %v757 = vld [vmem:[%s3 + $0x3b0] sm:$0xff]
  %v758 = vld [vmem:[%s3 + $0x3b8] sm:$0xff]
  %v759 = vld [vmem:[%s3 + $0x3c0] sm:$0xff]
  %v760 = vld [vmem:[%s3 + $0x3c8] sm:$0xff]
  %v761 = vld [vmem:[%s3 + $0x3d0] sm:$0xff]
  %v762 = vld [vmem:[%s3 + $0x3d8] sm:$0xff]
  %v763 = vld [vmem:[%s3 + $0x3e0] sm:$0xff]
  %v764 = vld [vmem:[%s3 + $0x3e8] sm:$0xff]
  %v765 = vld [vmem:[%s3 + $0x3f0] sm:$0xff]
  %v766 = vld [vmem:[%s3 + $0x3f8] sm:$0xff]
  %v895 = vunpack.c.l.b16 %v639
  %v896 = vunpack.c.h.b16 %v639
  %v897 = vunpack.c.l.b16 %v640
  %v898 = vunpack.c.h.b16 %v640
  %v899 = vunpack.c.l.b16 %v641
  %v900 = vunpack.c.h.b16 %v641
  %v901 = vunpack.c.l.b16 %v642
  %v902 = vunpack.c.h.b16 %v642
  %v903 = vunpack.c.l.b16 %v643
  %v904 = vunpack.c.h.b16 %v643
  %v905 = vunpack.c.l.b16 %v644
  %v906 = vunpack.c.h.b16 %v644
  %v907 = vunpack.c.l.b16 %v645
  %v908 = vunpack.c.h.b16 %v645
  %v909 = vunpack.c.l.b16 %v646
  %v910 = vunpack.c.h.b16 %v646
  %v911 = vunpack.c.l.b16 %v647
  %v912 = vunpack.c.h.b16 %v647
  %v913 = vunpack.c.l.b16 %v648
  %v914 = vunpack.c.h.b16 %v648
  %v915 = vunpack.c.l.b16 %v649
  %v916 = vunpack.c.h.b16 %v649
  %v917 = vunpack.c.l.b16 %v650
  %v918 = vunpack.c.h.b16 %v650
  %v919 = vunpack.c.l.b16 %v651
  %v920 = vunpack.c.h.b16 %v651
  %v921 = vunpack.c.l.b16 %v652
  %v922 = vunpack.c.h.b16 %v652
  %v923 = vunpack.c.l.b16 %v653
  %v924 = vunpack.c.h.b16 %v653
  %v925 = vunpack.c.l.b16 %v654
  %v926 = vunpack.c.h.b16 %v654
  %v927 = vunpack.c.l.b16 %v655
  %v928 = vunpack.c.h.b16 %v655
  %v929 = vunpack.c.l.b16 %v656
  %v930 = vunpack.c.h.b16 %v656
  %v931 = vunpack.c.l.b16 %v657
  %v932 = vunpack.c.h.b16 %v657
  %v933 = vunpack.c.l.b16 %v658
  %v934 = vunpack.c.h.b16 %v658
  %v935 = vunpack.c.l.b16 %v659
  %v936 = vunpack.c.h.b16 %v659
  %v937 = vunpack.c.l.b16 %v660
  %v938 = vunpack.c.h.b16 %v660
  %v939 = vunpack.c.l.b16 %v661
  %v940 = vunpack.c.h.b16 %v661
  %v941 = vunpack.c.l.b16 %v662
  %v942 = vunpack.c.h.b16 %v662
  %v943 = vunpack.c.l.b16 %v663
  %v944 = vunpack.c.h.b16 %v663
  %v945 = vunpack.c.l.b16 %v664
  %v946 = vunpack.c.h.b16 %v664
  %v947 = vunpack.c.l.b16 %v665
  %v948 = vunpack.c.h.b16 %v665
  %v949 = vunpack.c.l.b16 %v666
  %v950 = vunpack.c.h.b16 %v666
  %v951 = vunpack.c.l.b16 %v667
  %v952 = vunpack.c.h.b16 %v667
  %v953 = vunpack.c.l.b16 %v668
  %v954 = vunpack.c.h.b16 %v668
  %v955 = vunpack.c.l.b16 %v669
  %v956 = vunpack.c.h.b16 %v669
  %v957 = vunpack.c.l.b16 %v670
  %v958 = vunpack.c.h.b16 %v670
  %v959 = vunpack.c.l.b16 %v671
  %v960 = vunpack.c.h.b16 %v671
  %v961 = vunpack.c.l.b16 %v672
  %v962 = vunpack.c.h.b16 %v672
  %v963 = vunpack.c.l.b16 %v673
  %v964 = vunpack.c.h.b16 %v673
  %v965 = vunpack.c.l.b16 %v674
  %v966 = vunpack.c.h.b16 %v674
  %v967 = vunpack.c.l.b16 %v675
  %v968 = vunpack.c.h.b16 %v675
  %v969 = vunpack.c.l.b16 %v676
  %v970 = vunpack.c.h.b16 %v676
  %v971 = vunpack.c.l.b16 %v677
  %v972 = vunpack.c.h.b16 %v677
  %v973 = vunpack.c.l.b16 %v678
  %v974 = vunpack.c.h.b16 %v678
  %v975 = vunpack.c.l.b16 %v679
  %v976 = vunpack.c.h.b16 %v679
  %v977 = vunpack.c.l.b16 %v680
  %v978 = vunpack.c.h.b16 %v680
  %v979 = vunpack.c.l.b16 %v681
  %v980 = vunpack.c.h.b16 %v681
  %v981 = vunpack.c.l.b16 %v682
  %v982 = vunpack.c.h.b16 %v682
  %v983 = vunpack.c.l.b16 %v683
  %v984 = vunpack.c.h.b16 %v683
  %v985 = vunpack.c.l.b16 %v684
  %v986 = vunpack.c.h.b16 %v684
  %v987 = vunpack.c.l.b16 %v685
  %v988 = vunpack.c.h.b16 %v685
  %v989 = vunpack.c.l.b16 %v686
  %v990 = vunpack.c.h.b16 %v686
  %v991 = vunpack.c.l.b16 %v687
  %v992 = vunpack.c.h.b16 %v687
  %v993 = vunpack.c.l.b16 %v688
  %v994 = vunpack.c.h.b16 %v688
  %v995 = vunpack.c.l.b16 %v689
  %v996 = vunpack.c.h.b16 %v689
  %v997 = vunpack.c.l.b16 %v690
  %v998 = vunpack.c.h.b16 %v690
  %v999 = vunpack.c.l.b16 %v691
  %v1000 = vunpack.c.h.b16 %v691
  %v1001 = vunpack.c.l.b16 %v692
  %v1002 = vunpack.c.h.b16 %v692
  %v1003 = vunpack.c.l.b16 %v693
  %v1004 = vunpack.c.h.b16 %v693
  %v1005 = vunpack.c.l.b16 %v694
  %v1006 = vunpack.c.h.b16 %v694
  %v1007 = vunpack.c.l.b16 %v695
  %v1008 = vunpack.c.h.b16 %v695
  %v1009 = vunpack.c.l.b16 %v696
  %v1010 = vunpack.c.h.b16 %v696
  %v1011 = vunpack.c.l.b16 %v697
  %v1012 = vunpack.c.h.b16 %v697
  %v1013 = vunpack.c.l.b16 %v698
  %v1014 = vunpack.c.h.b16 %v698
  %v1015 = vunpack.c.l.b16 %v699
  %v1016 = vunpack.c.h.b16 %v699
  %v1017 = vunpack.c.l.b16 %v700
  %v1018 = vunpack.c.h.b16 %v700
  %v1019 = vunpack.c.l.b16 %v701
  %v1020 = vunpack.c.h.b16 %v701
  %v1021 = vunpack.c.l.b16 %v702
  %v1022 = vunpack.c.h.b16 %v702
  %v1023 = vunpack.c.l.b16 %v703
  %v1024 = vunpack.c.h.b16 %v703
  %v1025 = vunpack.c.l.b16 %v704
  %v1026 = vunpack.c.h.b16 %v704
  %v1027 = vunpack.c.l.b16 %v705
  %v1028 = vunpack.c.h.b16 %v705
  %v1029 = vunpack.c.l.b16 %v706
  %v1030 = vunpack.c.h.b16 %v706
  %v1031 = vunpack.c.l.b16 %v707
  %v1032 = vunpack.c.h.b16 %v707
  %v1033 = vunpack.c.l.b16 %v708
  %v1034 = vunpack.c.h.b16 %v708
  %v1035 = vunpack.c.l.b16 %v709
  %v1036 = vunpack.c.h.b16 %v709
  %v1037 = vunpack.c.l.b16 %v710
  %v1038 = vunpack.c.h.b16 %v710
  %v1039 = vunpack.c.l.b16 %v711
  %v1040 = vunpack.c.h.b16 %v711
  %v1041 = vunpack.c.l.b16 %v712
  %v1042 = vunpack.c.h.b16 %v712
  %v1043 = vunpack.c.l.b16 %v713
  %v1044 = vunpack.c.h.b16 %v713
  %v1045 = vunpack.c.l.b16 %v714
  %v1046 = vunpack.c.h.b16 %v714
  %v1047 = vunpack.c.l.b16 %v715
  %v1048 = vunpack.c.h.b16 %v715
  %v1049 = vunpack.c.l.b16 %v716
  %v1050 = vunpack.c.h.b16 %v716
  %v1051 = vunpack.c.l.b16 %v717
  %v1052 = vunpack.c.h.b16 %v717
  %v1053 = vunpack.c.l.b16 %v718
  %v1054 = vunpack.c.h.b16 %v718
  %v1055 = vunpack.c.l.b16 %v719
  %v1056 = vunpack.c.h.b16 %v719
  %v1057 = vunpack.c.l.b16 %v720
  %v1058 = vunpack.c.h.b16 %v720
  %v1059 = vunpack.c.l.b16 %v721
  %v1060 = vunpack.c.h.b16 %v721
  %v1061 = vunpack.c.l.b16 %v722
  %v1062 = vunpack.c.h.b16 %v722
  %v1063 = vunpack.c.l.b16 %v723
  %v1064 = vunpack.c.h.b16 %v723
  %v1065 = vunpack.c.l.b16 %v724
  %v1066 = vunpack.c.h.b16 %v724
  %v1067 = vunpack.c.l.b16 %v725
  %v1068 = vunpack.c.h.b16 %v725
  %v1069 = vunpack.c.l.b16 %v726
  %v1070 = vunpack.c.h.b16 %v726
  %v1071 = vunpack.c.l.b16 %v727
  %v1072 = vunpack.c.h.b16 %v727
  %v1073 = vunpack.c.l.b16 %v728
  %v1074 = vunpack.c.h.b16 %v728
  %v1075 = vunpack.c.l.b16 %v729
  %v1076 = vunpack.c.h.b16 %v729
  %v1077 = vunpack.c.l.b16 %v730
  %v1078 = vunpack.c.h.b16 %v730
  %v1079 = vunpack.c.l.b16 %v731
  %v1080 = vunpack.c.h.b16 %v731
  %v1081 = vunpack.c.l.b16 %v732
  %v1082 = vunpack.c.h.b16 %v732
  %v1083 = vunpack.c.l.b16 %v733
  %v1084 = vunpack.c.h.b16 %v733
  %v1085 = vunpack.c.l.b16 %v734
  %v1086 = vunpack.c.h.b16 %v734
  %v1087 = vunpack.c.l.b16 %v735
  %v1088 = vunpack.c.h.b16 %v735
  %v1089 = vunpack.c.l.b16 %v736
  %v1090 = vunpack.c.h.b16 %v736
  %v1091 = vunpack.c.l.b16 %v737
  %v1092 = vunpack.c.h.b16 %v737
  %v1093 = vunpack.c.l.b16 %v738
  %v1094 = vunpack.c.h.b16 %v738
  %v1095 = vunpack.c.l.b16 %v739
  %v1096 = vunpack.c.h.b16 %v739
  %v1097 = vunpack.c.l.b16 %v740
  %v1098 = vunpack.c.h.b16 %v740
  %v1099 = vunpack.c.l.b16 %v741
  %v1100 = vunpack.c.h.b16 %v741
  %v1101 = vunpack.c.l.b16 %v742
  %v1102 = vunpack.c.h.b16 %v742
  %v1103 = vunpack.c.l.b16 %v743
  %v1104 = vunpack.c.h.b16 %v743
  %v1105 = vunpack.c.l.b16 %v744
  %v1106 = vunpack.c.h.b16 %v744
  %v1107 = vunpack.c.l.b16 %v745
  %v1108 = vunpack.c.h.b16 %v745
  %v1109 = vunpack.c.l.b16 %v746
  %v1110 = vunpack.c.h.b16 %v746
  %v1111 = vunpack.c.l.b16 %v747
  %v1112 = vunpack.c.h.b16 %v747
  %v1113 = vunpack.c.l.b16 %v748
  %v1114 = vunpack.c.h.b16 %v748
  %v1115 = vunpack.c.l.b16 %v749
  %v1116 = vunpack.c.h.b16 %v749
  %v1117 = vunpack.c.l.b16 %v750
  %v1118 = vunpack.c.h.b16 %v750
  %v1119 = vunpack.c.l.b16 %v751
  %v1120 = vunpack.c.h.b16 %v751
  %v1121 = vunpack.c.l.b16 %v752
  %v1122 = vunpack.c.h.b16 %v752
  %v1123 = vunpack.c.l.b16 %v753
  %v1124 = vunpack.c.h.b16 %v753
  %v1125 = vunpack.c.l.b16 %v754
  %v1126 = vunpack.c.h.b16 %v754
  %v1127 = vunpack.c.l.b16 %v755
  %v1128 = vunpack.c.h.b16 %v755
  %v1129 = vunpack.c.l.b16 %v756
  %v1130 = vunpack.c.h.b16 %v756
  %v1131 = vunpack.c.l.b16 %v757
  %v1132 = vunpack.c.h.b16 %v757
  %v1133 = vunpack.c.l.b16 %v758
  %v1134 = vunpack.c.h.b16 %v758
  %v1135 = vunpack.c.l.b16 %v759
  %v1136 = vunpack.c.h.b16 %v759
  %v1137 = vunpack.c.l.b16 %v760
  %v1138 = vunpack.c.h.b16 %v760
  %v1139 = vunpack.c.l.b16 %v761
  %v1140 = vunpack.c.h.b16 %v761
  %v1141 = vunpack.c.l.b16 %v762
  %v1142 = vunpack.c.h.b16 %v762
  %v1143 = vunpack.c.l.b16 %v763
  %v1144 = vunpack.c.h.b16 %v763
  %v1145 = vunpack.c.l.b16 %v764
  %v1146 = vunpack.c.h.b16 %v764
  %v1147 = vunpack.c.l.b16 %v765
  %v1148 = vunpack.c.h.b16 %v765
  %v1149 = vunpack.c.l.b16 %v766
  %v1150 = vunpack.c.h.b16 %v766
  %v1151 = vpack.c.b16 %v903, %v895
  %v1152 = vpack.c.b16 %v904, %v896
  %v1153 = vpack.c.b16 %v905, %v897
  %v1154 = vpack.c.b16 %v906, %v898
  %v1155 = vpack.c.b16 %v907, %v899
  %v1156 = vpack.c.b16 %v908, %v900
  %v1157 = vpack.c.b16 %v909, %v901
  %v1158 = vpack.c.b16 %v910, %v902
  %v1159 = vpack.c.b16 %v919, %v911
  %v1160 = vpack.c.b16 %v920, %v912
  %v1161 = vpack.c.b16 %v921, %v913
  %v1162 = vpack.c.b16 %v922, %v914
  %v1163 = vpack.c.b16 %v923, %v915
  %v1164 = vpack.c.b16 %v924, %v916
  %v1165 = vpack.c.b16 %v925, %v917
  %v1166 = vpack.c.b16 %v926, %v918
  %v1167 = vpack.c.b16 %v935, %v927
  %v1168 = vpack.c.b16 %v936, %v928
  %v1169 = vpack.c.b16 %v937, %v929
  %v1170 = vpack.c.b16 %v938, %v930
  %v1171 = vpack.c.b16 %v939, %v931
  %v1172 = vpack.c.b16 %v940, %v932
  %v1173 = vpack.c.b16 %v941, %v933
  %v1174 = vpack.c.b16 %v942, %v934
  %v1175 = vpack.c.b16 %v951, %v943
  %v1176 = vpack.c.b16 %v952, %v944
  %v1177 = vpack.c.b16 %v953, %v945
  %v1178 = vpack.c.b16 %v954, %v946
  %v1179 = vpack.c.b16 %v955, %v947
  %v1180 = vpack.c.b16 %v956, %v948
  %v1181 = vpack.c.b16 %v957, %v949
  %v1182 = vpack.c.b16 %v958, %v950
  %v1183 = vpack.c.b16 %v967, %v959
  %v1184 = vpack.c.b16 %v968, %v960
  %v1185 = vpack.c.b16 %v969, %v961
  %v1186 = vpack.c.b16 %v970, %v962
  %v1187 = vpack.c.b16 %v971, %v963
  %v1188 = vpack.c.b16 %v972, %v964
  %v1189 = vpack.c.b16 %v973, %v965
  %v1190 = vpack.c.b16 %v974, %v966
  %v1191 = vpack.c.b16 %v983, %v975
  %v1192 = vpack.c.b16 %v984, %v976
  %v1193 = vpack.c.b16 %v985, %v977
  %v1194 = vpack.c.b16 %v986, %v978
  %v1195 = vpack.c.b16 %v987, %v979
  %v1196 = vpack.c.b16 %v988, %v980
  %v1197 = vpack.c.b16 %v989, %v981
  %v1198 = vpack.c.b16 %v990, %v982
  %v1199 = vpack.c.b16 %v999, %v991
  %v1200 = vpack.c.b16 %v1000, %v992
  %v1201 = vpack.c.b16 %v1001, %v993
  %v1202 = vpack.c.b16 %v1002, %v994
  %v1203 = vpack.c.b16 %v1003, %v995
  %v1204 = vpack.c.b16 %v1004, %v996
  %v1205 = vpack.c.b16 %v1005, %v997
  %v1206 = vpack.c.b16 %v1006, %v998
  %v1207 = vpack.c.b16 %v1015, %v1007
  %v1208 = vpack.c.b16 %v1016, %v1008
  %v1209 = vpack.c.b16 %v1017, %v1009
  %v1210 = vpack.c.b16 %v1018, %v1010
  %v1211 = vpack.c.b16 %v1019, %v1011
  %v1212 = vpack.c.b16 %v1020, %v1012
  %v1213 = vpack.c.b16 %v1021, %v1013
  %v1214 = vpack.c.b16 %v1022, %v1014
  %v1215 = vpack.c.b16 %v1031, %v1023
  %v1216 = vpack.c.b16 %v1032, %v1024
  %v1217 = vpack.c.b16 %v1033, %v1025
  %v1218 = vpack.c.b16 %v1034, %v1026
  %v1219 = vpack.c.b16 %v1035, %v1027
  %v1220 = vpack.c.b16 %v1036, %v1028
  %v1221 = vpack.c.b16 %v1037, %v1029
  %v1222 = vpack.c.b16 %v1038, %v1030
  %v1223 = vpack.c.b16 %v1047, %v1039
  %v1224 = vpack.c.b16 %v1048, %v1040
  %v1225 = vpack.c.b16 %v1049, %v1041
  %v1226 = vpack.c.b16 %v1050, %v1042
  %v1227 = vpack.c.b16 %v1051, %v1043
  %v1228 = vpack.c.b16 %v1052, %v1044
  %v1229 = vpack.c.b16 %v1053, %v1045
  %v1230 = vpack.c.b16 %v1054, %v1046
  %v1231 = vpack.c.b16 %v1063, %v1055
  %v1232 = vpack.c.b16 %v1064, %v1056
  %v1233 = vpack.c.b16 %v1065, %v1057
  %v1234 = vpack.c.b16 %v1066, %v1058
  %v1235 = vpack.c.b16 %v1067, %v1059
  %v1236 = vpack.c.b16 %v1068, %v1060
  %v1237 = vpack.c.b16 %v1069, %v1061
  %v1238 = vpack.c.b16 %v1070, %v1062
  %v1239 = vpack.c.b16 %v1079, %v1071
  %v1240 = vpack.c.b16 %v1080, %v1072
  %v1241 = vpack.c.b16 %v1081, %v1073
  %v1242 = vpack.c.b16 %v1082, %v1074
  %v1243 = vpack.c.b16 %v1083, %v1075
  %v1244 = vpack.c.b16 %v1084, %v1076
  %v1245 = vpack.c.b16 %v1085, %v1077
  %v1246 = vpack.c.b16 %v1086, %v1078
  %v1247 = vpack.c.b16 %v1095, %v1087
  %v1248 = vpack.c.b16 %v1096, %v1088
  %v1249 = vpack.c.b16 %v1097, %v1089
  %v1250 = vpack.c.b16 %v1098, %v1090
  %v1251 = vpack.c.b16 %v1099, %v1091
  %v1252 = vpack.c.b16 %v1100, %v1092
  %v1253 = vpack.c.b16 %v1101, %v1093
  %v1254 = vpack.c.b16 %v1102, %v1094
  %v1255 = vpack.c.b16 %v1111, %v1103
  %v1256 = vpack.c.b16 %v1112, %v1104
  %v1257 = vpack.c.b16 %v1113, %v1105
  %v1258 = vpack.c.b16 %v1114, %v1106
  %v1259 = vpack.c.b16 %v1115, %v1107
  %v1260 = vpack.c.b16 %v1116, %v1108
  %v1261 = vpack.c.b16 %v1117, %v1109
  %v1262 = vpack.c.b16 %v1118, %v1110
  %v1263 = vpack.c.b16 %v1127, %v1119
  %v1264 = vpack.c.b16 %v1128, %v1120
  %v1265 = vpack.c.b16 %v1129, %v1121
  %v1266 = vpack.c.b16 %v1130, %v1122
  %v1267 = vpack.c.b16 %v1131, %v1123
  %v1268 = vpack.c.b16 %v1132, %v1124
  %v1269 = vpack.c.b16 %v1133, %v1125
  %v1270 = vpack.c.b16 %v1134, %v1126
  %v1271 = vpack.c.b16 %v1143, %v1135
  %v1272 = vpack.c.b16 %v1144, %v1136
  %v1273 = vpack.c.b16 %v1145, %v1137
  %v1274 = vpack.c.b16 %v1146, %v1138
  %v1275 = vpack.c.b16 %v1147, %v1139
  %v1276 = vpack.c.b16 %v1148, %v1140
  %v1277 = vpack.c.b16 %v1149, %v1141
  %v1278 = vpack.c.b16 %v1150, %v1142
  %1407 = vmatprep.subr.bf16.mxu0 %v1208
  %1408 = vmatpush1.bf16.msra.mxu0 %v1207
  %1409 = vmatprep.subr.bf16.mxu0 %v1200
  %1410 = vmatpush1.bf16.msra.mxu0 %v1199
  %1411 = vmatprep.subr.bf16.mxu0 %v1192
  %1412 = vmatpush1.bf16.msra.mxu0 %v1191
  %1413 = vmatprep.subr.bf16.mxu0 %v1184
  %1414 = vmatpush1.bf16.msra.mxu0 %v1183
  %1415 = vmatprep.subr.bf16.mxu0 %v1176
  %1416 = vmatpush1.bf16.msra.mxu0 %v1175
  %1417 = vmatprep.subr.bf16.mxu0 %v1168
  %1418 = vmatpush1.bf16.msra.mxu0 %v1167
  %1419 = vmatprep.subr.bf16.mxu0 %v1160
  %1420 = vmatpush1.bf16.msra.mxu0 %v1159
  %1421 = vmatprep.subr.bf16.mxu0 %v1152
  %1422 = vmatpush1.bf16.msra.mxu0 %v1151
  %1423 = vmatprep.subr.bf16.mxu0 %v1272
  %1424 = vmatpush2.bf16.msra.mxu0 %v1271
  %1425 = vmatprep.subr.bf16.mxu0 %v1264
  %1426 = vmatpush2.bf16.msra.mxu0 %v1263
  %1427 = vmatprep.subr.bf16.mxu0 %v1256
  %1428 = vmatpush2.bf16.msra.mxu0 %v1255
  %1429 = vmatprep.subr.bf16.mxu0 %v1248
  %1430 = vmatpush2.bf16.msra.mxu0 %v1247
  %1431 = vmatprep.subr.bf16.mxu0 %v1240
  %1432 = vmatpush2.bf16.msra.mxu0 %v1239
  %1433 = vmatprep.subr.bf16.mxu0 %v1232
  %1434 = vmatpush2.bf16.msra.mxu0 %v1231
  %1435 = vmatprep.subr.bf16.mxu0 %v1224
  %1436 = vmatpush2.bf16.msra.mxu0 %v1223
  %1437 = vmatprep.subr.bf16.mxu0 %v1216
  %1438 = vmatpush2.bf16.msra.mxu0 %v1215
  %1439 = vmatprep.mubr.bf16.mxu0 %v638
  %1440 = vmatmul.mubr.bf16.gmra.mxu0 %v637
  %v1441 = vpop.f32.mrf.mxu0
  %v1442 = vadd.f32 0.0, %v1441
  %v1443 = vpop.f32.mrf.mxu0
  %v1444 = vadd.f32 0.0, %v1443
  %v1445 = vpop.f32.mrf.mxu0
  %v1446 = vpop.f32.mrf.mxu0
  %1447 = vdwg.mxu0
  %1448 = vmatprep.subr.bf16.mxu0 %v1210
  %1449 = vmatpush1.bf16.msra.mxu0 %v1209
  %1450 = vmatprep.subr.bf16.mxu0 %v1202
  %1451 = vmatpush1.bf16.msra.mxu0 %v1201
  %1452 = vmatprep.subr.bf16.mxu0 %v1194
  %1453 = vmatpush1.bf16.msra.mxu0 %v1193
  %1454 = vmatprep.subr.bf16.mxu0 %v1186
  %1455 = vmatpush1.bf16.msra.mxu0 %v1185
  %1456 = vmatprep.subr.bf16.mxu0 %v1178
  %1457 = vmatpush1.bf16.msra.mxu0 %v1177
  %1458 = vmatprep.subr.bf16.mxu0 %v1170
  %1459 = vmatpush1.bf16.msra.mxu0 %v1169
  %1460 = vmatprep.subr.bf16.mxu0 %v1162
  %1461 = vmatpush1.bf16.msra.mxu0 %v1161
  %1462 = vmatprep.subr.bf16.mxu0 %v1154
  %1463 = vmatpush1.bf16.msra.mxu0 %v1153
  %1464 = vmatprep.subr.bf16.mxu0 %v1274
  %1465 = vmatpush2.bf16.msra.mxu0 %v1273
  %1466 = vmatprep.subr.bf16.mxu0 %v1266
  %1467 = vmatpush2.bf16.msra.mxu0 %v1265
  %1468 = vmatprep.subr.bf16.mxu0 %v1258
  %1469 = vmatpush2.bf16.msra.mxu0 %v1257
  %1470 = vmatprep.subr.bf16.mxu0 %v1250
  %1471 = vmatpush2.bf16.msra.mxu0 %v1249
  %1472 = vmatprep.subr.bf16.mxu0 %v1242
  %1473 = vmatpush2.bf16.msra.mxu0 %v1241
  %1474 = vmatprep.subr.bf16.mxu0 %v1234
  %1475 = vmatpush2.bf16.msra.mxu0 %v1233
  %1476 = vmatprep.subr.bf16.mxu0 %v1226
  %1477 = vmatpush2.bf16.msra.mxu0 %v1225
  %1478 = vmatprep.subr.bf16.mxu0 %v1218
  %1479 = vmatpush2.bf16.msra.mxu0 %v1217
  %1480 = vmatprep.mubr.bf16.mxu0 %v638
  %1481 = vmatmul.mubr.bf16.gmra.mxu0 %v637
  %v1482 = vpop.f32.mrf.mxu0
  %v1483 = vadd.f32 0.0, %v1482
  %v1484 = vpop.f32.mrf.mxu0
  %v1485 = vadd.f32 0.0, %v1484
  %v1486 = vpop.f32.mrf.mxu0
  %v1487 = vpop.f32.mrf.mxu0
  %1488 = vdwg.mxu0
  %1489 = vmatprep.subr.bf16.mxu0 %v1212
  %1490 = vmatpush1.bf16.msra.mxu0 %v1211
  %1491 = vmatprep.subr.bf16.mxu0 %v1204
  %1492 = vmatpush1.bf16.msra.mxu0 %v1203
  %1493 = vmatprep.subr.bf16.mxu0 %v1196
  %1494 = vmatpush1.bf16.msra.mxu0 %v1195
  %1495 = vmatprep.subr.bf16.mxu0 %v1188
  %1496 = vmatpush1.bf16.msra.mxu0 %v1187
  %1497 = vmatprep.subr.bf16.mxu0 %v1180
  %1498 = vmatpush1.bf16.msra.mxu0 %v1179
  %1499 = vmatprep.subr.bf16.mxu0 %v1172
  %1500 = vmatpush1.bf16.msra.mxu0 %v1171
  %1501 = vmatprep.subr.bf16.mxu0 %v1164
  %1502 = vmatpush1.bf16.msra.mxu0 %v1163
  %1503 = vmatprep.subr.bf16.mxu0 %v1156
  %1504 = vmatpush1.bf16.msra.mxu0 %v1155
  %1505 = vmatprep.subr.bf16.mxu0 %v1276
  %1506 = vmatpush2.bf16.msra.mxu0 %v1275
  %1507 = vmatprep.subr.bf16.mxu0 %v1268
  %1508 = vmatpush2.bf16.msra.mxu0 %v1267
  %1509 = vmatprep.subr.bf16.mxu0 %v1260
  %1510 = vmatpush2.bf16.msra.mxu0 %v1259
  %1511 = vmatprep.subr.bf16.mxu0 %v1252
  %1512 = vmatpush2.bf16.msra.mxu0 %v1251
  %1513 = vmatprep.subr.bf16.mxu0 %v1244
  %1514 = vmatpush2.bf16.msra.mxu0 %v1243
  %1515 = vmatprep.subr.bf16.mxu0 %v1236
  %1516 = vmatpush2.bf16.msra.mxu0 %v1235
  %1517 = vmatprep.subr.bf16.mxu0 %v1228
  %1518 = vmatpush2.bf16.msra.mxu0 %v1227
  %1519 = vmatprep.subr.bf16.mxu0 %v1220
  %1520 = vmatpush2.bf16.msra.mxu0 %v1219
  %1521 = vmatprep.mubr.bf16.mxu0 %v638
  %1522 = vmatmul.mubr.bf16.gmra.mxu0 %v637
  %v1523 = vpop.f32.mrf.mxu0
  %v1524 = vadd.f32 0.0, %v1523
  %v1525 = vpop.f32.mrf.mxu0
  %v1526 = vadd.f32 0.0, %v1525
  %v1527 = vpop.f32.mrf.mxu0
  %v1528 = vpop.f32.mrf.mxu0
  %1529 = vdwg.mxu0
  %1530 = vmatprep.subr.bf16.mxu0 %v1214
  %1531 = vmatpush1.bf16.msra.mxu0 %v1213
  %1532 = vmatprep.subr.bf16.mxu0 %v1206
  %1533 = vmatpush1.bf16.msra.mxu0 %v1205
  %1534 = vmatprep.subr.bf16.mxu0 %v1198
  %1535 = vmatpush1.bf16.msra.mxu0 %v1197
  %1536 = vmatprep.subr.bf16.mxu0 %v1190
  %1537 = vmatpush1.bf16.msra.mxu0 %v1189
  %1538 = vmatprep.subr.bf16.mxu0 %v1182
  %1539 = vmatpush1.bf16.msra.mxu0 %v1181
  %1540 = vmatprep.subr.bf16.mxu0 %v1174
  %1541 = vmatpush1.bf16.msra.mxu0 %v1173
  %1542 = vmatprep.subr.bf16.mxu0 %v1166
  %1543 = vmatpush1.bf16.msra.mxu0 %v1165
  %1544 = vmatprep.subr.bf16.mxu0 %v1158
  %1545 = vmatpush1.bf16.msra.mxu0 %v1157
  %1546 = vmatprep.subr.bf16.mxu0 %v1278
  %1547 = vmatpush2.bf16.msra.mxu0 %v1277
  %1548 = vmatprep.subr.bf16.mxu0 %v1270
  %1549 = vmatpush2.bf16.msra.mxu0 %v1269
  %1550 = vmatprep.subr.bf16.mxu0 %v1262
  %1551 = vmatpush2.bf16.msra.mxu0 %v1261
  %1552 = vmatprep.subr.bf16.mxu0 %v1254
  %1553 = vmatpush2.bf16.msra.mxu0 %v1253
  %1554 = vmatprep.subr.bf16.mxu0 %v1246
  %1555 = vmatpush2.bf16.msra.mxu0 %v1245
  %1556 = vmatprep.subr.bf16.mxu0 %v1238
  %1557 = vmatpush2.bf16.msra.mxu0 %v1237
  %1558 = vmatprep.subr.bf16.mxu0 %v1230
  %1559 = vmatpush2.bf16.msra.mxu0 %v1229
  %1560 = vmatprep.subr.bf16.mxu0 %v1222
  %1561 = vmatpush2.bf16.msra.mxu0 %v1221
  %1562 = vmatprep.mubr.bf16.mxu0 %v638
  %1563 = vmatmul.mubr.bf16.gmra.mxu0 %v637
  %v1564 = vpop.f32.mrf.mxu0
  %v1565 = vadd.f32 0.0, %v1564
  %v1566 = vpop.f32.mrf.mxu0
  %v1567 = vadd.f32 0.0, %v1566
  %v1568 = vpop.f32.mrf.mxu0
  %v1569 = vpop.f32.mrf.mxu0
  %1570 = vdwg.mxu0
  %v1571 = vld [vmem:[#allocation2 + $0x20] sm:$0xff]
  %v1572 = vld [vmem:[#allocation2 + $0x28] sm:$0xff]
  %v1573 = vld [vmem:[#allocation2 + $0x30] sm:$0xff]
  %v1574 = vld [vmem:[#allocation2 + $0x38] sm:$0xff]
  %v1575 = vadd.f32 %v1442, %v1571
  %v1576 = vadd.f32 %v1444, %v1572
  %v1577 = vadd.f32 %v1483, %v1573
  %v1578 = vadd.f32 %v1485, %v1574
  %v1580 = vlaneseq
  %v1581 = vshrl.u32 %v1580, 7
  %v1582 = vsub.s32 0, %v1581
  %v1583 = vrot.slane %v614, %v1582
  %v1584 = vlaneseq
  %v1585 = vshrl.u32 %v1584, 7
  %v1586 = vsub.s32 1, %v1585
  %v1587 = vrot.slane %v614, %v1586
  %v1588 = vlaneseq
  %v1589 = vshrl.u32 %v1588, 7
  %v1590 = vsub.s32 2, %v1589
  %v1591 = vrot.slane %v614, %v1590
  %v1592 = vlaneseq
  %v1593 = vshrl.u32 %v1592, 7
  %v1594 = vsub.s32 3, %v1593
  %v1595 = vrot.slane %v614, %v1594
  %v1600 = vadd.f32 %v1524, %v1583
  %v1601 = vadd.f32 %v1526, %v1587
  %v1602 = vadd.f32 %v1565, %v1591
  %v1603 = vadd.f32 %v1567, %v1595
  %v1604 = vmul.f32 %v1575, 0.5
  %v1605 = vtanh.pop %v1604
  %v1606 = vadd.f32 %v1605, 1.0
  %v1607 = vmul.f32 %v1606, 0.5
  %v1608 = vmul.f32 %v1576, 0.5
  %v1609 = vtanh.pop %v1608
  %v1610 = vadd.f32 %v1609, 1.0
  %v1611 = vmul.f32 %v1610, 0.5
  %v1612 = vtanh.pop %v1577
  %v1613 = vmul.f32 %v1578, 0.5
  %v1614 = vtanh.pop %v1613
  %v1615 = vadd.f32 %v1614, 1.0
  %v1616 = vmul.f32 %v1615, 0.5
  %v1617 = vmul.f32 %v1611, %v634
  %v1618 = vmul.f32 %v1607, %v1612
  %v1619 = vadd.f32 %v1617, %v1618
  %v1620 = vtanh.pop %v1619
  %v1621 = vmul.f32 %v1616, %v1620
  %v1622 = vmul.f32 %v1600, 0.5
  %v1623 = vtanh.pop %v1622
  %v1624 = vadd.f32 %v1623, 1.0
  %v1625 = vmul.f32 %v1624, 0.5
  %v1626 = vmul.f32 %v1601, 0.5
  %v1627 = vtanh.pop %v1626
  %v1628 = vadd.f32 %v1627, 1.0
  %v1629 = vmul.f32 %v1628, 0.5
  %v1630 = vtanh.pop %v1602
  %v1631 = vmul.f32 %v1603, 0.5
  %v1632 = vtanh.pop %v1631
  %v1633 = vadd.f32 %v1632, 1.0
  %v1634 = vmul.f32 %v1633, 0.5
  %v1635 = vmul.f32 %v1629, 0.0
  %v1636 = vmul.f32 %v1625, %v1630
  %v1637 = vadd.f32 %v1635, %v1636
  %v1638 = vtanh.pop %v1637
  %v1639 = vmul.f32 %v1634, %v1638
  %v1640 = vpack.c.bf16 %v1621, %v1621
  %v1641 = vpack.c.bf16 %v1639, %v1639
  %1642 = vmatprep.subr.bf16.mxu0 %v1208
  %1643 = vmatpush1.bf16.msra.mxu0 %v1207
  %1644 = vmatprep.subr.bf16.mxu0 %v1200
  %1645 = vmatpush1.bf16.msra.mxu0 %v1199
  %1646 = vmatprep.subr.bf16.mxu0 %v1192
  %1647 = vmatpush1.bf16.msra.mxu0 %v1191
  %1648 = vmatprep.subr.bf16.mxu0 %v1184
  %1649 = vmatpush1.bf16.msra.mxu0 %v1183
  %1650 = vmatprep.subr.bf16.mxu0 %v1176
  %1651 = vmatpush1.bf16.msra.mxu0 %v1175
  %1652 = vmatprep.subr.bf16.mxu0 %v1168
  %1653 = vmatpush1.bf16.msra.mxu0 %v1167
  %1654 = vmatprep.subr.bf16.mxu0 %v1160
  %1655 = vmatpush1.bf16.msra.mxu0 %v1159
  %1656 = vmatprep.subr.bf16.mxu0 %v1152
  %1657 = vmatpush1.bf16.msra.mxu0 %v1151
  %1658 = vmatprep.subr.bf16.mxu0 %v1272
  %1659 = vmatpush2.bf16.msra.mxu0 %v1271
  %1660 = vmatprep.subr.bf16.mxu0 %v1264
  %1661 = vmatpush2.bf16.msra.mxu0 %v1263
  %1662 = vmatprep.subr.bf16.mxu0 %v1256
  %1663 = vmatpush2.bf16.msra.mxu0 %v1255
  %1664 = vmatprep.subr.bf16.mxu0 %v1248
  %1665 = vmatpush2.bf16.msra.mxu0 %v1247
  %1666 = vmatprep.subr.bf16.mxu0 %v1240
  %1667 = vmatpush2.bf16.msra.mxu0 %v1239
  %1668 = vmatprep.subr.bf16.mxu0 %v1232
  %1669 = vmatpush2.bf16.msra.mxu0 %v1231
  %1670 = vmatprep.subr.bf16.mxu0 %v1224
  %1671 = vmatpush2.bf16.msra.mxu0 %v1223
  %1672 = vmatprep.subr.bf16.mxu0 %v1216
  %1673 = vmatpush2.bf16.msra.mxu0 %v1215
  %1674 = vmatprep.mubr.bf16.mxu0 %v1641
  %1675 = vmatmul.mubr.bf16.gmra.mxu0 %v1640
  %v1676 = vpop.f32.mrf.mxu0
  %v1677 = vadd.f32 0.0, %v1676
  %v1678 = vpop.f32.mrf.mxu0
  %v1679 = vadd.f32 0.0, %v1678
  %v1680 = vpop.f32.mrf.mxu0
  %v1681 = vpop.f32.mrf.mxu0
  %1682 = vdwg.mxu0
  %1683 = vmatprep.subr.bf16.mxu0 %v1210
  %1684 = vmatpush1.bf16.msra.mxu0 %v1209
  %1685 = vmatprep.subr.bf16.mxu0 %v1202
  %1686 = vmatpush1.bf16.msra.mxu0 %v1201
  %1687 = vmatprep.subr.bf16.mxu0 %v1194
  %1688 = vmatpush1.bf16.msra.mxu0 %v1193
  %1689 = vmatprep.subr.bf16.mxu0 %v1186
  %1690 = vmatpush1.bf16.msra.mxu0 %v1185
  %1691 = vmatprep.subr.bf16.mxu0 %v1178
  %1692 = vmatpush1.bf16.msra.mxu0 %v1177
  %1693 = vmatprep.subr.bf16.mxu0 %v1170
  %1694 = vmatpush1.bf16.msra.mxu0 %v1169
  %1695 = vmatprep.subr.bf16.mxu0 %v1162
  %1696 = vmatpush1.bf16.msra.mxu0 %v1161
  %1697 = vmatprep.subr.bf16.mxu0 %v1154
  %1698 = vmatpush1.bf16.msra.mxu0 %v1153
  %1699 = vmatprep.subr.bf16.mxu0 %v1274
  %1700 = vmatpush2.bf16.msra.mxu0 %v1273
  %1701 = vmatprep.subr.bf16.mxu0 %v1266
  %1702 = vmatpush2.bf16.msra.mxu0 %v1265
  %1703 = vmatprep.subr.bf16.mxu0 %v1258
  %1704 = vmatpush2.bf16.msra.mxu0 %v1257
  %1705 = vmatprep.subr.bf16.mxu0 %v1250
  %1706 = vmatpush2.bf16.msra.mxu0 %v1249
  %1707 = vmatprep.subr.bf16.mxu0 %v1242
  %1708 = vmatpush2.bf16.msra.mxu0 %v1241
  %1709 = vmatprep.subr.bf16.mxu0 %v1234
  %1710 = vmatpush2.bf16.msra.mxu0 %v1233
  %1711 = vmatprep.subr.bf16.mxu0 %v1226
  %1712 = vmatpush2.bf16.msra.mxu0 %v1225
  %1713 = vmatprep.subr.bf16.mxu0 %v1218
  %1714 = vmatpush2.bf16.msra.mxu0 %v1217
  %1715 = vmatprep.mubr.bf16.mxu0 %v1641
  %1716 = vmatmul.mubr.bf16.gmra.mxu0 %v1640
  %v1717 = vpop.f32.mrf.mxu0
  %v1718 = vadd.f32 0.0, %v1717
  %v1719 = vpop.f32.mrf.mxu0
  %v1720 = vadd.f32 0.0, %v1719
  %v1721 = vpop.f32.mrf.mxu0
  %v1722 = vpop.f32.mrf.mxu0
  %1723 = vdwg.mxu0
  %1724 = vmatprep.subr.bf16.mxu0 %v1212
  %1725 = vmatpush1.bf16.msra.mxu0 %v1211
  %1726 = vmatprep.subr.bf16.mxu0 %v1204
  %1727 = vmatpush1.bf16.msra.mxu0 %v1203
  %1728 = vmatprep.subr.bf16.mxu0 %v1196
  %1729 = vmatpush1.bf16.msra.mxu0 %v1195
  %1730 = vmatprep.subr.bf16.mxu0 %v1188
  %1731 = vmatpush1.bf16.msra.mxu0 %v1187
  %1732 = vmatprep.subr.bf16.mxu0 %v1180
  %1733 = vmatpush1.bf16.msra.mxu0 %v1179
  %1734 = vmatprep.subr.bf16.mxu0 %v1172
  %1735 = vmatpush1.bf16.msra.mxu0 %v1171
  %1736 = vmatprep.subr.bf16.mxu0 %v1164
  %1737 = vmatpush1.bf16.msra.mxu0 %v1163
  %1738 = vmatprep.subr.bf16.mxu0 %v1156
  %1739 = vmatpush1.bf16.msra.mxu0 %v1155
  %1740 = vmatprep.subr.bf16.mxu0 %v1276
  %1741 = vmatpush2.bf16.msra.mxu0 %v1275
  %1742 = vmatprep.subr.bf16.mxu0 %v1268
  %1743 = vmatpush2.bf16.msra.mxu0 %v1267
  %1744 = vmatprep.subr.bf16.mxu0 %v1260
  %1745 = vmatpush2.bf16.msra.mxu0 %v1259
  %1746 = vmatprep.subr.bf16.mxu0 %v1252
  %1747 = vmatpush2.bf16.msra.mxu0 %v1251
  %1748 = vmatprep.subr.bf16.mxu0 %v1244
  %1749 = vmatpush2.bf16.msra.mxu0 %v1243
  %1750 = vmatprep.subr.bf16.mxu0 %v1236
  %1751 = vmatpush2.bf16.msra.mxu0 %v1235
  %1752 = vmatprep.subr.bf16.mxu0 %v1228
  %1753 = vmatpush2.bf16.msra.mxu0 %v1227
  %1754 = vmatprep.subr.bf16.mxu0 %v1220
  %1755 = vmatpush2.bf16.msra.mxu0 %v1219
  %1756 = vmatprep.mubr.bf16.mxu0 %v1641
  %1757 = vmatmul.mubr.bf16.gmra.mxu0 %v1640
  %v1758 = vpop.f32.mrf.mxu0
  %v1759 = vadd.f32 0.0, %v1758
  %v1760 = vpop.f32.mrf.mxu0
  %v1761 = vadd.f32 0.0, %v1760
  %v1762 = vpop.f32.mrf.mxu0
  %v1763 = vpop.f32.mrf.mxu0
  %1764 = vdwg.mxu0
  %1765 = vmatprep.subr.bf16.mxu0 %v1214
  %1766 = vmatpush1.bf16.msra.mxu0 %v1213
  %1767 = vmatprep.subr.bf16.mxu0 %v1206
  %1768 = vmatpush1.bf16.msra.mxu0 %v1205
  %1769 = vmatprep.subr.bf16.mxu0 %v1198
  %1770 = vmatpush1.bf16.msra.mxu0 %v1197
  %1771 = vmatprep.subr.bf16.mxu0 %v1190
  %1772 = vmatpush1.bf16.msra.mxu0 %v1189
  %1773 = vmatprep.subr.bf16.mxu0 %v1182
  %1774 = vmatpush1.bf16.msra.mxu0 %v1181
  %1775 = vmatprep.subr.bf16.mxu0 %v1174
  %1776 = vmatpush1.bf16.msra.mxu0 %v1173
  %1777 = vmatprep.subr.bf16.mxu0 %v1166
  %1778 = vmatpush1.bf16.msra.mxu0 %v1165
  %1779 = vmatprep.subr.bf16.mxu0 %v1158
  %1780 = vmatpush1.bf16.msra.mxu0 %v1157
  %1781 = vmatprep.subr.bf16.mxu0 %v1278
  %1782 = vmatpush2.bf16.msra.mxu0 %v1277
  %1783 = vmatprep.subr.bf16.mxu0 %v1270
  %1784 = vmatpush2.bf16.msra.mxu0 %v1269
  %1785 = vmatprep.subr.bf16.mxu0 %v1262
  %1786 = vmatpush2.bf16.msra.mxu0 %v1261
  %1787 = vmatprep.subr.bf16.mxu0 %v1254
  %1788 = vmatpush2.bf16.msra.mxu0 %v1253
  %1789 = vmatprep.subr.bf16.mxu0 %v1246
  %1790 = vmatpush2.bf16.msra.mxu0 %v1245
  %1791 = vmatprep.subr.bf16.mxu0 %v1238
  %1792 = vmatpush2.bf16.msra.mxu0 %v1237
  %1793 = vmatprep.subr.bf16.mxu0 %v1230
  %1794 = vmatpush2.bf16.msra.mxu0 %v1229
  %1795 = vmatprep.subr.bf16.mxu0 %v1222
  %1796 = vmatpush2.bf16.msra.mxu0 %v1221
  %1797 = vmatprep.mubr.bf16.mxu0 %v1641
  %1798 = vmatmul.mubr.bf16.gmra.mxu0 %v1640
  %v1799 = vpop.f32.mrf.mxu0
  %v1800 = vadd.f32 0.0, %v1799
  %v1801 = vpop.f32.mrf.mxu0
  %v1802 = vadd.f32 0.0, %v1801
  %v1803 = vpop.f32.mrf.mxu0
  %v1804 = vpop.f32.mrf.mxu0
  %1805 = vdwg.mxu0
  %v1806 = vld [vmem:[#allocation2 + $0x40] sm:$0xff]
  %v1807 = vld [vmem:[#allocation2 + $0x48] sm:$0xff]
  %v1808 = vld [vmem:[#allocation2 + $0x50] sm:$0xff]
  %v1809 = vld [vmem:[#allocation2 + $0x58] sm:$0xff]
  %v1810 = vadd.f32 %v1677, %v1806
  %v1811 = vadd.f32 %v1679, %v1807
  %v1812 = vadd.f32 %v1718, %v1808
  %v1813 = vadd.f32 %v1720, %v1809
  %v1814 = vadd.f32 %v1759, %v1583
  %v1815 = vadd.f32 %v1761, %v1587
  %v1816 = vadd.f32 %v1800, %v1591
  %v1817 = vadd.f32 %v1802, %v1595
  %v1818 = vmul.f32 %v1810, 0.5
  %v1819 = vtanh.pop %v1818
  %v1820 = vadd.f32 %v1819, 1.0
  %v1821 = vmul.f32 %v1820, 0.5
  %v1822 = vmul.f32 %v1811, 0.5
  %v1823 = vtanh.pop %v1822
  %v1824 = vadd.f32 %v1823, 1.0
  %v1825 = vmul.f32 %v1824, 0.5
  %v1826 = vtanh.pop %v1812
  %v1827 = vmul.f32 %v1813, 0.5
  %v1828 = vtanh.pop %v1827
  %v1829 = vadd.f32 %v1828, 1.0
  %v1830 = vmul.f32 %v1829, 0.5
  %v1831 = vmul.f32 %v1825, %v1619
  %v1832 = vmul.f32 %v1821, %v1826
  %v1833 = vadd.f32 %v1831, %v1832
  %v1834 = vtanh.pop %v1833
  %v1835 = vmul.f32 %v1830, %v1834
  %v1836 = vmul.f32 %v1814, 0.5
  %v1837 = vtanh.pop %v1836
  %v1838 = vadd.f32 %v1837, 1.0
  %v1839 = vmul.f32 %v1838, 0.5
  %v1840 = vmul.f32 %v1815, 0.5
  %v1841 = vtanh.pop %v1840
  %v1842 = vadd.f32 %v1841, 1.0
  %v1843 = vmul.f32 %v1842, 0.5
  %v1844 = vtanh.pop %v1816
  %v1845 = vmul.f32 %v1817, 0.5
  %v1846 = vtanh.pop %v1845
  %v1847 = vadd.f32 %v1846, 1.0
  %v1848 = vmul.f32 %v1847, 0.5
  %v1849 = vmul.f32 %v1843, %v1637
  %v1850 = vmul.f32 %v1839, %v1844
  %v1851 = vadd.f32 %v1849, %v1850
  %v1852 = vtanh.pop %v1851
  %v1853 = vmul.f32 %v1848, %v1852
  %v1854 = vpack.c.bf16 %v1835, %v1835
  %v1855 = vpack.c.bf16 %v1853, %v1853
  %1856 = vmatprep.subr.bf16.mxu0 %v1208
  %1857 = vmatpush1.bf16.msra.mxu0 %v1207
  %1858 = vmatprep.subr.bf16.mxu0 %v1200
  %1859 = vmatpush1.bf16.msra.mxu0 %v1199
  %1860 = vmatprep.subr.bf16.mxu0 %v1192
  %1861 = vmatpush1.bf16.msra.mxu0 %v1191
  %1862 = vmatprep.subr.bf16.mxu0 %v1184
  %1863 = vmatpush1.bf16.msra.mxu0 %v1183
  %1864 = vmatprep.subr.bf16.mxu0 %v1176
  %1865 = vmatpush1.bf16.msra.mxu0 %v1175
  %1866 = vmatprep.subr.bf16.mxu0 %v1168
  %1867 = vmatpush1.bf16.msra.mxu0 %v1167
  %1868 = vmatprep.subr.bf16.mxu0 %v1160
  %1869 = vmatpush1.bf16.msra.mxu0 %v1159
  %1870 = vmatprep.subr.bf16.mxu0 %v1152
  %1871 = vmatpush1.bf16.msra.mxu0 %v1151
  %1872 = vmatprep.subr.bf16.mxu0 %v1272
  %1873 = vmatpush2.bf16.msra.mxu0 %v1271
  %1874 = vmatprep.subr.bf16.mxu0 %v1264
  %1875 = vmatpush2.bf16.msra.mxu0 %v1263
  %1876 = vmatprep.subr.bf16.mxu0 %v1256
  %1877 = vmatpush2.bf16.msra.mxu0 %v1255
  %1878 = vmatprep.subr.bf16.mxu0 %v1248
  %1879 = vmatpush2.bf16.msra.mxu0 %v1247
  %1880 = vmatprep.subr.bf16.mxu0 %v1240
  %1881 = vmatpush2.bf16.msra.mxu0 %v1239
  %1882 = vmatprep.subr.bf16.mxu0 %v1232
  %1883 = vmatpush2.bf16.msra.mxu0 %v1231
  %1884 = vmatprep.subr.bf16.mxu0 %v1224
  %1885 = vmatpush2.bf16.msra.mxu0 %v1223
  %1886 = vmatprep.subr.bf16.mxu0 %v1216
  %1887 = vmatpush2.bf16.msra.mxu0 %v1215
  %1888 = vmatprep.mubr.bf16.mxu0 %v1855
  %1889 = vmatmul.mubr.bf16.gmra.mxu0 %v1854
  %v1890 = vpop.f32.mrf.mxu0
  %v1891 = vadd.f32 0.0, %v1890
  %v1892 = vpop.f32.mrf.mxu0
  %v1893 = vadd.f32 0.0, %v1892
  %v1894 = vpop.f32.mrf.mxu0
  %v1895 = vpop.f32.mrf.mxu0
  %1896 = vdwg.mxu0
  %1897 = vmatprep.subr.bf16.mxu0 %v1210
  %1898 = vmatpush1.bf16.msra.mxu0 %v1209
  %1899 = vmatprep.subr.bf16.mxu0 %v1202
  %1900 = vmatpush1.bf16.msra.mxu0 %v1201
  %1901 = vmatprep.subr.bf16.mxu0 %v1194
  %1902 = vmatpush1.bf16.msra.mxu0 %v1193
  %1903 = vmatprep.subr.bf16.mxu0 %v1186
  %1904 = vmatpush1.bf16.msra.mxu0 %v1185
  %1905 = vmatprep.subr.bf16.mxu0 %v1178
  %1906 = vmatpush1.bf16.msra.mxu0 %v1177
  %1907 = vmatprep.subr.bf16.mxu0 %v1170
  %1908 = vmatpush1.bf16.msra.mxu0 %v1169
  %1909 = vmatprep.subr.bf16.mxu0 %v1162
  %1910 = vmatpush1.bf16.msra.mxu0 %v1161
  %1911 = vmatprep.subr.bf16.mxu0 %v1154
  %1912 = vmatpush1.bf16.msra.mxu0 %v1153
  %1913 = vmatprep.subr.bf16.mxu0 %v1274
  %1914 = vmatpush2.bf16.msra.mxu0 %v1273
  %1915 = vmatprep.subr.bf16.mxu0 %v1266
  %1916 = vmatpush2.bf16.msra.mxu0 %v1265
  %1917 = vmatprep.subr.bf16.mxu0 %v1258
  %1918 = vmatpush2.bf16.msra.mxu0 %v1257
  %1919 = vmatprep.subr.bf16.mxu0 %v1250
  %1920 = vmatpush2.bf16.msra.mxu0 %v1249
  %1921 = vmatprep.subr.bf16.mxu0 %v1242
  %1922 = vmatpush2.bf16.msra.mxu0 %v1241
  %1923 = vmatprep.subr.bf16.mxu0 %v1234
  %1924 = vmatpush2.bf16.msra.mxu0 %v1233
  %1925 = vmatprep.subr.bf16.mxu0 %v1226
  %1926 = vmatpush2.bf16.msra.mxu0 %v1225
  %1927 = vmatprep.subr.bf16.mxu0 %v1218
  %1928 = vmatpush2.bf16.msra.mxu0 %v1217
  %1929 = vmatprep.mubr.bf16.mxu0 %v1855
  %1930 = vmatmul.mubr.bf16.gmra.mxu0 %v1854
  %v1931 = vpop.f32.mrf.mxu0
  %v1932 = vadd.f32 0.0, %v1931
  %v1933 = vpop.f32.mrf.mxu0
  %v1934 = vadd.f32 0.0, %v1933
  %v1935 = vpop.f32.mrf.mxu0
  %v1936 = vpop.f32.mrf.mxu0
  %1937 = vdwg.mxu0
  %1938 = vmatprep.subr.bf16.mxu0 %v1212
  %1939 = vmatpush1.bf16.msra.mxu0 %v1211
  %1940 = vmatprep.subr.bf16.mxu0 %v1204
  %1941 = vmatpush1.bf16.msra.mxu0 %v1203
  %1942 = vmatprep.subr.bf16.mxu0 %v1196
  %1943 = vmatpush1.bf16.msra.mxu0 %v1195
  %1944 = vmatprep.subr.bf16.mxu0 %v1188
  %1945 = vmatpush1.bf16.msra.mxu0 %v1187
  %1946 = vmatprep.subr.bf16.mxu0 %v1180
  %1947 = vmatpush1.bf16.msra.mxu0 %v1179
  %1948 = vmatprep.subr.bf16.mxu0 %v1172
  %1949 = vmatpush1.bf16.msra.mxu0 %v1171
  %1950 = vmatprep.subr.bf16.mxu0 %v1164
  %1951 = vmatpush1.bf16.msra.mxu0 %v1163
  %1952 = vmatprep.subr.bf16.mxu0 %v1156
  %1953 = vmatpush1.bf16.msra.mxu0 %v1155
  %1954 = vmatprep.subr.bf16.mxu0 %v1276
  %1955 = vmatpush2.bf16.msra.mxu0 %v1275
  %1956 = vmatprep.subr.bf16.mxu0 %v1268
  %1957 = vmatpush2.bf16.msra.mxu0 %v1267
  %1958 = vmatprep.subr.bf16.mxu0 %v1260
  %1959 = vmatpush2.bf16.msra.mxu0 %v1259
  %1960 = vmatprep.subr.bf16.mxu0 %v1252
  %1961 = vmatpush2.bf16.msra.mxu0 %v1251
  %1962 = vmatprep.subr.bf16.mxu0 %v1244
  %1963 = vmatpush2.bf16.msra.mxu0 %v1243
  %1964 = vmatprep.subr.bf16.mxu0 %v1236
  %1965 = vmatpush2.bf16.msra.mxu0 %v1235
  %1966 = vmatprep.subr.bf16.mxu0 %v1228
  %1967 = vmatpush2.bf16.msra.mxu0 %v1227
  %1968 = vmatprep.subr.bf16.mxu0 %v1220
  %1969 = vmatpush2.bf16.msra.mxu0 %v1219
  %1970 = vmatprep.mubr.bf16.mxu0 %v1855
  %1971 = vmatmul.mubr.bf16.gmra.mxu0 %v1854
  %v1972 = vpop.f32.mrf.mxu0
  %v1973 = vadd.f32 0.0, %v1972
  %v1974 = vpop.f32.mrf.mxu0
  %v1975 = vadd.f32 0.0, %v1974
  %v1976 = vpop.f32.mrf.mxu0
  %v1977 = vpop.f32.mrf.mxu0
  %1978 = vdwg.mxu0
  %1979 = vmatprep.subr.bf16.mxu0 %v1214
  %1980 = vmatpush1.bf16.msra.mxu0 %v1213
  %1981 = vmatprep.subr.bf16.mxu0 %v1206
  %1982 = vmatpush1.bf16.msra.mxu0 %v1205
  %1983 = vmatprep.subr.bf16.mxu0 %v1198
  %1984 = vmatpush1.bf16.msra.mxu0 %v1197
  %1985 = vmatprep.subr.bf16.mxu0 %v1190
  %1986 = vmatpush1.bf16.msra.mxu0 %v1189
  %1987 = vmatprep.subr.bf16.mxu0 %v1182
  %1988 = vmatpush1.bf16.msra.mxu0 %v1181
  %1989 = vmatprep.subr.bf16.mxu0 %v1174
  %1990 = vmatpush1.bf16.msra.mxu0 %v1173
  %1991 = vmatprep.subr.bf16.mxu0 %v1166
  %1992 = vmatpush1.bf16.msra.mxu0 %v1165
  %1993 = vmatprep.subr.bf16.mxu0 %v1158
  %1994 = vmatpush1.bf16.msra.mxu0 %v1157
  %1995 = vmatprep.subr.bf16.mxu0 %v1278
  %1996 = vmatpush2.bf16.msra.mxu0 %v1277
  %1997 = vmatprep.subr.bf16.mxu0 %v1270
  %1998 = vmatpush2.bf16.msra.mxu0 %v1269
  %1999 = vmatprep.subr.bf16.mxu0 %v1262
  %2000 = vmatpush2.bf16.msra.mxu0 %v1261
  %2001 = vmatprep.subr.bf16.mxu0 %v1254
  %2002 = vmatpush2.bf16.msra.mxu0 %v1253
  %2003 = vmatprep.subr.bf16.mxu0 %v1246
  %2004 = vmatpush2.bf16.msra.mxu0 %v1245
  %2005 = vmatprep.subr.bf16.mxu0 %v1238
  %2006 = vmatpush2.bf16.msra.mxu0 %v1237
  %2007 = vmatprep.subr.bf16.mxu0 %v1230
  %2008 = vmatpush2.bf16.msra.mxu0 %v1229
  %2009 = vmatprep.subr.bf16.mxu0 %v1222
  %2010 = vmatpush2.bf16.msra.mxu0 %v1221
  %2011 = vmatprep.mubr.bf16.mxu0 %v1855
  %2012 = vmatmul.mubr.bf16.gmra.mxu0 %v1854
  %v2013 = vpop.f32.mrf.mxu0
  %v2014 = vadd.f32 0.0, %v2013
  %v2015 = vpop.f32.mrf.mxu0
  %v2016 = vadd.f32 0.0, %v2015
  %v2017 = vpop.f32.mrf.mxu0
  %v2018 = vpop.f32.mrf.mxu0
  %2019 = vdwg.mxu0
  %v2020 = vld [vmem:[#allocation2 + $0x60] sm:$0xff]
  %v2021 = vld [vmem:[#allocation2 + $0x68] sm:$0xff]
  %v2022 = vld [vmem:[#allocation2 + $0x70] sm:$0xff]
  %v2023 = vld [vmem:[#allocation2 + $0x78] sm:$0xff]
  %v2024 = vadd.f32 %v1891, %v2020
  %v2025 = vadd.f32 %v1893, %v2021
  %v2026 = vadd.f32 %v1932, %v2022
  %v2027 = vadd.f32 %v1934, %v2023
  %v2028 = vadd.f32 %v1973, %v1583
  %v2029 = vadd.f32 %v1975, %v1587
  %v2030 = vadd.f32 %v2014, %v1591
  %v2031 = vadd.f32 %v2016, %v1595
  %v2032 = vmul.f32 %v2024, 0.5
  %v2033 = vtanh.pop %v2032
  %v2034 = vadd.f32 %v2033, 1.0
  %v2035 = vmul.f32 %v2034, 0.5
  %v2036 = vmul.f32 %v2025, 0.5
  %v2037 = vtanh.pop %v2036
  %v2038 = vadd.f32 %v2037, 1.0
  %v2039 = vmul.f32 %v2038, 0.5
  %v2040 = vtanh.pop %v2026
  %v2041 = vmul.f32 %v2027, 0.5
  %v2042 = vtanh.pop %v2041
  %v2043 = vadd.f32 %v2042, 1.0
  %v2044 = vmul.f32 %v2043, 0.5
  %v2045 = vmul.f32 %v2039, %v1833
  %v2046 = vmul.f32 %v2035, %v2040
  %v2047 = vadd.f32 %v2045, %v2046
  %v2048 = vtanh.pop %v2047
  %v2049 = vmul.f32 %v2044, %v2048
  %v2050 = vmul.f32 %v2028, 0.5
  %v2051 = vtanh.pop %v2050
  %v2052 = vadd.f32 %v2051, 1.0
  %v2053 = vmul.f32 %v2052, 0.5
  %v2054 = vmul.f32 %v2029, 0.5
  %v2055 = vtanh.pop %v2054
  %v2056 = vadd.f32 %v2055, 1.0
  %v2057 = vmul.f32 %v2056, 0.5
  %v2058 = vtanh.pop %v2030
  %v2059 = vmul.f32 %v2031, 0.5
  %v2060 = vtanh.pop %v2059
  %v2061 = vadd.f32 %v2060, 1.0
  %v2062 = vmul.f32 %v2061, 0.5
  %v2063 = vmul.f32 %v2057, %v1851
  %v2064 = vmul.f32 %v2053, %v2058
  %v2065 = vadd.f32 %v2063, %v2064
  %v2066 = vtanh.pop %v2065
  %v2067 = vmul.f32 %v2062, %v2066
  %v2068 = vpack.c.bf16 %v2049, %v2049
  %v2069 = vpack.c.bf16 %v2067, %v2067
  %2070 = vmatprep.subr.bf16.mxu0 %v1208
  %2071 = vmatpush1.bf16.msra.mxu0 %v1207
  %2072 = vmatprep.subr.bf16.mxu0 %v1200
  %2073 = vmatpush1.bf16.msra.mxu0 %v1199
  %2074 = vmatprep.subr.bf16.mxu0 %v1192
  %2075 = vmatpush1.bf16.msra.mxu0 %v1191
  %2076 = vmatprep.subr.bf16.mxu0 %v1184
  %2077 = vmatpush1.bf16.msra.mxu0 %v1183
  %2078 = vmatprep.subr.bf16.mxu0 %v1176
  %2079 = vmatpush1.bf16.msra.mxu0 %v1175
  %2080 = vmatprep.subr.bf16.mxu0 %v1168
  %2081 = vmatpush1.bf16.msra.mxu0 %v1167
  %2082 = vmatprep.subr.bf16.mxu0 %v1160
  %2083 = vmatpush1.bf16.msra.mxu0 %v1159
  %2084 = vmatprep.subr.bf16.mxu0 %v1152
  %2085 = vmatpush1.bf16.msra.mxu0 %v1151
  %2086 = vmatprep.subr.bf16.mxu0 %v1272
  %2087 = vmatpush2.bf16.msra.mxu0 %v1271
  %2088 = vmatprep.subr.bf16.mxu0 %v1264
  %2089 = vmatpush2.bf16.msra.mxu0 %v1263
  %2090 = vmatprep.subr.bf16.mxu0 %v1256
  %2091 = vmatpush2.bf16.msra.mxu0 %v1255
  %2092 = vmatprep.subr.bf16.mxu0 %v1248
  %2093 = vmatpush2.bf16.msra.mxu0 %v1247
  %2094 = vmatprep.subr.bf16.mxu0 %v1240
  %2095 = vmatpush2.bf16.msra.mxu0 %v1239
  %2096 = vmatprep.subr.bf16.mxu0 %v1232
  %2097 = vmatpush2.bf16.msra.mxu0 %v1231
  %2098 = vmatprep.subr.bf16.mxu0 %v1224
  %2099 = vmatpush2.bf16.msra.mxu0 %v1223
  %2100 = vmatprep.subr.bf16.mxu0 %v1216
  %2101 = vmatpush2.bf16.msra.mxu0 %v1215
  %2102 = vmatprep.mubr.bf16.mxu0 %v2069
  %2103 = vmatmul.mubr.bf16.gmra.mxu0 %v2068
  %v2104 = vpop.f32.mrf.mxu0
  %v2105 = vadd.f32 0.0, %v2104
  %v2106 = vpop.f32.mrf.mxu0
  %v2107 = vadd.f32 0.0, %v2106
  %v2108 = vpop.f32.mrf.mxu0
  %v2109 = vpop.f32.mrf.mxu0
  %2110 = vdwg.mxu0
  %2111 = vmatprep.subr.bf16.mxu0 %v1210
  %2112 = vmatpush1.bf16.msra.mxu0 %v1209
  %2113 = vmatprep.subr.bf16.mxu0 %v1202
  %2114 = vmatpush1.bf16.msra.mxu0 %v1201
  %2115 = vmatprep.subr.bf16.mxu0 %v1194
  %2116 = vmatpush1.bf16.msra.mxu0 %v1193
  %2117 = vmatprep.subr.bf16.mxu0 %v1186
  %2118 = vmatpush1.bf16.msra.mxu0 %v1185
  %2119 = vmatprep.subr.bf16.mxu0 %v1178
  %2120 = vmatpush1.bf16.msra.mxu0 %v1177
  %2121 = vmatprep.subr.bf16.mxu0 %v1170
  %2122 = vmatpush1.bf16.msra.mxu0 %v1169
  %2123 = vmatprep.subr.bf16.mxu0 %v1162
  %2124 = vmatpush1.bf16.msra.mxu0 %v1161
  %2125 = vmatprep.subr.bf16.mxu0 %v1154
  %2126 = vmatpush1.bf16.msra.mxu0 %v1153
  %2127 = vmatprep.subr.bf16.mxu0 %v1274
  %2128 = vmatpush2.bf16.msra.mxu0 %v1273
  %2129 = vmatprep.subr.bf16.mxu0 %v1266
  %2130 = vmatpush2.bf16.msra.mxu0 %v1265
  %2131 = vmatprep.subr.bf16.mxu0 %v1258
  %2132 = vmatpush2.bf16.msra.mxu0 %v1257
  %2133 = vmatprep.subr.bf16.mxu0 %v1250
  %2134 = vmatpush2.bf16.msra.mxu0 %v1249
  %2135 = vmatprep.subr.bf16.mxu0 %v1242
  %2136 = vmatpush2.bf16.msra.mxu0 %v1241
  %2137 = vmatprep.subr.bf16.mxu0 %v1234
  %2138 = vmatpush2.bf16.msra.mxu0 %v1233
  %2139 = vmatprep.subr.bf16.mxu0 %v1226
  %2140 = vmatpush2.bf16.msra.mxu0 %v1225
  %2141 = vmatprep.subr.bf16.mxu0 %v1218
  %2142 = vmatpush2.bf16.msra.mxu0 %v1217
  %2143 = vmatprep.mubr.bf16.mxu0 %v2069
  %2144 = vmatmul.mubr.bf16.gmra.mxu0 %v2068
  %v2145 = vpop.f32.mrf.mxu0
  %v2146 = vadd.f32 0.0, %v2145
  %v2147 = vpop.f32.mrf.mxu0
  %v2148 = vadd.f32 0.0, %v2147
  %v2149 = vpop.f32.mrf.mxu0
  %v2150 = vpop.f32.mrf.mxu0
  %2151 = vdwg.mxu0
  %2152 = vmatprep.subr.bf16.mxu0 %v1212
  %2153 = vmatpush1.bf16.msra.mxu0 %v1211
  %2154 = vmatprep.subr.bf16.mxu0 %v1204
  %2155 = vmatpush1.bf16.msra.mxu0 %v1203
  %2156 = vmatprep.subr.bf16.mxu0 %v1196
  %2157 = vmatpush1.bf16.msra.mxu0 %v1195
  %2158 = vmatprep.subr.bf16.mxu0 %v1188
  %2159 = vmatpush1.bf16.msra.mxu0 %v1187
  %2160 = vmatprep.subr.bf16.mxu0 %v1180
  %2161 = vmatpush1.bf16.msra.mxu0 %v1179
  %2162 = vmatprep.subr.bf16.mxu0 %v1172
  %2163 = vmatpush1.bf16.msra.mxu0 %v1171
  %2164 = vmatprep.subr.bf16.mxu0 %v1164
  %2165 = vmatpush1.bf16.msra.mxu0 %v1163
  %2166 = vmatprep.subr.bf16.mxu0 %v1156
  %2167 = vmatpush1.bf16.msra.mxu0 %v1155
  %2168 = vmatprep.subr.bf16.mxu0 %v1276
  %2169 = vmatpush2.bf16.msra.mxu0 %v1275
  %2170 = vmatprep.subr.bf16.mxu0 %v1268
  %2171 = vmatpush2.bf16.msra.mxu0 %v1267
  %2172 = vmatprep.subr.bf16.mxu0 %v1260
  %2173 = vmatpush2.bf16.msra.mxu0 %v1259
  %2174 = vmatprep.subr.bf16.mxu0 %v1252
  %2175 = vmatpush2.bf16.msra.mxu0 %v1251
  %2176 = vmatprep.subr.bf16.mxu0 %v1244
  %2177 = vmatpush2.bf16.msra.mxu0 %v1243
  %2178 = vmatprep.subr.bf16.mxu0 %v1236
  %2179 = vmatpush2.bf16.msra.mxu0 %v1235
  %2180 = vmatprep.subr.bf16.mxu0 %v1228
  %2181 = vmatpush2.bf16.msra.mxu0 %v1227
  %2182 = vmatprep.subr.bf16.mxu0 %v1220
  %2183 = vmatpush2.bf16.msra.mxu0 %v1219
  %2184 = vmatprep.mubr.bf16.mxu0 %v2069
  %2185 = vmatmul.mubr.bf16.gmra.mxu0 %v2068
  %v2186 = vpop.f32.mrf.mxu0
  %v2187 = vadd.f32 0.0, %v2186
  %v2188 = vpop.f32.mrf.mxu0
  %v2189 = vadd.f32 0.0, %v2188
  %v2190 = vpop.f32.mrf.mxu0
  %v2191 = vpop.f32.mrf.mxu0
  %2192 = vdwg.mxu0
  %2193 = vmatprep.subr.bf16.mxu0 %v1214
  %2194 = vmatpush1.bf16.msra.mxu0 %v1213
  %2195 = vmatprep.subr.bf16.mxu0 %v1206
  %2196 = vmatpush1.bf16.msra.mxu0 %v1205
  %2197 = vmatprep.subr.bf16.mxu0 %v1198
  %2198 = vmatpush1.bf16.msra.mxu0 %v1197
  %2199 = vmatprep.subr.bf16.mxu0 %v1190
  %2200 = vmatpush1.bf16.msra.mxu0 %v1189
  %2201 = vmatprep.subr.bf16.mxu0 %v1182
  %2202 = vmatpush1.bf16.msra.mxu0 %v1181
  %2203 = vmatprep.subr.bf16.mxu0 %v1174
  %2204 = vmatpush1.bf16.msra.mxu0 %v1173
  %2205 = vmatprep.subr.bf16.mxu0 %v1166
  %2206 = vmatpush1.bf16.msra.mxu0 %v1165
  %2207 = vmatprep.subr.bf16.mxu0 %v1158
  %2208 = vmatpush1.bf16.msra.mxu0 %v1157
  %2209 = vmatprep.subr.bf16.mxu0 %v1278
  %2210 = vmatpush2.bf16.msra.mxu0 %v1277
  %2211 = vmatprep.subr.bf16.mxu0 %v1270
  %2212 = vmatpush2.bf16.msra.mxu0 %v1269
  %2213 = vmatprep.subr.bf16.mxu0 %v1262
  %2214 = vmatpush2.bf16.msra.mxu0 %v1261
  %2215 = vmatprep.subr.bf16.mxu0 %v1254
  %2216 = vmatpush2.bf16.msra.mxu0 %v1253
  %2217 = vmatprep.subr.bf16.mxu0 %v1246
  %2218 = vmatpush2.bf16.msra.mxu0 %v1245
  %2219 = vmatprep.subr.bf16.mxu0 %v1238
  %2220 = vmatpush2.bf16.msra.mxu0 %v1237
  %2221 = vmatprep.subr.bf16.mxu0 %v1230
  %2222 = vmatpush2.bf16.msra.mxu0 %v1229
  %2223 = vmatprep.subr.bf16.mxu0 %v1222
  %2224 = vmatpush2.bf16.msra.mxu0 %v1221
  %2225 = vmatprep.mubr.bf16.mxu0 %v2069
  %2226 = vmatmul.mubr.bf16.gmra.mxu0 %v2068
  %v2227 = vpop.f32.mrf.mxu0
  %v2228 = vadd.f32 0.0, %v2227
  %v2229 = vpop.f32.mrf.mxu0
  %v2230 = vadd.f32 0.0, %v2229
  %v2231 = vpop.f32.mrf.mxu0
  %v2232 = vpop.f32.mrf.mxu0
  %2233 = vdwg.mxu0
  %v2234 = vld [vmem:[#allocation2 + $0x80] sm:$0xff]
  %v2235 = vld [vmem:[#allocation2 + $0x88] sm:$0xff]
  %v2236 = vld [vmem:[#allocation2 + $0x90] sm:$0xff]
  %v2237 = vld [vmem:[#allocation2 + $0x98] sm:$0xff]
  %v2238 = vadd.f32 %v2105, %v2234
  %v2239 = vadd.f32 %v2107, %v2235
  %v2240 = vadd.f32 %v2146, %v2236
  %v2241 = vadd.f32 %v2148, %v2237
  %v2242 = vadd.f32 %v2187, %v1583
  %v2243 = vadd.f32 %v2189, %v1587
  %v2244 = vadd.f32 %v2228, %v1591
  %v2245 = vadd.f32 %v2230, %v1595
  %v2246 = vmul.f32 %v2238, 0.5
  %v2247 = vtanh.pop %v2246
  %v2248 = vadd.f32 %v2247, 1.0
  %v2249 = vmul.f32 %v2248, 0.5
  %v2250 = vmul.f32 %v2239, 0.5
  %v2251 = vtanh.pop %v2250
  %v2252 = vadd.f32 %v2251, 1.0
  %v2253 = vmul.f32 %v2252, 0.5
  %v2254 = vtanh.pop %v2240
  %v2255 = vmul.f32 %v2241, 0.5
  %v2256 = vtanh.pop %v2255
  %v2257 = vadd.f32 %v2256, 1.0
  %v2258 = vmul.f32 %v2257, 0.5
  %v2259 = vmul.f32 %v2253, %v2047
  %v2260 = vmul.f32 %v2249, %v2254
  %v2261 = vadd.f32 %v2259, %v2260
  %v2262 = vtanh.pop %v2261
  %v2263 = vmul.f32 %v2258, %v2262
  %v2264 = vmul.f32 %v2242, 0.5
  %v2265 = vtanh.pop %v2264
  %v2266 = vadd.f32 %v2265, 1.0
  %v2267 = vmul.f32 %v2266, 0.5
  %v2268 = vmul.f32 %v2243, 0.5
  %v2269 = vtanh.pop %v2268
  %v2270 = vadd.f32 %v2269, 1.0
  %v2271 = vmul.f32 %v2270, 0.5
  %v2272 = vtanh.pop %v2244
  %v2273 = vmul.f32 %v2245, 0.5
  %v2274 = vtanh.pop %v2273
  %v2275 = vadd.f32 %v2274, 1.0
  %v2276 = vmul.f32 %v2275, 0.5
  %v2277 = vmul.f32 %v2271, %v2065
  %v2278 = vmul.f32 %v2267, %v2272
  %v2279 = vadd.f32 %v2277, %v2278
  %v2280 = vtanh.pop %v2279
  %v2281 = vmul.f32 %v2276, %v2280
  %v2282 = vpack.c.bf16 %v2263, %v2263
  %v2283 = vpack.c.bf16 %v2281, %v2281
  %2284 = vmatprep.subr.bf16.mxu0 %v1208
  %2285 = vmatpush1.bf16.msra.mxu0 %v1207
  %2286 = vmatprep.subr.bf16.mxu0 %v1200
  %2287 = vmatpush1.bf16.msra.mxu0 %v1199
  %2288 = vmatprep.subr.bf16.mxu0 %v1192
  %2289 = vmatpush1.bf16.msra.mxu0 %v1191
  %2290 = vmatprep.subr.bf16.mxu0 %v1184
  %2291 = vmatpush1.bf16.msra.mxu0 %v1183
  %2292 = vmatprep.subr.bf16.mxu0 %v1176
  %2293 = vmatpush1.bf16.msra.mxu0 %v1175
  %2294 = vmatprep.subr.bf16.mxu0 %v1168
  %2295 = vmatpush1.bf16.msra.mxu0 %v1167
  %2296 = vmatprep.subr.bf16.mxu0 %v1160
  %2297 = vmatpush1.bf16.msra.mxu0 %v1159
  %2298 = vmatprep.subr.bf16.mxu0 %v1152
  %2299 = vmatpush1.bf16.msra.mxu0 %v1151
  %2300 = vmatprep.subr.bf16.mxu0 %v1272
  %2301 = vmatpush2.bf16.msra.mxu0 %v1271
  %2302 = vmatprep.subr.bf16.mxu0 %v1264
  %2303 = vmatpush2.bf16.msra.mxu0 %v1263
  %2304 = vmatprep.subr.bf16.mxu0 %v1256
  %2305 = vmatpush2.bf16.msra.mxu0 %v1255
  %2306 = vmatprep.subr.bf16.mxu0 %v1248
  %2307 = vmatpush2.bf16.msra.mxu0 %v1247
  %2308 = vmatprep.subr.bf16.mxu0 %v1240
  %2309 = vmatpush2.bf16.msra.mxu0 %v1239
  %2310 = vmatprep.subr.bf16.mxu0 %v1232
  %2311 = vmatpush2.bf16.msra.mxu0 %v1231
  %2312 = vmatprep.subr.bf16.mxu0 %v1224
  %2313 = vmatpush2.bf16.msra.mxu0 %v1223
  %2314 = vmatprep.subr.bf16.mxu0 %v1216
  %2315 = vmatpush2.bf16.msra.mxu0 %v1215
  %2316 = vmatprep.mubr.bf16.mxu0 %v2283
  %2317 = vmatmul.mubr.bf16.gmra.mxu0 %v2282
  %v2318 = vpop.f32.mrf.mxu0
  %v2319 = vadd.f32 0.0, %v2318
  %v2320 = vpop.f32.mrf.mxu0
  %v2321 = vadd.f32 0.0, %v2320
  %v2322 = vpop.f32.mrf.mxu0
  %v2323 = vpop.f32.mrf.mxu0
  %2324 = vdwg.mxu0
  %2325 = vmatprep.subr.bf16.mxu0 %v1210
  %2326 = vmatpush1.bf16.msra.mxu0 %v1209
  %2327 = vmatprep.subr.bf16.mxu0 %v1202
  %2328 = vmatpush1.bf16.msra.mxu0 %v1201
  %2329 = vmatprep.subr.bf16.mxu0 %v1194
  %2330 = vmatpush1.bf16.msra.mxu0 %v1193
  %2331 = vmatprep.subr.bf16.mxu0 %v1186
  %2332 = vmatpush1.bf16.msra.mxu0 %v1185
  %2333 = vmatprep.subr.bf16.mxu0 %v1178
  %2334 = vmatpush1.bf16.msra.mxu0 %v1177
  %2335 = vmatprep.subr.bf16.mxu0 %v1170
  %2336 = vmatpush1.bf16.msra.mxu0 %v1169
  %2337 = vmatprep.subr.bf16.mxu0 %v1162
  %2338 = vmatpush1.bf16.msra.mxu0 %v1161
  %2339 = vmatprep.subr.bf16.mxu0 %v1154
  %2340 = vmatpush1.bf16.msra.mxu0 %v1153
  %2341 = vmatprep.subr.bf16.mxu0 %v1274
  %2342 = vmatpush2.bf16.msra.mxu0 %v1273
  %2343 = vmatprep.subr.bf16.mxu0 %v1266
  %2344 = vmatpush2.bf16.msra.mxu0 %v1265
  %2345 = vmatprep.subr.bf16.mxu0 %v1258
  %2346 = vmatpush2.bf16.msra.mxu0 %v1257
  %2347 = vmatprep.subr.bf16.mxu0 %v1250
  %2348 = vmatpush2.bf16.msra.mxu0 %v1249
  %2349 = vmatprep.subr.bf16.mxu0 %v1242
  %2350 = vmatpush2.bf16.msra.mxu0 %v1241
  %2351 = vmatprep.subr.bf16.mxu0 %v1234
  %2352 = vmatpush2.bf16.msra.mxu0 %v1233
  %2353 = vmatprep.subr.bf16.mxu0 %v1226
  %2354 = vmatpush2.bf16.msra.mxu0 %v1225
  %2355 = vmatprep.subr.bf16.mxu0 %v1218
  %2356 = vmatpush2.bf16.msra.mxu0 %v1217
  %2357 = vmatprep.mubr.bf16.mxu0 %v2283
  %2358 = vmatmul.mubr.bf16.gmra.mxu0 %v2282
  %v2359 = vpop.f32.mrf.mxu0
  %v2360 = vadd.f32 0.0, %v2359
  %v2361 = vpop.f32.mrf.mxu0
  %v2362 = vadd.f32 0.0, %v2361
  %v2363 = vpop.f32.mrf.mxu0
  %v2364 = vpop.f32.mrf.mxu0
  %2365 = vdwg.mxu0
  %2366 = vmatprep.subr.bf16.mxu0 %v1212
  %2367 = vmatpush1.bf16.msra.mxu0 %v1211
  %2368 = vmatprep.subr.bf16.mxu0 %v1204
  %2369 = vmatpush1.bf16.msra.mxu0 %v1203
  %2370 = vmatprep.subr.bf16.mxu0 %v1196
  %2371 = vmatpush1.bf16.msra.mxu0 %v1195
  %2372 = vmatprep.subr.bf16.mxu0 %v1188
  %2373 = vmatpush1.bf16.msra.mxu0 %v1187
  %2374 = vmatprep.subr.bf16.mxu0 %v1180
  %2375 = vmatpush1.bf16.msra.mxu0 %v1179
  %2376 = vmatprep.subr.bf16.mxu0 %v1172
  %2377 = vmatpush1.bf16.msra.mxu0 %v1171
  %2378 = vmatprep.subr.bf16.mxu0 %v1164
  %2379 = vmatpush1.bf16.msra.mxu0 %v1163
  %2380 = vmatprep.subr.bf16.mxu0 %v1156
  %2381 = vmatpush1.bf16.msra.mxu0 %v1155
  %2382 = vmatprep.subr.bf16.mxu0 %v1276
  %2383 = vmatpush2.bf16.msra.mxu0 %v1275
  %2384 = vmatprep.subr.bf16.mxu0 %v1268
  %2385 = vmatpush2.bf16.msra.mxu0 %v1267
  %2386 = vmatprep.subr.bf16.mxu0 %v1260
  %2387 = vmatpush2.bf16.msra.mxu0 %v1259
  %2388 = vmatprep.subr.bf16.mxu0 %v1252
  %2389 = vmatpush2.bf16.msra.mxu0 %v1251
  %2390 = vmatprep.subr.bf16.mxu0 %v1244
  %2391 = vmatpush2.bf16.msra.mxu0 %v1243
  %2392 = vmatprep.subr.bf16.mxu0 %v1236
  %2393 = vmatpush2.bf16.msra.mxu0 %v1235
  %2394 = vmatprep.subr.bf16.mxu0 %v1228
  %2395 = vmatpush2.bf16.msra.mxu0 %v1227
  %2396 = vmatprep.subr.bf16.mxu0 %v1220
  %2397 = vmatpush2.bf16.msra.mxu0 %v1219
  %2398 = vmatprep.mubr.bf16.mxu0 %v2283
  %2399 = vmatmul.mubr.bf16.gmra.mxu0 %v2282
  %v2400 = vpop.f32.mrf.mxu0
  %v2401 = vadd.f32 0.0, %v2400
  %v2402 = vpop.f32.mrf.mxu0
  %v2403 = vadd.f32 0.0, %v2402
  %v2404 = vpop.f32.mrf.mxu0
  %v2405 = vpop.f32.mrf.mxu0
  %2406 = vdwg.mxu0
  %2407 = vmatprep.subr.bf16.mxu0 %v1214
  %2408 = vmatpush1.bf16.msra.mxu0 %v1213
  %2409 = vmatprep.subr.bf16.mxu0 %v1206
  %2410 = vmatpush1.bf16.msra.mxu0 %v1205
  %2411 = vmatprep.subr.bf16.mxu0 %v1198
  %2412 = vmatpush1.bf16.msra.mxu0 %v1197
  %2413 = vmatprep.subr.bf16.mxu0 %v1190
  %2414 = vmatpush1.bf16.msra.mxu0 %v1189
  %2415 = vmatprep.subr.bf16.mxu0 %v1182
  %2416 = vmatpush1.bf16.msra.mxu0 %v1181
  %2417 = vmatprep.subr.bf16.mxu0 %v1174
  %2418 = vmatpush1.bf16.msra.mxu0 %v1173
  %2419 = vmatprep.subr.bf16.mxu0 %v1166
  %2420 = vmatpush1.bf16.msra.mxu0 %v1165
  %2421 = vmatprep.subr.bf16.mxu0 %v1158
  %2422 = vmatpush1.bf16.msra.mxu0 %v1157
  %2423 = vmatprep.subr.bf16.mxu0 %v1278
  %2424 = vmatpush2.bf16.msra.mxu0 %v1277
  %2425 = vmatprep.subr.bf16.mxu0 %v1270
  %2426 = vmatpush2.bf16.msra.mxu0 %v1269
  %2427 = vmatprep.subr.bf16.mxu0 %v1262
  %2428 = vmatpush2.bf16.msra.mxu0 %v1261
  %2429 = vmatprep.subr.bf16.mxu0 %v1254
  %2430 = vmatpush2.bf16.msra.mxu0 %v1253
  %2431 = vmatprep.subr.bf16.mxu0 %v1246
  %2432 = vmatpush2.bf16.msra.mxu0 %v1245
  %2433 = vmatprep.subr.bf16.mxu0 %v1238
  %2434 = vmatpush2.bf16.msra.mxu0 %v1237
  %2435 = vmatprep.subr.bf16.mxu0 %v1230
  %2436 = vmatpush2.bf16.msra.mxu0 %v1229
  %2437 = vmatprep.subr.bf16.mxu0 %v1222
  %2438 = vmatpush2.bf16.msra.mxu0 %v1221
  %2439 = vmatprep.mubr.bf16.mxu0 %v2283
  %2440 = vmatmul.mubr.bf16.gmra.mxu0 %v2282
  %v2441 = vpop.f32.mrf.mxu0
  %v2442 = vadd.f32 0.0, %v2441
  %v2443 = vpop.f32.mrf.mxu0
  %v2444 = vadd.f32 0.0, %v2443
  %v2445 = vpop.f32.mrf.mxu0
  %v2446 = vpop.f32.mrf.mxu0
  %2447 = vdwg.mxu0
  %v2448 = vld [vmem:[#allocation2 + $0xa0] sm:$0xff]
  %v2449 = vld [vmem:[#allocation2 + $0xa8] sm:$0xff]
  %v2450 = vld [vmem:[#allocation2 + $0xb0] sm:$0xff]
  %v2451 = vld [vmem:[#allocation2 + $0xb8] sm:$0xff]
  %v2452 = vadd.f32 %v2319, %v2448
  %v2453 = vadd.f32 %v2321, %v2449
  %v2454 = vadd.f32 %v2360, %v2450
  %v2455 = vadd.f32 %v2362, %v2451
  %v2456 = vadd.f32 %v2401, %v1583
  %v2457 = vadd.f32 %v2403, %v1587
  %v2458 = vadd.f32 %v2442, %v1591
  %v2459 = vadd.f32 %v2444, %v1595
  %v2460 = vmul.f32 %v2452, 0.5
  %v2461 = vtanh.pop %v2460
  %v2462 = vadd.f32 %v2461, 1.0
  %v2463 = vmul.f32 %v2462, 0.5
  %v2464 = vmul.f32 %v2453, 0.5
  %v2465 = vtanh.pop %v2464
  %v2466 = vadd.f32 %v2465, 1.0
  %v2467 = vmul.f32 %v2466, 0.5
  %v2468 = vtanh.pop %v2454
  %v2469 = vmul.f32 %v2455, 0.5
  %v2470 = vtanh.pop %v2469
  %v2471 = vadd.f32 %v2470, 1.0
  %v2472 = vmul.f32 %v2471, 0.5
  %v2473 = vmul.f32 %v2467, %v2261
  %v2474 = vmul.f32 %v2463, %v2468
  %v2475 = vadd.f32 %v2473, %v2474
  %v2476 = vtanh.pop %v2475
  %v2477 = vmul.f32 %v2472, %v2476
  %v2478 = vmul.f32 %v2456, 0.5
  %v2479 = vtanh.pop %v2478
  %v2480 = vadd.f32 %v2479, 1.0
  %v2481 = vmul.f32 %v2480, 0.5
  %v2482 = vmul.f32 %v2457, 0.5
  %v2483 = vtanh.pop %v2482
  %v2484 = vadd.f32 %v2483, 1.0
  %v2485 = vmul.f32 %v2484, 0.5
  %v2486 = vtanh.pop %v2458
  %v2487 = vmul.f32 %v2459, 0.5
  %v2488 = vtanh.pop %v2487
  %v2489 = vadd.f32 %v2488, 1.0
  %v2490 = vmul.f32 %v2489, 0.5
  %v2491 = vmul.f32 %v2485, %v2279
  %v2492 = vmul.f32 %v2481, %v2486
  %v2493 = vadd.f32 %v2491, %v2492
  %v2494 = vtanh.pop %v2493
  %v2495 = vmul.f32 %v2490, %v2494
  %v2496 = vpack.c.bf16 %v2477, %v2477
  %v2497 = vpack.c.bf16 %v2495, %v2495
  %2498 = vmatprep.subr.bf16.mxu0 %v1208
  %2499 = vmatpush1.bf16.msra.mxu0 %v1207
  %2500 = vmatprep.subr.bf16.mxu0 %v1200
  %2501 = vmatpush1.bf16.msra.mxu0 %v1199
  %2502 = vmatprep.subr.bf16.mxu0 %v1192
  %2503 = vmatpush1.bf16.msra.mxu0 %v1191
  %2504 = vmatprep.subr.bf16.mxu0 %v1184
  %2505 = vmatpush1.bf16.msra.mxu0 %v1183
  %2506 = vmatprep.subr.bf16.mxu0 %v1176
  %2507 = vmatpush1.bf16.msra.mxu0 %v1175
  %2508 = vmatprep.subr.bf16.mxu0 %v1168
  %2509 = vmatpush1.bf16.msra.mxu0 %v1167
  %2510 = vmatprep.subr.bf16.mxu0 %v1160
  %2511 = vmatpush1.bf16.msra.mxu0 %v1159
  %2512 = vmatprep.subr.bf16.mxu0 %v1152
  %2513 = vmatpush1.bf16.msra.mxu0 %v1151
  %2514 = vmatprep.subr.bf16.mxu0 %v1272
  %2515 = vmatpush2.bf16.msra.mxu0 %v1271
  %2516 = vmatprep.subr.bf16.mxu0 %v1264
  %2517 = vmatpush2.bf16.msra.mxu0 %v1263
  %2518 = vmatprep.subr.bf16.mxu0 %v1256
  %2519 = vmatpush2.bf16.msra.mxu0 %v1255
  %2520 = vmatprep.subr.bf16.mxu0 %v1248
  %2521 = vmatpush2.bf16.msra.mxu0 %v1247
  %2522 = vmatprep.subr.bf16.mxu0 %v1240
  %2523 = vmatpush2.bf16.msra.mxu0 %v1239
  %2524 = vmatprep.subr.bf16.mxu0 %v1232
  %2525 = vmatpush2.bf16.msra.mxu0 %v1231
  %2526 = vmatprep.subr.bf16.mxu0 %v1224
  %2527 = vmatpush2.bf16.msra.mxu0 %v1223
  %2528 = vmatprep.subr.bf16.mxu0 %v1216
  %2529 = vmatpush2.bf16.msra.mxu0 %v1215
  %2530 = vmatprep.mubr.bf16.mxu0 %v2497
  %2531 = vmatmul.mubr.bf16.gmra.mxu0 %v2496
  %v2532 = vpop.f32.mrf.mxu0
  %v2533 = vadd.f32 0.0, %v2532
  %v2534 = vpop.f32.mrf.mxu0
  %v2535 = vadd.f32 0.0, %v2534
  %v2536 = vpop.f32.mrf.mxu0
  %v2537 = vpop.f32.mrf.mxu0
  %2538 = vdwg.mxu0
  %2539 = vmatprep.subr.bf16.mxu0 %v1210
  %2540 = vmatpush1.bf16.msra.mxu0 %v1209
  %2541 = vmatprep.subr.bf16.mxu0 %v1202
  %2542 = vmatpush1.bf16.msra.mxu0 %v1201
  %2543 = vmatprep.subr.bf16.mxu0 %v1194
  %2544 = vmatpush1.bf16.msra.mxu0 %v1193
  %2545 = vmatprep.subr.bf16.mxu0 %v1186
  %2546 = vmatpush1.bf16.msra.mxu0 %v1185
  %2547 = vmatprep.subr.bf16.mxu0 %v1178
  %2548 = vmatpush1.bf16.msra.mxu0 %v1177
  %2549 = vmatprep.subr.bf16.mxu0 %v1170
  %2550 = vmatpush1.bf16.msra.mxu0 %v1169
  %2551 = vmatprep.subr.bf16.mxu0 %v1162
  %2552 = vmatpush1.bf16.msra.mxu0 %v1161
  %2553 = vmatprep.subr.bf16.mxu0 %v1154
  %2554 = vmatpush1.bf16.msra.mxu0 %v1153
  %2555 = vmatprep.subr.bf16.mxu0 %v1274
  %2556 = vmatpush2.bf16.msra.mxu0 %v1273
  %2557 = vmatprep.subr.bf16.mxu0 %v1266
  %2558 = vmatpush2.bf16.msra.mxu0 %v1265
  %2559 = vmatprep.subr.bf16.mxu0 %v1258
  %2560 = vmatpush2.bf16.msra.mxu0 %v1257
  %2561 = vmatprep.subr.bf16.mxu0 %v1250
  %2562 = vmatpush2.bf16.msra.mxu0 %v1249
  %2563 = vmatprep.subr.bf16.mxu0 %v1242
  %2564 = vmatpush2.bf16.msra.mxu0 %v1241
  %2565 = vmatprep.subr.bf16.mxu0 %v1234
  %2566 = vmatpush2.bf16.msra.mxu0 %v1233
  %2567 = vmatprep.subr.bf16.mxu0 %v1226
  %2568 = vmatpush2.bf16.msra.mxu0 %v1225
  %2569 = vmatprep.subr.bf16.mxu0 %v1218
  %2570 = vmatpush2.bf16.msra.mxu0 %v1217
  %2571 = vmatprep.mubr.bf16.mxu0 %v2497
  %2572 = vmatmul.mubr.bf16.gmra.mxu0 %v2496
  %v2573 = vpop.f32.mrf.mxu0
  %v2574 = vadd.f32 0.0, %v2573
  %v2575 = vpop.f32.mrf.mxu0
  %v2576 = vadd.f32 0.0, %v2575
  %v2577 = vpop.f32.mrf.mxu0
  %v2578 = vpop.f32.mrf.mxu0
  %2579 = vdwg.mxu0
  %2580 = vmatprep.subr.bf16.mxu0 %v1212
  %2581 = vmatpush1.bf16.msra.mxu0 %v1211
  %2582 = vmatprep.subr.bf16.mxu0 %v1204
  %2583 = vmatpush1.bf16.msra.mxu0 %v1203
  %2584 = vmatprep.subr.bf16.mxu0 %v1196
  %2585 = vmatpush1.bf16.msra.mxu0 %v1195
  %2586 = vmatprep.subr.bf16.mxu0 %v1188
  %2587 = vmatpush1.bf16.msra.mxu0 %v1187
  %2588 = vmatprep.subr.bf16.mxu0 %v1180
  %2589 = vmatpush1.bf16.msra.mxu0 %v1179
  %2590 = vmatprep.subr.bf16.mxu0 %v1172
  %2591 = vmatpush1.bf16.msra.mxu0 %v1171
  %2592 = vmatprep.subr.bf16.mxu0 %v1164
  %2593 = vmatpush1.bf16.msra.mxu0 %v1163
  %2594 = vmatprep.subr.bf16.mxu0 %v1156
  %2595 = vmatpush1.bf16.msra.mxu0 %v1155
  %2596 = vmatprep.subr.bf16.mxu0 %v1276
  %2597 = vmatpush2.bf16.msra.mxu0 %v1275
  %2598 = vmatprep.subr.bf16.mxu0 %v1268
  %2599 = vmatpush2.bf16.msra.mxu0 %v1267
  %2600 = vmatprep.subr.bf16.mxu0 %v1260
  %2601 = vmatpush2.bf16.msra.mxu0 %v1259
  %2602 = vmatprep.subr.bf16.mxu0 %v1252
  %2603 = vmatpush2.bf16.msra.mxu0 %v1251
  %2604 = vmatprep.subr.bf16.mxu0 %v1244
  %2605 = vmatpush2.bf16.msra.mxu0 %v1243
  %2606 = vmatprep.subr.bf16.mxu0 %v1236
  %2607 = vmatpush2.bf16.msra.mxu0 %v1235
  %2608 = vmatprep.subr.bf16.mxu0 %v1228
  %2609 = vmatpush2.bf16.msra.mxu0 %v1227
  %2610 = vmatprep.subr.bf16.mxu0 %v1220
  %2611 = vmatpush2.bf16.msra.mxu0 %v1219
  %2612 = vmatprep.mubr.bf16.mxu0 %v2497
  %2613 = vmatmul.mubr.bf16.gmra.mxu0 %v2496
  %v2614 = vpop.f32.mrf.mxu0
  %v2615 = vadd.f32 0.0, %v2614
  %v2616 = vpop.f32.mrf.mxu0
  %v2617 = vadd.f32 0.0, %v2616
  %v2618 = vpop.f32.mrf.mxu0
  %v2619 = vpop.f32.mrf.mxu0
  %2620 = vdwg.mxu0
  %2621 = vmatprep.subr.bf16.mxu0 %v1214
  %2622 = vmatpush1.bf16.msra.mxu0 %v1213
  %2623 = vmatprep.subr.bf16.mxu0 %v1206
  %2624 = vmatpush1.bf16.msra.mxu0 %v1205
  %2625 = vmatprep.subr.bf16.mxu0 %v1198
  %2626 = vmatpush1.bf16.msra.mxu0 %v1197
  %2627 = vmatprep.subr.bf16.mxu0 %v1190
  %2628 = vmatpush1.bf16.msra.mxu0 %v1189
  %2629 = vmatprep.subr.bf16.mxu0 %v1182
  %2630 = vmatpush1.bf16.msra.mxu0 %v1181
  %2631 = vmatprep.subr.bf16.mxu0 %v1174
  %2632 = vmatpush1.bf16.msra.mxu0 %v1173
  %2633 = vmatprep.subr.bf16.mxu0 %v1166
  %2634 = vmatpush1.bf16.msra.mxu0 %v1165
  %2635 = vmatprep.subr.bf16.mxu0 %v1158
  %2636 = vmatpush1.bf16.msra.mxu0 %v1157
  %2637 = vmatprep.subr.bf16.mxu0 %v1278
  %2638 = vmatpush2.bf16.msra.mxu0 %v1277
  %2639 = vmatprep.subr.bf16.mxu0 %v1270
  %2640 = vmatpush2.bf16.msra.mxu0 %v1269
  %2641 = vmatprep.subr.bf16.mxu0 %v1262
  %2642 = vmatpush2.bf16.msra.mxu0 %v1261
  %2643 = vmatprep.subr.bf16.mxu0 %v1254
  %2644 = vmatpush2.bf16.msra.mxu0 %v1253
  %2645 = vmatprep.subr.bf16.mxu0 %v1246
  %2646 = vmatpush2.bf16.msra.mxu0 %v1245
  %2647 = vmatprep.subr.bf16.mxu0 %v1238
  %2648 = vmatpush2.bf16.msra.mxu0 %v1237
  %2649 = vmatprep.subr.bf16.mxu0 %v1230
  %2650 = vmatpush2.bf16.msra.mxu0 %v1229
  %2651 = vmatprep.subr.bf16.mxu0 %v1222
  %2652 = vmatpush2.bf16.msra.mxu0 %v1221
  %2653 = vmatprep.mubr.bf16.mxu0 %v2497
  %2654 = vmatmul.mubr.bf16.gmra.mxu0 %v2496
  %v2655 = vpop.f32.mrf.mxu0
  %v2656 = vadd.f32 0.0, %v2655
  %v2657 = vpop.f32.mrf.mxu0
  %v2658 = vadd.f32 0.0, %v2657
  %v2659 = vpop.f32.mrf.mxu0
  %v2660 = vpop.f32.mrf.mxu0
  %2661 = vdwg.mxu0
  %v2662 = vld [vmem:[#allocation2 + $0xc0] sm:$0xff]
  %v2663 = vld [vmem:[#allocation2 + $0xc8] sm:$0xff]
  %v2664 = vld [vmem:[#allocation2 + $0xd0] sm:$0xff]
  %v2665 = vld [vmem:[#allocation2 + $0xd8] sm:$0xff]
  %v2666 = vadd.f32 %v2533, %v2662
  %v2667 = vadd.f32 %v2535, %v2663
  %v2668 = vadd.f32 %v2574, %v2664
  %v2669 = vadd.f32 %v2576, %v2665
  %v2670 = vadd.f32 %v2615, %v1583
  %v2671 = vadd.f32 %v2617, %v1587
  %v2672 = vadd.f32 %v2656, %v1591
  %v2673 = vadd.f32 %v2658, %v1595
  %v2674 = vmul.f32 %v2666, 0.5
  %v2675 = vtanh.pop %v2674
  %v2676 = vadd.f32 %v2675, 1.0
  %v2677 = vmul.f32 %v2676, 0.5
  %v2678 = vmul.f32 %v2667, 0.5
  %v2679 = vtanh.pop %v2678
  %v2680 = vadd.f32 %v2679, 1.0
  %v2681 = vmul.f32 %v2680, 0.5
  %v2682 = vtanh.pop %v2668
  %v2683 = vmul.f32 %v2669, 0.5
  %v2684 = vtanh.pop %v2683
  %v2685 = vadd.f32 %v2684, 1.0
  %v2686 = vmul.f32 %v2685, 0.5
  %v2687 = vmul.f32 %v2681, %v2475
  %v2688 = vmul.f32 %v2677, %v2682
  %v2689 = vadd.f32 %v2687, %v2688
  %v2690 = vtanh.pop %v2689
  %v2691 = vmul.f32 %v2686, %v2690
  %v2692 = vmul.f32 %v2670, 0.5
  %v2693 = vtanh.pop %v2692
  %v2694 = vadd.f32 %v2693, 1.0
  %v2695 = vmul.f32 %v2694, 0.5
  %v2696 = vmul.f32 %v2671, 0.5
  %v2697 = vtanh.pop %v2696
  %v2698 = vadd.f32 %v2697, 1.0
  %v2699 = vmul.f32 %v2698, 0.5
  %v2700 = vtanh.pop %v2672
  %v2701 = vmul.f32 %v2673, 0.5
  %v2702 = vtanh.pop %v2701
  %v2703 = vadd.f32 %v2702, 1.0
  %v2704 = vmul.f32 %v2703, 0.5
  %v2705 = vmul.f32 %v2699, %v2493
  %v2706 = vmul.f32 %v2695, %v2700
  %v2707 = vadd.f32 %v2705, %v2706
  %v2708 = vtanh.pop %v2707
  %v2709 = vmul.f32 %v2704, %v2708
  %v2710 = vpack.c.bf16 %v2691, %v2691
  %v2711 = vpack.c.bf16 %v2709, %v2709
  %2712 = vmatprep.subr.bf16.mxu0 %v1208
  %2713 = vmatpush1.bf16.msra.mxu0 %v1207
  %2714 = vmatprep.subr.bf16.mxu0 %v1200
  %2715 = vmatpush1.bf16.msra.mxu0 %v1199
  %2716 = vmatprep.subr.bf16.mxu0 %v1192
  %2717 = vmatpush1.bf16.msra.mxu0 %v1191
  %2718 = vmatprep.subr.bf16.mxu0 %v1184
  %2719 = vmatpush1.bf16.msra.mxu0 %v1183
  %2720 = vmatprep.subr.bf16.mxu0 %v1176
  %2721 = vmatpush1.bf16.msra.mxu0 %v1175
  %2722 = vmatprep.subr.bf16.mxu0 %v1168
  %2723 = vmatpush1.bf16.msra.mxu0 %v1167
  %2724 = vmatprep.subr.bf16.mxu0 %v1160
  %2725 = vmatpush1.bf16.msra.mxu0 %v1159
  %2726 = vmatprep.subr.bf16.mxu0 %v1152
  %2727 = vmatpush1.bf16.msra.mxu0 %v1151
  %2728 = vmatprep.subr.bf16.mxu0 %v1272
  %2729 = vmatpush2.bf16.msra.mxu0 %v1271
  %2730 = vmatprep.subr.bf16.mxu0 %v1264
  %2731 = vmatpush2.bf16.msra.mxu0 %v1263
  %2732 = vmatprep.subr.bf16.mxu0 %v1256
  %2733 = vmatpush2.bf16.msra.mxu0 %v1255
  %2734 = vmatprep.subr.bf16.mxu0 %v1248
  %2735 = vmatpush2.bf16.msra.mxu0 %v1247
  %2736 = vmatprep.subr.bf16.mxu0 %v1240
  %2737 = vmatpush2.bf16.msra.mxu0 %v1239
  %2738 = vmatprep.subr.bf16.mxu0 %v1232
  %2739 = vmatpush2.bf16.msra.mxu0 %v1231
  %2740 = vmatprep.subr.bf16.mxu0 %v1224
  %2741 = vmatpush2.bf16.msra.mxu0 %v1223
  %2742 = vmatprep.subr.bf16.mxu0 %v1216
  %2743 = vmatpush2.bf16.msra.mxu0 %v1215
  %2744 = vmatprep.mubr.bf16.mxu0 %v2711
  %2745 = vmatmul.mubr.bf16.gmra.mxu0 %v2710
  %v2746 = vpop.f32.mrf.mxu0
  %v2747 = vadd.f32 0.0, %v2746
  %v2748 = vpop.f32.mrf.mxu0
  %v2749 = vadd.f32 0.0, %v2748
  %v2750 = vpop.f32.mrf.mxu0
  %v2751 = vpop.f32.mrf.mxu0
  %2752 = vdwg.mxu0
  %2753 = vmatprep.subr.bf16.mxu0 %v1210
  %2754 = vmatpush1.bf16.msra.mxu0 %v1209
  %2755 = vmatprep.subr.bf16.mxu0 %v1202
  %2756 = vmatpush1.bf16.msra.mxu0 %v1201
  %2757 = vmatprep.subr.bf16.mxu0 %v1194
  %2758 = vmatpush1.bf16.msra.mxu0 %v1193
  %2759 = vmatprep.subr.bf16.mxu0 %v1186
  %2760 = vmatpush1.bf16.msra.mxu0 %v1185
  %2761 = vmatprep.subr.bf16.mxu0 %v1178
  %2762 = vmatpush1.bf16.msra.mxu0 %v1177
  %2763 = vmatprep.subr.bf16.mxu0 %v1170
  %2764 = vmatpush1.bf16.msra.mxu0 %v1169
  %2765 = vmatprep.subr.bf16.mxu0 %v1162
  %2766 = vmatpush1.bf16.msra.mxu0 %v1161
  %2767 = vmatprep.subr.bf16.mxu0 %v1154
  %2768 = vmatpush1.bf16.msra.mxu0 %v1153
  %2769 = vmatprep.subr.bf16.mxu0 %v1274
  %2770 = vmatpush2.bf16.msra.mxu0 %v1273
  %2771 = vmatprep.subr.bf16.mxu0 %v1266
  %2772 = vmatpush2.bf16.msra.mxu0 %v1265
  %2773 = vmatprep.subr.bf16.mxu0 %v1258
  %2774 = vmatpush2.bf16.msra.mxu0 %v1257
  %2775 = vmatprep.subr.bf16.mxu0 %v1250
  %2776 = vmatpush2.bf16.msra.mxu0 %v1249
  %2777 = vmatprep.subr.bf16.mxu0 %v1242
  %2778 = vmatpush2.bf16.msra.mxu0 %v1241
  %2779 = vmatprep.subr.bf16.mxu0 %v1234
  %2780 = vmatpush2.bf16.msra.mxu0 %v1233
  %2781 = vmatprep.subr.bf16.mxu0 %v1226
  %2782 = vmatpush2.bf16.msra.mxu0 %v1225
  %2783 = vmatprep.subr.bf16.mxu0 %v1218
  %2784 = vmatpush2.bf16.msra.mxu0 %v1217
  %2785 = vmatprep.mubr.bf16.mxu0 %v2711
  %2786 = vmatmul.mubr.bf16.gmra.mxu0 %v2710
  %v2787 = vpop.f32.mrf.mxu0
  %v2788 = vadd.f32 0.0, %v2787
  %v2789 = vpop.f32.mrf.mxu0
  %v2790 = vadd.f32 0.0, %v2789
  %v2791 = vpop.f32.mrf.mxu0
  %v2792 = vpop.f32.mrf.mxu0
  %2793 = vdwg.mxu0
  %2794 = vmatprep.subr.bf16.mxu0 %v1212
  %2795 = vmatpush1.bf16.msra.mxu0 %v1211
  %2796 = vmatprep.subr.bf16.mxu0 %v1204
  %2797 = vmatpush1.bf16.msra.mxu0 %v1203
  %2798 = vmatprep.subr.bf16.mxu0 %v1196
  %2799 = vmatpush1.bf16.msra.mxu0 %v1195
  %2800 = vmatprep.subr.bf16.mxu0 %v1188
  %2801 = vmatpush1.bf16.msra.mxu0 %v1187
  %2802 = vmatprep.subr.bf16.mxu0 %v1180
  %2803 = vmatpush1.bf16.msra.mxu0 %v1179
  %2804 = vmatprep.subr.bf16.mxu0 %v1172
  %2805 = vmatpush1.bf16.msra.mxu0 %v1171
  %2806 = vmatprep.subr.bf16.mxu0 %v1164
  %2807 = vmatpush1.bf16.msra.mxu0 %v1163
  %2808 = vmatprep.subr.bf16.mxu0 %v1156
  %2809 = vmatpush1.bf16.msra.mxu0 %v1155
  %2810 = vmatprep.subr.bf16.mxu0 %v1276
  %2811 = vmatpush2.bf16.msra.mxu0 %v1275
  %2812 = vmatprep.subr.bf16.mxu0 %v1268
  %2813 = vmatpush2.bf16.msra.mxu0 %v1267
  %2814 = vmatprep.subr.bf16.mxu0 %v1260
  %2815 = vmatpush2.bf16.msra.mxu0 %v1259
  %2816 = vmatprep.subr.bf16.mxu0 %v1252
  %2817 = vmatpush2.bf16.msra.mxu0 %v1251
  %2818 = vmatprep.subr.bf16.mxu0 %v1244
  %2819 = vmatpush2.bf16.msra.mxu0 %v1243
  %2820 = vmatprep.subr.bf16.mxu0 %v1236
  %2821 = vmatpush2.bf16.msra.mxu0 %v1235
  %2822 = vmatprep.subr.bf16.mxu0 %v1228
  %2823 = vmatpush2.bf16.msra.mxu0 %v1227
  %2824 = vmatprep.subr.bf16.mxu0 %v1220
  %2825 = vmatpush2.bf16.msra.mxu0 %v1219
  %2826 = vmatprep.mubr.bf16.mxu0 %v2711
  %2827 = vmatmul.mubr.bf16.gmra.mxu0 %v2710
  %v2828 = vpop.f32.mrf.mxu0
  %v2829 = vadd.f32 0.0, %v2828
  %v2830 = vpop.f32.mrf.mxu0
  %v2831 = vadd.f32 0.0, %v2830
  %v2832 = vpop.f32.mrf.mxu0
  %v2833 = vpop.f32.mrf.mxu0
  %2834 = vdwg.mxu0
  %2835 = vmatprep.subr.bf16.mxu0 %v1214
  %2836 = vmatpush1.bf16.msra.mxu0 %v1213
  %2837 = vmatprep.subr.bf16.mxu0 %v1206
  %2838 = vmatpush1.bf16.msra.mxu0 %v1205
  %2839 = vmatprep.subr.bf16.mxu0 %v1198
  %2840 = vmatpush1.bf16.msra.mxu0 %v1197
  %2841 = vmatprep.subr.bf16.mxu0 %v1190
  %2842 = vmatpush1.bf16.msra.mxu0 %v1189
  %2843 = vmatprep.subr.bf16.mxu0 %v1182
  %2844 = vmatpush1.bf16.msra.mxu0 %v1181
  %2845 = vmatprep.subr.bf16.mxu0 %v1174
  %2846 = vmatpush1.bf16.msra.mxu0 %v1173
  %2847 = vmatprep.subr.bf16.mxu0 %v1166
  %2848 = vmatpush1.bf16.msra.mxu0 %v1165
  %2849 = vmatprep.subr.bf16.mxu0 %v1158
  %2850 = vmatpush1.bf16.msra.mxu0 %v1157
  %2851 = vmatprep.subr.bf16.mxu0 %v1278
  %2852 = vmatpush2.bf16.msra.mxu0 %v1277
  %2853 = vmatprep.subr.bf16.mxu0 %v1270
  %2854 = vmatpush2.bf16.msra.mxu0 %v1269
  %2855 = vmatprep.subr.bf16.mxu0 %v1262
  %2856 = vmatpush2.bf16.msra.mxu0 %v1261
  %2857 = vmatprep.subr.bf16.mxu0 %v1254
  %2858 = vmatpush2.bf16.msra.mxu0 %v1253
  %2859 = vmatprep.subr.bf16.mxu0 %v1246
  %2860 = vmatpush2.bf16.msra.mxu0 %v1245
  %2861 = vmatprep.subr.bf16.mxu0 %v1238
  %2862 = vmatpush2.bf16.msra.mxu0 %v1237
  %2863 = vmatprep.subr.bf16.mxu0 %v1230
  %2864 = vmatpush2.bf16.msra.mxu0 %v1229
  %2865 = vmatprep.subr.bf16.mxu0 %v1222
  %2866 = vmatpush2.bf16.msra.mxu0 %v1221
  %2867 = vmatprep.mubr.bf16.mxu0 %v2711
  %2868 = vmatmul.mubr.bf16.gmra.mxu0 %v2710
  %v2869 = vpop.f32.mrf.mxu0
  %v2870 = vadd.f32 0.0, %v2869
  %v2871 = vpop.f32.mrf.mxu0
  %v2872 = vadd.f32 0.0, %v2871
  %v2873 = vpop.f32.mrf.mxu0
  %v2874 = vpop.f32.mrf.mxu0
  %2875 = vdwg.mxu0
  %v2876 = vld [vmem:[#allocation2 + $0xe0] sm:$0xff]
  %v2877 = vld [vmem:[#allocation2 + $0xe8] sm:$0xff]
  %v2878 = vld [vmem:[#allocation2 + $0xf0] sm:$0xff]
  %v2879 = vld [vmem:[#allocation2 + $0xf8] sm:$0xff]
  %v2880 = vadd.f32 %v2747, %v2876
  %v2881 = vadd.f32 %v2749, %v2877
  %v2882 = vadd.f32 %v2788, %v2878
  %v2883 = vadd.f32 %v2790, %v2879
  %v2884 = vadd.f32 %v2829, %v1583
  %v2885 = vadd.f32 %v2831, %v1587
  %v2886 = vadd.f32 %v2870, %v1591
  %v2887 = vadd.f32 %v2872, %v1595
  %v2888 = vmul.f32 %v2880, 0.5
  %v2889 = vtanh.pop %v2888
  %v2890 = vadd.f32 %v2889, 1.0
  %v2891 = vmul.f32 %v2890, 0.5
  %v2892 = vmul.f32 %v2881, 0.5
  %v2893 = vtanh.pop %v2892
  %v2894 = vadd.f32 %v2893, 1.0
  %v2895 = vmul.f32 %v2894, 0.5
  %v2896 = vtanh.pop %v2882
  %v2897 = vmul.f32 %v2883, 0.5
  %v2898 = vtanh.pop %v2897
  %v2899 = vadd.f32 %v2898, 1.0
  %v2900 = vmul.f32 %v2899, 0.5
  %v2901 = vmul.f32 %v2895, %v2689
  %v2902 = vmul.f32 %v2891, %v2896
  %v2903 = vadd.f32 %v2901, %v2902
  %v2904 = vtanh.pop %v2903
  %v2905 = vmul.f32 %v2900, %v2904
  %v2906 = vmul.f32 %v2884, 0.5
  %v2907 = vtanh.pop %v2906
  %v2908 = vadd.f32 %v2907, 1.0
  %v2909 = vmul.f32 %v2908, 0.5
  %v2910 = vmul.f32 %v2885, 0.5
  %v2911 = vtanh.pop %v2910
  %v2912 = vadd.f32 %v2911, 1.0
  %v2913 = vmul.f32 %v2912, 0.5
  %v2914 = vtanh.pop %v2886
  %v2915 = vmul.f32 %v2887, 0.5
  %v2916 = vtanh.pop %v2915
  %v2917 = vadd.f32 %v2916, 1.0
  %v2918 = vmul.f32 %v2917, 0.5
  %v2919 = vmul.f32 %v2913, %v2707
  %v2920 = vmul.f32 %v2909, %v2914
  %v2921 = vadd.f32 %v2919, %v2920
  %v2922 = vtanh.pop %v2921
  %v2923 = vmul.f32 %v2918, %v2922
  %v2924 = vpack.c.bf16 %v2905, %v2905
  %v2925 = vpack.c.bf16 %v2923, %v2923
  %2926 = vmatprep.subr.bf16.mxu0 %v1208
  %2927 = vmatpush1.bf16.msra.mxu0 %v1207
  %2928 = vmatprep.subr.bf16.mxu0 %v1200
  %2929 = vmatpush1.bf16.msra.mxu0 %v1199
  %2930 = vmatprep.subr.bf16.mxu0 %v1192
  %2931 = vmatpush1.bf16.msra.mxu0 %v1191
  %2932 = vmatprep.subr.bf16.mxu0 %v1184
  %2933 = vmatpush1.bf16.msra.mxu0 %v1183
  %2934 = vmatprep.subr.bf16.mxu0 %v1176
  %2935 = vmatpush1.bf16.msra.mxu0 %v1175
  %2936 = vmatprep.subr.bf16.mxu0 %v1168
  %2937 = vmatpush1.bf16.msra.mxu0 %v1167
  %2938 = vmatprep.subr.bf16.mxu0 %v1160
  %2939 = vmatpush1.bf16.msra.mxu0 %v1159
  %2940 = vmatprep.subr.bf16.mxu0 %v1152
  %2941 = vmatpush1.bf16.msra.mxu0 %v1151
  %2942 = vmatprep.subr.bf16.mxu0 %v1272
  %2943 = vmatpush2.bf16.msra.mxu0 %v1271
  %2944 = vmatprep.subr.bf16.mxu0 %v1264
  %2945 = vmatpush2.bf16.msra.mxu0 %v1263
  %2946 = vmatprep.subr.bf16.mxu0 %v1256
  %2947 = vmatpush2.bf16.msra.mxu0 %v1255
  %2948 = vmatprep.subr.bf16.mxu0 %v1248
  %2949 = vmatpush2.bf16.msra.mxu0 %v1247
  %2950 = vmatprep.subr.bf16.mxu0 %v1240
  %2951 = vmatpush2.bf16.msra.mxu0 %v1239
  %2952 = vmatprep.subr.bf16.mxu0 %v1232
  %2953 = vmatpush2.bf16.msra.mxu0 %v1231
  %2954 = vmatprep.subr.bf16.mxu0 %v1224
  %2955 = vmatpush2.bf16.msra.mxu0 %v1223
  %2956 = vmatprep.subr.bf16.mxu0 %v1216
  %2957 = vmatpush2.bf16.msra.mxu0 %v1215
  %2958 = vmatprep.mubr.bf16.mxu0 %v2925
  %2959 = vmatmul.mubr.bf16.gmra.mxu0 %v2924
  %v2960 = vpop.f32.mrf.mxu0
  %v2961 = vadd.f32 0.0, %v2960
  %v2962 = vpop.f32.mrf.mxu0
  %v2963 = vadd.f32 0.0, %v2962
  %v2964 = vpop.f32.mrf.mxu0
  %v2965 = vpop.f32.mrf.mxu0
  %2966 = vdwg.mxu0
  %2967 = vmatprep.subr.bf16.mxu0 %v1210
  %2968 = vmatpush1.bf16.msra.mxu0 %v1209
  %2969 = vmatprep.subr.bf16.mxu0 %v1202
  %2970 = vmatpush1.bf16.msra.mxu0 %v1201
  %2971 = vmatprep.subr.bf16.mxu0 %v1194
  %2972 = vmatpush1.bf16.msra.mxu0 %v1193
  %2973 = vmatprep.subr.bf16.mxu0 %v1186
  %2974 = vmatpush1.bf16.msra.mxu0 %v1185
  %2975 = vmatprep.subr.bf16.mxu0 %v1178
  %2976 = vmatpush1.bf16.msra.mxu0 %v1177
  %2977 = vmatprep.subr.bf16.mxu0 %v1170
  %2978 = vmatpush1.bf16.msra.mxu0 %v1169
  %2979 = vmatprep.subr.bf16.mxu0 %v1162
  %2980 = vmatpush1.bf16.msra.mxu0 %v1161
  %2981 = vmatprep.subr.bf16.mxu0 %v1154
  %2982 = vmatpush1.bf16.msra.mxu0 %v1153
  %2983 = vmatprep.subr.bf16.mxu0 %v1274
  %2984 = vmatpush2.bf16.msra.mxu0 %v1273
  %2985 = vmatprep.subr.bf16.mxu0 %v1266
  %2986 = vmatpush2.bf16.msra.mxu0 %v1265
  %2987 = vmatprep.subr.bf16.mxu0 %v1258
  %2988 = vmatpush2.bf16.msra.mxu0 %v1257
  %2989 = vmatprep.subr.bf16.mxu0 %v1250
  %2990 = vmatpush2.bf16.msra.mxu0 %v1249
  %2991 = vmatprep.subr.bf16.mxu0 %v1242
  %2992 = vmatpush2.bf16.msra.mxu0 %v1241
  %2993 = vmatprep.subr.bf16.mxu0 %v1234
  %2994 = vmatpush2.bf16.msra.mxu0 %v1233
  %2995 = vmatprep.subr.bf16.mxu0 %v1226
  %2996 = vmatpush2.bf16.msra.mxu0 %v1225
  %2997 = vmatprep.subr.bf16.mxu0 %v1218
  %2998 = vmatpush2.bf16.msra.mxu0 %v1217
  %2999 = vmatprep.mubr.bf16.mxu0 %v2925
  %3000 = vmatmul.mubr.bf16.gmra.mxu0 %v2924
  %v3001 = vpop.f32.mrf.mxu0
  %v3002 = vadd.f32 0.0, %v3001
  %v3003 = vpop.f32.mrf.mxu0
  %v3004 = vadd.f32 0.0, %v3003
  %v3005 = vpop.f32.mrf.mxu0
  %v3006 = vpop.f32.mrf.mxu0
  %3007 = vdwg.mxu0
  %3008 = vmatprep.subr.bf16.mxu0 %v1212
  %3009 = vmatpush1.bf16.msra.mxu0 %v1211
  %3010 = vmatprep.subr.bf16.mxu0 %v1204
  %3011 = vmatpush1.bf16.msra.mxu0 %v1203
  %3012 = vmatprep.subr.bf16.mxu0 %v1196
  %3013 = vmatpush1.bf16.msra.mxu0 %v1195
  %3014 = vmatprep.subr.bf16.mxu0 %v1188
  %3015 = vmatpush1.bf16.msra.mxu0 %v1187
  %3016 = vmatprep.subr.bf16.mxu0 %v1180
  %3017 = vmatpush1.bf16.msra.mxu0 %v1179
  %3018 = vmatprep.subr.bf16.mxu0 %v1172
  %3019 = vmatpush1.bf16.msra.mxu0 %v1171
  %3020 = vmatprep.subr.bf16.mxu0 %v1164
  %3021 = vmatpush1.bf16.msra.mxu0 %v1163
  %3022 = vmatprep.subr.bf16.mxu0 %v1156
  %3023 = vmatpush1.bf16.msra.mxu0 %v1155
  %3024 = vmatprep.subr.bf16.mxu0 %v1276
  %3025 = vmatpush2.bf16.msra.mxu0 %v1275
  %3026 = vmatprep.subr.bf16.mxu0 %v1268
  %3027 = vmatpush2.bf16.msra.mxu0 %v1267
  %3028 = vmatprep.subr.bf16.mxu0 %v1260
  %3029 = vmatpush2.bf16.msra.mxu0 %v1259
  %3030 = vmatprep.subr.bf16.mxu0 %v1252
  %3031 = vmatpush2.bf16.msra.mxu0 %v1251
  %3032 = vmatprep.subr.bf16.mxu0 %v1244
  %3033 = vmatpush2.bf16.msra.mxu0 %v1243
  %3034 = vmatprep.subr.bf16.mxu0 %v1236
  %3035 = vmatpush2.bf16.msra.mxu0 %v1235
  %3036 = vmatprep.subr.bf16.mxu0 %v1228
  %3037 = vmatpush2.bf16.msra.mxu0 %v1227
  %3038 = vmatprep.subr.bf16.mxu0 %v1220
  %3039 = vmatpush2.bf16.msra.mxu0 %v1219
  %3040 = vmatprep.mubr.bf16.mxu0 %v2925
  %3041 = vmatmul.mubr.bf16.gmra.mxu0 %v2924
  %v3042 = vpop.f32.mrf.mxu0
  %v3043 = vadd.f32 0.0, %v3042
  %v3044 = vpop.f32.mrf.mxu0
  %v3045 = vadd.f32 0.0, %v3044
  %v3046 = vpop.f32.mrf.mxu0
  %v3047 = vpop.f32.mrf.mxu0
  %3048 = vdwg.mxu0
  %3049 = vmatprep.subr.bf16.mxu0 %v1214
  %3050 = vmatpush1.bf16.msra.mxu0 %v1213
  %3051 = vmatprep.subr.bf16.mxu0 %v1206
  %3052 = vmatpush1.bf16.msra.mxu0 %v1205
  %3053 = vmatprep.subr.bf16.mxu0 %v1198
  %3054 = vmatpush1.bf16.msra.mxu0 %v1197
  %3055 = vmatprep.subr.bf16.mxu0 %v1190
  %3056 = vmatpush1.bf16.msra.mxu0 %v1189
  %3057 = vmatprep.subr.bf16.mxu0 %v1182
  %3058 = vmatpush1.bf16.msra.mxu0 %v1181
  %3059 = vmatprep.subr.bf16.mxu0 %v1174
  %3060 = vmatpush1.bf16.msra.mxu0 %v1173
  %3061 = vmatprep.subr.bf16.mxu0 %v1166
  %3062 = vmatpush1.bf16.msra.mxu0 %v1165
  %3063 = vmatprep.subr.bf16.mxu0 %v1158
  %3064 = vmatpush1.bf16.msra.mxu0 %v1157
  %3065 = vmatprep.subr.bf16.mxu0 %v1278
  %3066 = vmatpush2.bf16.msra.mxu0 %v1277
  %3067 = vmatprep.subr.bf16.mxu0 %v1270
  %3068 = vmatpush2.bf16.msra.mxu0 %v1269
  %3069 = vmatprep.subr.bf16.mxu0 %v1262
  %3070 = vmatpush2.bf16.msra.mxu0 %v1261
  %3071 = vmatprep.subr.bf16.mxu0 %v1254
  %3072 = vmatpush2.bf16.msra.mxu0 %v1253
  %3073 = vmatprep.subr.bf16.mxu0 %v1246
  %3074 = vmatpush2.bf16.msra.mxu0 %v1245
  %3075 = vmatprep.subr.bf16.mxu0 %v1238
  %3076 = vmatpush2.bf16.msra.mxu0 %v1237
  %3077 = vmatprep.subr.bf16.mxu0 %v1230
  %3078 = vmatpush2.bf16.msra.mxu0 %v1229
  %3079 = vmatprep.subr.bf16.mxu0 %v1222
  %3080 = vmatpush2.bf16.msra.mxu0 %v1221
  %3081 = vmatprep.mubr.bf16.mxu0 %v2925
  %3082 = vmatmul.mubr.bf16.gmra.mxu0 %v2924
  %v3083 = vpop.f32.mrf.mxu0
  %v3084 = vadd.f32 0.0, %v3083
  %v3085 = vpop.f32.mrf.mxu0
  %v3086 = vadd.f32 0.0, %v3085
  %v3087 = vpop.f32.mrf.mxu0
  %v3088 = vpop.f32.mrf.mxu0
  %3089 = vdwg.mxu0
  %v3090 = vld [vmem:[#allocation2 + $0x100] sm:$0xff]
  %v3091 = vld [vmem:[#allocation2 + $0x108] sm:$0xff]
  %v3092 = vld [vmem:[#allocation2 + $0x110] sm:$0xff]
  %v3093 = vld [vmem:[#allocation2 + $0x118] sm:$0xff]
  %v3094 = vadd.f32 %v2961, %v3090
  %v3095 = vadd.f32 %v2963, %v3091
  %v3096 = vadd.f32 %v3002, %v3092
  %v3097 = vadd.f32 %v3004, %v3093
  %v3098 = vadd.f32 %v3043, %v1583
  %v3099 = vadd.f32 %v3045, %v1587
  %v3100 = vadd.f32 %v3084, %v1591
  %v3101 = vadd.f32 %v3086, %v1595
  %v3102 = vmul.f32 %v3094, 0.5
  %v3103 = vtanh.pop %v3102
  %v3104 = vadd.f32 %v3103, 1.0
  %v3105 = vmul.f32 %v3104, 0.5
  %v3106 = vmul.f32 %v3095, 0.5
  %v3107 = vtanh.pop %v3106
  %v3108 = vadd.f32 %v3107, 1.0
  %v3109 = vmul.f32 %v3108, 0.5
  %v3110 = vtanh.pop %v3096
  %v3111 = vmul.f32 %v3097, 0.5
  %v3112 = vtanh.pop %v3111
  %v3113 = vadd.f32 %v3112, 1.0
  %v3114 = vmul.f32 %v3113, 0.5
  %v3115 = vmul.f32 %v3109, %v2903
  %v3116 = vmul.f32 %v3105, %v3110
  %v3117 = vadd.f32 %v3115, %v3116
  %v3118 = vtanh.pop %v3117
  %v3119 = vmul.f32 %v3114, %v3118
  %v3120 = vmul.f32 %v3098, 0.5
  %v3121 = vtanh.pop %v3120
  %v3122 = vadd.f32 %v3121, 1.0
  %v3123 = vmul.f32 %v3122, 0.5
  %v3124 = vmul.f32 %v3099, 0.5
  %v3125 = vtanh.pop %v3124
  %v3126 = vadd.f32 %v3125, 1.0
  %v3127 = vmul.f32 %v3126, 0.5
  %v3128 = vtanh.pop %v3100
  %v3129 = vmul.f32 %v3101, 0.5
  %v3130 = vtanh.pop %v3129
  %v3131 = vadd.f32 %v3130, 1.0
  %v3132 = vmul.f32 %v3131, 0.5
  %v3133 = vmul.f32 %v3127, %v2921
  %v3134 = vmul.f32 %v3123, %v3128
  %v3135 = vadd.f32 %v3133, %v3134
  %v3136 = vtanh.pop %v3135
  %v3137 = vmul.f32 %v3132, %v3136
  %v3138 = vpack.c.bf16 %v3119, %v3119
  %v3139 = vpack.c.bf16 %v3137, %v3137
  %3140 = vmatprep.subr.bf16.mxu0 %v1208
  %3141 = vmatpush1.bf16.msra.mxu0 %v1207
  %3142 = vmatprep.subr.bf16.mxu0 %v1200
  %3143 = vmatpush1.bf16.msra.mxu0 %v1199
  %3144 = vmatprep.subr.bf16.mxu0 %v1192
  %3145 = vmatpush1.bf16.msra.mxu0 %v1191
  %3146 = vmatprep.subr.bf16.mxu0 %v1184
  %3147 = vmatpush1.bf16.msra.mxu0 %v1183
  %3148 = vmatprep.subr.bf16.mxu0 %v1176
  %3149 = vmatpush1.bf16.msra.mxu0 %v1175
  %3150 = vmatprep.subr.bf16.mxu0 %v1168
  %3151 = vmatpush1.bf16.msra.mxu0 %v1167
  %3152 = vmatprep.subr.bf16.mxu0 %v1160
  %3153 = vmatpush1.bf16.msra.mxu0 %v1159
  %3154 = vmatprep.subr.bf16.mxu0 %v1152
  %3155 = vmatpush1.bf16.msra.mxu0 %v1151
  %3156 = vmatprep.subr.bf16.mxu0 %v1272
  %3157 = vmatpush2.bf16.msra.mxu0 %v1271
  %3158 = vmatprep.subr.bf16.mxu0 %v1264
  %3159 = vmatpush2.bf16.msra.mxu0 %v1263
  %3160 = vmatprep.subr.bf16.mxu0 %v1256
  %3161 = vmatpush2.bf16.msra.mxu0 %v1255
  %3162 = vmatprep.subr.bf16.mxu0 %v1248
  %3163 = vmatpush2.bf16.msra.mxu0 %v1247
  %3164 = vmatprep.subr.bf16.mxu0 %v1240
  %3165 = vmatpush2.bf16.msra.mxu0 %v1239
  %3166 = vmatprep.subr.bf16.mxu0 %v1232
  %3167 = vmatpush2.bf16.msra.mxu0 %v1231
  %3168 = vmatprep.subr.bf16.mxu0 %v1224
  %3169 = vmatpush2.bf16.msra.mxu0 %v1223
  %3170 = vmatprep.subr.bf16.mxu0 %v1216
  %3171 = vmatpush2.bf16.msra.mxu0 %v1215
  %3172 = vmatprep.mubr.bf16.mxu0 %v3139
  %3173 = vmatmul.mubr.bf16.gmra.mxu0 %v3138
  %v3174 = vpop.f32.mrf.mxu0
  %v3175 = vadd.f32 0.0, %v3174
  %v3176 = vpop.f32.mrf.mxu0
  %v3177 = vadd.f32 0.0, %v3176
  %v3178 = vpop.f32.mrf.mxu0
  %v3179 = vpop.f32.mrf.mxu0
  %3180 = vdwg.mxu0
  %3181 = vmatprep.subr.bf16.mxu0 %v1210
  %3182 = vmatpush1.bf16.msra.mxu0 %v1209
  %3183 = vmatprep.subr.bf16.mxu0 %v1202
  %3184 = vmatpush1.bf16.msra.mxu0 %v1201
  %3185 = vmatprep.subr.bf16.mxu0 %v1194
  %3186 = vmatpush1.bf16.msra.mxu0 %v1193
  %3187 = vmatprep.subr.bf16.mxu0 %v1186
  %3188 = vmatpush1.bf16.msra.mxu0 %v1185
  %3189 = vmatprep.subr.bf16.mxu0 %v1178
  %3190 = vmatpush1.bf16.msra.mxu0 %v1177
  %3191 = vmatprep.subr.bf16.mxu0 %v1170
  %3192 = vmatpush1.bf16.msra.mxu0 %v1169
  %3193 = vmatprep.subr.bf16.mxu0 %v1162
  %3194 = vmatpush1.bf16.msra.mxu0 %v1161
  %3195 = vmatprep.subr.bf16.mxu0 %v1154
  %3196 = vmatpush1.bf16.msra.mxu0 %v1153
  %3197 = vmatprep.subr.bf16.mxu0 %v1274
  %3198 = vmatpush2.bf16.msra.mxu0 %v1273
  %3199 = vmatprep.subr.bf16.mxu0 %v1266
  %3200 = vmatpush2.bf16.msra.mxu0 %v1265
  %3201 = vmatprep.subr.bf16.mxu0 %v1258
  %3202 = vmatpush2.bf16.msra.mxu0 %v1257
  %3203 = vmatprep.subr.bf16.mxu0 %v1250
  %3204 = vmatpush2.bf16.msra.mxu0 %v1249
  %3205 = vmatprep.subr.bf16.mxu0 %v1242
  %3206 = vmatpush2.bf16.msra.mxu0 %v1241
  %3207 = vmatprep.subr.bf16.mxu0 %v1234
  %3208 = vmatpush2.bf16.msra.mxu0 %v1233
  %3209 = vmatprep.subr.bf16.mxu0 %v1226
  %3210 = vmatpush2.bf16.msra.mxu0 %v1225
  %3211 = vmatprep.subr.bf16.mxu0 %v1218
  %3212 = vmatpush2.bf16.msra.mxu0 %v1217
  %3213 = vmatprep.mubr.bf16.mxu0 %v3139
  %3214 = vmatmul.mubr.bf16.gmra.mxu0 %v3138
  %v3215 = vpop.f32.mrf.mxu0
  %v3216 = vadd.f32 0.0, %v3215
  %v3217 = vpop.f32.mrf.mxu0
  %v3218 = vadd.f32 0.0, %v3217
  %v3219 = vpop.f32.mrf.mxu0
  %v3220 = vpop.f32.mrf.mxu0
  %3221 = vdwg.mxu0
  %3222 = vmatprep.subr.bf16.mxu0 %v1212
  %3223 = vmatpush1.bf16.msra.mxu0 %v1211
  %3224 = vmatprep.subr.bf16.mxu0 %v1204
  %3225 = vmatpush1.bf16.msra.mxu0 %v1203
  %3226 = vmatprep.subr.bf16.mxu0 %v1196
  %3227 = vmatpush1.bf16.msra.mxu0 %v1195
  %3228 = vmatprep.subr.bf16.mxu0 %v1188
  %3229 = vmatpush1.bf16.msra.mxu0 %v1187
  %3230 = vmatprep.subr.bf16.mxu0 %v1180
  %3231 = vmatpush1.bf16.msra.mxu0 %v1179
  %3232 = vmatprep.subr.bf16.mxu0 %v1172
  %3233 = vmatpush1.bf16.msra.mxu0 %v1171
  %3234 = vmatprep.subr.bf16.mxu0 %v1164
  %3235 = vmatpush1.bf16.msra.mxu0 %v1163
  %3236 = vmatprep.subr.bf16.mxu0 %v1156
  %3237 = vmatpush1.bf16.msra.mxu0 %v1155
  %3238 = vmatprep.subr.bf16.mxu0 %v1276
  %3239 = vmatpush2.bf16.msra.mxu0 %v1275
  %3240 = vmatprep.subr.bf16.mxu0 %v1268
  %3241 = vmatpush2.bf16.msra.mxu0 %v1267
  %3242 = vmatprep.subr.bf16.mxu0 %v1260
  %3243 = vmatpush2.bf16.msra.mxu0 %v1259
  %3244 = vmatprep.subr.bf16.mxu0 %v1252
  %3245 = vmatpush2.bf16.msra.mxu0 %v1251
  %3246 = vmatprep.subr.bf16.mxu0 %v1244
  %3247 = vmatpush2.bf16.msra.mxu0 %v1243
  %3248 = vmatprep.subr.bf16.mxu0 %v1236
  %3249 = vmatpush2.bf16.msra.mxu0 %v1235
  %3250 = vmatprep.subr.bf16.mxu0 %v1228
  %3251 = vmatpush2.bf16.msra.mxu0 %v1227
  %3252 = vmatprep.subr.bf16.mxu0 %v1220
  %3253 = vmatpush2.bf16.msra.mxu0 %v1219
  %3254 = vmatprep.mubr.bf16.mxu0 %v3139
  %3255 = vmatmul.mubr.bf16.gmra.mxu0 %v3138
  %v3256 = vpop.f32.mrf.mxu0
  %v3257 = vadd.f32 0.0, %v3256
  %v3258 = vpop.f32.mrf.mxu0
  %v3259 = vadd.f32 0.0, %v3258
  %v3260 = vpop.f32.mrf.mxu0
  %v3261 = vpop.f32.mrf.mxu0
  %3262 = vdwg.mxu0
  %3263 = vmatprep.subr.bf16.mxu0 %v1214
  %3264 = vmatpush1.bf16.msra.mxu0 %v1213
  %3265 = vmatprep.subr.bf16.mxu0 %v1206
  %3266 = vmatpush1.bf16.msra.mxu0 %v1205
  %3267 = vmatprep.subr.bf16.mxu0 %v1198
  %3268 = vmatpush1.bf16.msra.mxu0 %v1197
  %3269 = vmatprep.subr.bf16.mxu0 %v1190
  %3270 = vmatpush1.bf16.msra.mxu0 %v1189
  %3271 = vmatprep.subr.bf16.mxu0 %v1182
  %3272 = vmatpush1.bf16.msra.mxu0 %v1181
  %3273 = vmatprep.subr.bf16.mxu0 %v1174
  %3274 = vmatpush1.bf16.msra.mxu0 %v1173
  %3275 = vmatprep.subr.bf16.mxu0 %v1166
  %3276 = vmatpush1.bf16.msra.mxu0 %v1165
  %3277 = vmatprep.subr.bf16.mxu0 %v1158
  %3278 = vmatpush1.bf16.msra.mxu0 %v1157
  %3279 = vmatprep.subr.bf16.mxu0 %v1278
  %3280 = vmatpush2.bf16.msra.mxu0 %v1277
  %3281 = vmatprep.subr.bf16.mxu0 %v1270
  %3282 = vmatpush2.bf16.msra.mxu0 %v1269
  %3283 = vmatprep.subr.bf16.mxu0 %v1262
  %3284 = vmatpush2.bf16.msra.mxu0 %v1261
  %3285 = vmatprep.subr.bf16.mxu0 %v1254
  %3286 = vmatpush2.bf16.msra.mxu0 %v1253
  %3287 = vmatprep.subr.bf16.mxu0 %v1246
  %3288 = vmatpush2.bf16.msra.mxu0 %v1245
  %3289 = vmatprep.subr.bf16.mxu0 %v1238
  %3290 = vmatpush2.bf16.msra.mxu0 %v1237
  %3291 = vmatprep.subr.bf16.mxu0 %v1230
  %3292 = vmatpush2.bf16.msra.mxu0 %v1229
  %3293 = vmatprep.subr.bf16.mxu0 %v1222
  %3294 = vmatpush2.bf16.msra.mxu0 %v1221
  %3295 = vmatprep.mubr.bf16.mxu0 %v3139
  %3296 = vmatmul.mubr.bf16.gmra.mxu0 %v3138
  %v3297 = vpop.f32.mrf.mxu0
  %v3298 = vadd.f32 0.0, %v3297
  %v3299 = vpop.f32.mrf.mxu0
  %v3300 = vadd.f32 0.0, %v3299
  %v3301 = vpop.f32.mrf.mxu0
  %v3302 = vpop.f32.mrf.mxu0
  %3303 = vdwg.mxu0
  %v3304 = vld [vmem:[#allocation2 + $0x120] sm:$0xff]
  %v3305 = vld [vmem:[#allocation2 + $0x128] sm:$0xff]
  %v3306 = vld [vmem:[#allocation2 + $0x130] sm:$0xff]
  %v3307 = vld [vmem:[#allocation2 + $0x138] sm:$0xff]
  %v3308 = vadd.f32 %v3175, %v3304
  %v3309 = vadd.f32 %v3177, %v3305
  %v3310 = vadd.f32 %v3216, %v3306
  %v3311 = vadd.f32 %v3218, %v3307
  %v3312 = vadd.f32 %v3257, %v1583
  %v3313 = vadd.f32 %v3259, %v1587
  %v3314 = vadd.f32 %v3298, %v1591
  %v3315 = vadd.f32 %v3300, %v1595
  %v3316 = vmul.f32 %v3308, 0.5
  %v3317 = vtanh.pop %v3316
  %v3318 = vadd.f32 %v3317, 1.0
  %v3319 = vmul.f32 %v3318, 0.5
  %v3320 = vmul.f32 %v3309, 0.5
  %v3321 = vtanh.pop %v3320
  %v3322 = vadd.f32 %v3321, 1.0
  %v3323 = vmul.f32 %v3322, 0.5
  %v3324 = vtanh.pop %v3310
  %v3325 = vmul.f32 %v3311, 0.5
  %v3326 = vtanh.pop %v3325
  %v3327 = vadd.f32 %v3326, 1.0
  %v3328 = vmul.f32 %v3327, 0.5
  %v3329 = vmul.f32 %v3323, %v3117
  %v3330 = vmul.f32 %v3319, %v3324
  %v3331 = vadd.f32 %v3329, %v3330
  %v3332 = vtanh.pop %v3331
  %v3333 = vmul.f32 %v3328, %v3332
  %v3334 = vmul.f32 %v3312, 0.5
  %v3335 = vtanh.pop %v3334
  %v3336 = vadd.f32 %v3335, 1.0
  %v3337 = vmul.f32 %v3336, 0.5
  %v3338 = vmul.f32 %v3313, 0.5
  %v3339 = vtanh.pop %v3338
  %v3340 = vadd.f32 %v3339, 1.0
  %v3341 = vmul.f32 %v3340, 0.5
  %v3342 = vtanh.pop %v3314
  %v3343 = vmul.f32 %v3315, 0.5
  %v3344 = vtanh.pop %v3343
  %v3345 = vadd.f32 %v3344, 1.0
  %v3346 = vmul.f32 %v3345, 0.5
  %v3347 = vmul.f32 %v3341, %v3135
  %v3348 = vmul.f32 %v3337, %v3342
  %v3349 = vadd.f32 %v3347, %v3348
  %v3350 = vtanh.pop %v3349
  %v3351 = vmul.f32 %v3346, %v3350
  %v3352 = vpack.c.bf16 %v3333, %v3333
  %v3353 = vpack.c.bf16 %v3351, %v3351
  %3354 = vmatprep.subr.bf16.mxu0 %v1208
  %3355 = vmatpush1.bf16.msra.mxu0 %v1207
  %3356 = vmatprep.subr.bf16.mxu0 %v1200
  %3357 = vmatpush1.bf16.msra.mxu0 %v1199
  %3358 = vmatprep.subr.bf16.mxu0 %v1192
  %3359 = vmatpush1.bf16.msra.mxu0 %v1191
  %3360 = vmatprep.subr.bf16.mxu0 %v1184
  %3361 = vmatpush1.bf16.msra.mxu0 %v1183
  %3362 = vmatprep.subr.bf16.mxu0 %v1176
  %3363 = vmatpush1.bf16.msra.mxu0 %v1175
  %3364 = vmatprep.subr.bf16.mxu0 %v1168
  %3365 = vmatpush1.bf16.msra.mxu0 %v1167
  %3366 = vmatprep.subr.bf16.mxu0 %v1160
  %3367 = vmatpush1.bf16.msra.mxu0 %v1159
  %3368 = vmatprep.subr.bf16.mxu0 %v1152
  %3369 = vmatpush1.bf16.msra.mxu0 %v1151
  %3370 = vmatprep.subr.bf16.mxu0 %v1272
  %3371 = vmatpush2.bf16.msra.mxu0 %v1271
  %3372 = vmatprep.subr.bf16.mxu0 %v1264
  %3373 = vmatpush2.bf16.msra.mxu0 %v1263
  %3374 = vmatprep.subr.bf16.mxu0 %v1256
  %3375 = vmatpush2.bf16.msra.mxu0 %v1255
  %3376 = vmatprep.subr.bf16.mxu0 %v1248
  %3377 = vmatpush2.bf16.msra.mxu0 %v1247
  %3378 = vmatprep.subr.bf16.mxu0 %v1240
  %3379 = vmatpush2.bf16.msra.mxu0 %v1239
  %3380 = vmatprep.subr.bf16.mxu0 %v1232
  %3381 = vmatpush2.bf16.msra.mxu0 %v1231
  %3382 = vmatprep.subr.bf16.mxu0 %v1224
  %3383 = vmatpush2.bf16.msra.mxu0 %v1223
  %3384 = vmatprep.subr.bf16.mxu0 %v1216
  %3385 = vmatpush2.bf16.msra.mxu0 %v1215
  %3386 = vmatprep.mubr.bf16.mxu0 %v3353
  %3387 = vmatmul.mubr.bf16.gmra.mxu0 %v3352
  %v3388 = vpop.f32.mrf.mxu0
  %v3389 = vadd.f32 0.0, %v3388
  %v3390 = vpop.f32.mrf.mxu0
  %v3391 = vadd.f32 0.0, %v3390
  %v3392 = vpop.f32.mrf.mxu0
  %v3393 = vpop.f32.mrf.mxu0
  %3394 = vdwg.mxu0
  %3395 = vmatprep.subr.bf16.mxu0 %v1210
  %3396 = vmatpush1.bf16.msra.mxu0 %v1209
  %3397 = vmatprep.subr.bf16.mxu0 %v1202
  %3398 = vmatpush1.bf16.msra.mxu0 %v1201
  %3399 = vmatprep.subr.bf16.mxu0 %v1194
  %3400 = vmatpush1.bf16.msra.mxu0 %v1193
  %3401 = vmatprep.subr.bf16.mxu0 %v1186
  %3402 = vmatpush1.bf16.msra.mxu0 %v1185
  %3403 = vmatprep.subr.bf16.mxu0 %v1178
  %3404 = vmatpush1.bf16.msra.mxu0 %v1177
  %3405 = vmatprep.subr.bf16.mxu0 %v1170
  %3406 = vmatpush1.bf16.msra.mxu0 %v1169
  %3407 = vmatprep.subr.bf16.mxu0 %v1162
  %3408 = vmatpush1.bf16.msra.mxu0 %v1161
  %3409 = vmatprep.subr.bf16.mxu0 %v1154
  %3410 = vmatpush1.bf16.msra.mxu0 %v1153
  %3411 = vmatprep.subr.bf16.mxu0 %v1274
  %3412 = vmatpush2.bf16.msra.mxu0 %v1273
  %3413 = vmatprep.subr.bf16.mxu0 %v1266
  %3414 = vmatpush2.bf16.msra.mxu0 %v1265
  %3415 = vmatprep.subr.bf16.mxu0 %v1258
  %3416 = vmatpush2.bf16.msra.mxu0 %v1257
  %3417 = vmatprep.subr.bf16.mxu0 %v1250
  %3418 = vmatpush2.bf16.msra.mxu0 %v1249
  %3419 = vmatprep.subr.bf16.mxu0 %v1242
  %3420 = vmatpush2.bf16.msra.mxu0 %v1241
  %3421 = vmatprep.subr.bf16.mxu0 %v1234
  %3422 = vmatpush2.bf16.msra.mxu0 %v1233
  %3423 = vmatprep.subr.bf16.mxu0 %v1226
  %3424 = vmatpush2.bf16.msra.mxu0 %v1225
  %3425 = vmatprep.subr.bf16.mxu0 %v1218
  %3426 = vmatpush2.bf16.msra.mxu0 %v1217
  %3427 = vmatprep.mubr.bf16.mxu0 %v3353
  %3428 = vmatmul.mubr.bf16.gmra.mxu0 %v3352
  %v3429 = vpop.f32.mrf.mxu0
  %v3430 = vadd.f32 0.0, %v3429
  %v3431 = vpop.f32.mrf.mxu0
  %v3432 = vadd.f32 0.0, %v3431
  %v3433 = vpop.f32.mrf.mxu0
  %v3434 = vpop.f32.mrf.mxu0
  %3435 = vdwg.mxu0
  %3436 = vmatprep.subr.bf16.mxu0 %v1212
  %3437 = vmatpush1.bf16.msra.mxu0 %v1211
  %3438 = vmatprep.subr.bf16.mxu0 %v1204
  %3439 = vmatpush1.bf16.msra.mxu0 %v1203
  %3440 = vmatprep.subr.bf16.mxu0 %v1196
  %3441 = vmatpush1.bf16.msra.mxu0 %v1195
  %3442 = vmatprep.subr.bf16.mxu0 %v1188
  %3443 = vmatpush1.bf16.msra.mxu0 %v1187
  %3444 = vmatprep.subr.bf16.mxu0 %v1180
  %3445 = vmatpush1.bf16.msra.mxu0 %v1179
  %3446 = vmatprep.subr.bf16.mxu0 %v1172
  %3447 = vmatpush1.bf16.msra.mxu0 %v1171
  %3448 = vmatprep.subr.bf16.mxu0 %v1164
  %3449 = vmatpush1.bf16.msra.mxu0 %v1163
  %3450 = vmatprep.subr.bf16.mxu0 %v1156
  %3451 = vmatpush1.bf16.msra.mxu0 %v1155
  %3452 = vmatprep.subr.bf16.mxu0 %v1276
  %3453 = vmatpush2.bf16.msra.mxu0 %v1275
  %3454 = vmatprep.subr.bf16.mxu0 %v1268
  %3455 = vmatpush2.bf16.msra.mxu0 %v1267
  %3456 = vmatprep.subr.bf16.mxu0 %v1260
  %3457 = vmatpush2.bf16.msra.mxu0 %v1259
  %3458 = vmatprep.subr.bf16.mxu0 %v1252
  %3459 = vmatpush2.bf16.msra.mxu0 %v1251
  %3460 = vmatprep.subr.bf16.mxu0 %v1244
  %3461 = vmatpush2.bf16.msra.mxu0 %v1243
  %3462 = vmatprep.subr.bf16.mxu0 %v1236
  %3463 = vmatpush2.bf16.msra.mxu0 %v1235
  %3464 = vmatprep.subr.bf16.mxu0 %v1228
  %3465 = vmatpush2.bf16.msra.mxu0 %v1227
  %3466 = vmatprep.subr.bf16.mxu0 %v1220
  %3467 = vmatpush2.bf16.msra.mxu0 %v1219
  %3468 = vmatprep.mubr.bf16.mxu0 %v3353
  %3469 = vmatmul.mubr.bf16.gmra.mxu0 %v3352
  %v3470 = vpop.f32.mrf.mxu0
  %v3471 = vadd.f32 0.0, %v3470
  %v3472 = vpop.f32.mrf.mxu0
  %v3473 = vadd.f32 0.0, %v3472
  %v3474 = vpop.f32.mrf.mxu0
  %v3475 = vpop.f32.mrf.mxu0
  %3476 = vdwg.mxu0
  %3477 = vmatprep.subr.bf16.mxu0 %v1214
  %3478 = vmatpush1.bf16.msra.mxu0 %v1213
  %3479 = vmatprep.subr.bf16.mxu0 %v1206
  %3480 = vmatpush1.bf16.msra.mxu0 %v1205
  %3481 = vmatprep.subr.bf16.mxu0 %v1198
  %3482 = vmatpush1.bf16.msra.mxu0 %v1197
  %3483 = vmatprep.subr.bf16.mxu0 %v1190
  %3484 = vmatpush1.bf16.msra.mxu0 %v1189
  %3485 = vmatprep.subr.bf16.mxu0 %v1182
  %3486 = vmatpush1.bf16.msra.mxu0 %v1181
  %3487 = vmatprep.subr.bf16.mxu0 %v1174
  %3488 = vmatpush1.bf16.msra.mxu0 %v1173
  %3489 = vmatprep.subr.bf16.mxu0 %v1166
  %3490 = vmatpush1.bf16.msra.mxu0 %v1165
  %3491 = vmatprep.subr.bf16.mxu0 %v1158
  %3492 = vmatpush1.bf16.msra.mxu0 %v1157
  %3493 = vmatprep.subr.bf16.mxu0 %v1278
  %3494 = vmatpush2.bf16.msra.mxu0 %v1277
  %3495 = vmatprep.subr.bf16.mxu0 %v1270
  %3496 = vmatpush2.bf16.msra.mxu0 %v1269
  %3497 = vmatprep.subr.bf16.mxu0 %v1262
  %3498 = vmatpush2.bf16.msra.mxu0 %v1261
  %3499 = vmatprep.subr.bf16.mxu0 %v1254
  %3500 = vmatpush2.bf16.msra.mxu0 %v1253
  %3501 = vmatprep.subr.bf16.mxu0 %v1246
  %3502 = vmatpush2.bf16.msra.mxu0 %v1245
  %3503 = vmatprep.subr.bf16.mxu0 %v1238
  %3504 = vmatpush2.bf16.msra.mxu0 %v1237
  %3505 = vmatprep.subr.bf16.mxu0 %v1230
  %3506 = vmatpush2.bf16.msra.mxu0 %v1229
  %3507 = vmatprep.subr.bf16.mxu0 %v1222
  %3508 = vmatpush2.bf16.msra.mxu0 %v1221
  %3509 = vmatprep.mubr.bf16.mxu0 %v3353
  %3510 = vmatmul.mubr.bf16.gmra.mxu0 %v3352
  %v3511 = vpop.f32.mrf.mxu0
  %v3512 = vadd.f32 0.0, %v3511
  %v3513 = vpop.f32.mrf.mxu0
  %v3514 = vadd.f32 0.0, %v3513
  %v3515 = vpop.f32.mrf.mxu0
  %v3516 = vpop.f32.mrf.mxu0
  %3517 = vdwg.mxu0
  %v3518 = vld [vmem:[#allocation2 + $0x140] sm:$0xff]
  %v3519 = vld [vmem:[#allocation2 + $0x148] sm:$0xff]
  %v3520 = vld [vmem:[#allocation2 + $0x150] sm:$0xff]
  %v3521 = vld [vmem:[#allocation2 + $0x158] sm:$0xff]
  %v3522 = vadd.f32 %v3389, %v3518
  %v3523 = vadd.f32 %v3391, %v3519
  %v3524 = vadd.f32 %v3430, %v3520
  %v3525 = vadd.f32 %v3432, %v3521
  %v3526 = vadd.f32 %v3471, %v1583
  %v3527 = vadd.f32 %v3473, %v1587
  %v3528 = vadd.f32 %v3512, %v1591
  %v3529 = vadd.f32 %v3514, %v1595
  %v3530 = vmul.f32 %v3522, 0.5
  %v3531 = vtanh.pop %v3530
  %v3532 = vadd.f32 %v3531, 1.0
  %v3533 = vmul.f32 %v3532, 0.5
  %v3534 = vmul.f32 %v3523, 0.5
  %v3535 = vtanh.pop %v3534
  %v3536 = vadd.f32 %v3535, 1.0
  %v3537 = vmul.f32 %v3536, 0.5
  %v3538 = vtanh.pop %v3524
  %v3539 = vmul.f32 %v3525, 0.5
  %v3540 = vtanh.pop %v3539
  %v3541 = vadd.f32 %v3540, 1.0
  %v3542 = vmul.f32 %v3541, 0.5
  %v3543 = vmul.f32 %v3537, %v3331
  %v3544 = vmul.f32 %v3533, %v3538
  %v3545 = vadd.f32 %v3543, %v3544
  %v3546 = vtanh.pop %v3545
  %v3547 = vmul.f32 %v3542, %v3546
  %v3548 = vmul.f32 %v3526, 0.5
  %v3549 = vtanh.pop %v3548
  %v3550 = vadd.f32 %v3549, 1.0
  %v3551 = vmul.f32 %v3550, 0.5
  %v3552 = vmul.f32 %v3527, 0.5
  %v3553 = vtanh.pop %v3552
  %v3554 = vadd.f32 %v3553, 1.0
  %v3555 = vmul.f32 %v3554, 0.5
  %v3556 = vtanh.pop %v3528
  %v3557 = vmul.f32 %v3529, 0.5
  %v3558 = vtanh.pop %v3557
  %v3559 = vadd.f32 %v3558, 1.0
  %v3560 = vmul.f32 %v3559, 0.5
  %v3561 = vmul.f32 %v3555, %v3349
  %v3562 = vmul.f32 %v3551, %v3556
  %v3563 = vadd.f32 %v3561, %v3562
  %v3564 = vtanh.pop %v3563
  %v3565 = vmul.f32 %v3560, %v3564
  %v3566 = vpack.c.bf16 %v3547, %v3547
  %v3567 = vpack.c.bf16 %v3565, %v3565
  %3568 = vmatprep.subr.bf16.mxu0 %v1208
  %3569 = vmatpush1.bf16.msra.mxu0 %v1207
  %3570 = vmatprep.subr.bf16.mxu0 %v1200
  %3571 = vmatpush1.bf16.msra.mxu0 %v1199
  %3572 = vmatprep.subr.bf16.mxu0 %v1192
  %3573 = vmatpush1.bf16.msra.mxu0 %v1191
  %3574 = vmatprep.subr.bf16.mxu0 %v1184
  %3575 = vmatpush1.bf16.msra.mxu0 %v1183
  %3576 = vmatprep.subr.bf16.mxu0 %v1176
  %3577 = vmatpush1.bf16.msra.mxu0 %v1175
  %3578 = vmatprep.subr.bf16.mxu0 %v1168
  %3579 = vmatpush1.bf16.msra.mxu0 %v1167
  %3580 = vmatprep.subr.bf16.mxu0 %v1160
  %3581 = vmatpush1.bf16.msra.mxu0 %v1159
  %3582 = vmatprep.subr.bf16.mxu0 %v1152
  %3583 = vmatpush1.bf16.msra.mxu0 %v1151
  %3584 = vmatprep.subr.bf16.mxu0 %v1272
  %3585 = vmatpush2.bf16.msra.mxu0 %v1271
  %3586 = vmatprep.subr.bf16.mxu0 %v1264
  %3587 = vmatpush2.bf16.msra.mxu0 %v1263
  %3588 = vmatprep.subr.bf16.mxu0 %v1256
  %3589 = vmatpush2.bf16.msra.mxu0 %v1255
  %3590 = vmatprep.subr.bf16.mxu0 %v1248
  %3591 = vmatpush2.bf16.msra.mxu0 %v1247
  %3592 = vmatprep.subr.bf16.mxu0 %v1240
  %3593 = vmatpush2.bf16.msra.mxu0 %v1239
  %3594 = vmatprep.subr.bf16.mxu0 %v1232
  %3595 = vmatpush2.bf16.msra.mxu0 %v1231
  %3596 = vmatprep.subr.bf16.mxu0 %v1224
  %3597 = vmatpush2.bf16.msra.mxu0 %v1223
  %3598 = vmatprep.subr.bf16.mxu0 %v1216
  %3599 = vmatpush2.bf16.msra.mxu0 %v1215
  %3600 = vmatprep.mubr.bf16.mxu0 %v3567
  %3601 = vmatmul.mubr.bf16.gmra.mxu0 %v3566
  %v3602 = vpop.f32.mrf.mxu0
  %v3603 = vadd.f32 0.0, %v3602
  %v3604 = vpop.f32.mrf.mxu0
  %v3605 = vadd.f32 0.0, %v3604
  %v3606 = vpop.f32.mrf.mxu0
  %v3607 = vpop.f32.mrf.mxu0
  %3608 = vdwg.mxu0
  %3609 = vmatprep.subr.bf16.mxu0 %v1210
  %3610 = vmatpush1.bf16.msra.mxu0 %v1209
  %3611 = vmatprep.subr.bf16.mxu0 %v1202
  %3612 = vmatpush1.bf16.msra.mxu0 %v1201
  %3613 = vmatprep.subr.bf16.mxu0 %v1194
  %3614 = vmatpush1.bf16.msra.mxu0 %v1193
  %3615 = vmatprep.subr.bf16.mxu0 %v1186
  %3616 = vmatpush1.bf16.msra.mxu0 %v1185
  %3617 = vmatprep.subr.bf16.mxu0 %v1178
  %3618 = vmatpush1.bf16.msra.mxu0 %v1177
  %3619 = vmatprep.subr.bf16.mxu0 %v1170
  %3620 = vmatpush1.bf16.msra.mxu0 %v1169
  %3621 = vmatprep.subr.bf16.mxu0 %v1162
  %3622 = vmatpush1.bf16.msra.mxu0 %v1161
  %3623 = vmatprep.subr.bf16.mxu0 %v1154
  %3624 = vmatpush1.bf16.msra.mxu0 %v1153
  %3625 = vmatprep.subr.bf16.mxu0 %v1274
  %3626 = vmatpush2.bf16.msra.mxu0 %v1273
  %3627 = vmatprep.subr.bf16.mxu0 %v1266
  %3628 = vmatpush2.bf16.msra.mxu0 %v1265
  %3629 = vmatprep.subr.bf16.mxu0 %v1258
  %3630 = vmatpush2.bf16.msra.mxu0 %v1257
  %3631 = vmatprep.subr.bf16.mxu0 %v1250
  %3632 = vmatpush2.bf16.msra.mxu0 %v1249
  %3633 = vmatprep.subr.bf16.mxu0 %v1242
  %3634 = vmatpush2.bf16.msra.mxu0 %v1241
  %3635 = vmatprep.subr.bf16.mxu0 %v1234
  %3636 = vmatpush2.bf16.msra.mxu0 %v1233
  %3637 = vmatprep.subr.bf16.mxu0 %v1226
  %3638 = vmatpush2.bf16.msra.mxu0 %v1225
  %3639 = vmatprep.subr.bf16.mxu0 %v1218
  %3640 = vmatpush2.bf16.msra.mxu0 %v1217
  %3641 = vmatprep.mubr.bf16.mxu0 %v3567
  %3642 = vmatmul.mubr.bf16.gmra.mxu0 %v3566
  %v3643 = vpop.f32.mrf.mxu0
  %v3644 = vadd.f32 0.0, %v3643
  %v3645 = vpop.f32.mrf.mxu0
  %v3646 = vadd.f32 0.0, %v3645
  %v3647 = vpop.f32.mrf.mxu0
  %v3648 = vpop.f32.mrf.mxu0
  %3649 = vdwg.mxu0
  %3650 = vmatprep.subr.bf16.mxu0 %v1212
  %3651 = vmatpush1.bf16.msra.mxu0 %v1211
  %3652 = vmatprep.subr.bf16.mxu0 %v1204
  %3653 = vmatpush1.bf16.msra.mxu0 %v1203
  %3654 = vmatprep.subr.bf16.mxu0 %v1196
  %3655 = vmatpush1.bf16.msra.mxu0 %v1195
  %3656 = vmatprep.subr.bf16.mxu0 %v1188
  %3657 = vmatpush1.bf16.msra.mxu0 %v1187
  %3658 = vmatprep.subr.bf16.mxu0 %v1180
  %3659 = vmatpush1.bf16.msra.mxu0 %v1179
  %3660 = vmatprep.subr.bf16.mxu0 %v1172
  %3661 = vmatpush1.bf16.msra.mxu0 %v1171
  %3662 = vmatprep.subr.bf16.mxu0 %v1164
  %3663 = vmatpush1.bf16.msra.mxu0 %v1163
  %3664 = vmatprep.subr.bf16.mxu0 %v1156
  %3665 = vmatpush1.bf16.msra.mxu0 %v1155
  %3666 = vmatprep.subr.bf16.mxu0 %v1276
  %3667 = vmatpush2.bf16.msra.mxu0 %v1275
  %3668 = vmatprep.subr.bf16.mxu0 %v1268
  %3669 = vmatpush2.bf16.msra.mxu0 %v1267
  %3670 = vmatprep.subr.bf16.mxu0 %v1260
  %3671 = vmatpush2.bf16.msra.mxu0 %v1259
  %3672 = vmatprep.subr.bf16.mxu0 %v1252
  %3673 = vmatpush2.bf16.msra.mxu0 %v1251
  %3674 = vmatprep.subr.bf16.mxu0 %v1244
  %3675 = vmatpush2.bf16.msra.mxu0 %v1243
  %3676 = vmatprep.subr.bf16.mxu0 %v1236
  %3677 = vmatpush2.bf16.msra.mxu0 %v1235
  %3678 = vmatprep.subr.bf16.mxu0 %v1228
  %3679 = vmatpush2.bf16.msra.mxu0 %v1227
  %3680 = vmatprep.subr.bf16.mxu0 %v1220
  %3681 = vmatpush2.bf16.msra.mxu0 %v1219
  %3682 = vmatprep.mubr.bf16.mxu0 %v3567
  %3683 = vmatmul.mubr.bf16.gmra.mxu0 %v3566
  %v3684 = vpop.f32.mrf.mxu0
  %v3685 = vadd.f32 0.0, %v3684
  %v3686 = vpop.f32.mrf.mxu0
  %v3687 = vadd.f32 0.0, %v3686
  %v3688 = vpop.f32.mrf.mxu0
  %v3689 = vpop.f32.mrf.mxu0
  %3690 = vdwg.mxu0
  %3691 = vmatprep.subr.bf16.mxu0 %v1214
  %3692 = vmatpush1.bf16.msra.mxu0 %v1213
  %3693 = vmatprep.subr.bf16.mxu0 %v1206
  %3694 = vmatpush1.bf16.msra.mxu0 %v1205
  %3695 = vmatprep.subr.bf16.mxu0 %v1198
  %3696 = vmatpush1.bf16.msra.mxu0 %v1197
  %3697 = vmatprep.subr.bf16.mxu0 %v1190
  %3698 = vmatpush1.bf16.msra.mxu0 %v1189
  %3699 = vmatprep.subr.bf16.mxu0 %v1182
  %3700 = vmatpush1.bf16.msra.mxu0 %v1181
  %3701 = vmatprep.subr.bf16.mxu0 %v1174
  %3702 = vmatpush1.bf16.msra.mxu0 %v1173
  %3703 = vmatprep.subr.bf16.mxu0 %v1166
  %3704 = vmatpush1.bf16.msra.mxu0 %v1165
  %3705 = vmatprep.subr.bf16.mxu0 %v1158
  %3706 = vmatpush1.bf16.msra.mxu0 %v1157
  %3707 = vmatprep.subr.bf16.mxu0 %v1278
  %3708 = vmatpush2.bf16.msra.mxu0 %v1277
  %3709 = vmatprep.subr.bf16.mxu0 %v1270
  %3710 = vmatpush2.bf16.msra.mxu0 %v1269
  %3711 = vmatprep.subr.bf16.mxu0 %v1262
  %3712 = vmatpush2.bf16.msra.mxu0 %v1261
  %3713 = vmatprep.subr.bf16.mxu0 %v1254
  %3714 = vmatpush2.bf16.msra.mxu0 %v1253
  %3715 = vmatprep.subr.bf16.mxu0 %v1246
  %3716 = vmatpush2.bf16.msra.mxu0 %v1245
  %3717 = vmatprep.subr.bf16.mxu0 %v1238
  %3718 = vmatpush2.bf16.msra.mxu0 %v1237
  %3719 = vmatprep.subr.bf16.mxu0 %v1230
  %3720 = vmatpush2.bf16.msra.mxu0 %v1229
  %3721 = vmatprep.subr.bf16.mxu0 %v1222
  %3722 = vmatpush2.bf16.msra.mxu0 %v1221
  %3723 = vmatprep.mubr.bf16.mxu0 %v3567
  %3724 = vmatmul.mubr.bf16.gmra.mxu0 %v3566
  %v3725 = vpop.f32.mrf.mxu0
  %v3726 = vadd.f32 0.0, %v3725
  %v3727 = vpop.f32.mrf.mxu0
  %v3728 = vadd.f32 0.0, %v3727
  %v3729 = vpop.f32.mrf.mxu0
  %v3730 = vpop.f32.mrf.mxu0
  %3731 = vdwg.mxu0
  %v3732 = vld [vmem:[#allocation2 + $0x160] sm:$0xff]
  %v3733 = vld [vmem:[#allocation2 + $0x168] sm:$0xff]
  %v3734 = vld [vmem:[#allocation2 + $0x170] sm:$0xff]
  %v3735 = vld [vmem:[#allocation2 + $0x178] sm:$0xff]
  %v3736 = vadd.f32 %v3603, %v3732
  %v3737 = vadd.f32 %v3605, %v3733
  %v3738 = vadd.f32 %v3644, %v3734
  %v3739 = vadd.f32 %v3646, %v3735
  %v3740 = vadd.f32 %v3685, %v1583
  %v3741 = vadd.f32 %v3687, %v1587
  %v3742 = vadd.f32 %v3726, %v1591
  %v3743 = vadd.f32 %v3728, %v1595
  %v3744 = vmul.f32 %v3736, 0.5
  %v3745 = vtanh.pop %v3744
  %v3746 = vadd.f32 %v3745, 1.0
  %v3747 = vmul.f32 %v3746, 0.5
  %v3748 = vmul.f32 %v3737, 0.5
  %v3749 = vtanh.pop %v3748
  %v3750 = vadd.f32 %v3749, 1.0
  %v3751 = vmul.f32 %v3750, 0.5
  %v3752 = vtanh.pop %v3738
  %v3753 = vmul.f32 %v3739, 0.5
  %v3754 = vtanh.pop %v3753
  %v3755 = vadd.f32 %v3754, 1.0
  %v3756 = vmul.f32 %v3755, 0.5
  %v3757 = vmul.f32 %v3751, %v3545
  %v3758 = vmul.f32 %v3747, %v3752
  %v3759 = vadd.f32 %v3757, %v3758
  %v3760 = vtanh.pop %v3759
  %v3761 = vmul.f32 %v3756, %v3760
  %v3762 = vmul.f32 %v3740, 0.5
  %v3763 = vtanh.pop %v3762
  %v3764 = vadd.f32 %v3763, 1.0
  %v3765 = vmul.f32 %v3764, 0.5
  %v3766 = vmul.f32 %v3741, 0.5
  %v3767 = vtanh.pop %v3766
  %v3768 = vadd.f32 %v3767, 1.0
  %v3769 = vmul.f32 %v3768, 0.5
  %v3770 = vtanh.pop %v3742
  %v3771 = vmul.f32 %v3743, 0.5
  %v3772 = vtanh.pop %v3771
  %v3773 = vadd.f32 %v3772, 1.0
  %v3774 = vmul.f32 %v3773, 0.5
  %v3775 = vmul.f32 %v3769, %v3563
  %v3776 = vmul.f32 %v3765, %v3770
  %v3777 = vadd.f32 %v3775, %v3776
  %v3778 = vtanh.pop %v3777
  %v3779 = vmul.f32 %v3774, %v3778
  %v3780 = vpack.c.bf16 %v3761, %v3761
  %v3781 = vpack.c.bf16 %v3779, %v3779
  %3782 = vmatprep.subr.bf16.mxu0 %v1208
  %3783 = vmatpush1.bf16.msra.mxu0 %v1207
  %3784 = vmatprep.subr.bf16.mxu0 %v1200
  %3785 = vmatpush1.bf16.msra.mxu0 %v1199
  %3786 = vmatprep.subr.bf16.mxu0 %v1192
  %3787 = vmatpush1.bf16.msra.mxu0 %v1191
  %3788 = vmatprep.subr.bf16.mxu0 %v1184
  %3789 = vmatpush1.bf16.msra.mxu0 %v1183
  %3790 = vmatprep.subr.bf16.mxu0 %v1176
  %3791 = vmatpush1.bf16.msra.mxu0 %v1175
  %3792 = vmatprep.subr.bf16.mxu0 %v1168
  %3793 = vmatpush1.bf16.msra.mxu0 %v1167
  %3794 = vmatprep.subr.bf16.mxu0 %v1160
  %3795 = vmatpush1.bf16.msra.mxu0 %v1159
  %3796 = vmatprep.subr.bf16.mxu0 %v1152
  %3797 = vmatpush1.bf16.msra.mxu0 %v1151
  %3798 = vmatprep.subr.bf16.mxu0 %v1272
  %3799 = vmatpush2.bf16.msra.mxu0 %v1271
  %3800 = vmatprep.subr.bf16.mxu0 %v1264
  %3801 = vmatpush2.bf16.msra.mxu0 %v1263
  %3802 = vmatprep.subr.bf16.mxu0 %v1256
  %3803 = vmatpush2.bf16.msra.mxu0 %v1255
  %3804 = vmatprep.subr.bf16.mxu0 %v1248
  %3805 = vmatpush2.bf16.msra.mxu0 %v1247
  %3806 = vmatprep.subr.bf16.mxu0 %v1240
  %3807 = vmatpush2.bf16.msra.mxu0 %v1239
  %3808 = vmatprep.subr.bf16.mxu0 %v1232
  %3809 = vmatpush2.bf16.msra.mxu0 %v1231
  %3810 = vmatprep.subr.bf16.mxu0 %v1224
  %3811 = vmatpush2.bf16.msra.mxu0 %v1223
  %3812 = vmatprep.subr.bf16.mxu0 %v1216
  %3813 = vmatpush2.bf16.msra.mxu0 %v1215
  %3814 = vmatprep.mubr.bf16.mxu0 %v3781
  %3815 = vmatmul.mubr.bf16.gmra.mxu0 %v3780
  %v3816 = vpop.f32.mrf.mxu0
  %v3817 = vadd.f32 0.0, %v3816
  %v3818 = vpop.f32.mrf.mxu0
  %v3819 = vadd.f32 0.0, %v3818
  %v3820 = vpop.f32.mrf.mxu0
  %v3821 = vpop.f32.mrf.mxu0
  %3822 = vdwg.mxu0
  %3823 = vmatprep.subr.bf16.mxu0 %v1210
  %3824 = vmatpush1.bf16.msra.mxu0 %v1209
  %3825 = vmatprep.subr.bf16.mxu0 %v1202
  %3826 = vmatpush1.bf16.msra.mxu0 %v1201
  %3827 = vmatprep.subr.bf16.mxu0 %v1194
  %3828 = vmatpush1.bf16.msra.mxu0 %v1193
  %3829 = vmatprep.subr.bf16.mxu0 %v1186
  %3830 = vmatpush1.bf16.msra.mxu0 %v1185
  %3831 = vmatprep.subr.bf16.mxu0 %v1178
  %3832 = vmatpush1.bf16.msra.mxu0 %v1177
  %3833 = vmatprep.subr.bf16.mxu0 %v1170
  %3834 = vmatpush1.bf16.msra.mxu0 %v1169
  %3835 = vmatprep.subr.bf16.mxu0 %v1162
  %3836 = vmatpush1.bf16.msra.mxu0 %v1161
  %3837 = vmatprep.subr.bf16.mxu0 %v1154
  %3838 = vmatpush1.bf16.msra.mxu0 %v1153
  %3839 = vmatprep.subr.bf16.mxu0 %v1274
  %3840 = vmatpush2.bf16.msra.mxu0 %v1273
  %3841 = vmatprep.subr.bf16.mxu0 %v1266
  %3842 = vmatpush2.bf16.msra.mxu0 %v1265
  %3843 = vmatprep.subr.bf16.mxu0 %v1258
  %3844 = vmatpush2.bf16.msra.mxu0 %v1257
  %3845 = vmatprep.subr.bf16.mxu0 %v1250
  %3846 = vmatpush2.bf16.msra.mxu0 %v1249
  %3847 = vmatprep.subr.bf16.mxu0 %v1242
  %3848 = vmatpush2.bf16.msra.mxu0 %v1241
  %3849 = vmatprep.subr.bf16.mxu0 %v1234
  %3850 = vmatpush2.bf16.msra.mxu0 %v1233
  %3851 = vmatprep.subr.bf16.mxu0 %v1226
  %3852 = vmatpush2.bf16.msra.mxu0 %v1225
  %3853 = vmatprep.subr.bf16.mxu0 %v1218
  %3854 = vmatpush2.bf16.msra.mxu0 %v1217
  %3855 = vmatprep.mubr.bf16.mxu0 %v3781
  %3856 = vmatmul.mubr.bf16.gmra.mxu0 %v3780
  %v3857 = vpop.f32.mrf.mxu0
  %v3858 = vadd.f32 0.0, %v3857
  %v3859 = vpop.f32.mrf.mxu0
  %v3860 = vadd.f32 0.0, %v3859
  %v3861 = vpop.f32.mrf.mxu0
  %v3862 = vpop.f32.mrf.mxu0
  %3863 = vdwg.mxu0
  %3864 = vmatprep.subr.bf16.mxu0 %v1212
  %3865 = vmatpush1.bf16.msra.mxu0 %v1211
  %3866 = vmatprep.subr.bf16.mxu0 %v1204
  %3867 = vmatpush1.bf16.msra.mxu0 %v1203
  %3868 = vmatprep.subr.bf16.mxu0 %v1196
  %3869 = vmatpush1.bf16.msra.mxu0 %v1195
  %3870 = vmatprep.subr.bf16.mxu0 %v1188
  %3871 = vmatpush1.bf16.msra.mxu0 %v1187
  %3872 = vmatprep.subr.bf16.mxu0 %v1180
  %3873 = vmatpush1.bf16.msra.mxu0 %v1179
  %3874 = vmatprep.subr.bf16.mxu0 %v1172
  %3875 = vmatpush1.bf16.msra.mxu0 %v1171
  %3876 = vmatprep.subr.bf16.mxu0 %v1164
  %3877 = vmatpush1.bf16.msra.mxu0 %v1163
  %3878 = vmatprep.subr.bf16.mxu0 %v1156
  %3879 = vmatpush1.bf16.msra.mxu0 %v1155
  %3880 = vmatprep.subr.bf16.mxu0 %v1276
  %3881 = vmatpush2.bf16.msra.mxu0 %v1275
  %3882 = vmatprep.subr.bf16.mxu0 %v1268
  %3883 = vmatpush2.bf16.msra.mxu0 %v1267
  %3884 = vmatprep.subr.bf16.mxu0 %v1260
  %3885 = vmatpush2.bf16.msra.mxu0 %v1259
  %3886 = vmatprep.subr.bf16.mxu0 %v1252
  %3887 = vmatpush2.bf16.msra.mxu0 %v1251
  %3888 = vmatprep.subr.bf16.mxu0 %v1244
  %3889 = vmatpush2.bf16.msra.mxu0 %v1243
  %3890 = vmatprep.subr.bf16.mxu0 %v1236
  %3891 = vmatpush2.bf16.msra.mxu0 %v1235
  %3892 = vmatprep.subr.bf16.mxu0 %v1228
  %3893 = vmatpush2.bf16.msra.mxu0 %v1227
  %3894 = vmatprep.subr.bf16.mxu0 %v1220
  %3895 = vmatpush2.bf16.msra.mxu0 %v1219
  %3896 = vmatprep.mubr.bf16.mxu0 %v3781
  %3897 = vmatmul.mubr.bf16.gmra.mxu0 %v3780
  %v3898 = vpop.f32.mrf.mxu0
  %v3899 = vadd.f32 0.0, %v3898
  %v3900 = vpop.f32.mrf.mxu0
  %v3901 = vadd.f32 0.0, %v3900
  %v3902 = vpop.f32.mrf.mxu0
  %v3903 = vpop.f32.mrf.mxu0
  %3904 = vdwg.mxu0
  %3905 = vmatprep.subr.bf16.mxu0 %v1214
  %3906 = vmatpush1.bf16.msra.mxu0 %v1213
  %3907 = vmatprep.subr.bf16.mxu0 %v1206
  %3908 = vmatpush1.bf16.msra.mxu0 %v1205
  %3909 = vmatprep.subr.bf16.mxu0 %v1198
  %3910 = vmatpush1.bf16.msra.mxu0 %v1197
  %3911 = vmatprep.subr.bf16.mxu0 %v1190
  %3912 = vmatpush1.bf16.msra.mxu0 %v1189
  %3913 = vmatprep.subr.bf16.mxu0 %v1182
  %3914 = vmatpush1.bf16.msra.mxu0 %v1181
  %3915 = vmatprep.subr.bf16.mxu0 %v1174
  %3916 = vmatpush1.bf16.msra.mxu0 %v1173
  %3917 = vmatprep.subr.bf16.mxu0 %v1166
  %3918 = vmatpush1.bf16.msra.mxu0 %v1165
  %3919 = vmatprep.subr.bf16.mxu0 %v1158
  %3920 = vmatpush1.bf16.msra.mxu0 %v1157
  %3921 = vmatprep.subr.bf16.mxu0 %v1278
  %3922 = vmatpush2.bf16.msra.mxu0 %v1277
  %3923 = vmatprep.subr.bf16.mxu0 %v1270
  %3924 = vmatpush2.bf16.msra.mxu0 %v1269
  %3925 = vmatprep.subr.bf16.mxu0 %v1262
  %3926 = vmatpush2.bf16.msra.mxu0 %v1261
  %3927 = vmatprep.subr.bf16.mxu0 %v1254
  %3928 = vmatpush2.bf16.msra.mxu0 %v1253
  %3929 = vmatprep.subr.bf16.mxu0 %v1246
  %3930 = vmatpush2.bf16.msra.mxu0 %v1245
  %3931 = vmatprep.subr.bf16.mxu0 %v1238
  %3932 = vmatpush2.bf16.msra.mxu0 %v1237
  %3933 = vmatprep.subr.bf16.mxu0 %v1230
  %3934 = vmatpush2.bf16.msra.mxu0 %v1229
  %3935 = vmatprep.subr.bf16.mxu0 %v1222
  %3936 = vmatpush2.bf16.msra.mxu0 %v1221
  %3937 = vmatprep.mubr.bf16.mxu0 %v3781
  %3938 = vmatmul.mubr.bf16.gmra.mxu0 %v3780
  %v3939 = vpop.f32.mrf.mxu0
  %v3940 = vadd.f32 0.0, %v3939
  %v3941 = vpop.f32.mrf.mxu0
  %v3942 = vadd.f32 0.0, %v3941
  %v3943 = vpop.f32.mrf.mxu0
  %v3944 = vpop.f32.mrf.mxu0
  %3945 = vdwg.mxu0
  %v3946 = vld [vmem:[#allocation2 + $0x180] sm:$0xff]
  %v3947 = vld [vmem:[#allocation2 + $0x188] sm:$0xff]
  %v3948 = vld [vmem:[#allocation2 + $0x190] sm:$0xff]
  %v3949 = vld [vmem:[#allocation2 + $0x198] sm:$0xff]
  %v3950 = vadd.f32 %v3817, %v3946
  %v3951 = vadd.f32 %v3819, %v3947
  %v3952 = vadd.f32 %v3858, %v3948
  %v3953 = vadd.f32 %v3860, %v3949
  %v3954 = vadd.f32 %v3899, %v1583
  %v3955 = vadd.f32 %v3901, %v1587
  %v3956 = vadd.f32 %v3940, %v1591
  %v3957 = vadd.f32 %v3942, %v1595
  %v3958 = vmul.f32 %v3950, 0.5
  %v3959 = vtanh.pop %v3958
  %v3960 = vadd.f32 %v3959, 1.0
  %v3961 = vmul.f32 %v3960, 0.5
  %v3962 = vmul.f32 %v3951, 0.5
  %v3963 = vtanh.pop %v3962
  %v3964 = vadd.f32 %v3963, 1.0
  %v3965 = vmul.f32 %v3964, 0.5
  %v3966 = vtanh.pop %v3952
  %v3967 = vmul.f32 %v3953, 0.5
  %v3968 = vtanh.pop %v3967
  %v3969 = vadd.f32 %v3968, 1.0
  %v3970 = vmul.f32 %v3969, 0.5
  %v3971 = vmul.f32 %v3965, %v3759
  %v3972 = vmul.f32 %v3961, %v3966
  %v3973 = vadd.f32 %v3971, %v3972
  %v3974 = vtanh.pop %v3973
  %v3975 = vmul.f32 %v3970, %v3974
  %v3976 = vmul.f32 %v3954, 0.5
  %v3977 = vtanh.pop %v3976
  %v3978 = vadd.f32 %v3977, 1.0
  %v3979 = vmul.f32 %v3978, 0.5
  %v3980 = vmul.f32 %v3955, 0.5
  %v3981 = vtanh.pop %v3980
  %v3982 = vadd.f32 %v3981, 1.0
  %v3983 = vmul.f32 %v3982, 0.5
  %v3984 = vtanh.pop %v3956
  %v3985 = vmul.f32 %v3957, 0.5
  %v3986 = vtanh.pop %v3985
  %v3987 = vadd.f32 %v3986, 1.0
  %v3988 = vmul.f32 %v3987, 0.5
  %v3989 = vmul.f32 %v3983, %v3777
  %v3990 = vmul.f32 %v3979, %v3984
  %v3991 = vadd.f32 %v3989, %v3990
  %v3992 = vtanh.pop %v3991
  %v3993 = vmul.f32 %v3988, %v3992
  %v3994 = vpack.c.bf16 %v3975, %v3975
  %v3995 = vpack.c.bf16 %v3993, %v3993
  %3996 = vmatprep.subr.bf16.mxu0 %v1208
  %3997 = vmatpush1.bf16.msra.mxu0 %v1207
  %3998 = vmatprep.subr.bf16.mxu0 %v1200
  %3999 = vmatpush1.bf16.msra.mxu0 %v1199
  %4000 = vmatprep.subr.bf16.mxu0 %v1192
  %4001 = vmatpush1.bf16.msra.mxu0 %v1191
  %4002 = vmatprep.subr.bf16.mxu0 %v1184
  %4003 = vmatpush1.bf16.msra.mxu0 %v1183
  %4004 = vmatprep.subr.bf16.mxu0 %v1176
  %4005 = vmatpush1.bf16.msra.mxu0 %v1175
  %4006 = vmatprep.subr.bf16.mxu0 %v1168
  %4007 = vmatpush1.bf16.msra.mxu0 %v1167
  %4008 = vmatprep.subr.bf16.mxu0 %v1160
  %4009 = vmatpush1.bf16.msra.mxu0 %v1159
  %4010 = vmatprep.subr.bf16.mxu0 %v1152
  %4011 = vmatpush1.bf16.msra.mxu0 %v1151
  %4012 = vmatprep.subr.bf16.mxu0 %v1272
  %4013 = vmatpush2.bf16.msra.mxu0 %v1271
  %4014 = vmatprep.subr.bf16.mxu0 %v1264
  %4015 = vmatpush2.bf16.msra.mxu0 %v1263
  %4016 = vmatprep.subr.bf16.mxu0 %v1256
  %4017 = vmatpush2.bf16.msra.mxu0 %v1255
  %4018 = vmatprep.subr.bf16.mxu0 %v1248
  %4019 = vmatpush2.bf16.msra.mxu0 %v1247
  %4020 = vmatprep.subr.bf16.mxu0 %v1240
  %4021 = vmatpush2.bf16.msra.mxu0 %v1239
  %4022 = vmatprep.subr.bf16.mxu0 %v1232
  %4023 = vmatpush2.bf16.msra.mxu0 %v1231
  %4024 = vmatprep.subr.bf16.mxu0 %v1224
  %4025 = vmatpush2.bf16.msra.mxu0 %v1223
  %4026 = vmatprep.subr.bf16.mxu0 %v1216
  %4027 = vmatpush2.bf16.msra.mxu0 %v1215
  %4028 = vmatprep.mubr.bf16.mxu0 %v3995
  %4029 = vmatmul.mubr.bf16.gmra.mxu0 %v3994
  %v4030 = vpop.f32.mrf.mxu0
  %v4031 = vadd.f32 0.0, %v4030
  %v4032 = vpop.f32.mrf.mxu0
  %v4033 = vadd.f32 0.0, %v4032
  %v4034 = vpop.f32.mrf.mxu0
  %v4035 = vpop.f32.mrf.mxu0
  %4036 = vdwg.mxu0
  %4037 = vmatprep.subr.bf16.mxu0 %v1210
  %4038 = vmatpush1.bf16.msra.mxu0 %v1209
  %4039 = vmatprep.subr.bf16.mxu0 %v1202
  %4040 = vmatpush1.bf16.msra.mxu0 %v1201
  %4041 = vmatprep.subr.bf16.mxu0 %v1194
  %4042 = vmatpush1.bf16.msra.mxu0 %v1193
  %4043 = vmatprep.subr.bf16.mxu0 %v1186
  %4044 = vmatpush1.bf16.msra.mxu0 %v1185
  %4045 = vmatprep.subr.bf16.mxu0 %v1178
  %4046 = vmatpush1.bf16.msra.mxu0 %v1177
  %4047 = vmatprep.subr.bf16.mxu0 %v1170
  %4048 = vmatpush1.bf16.msra.mxu0 %v1169
  %4049 = vmatprep.subr.bf16.mxu0 %v1162
  %4050 = vmatpush1.bf16.msra.mxu0 %v1161
  %4051 = vmatprep.subr.bf16.mxu0 %v1154
  %4052 = vmatpush1.bf16.msra.mxu0 %v1153
  %4053 = vmatprep.subr.bf16.mxu0 %v1274
  %4054 = vmatpush2.bf16.msra.mxu0 %v1273
  %4055 = vmatprep.subr.bf16.mxu0 %v1266
  %4056 = vmatpush2.bf16.msra.mxu0 %v1265
  %4057 = vmatprep.subr.bf16.mxu0 %v1258
  %4058 = vmatpush2.bf16.msra.mxu0 %v1257
  %4059 = vmatprep.subr.bf16.mxu0 %v1250
  %4060 = vmatpush2.bf16.msra.mxu0 %v1249
  %4061 = vmatprep.subr.bf16.mxu0 %v1242
  %4062 = vmatpush2.bf16.msra.mxu0 %v1241
  %4063 = vmatprep.subr.bf16.mxu0 %v1234
  %4064 = vmatpush2.bf16.msra.mxu0 %v1233
  %4065 = vmatprep.subr.bf16.mxu0 %v1226
  %4066 = vmatpush2.bf16.msra.mxu0 %v1225
  %4067 = vmatprep.subr.bf16.mxu0 %v1218
  %4068 = vmatpush2.bf16.msra.mxu0 %v1217
  %4069 = vmatprep.mubr.bf16.mxu0 %v3995
  %4070 = vmatmul.mubr.bf16.gmra.mxu0 %v3994
  %v4071 = vpop.f32.mrf.mxu0
  %v4072 = vadd.f32 0.0, %v4071
  %v4073 = vpop.f32.mrf.mxu0
  %v4074 = vadd.f32 0.0, %v4073
  %v4075 = vpop.f32.mrf.mxu0
  %v4076 = vpop.f32.mrf.mxu0
  %4077 = vdwg.mxu0
  %4078 = vmatprep.subr.bf16.mxu0 %v1212
  %4079 = vmatpush1.bf16.msra.mxu0 %v1211
  %4080 = vmatprep.subr.bf16.mxu0 %v1204
  %4081 = vmatpush1.bf16.msra.mxu0 %v1203
  %4082 = vmatprep.subr.bf16.mxu0 %v1196
  %4083 = vmatpush1.bf16.msra.mxu0 %v1195
  %4084 = vmatprep.subr.bf16.mxu0 %v1188
  %4085 = vmatpush1.bf16.msra.mxu0 %v1187
  %4086 = vmatprep.subr.bf16.mxu0 %v1180
  %4087 = vmatpush1.bf16.msra.mxu0 %v1179
  %4088 = vmatprep.subr.bf16.mxu0 %v1172
  %4089 = vmatpush1.bf16.msra.mxu0 %v1171
  %4090 = vmatprep.subr.bf16.mxu0 %v1164
  %4091 = vmatpush1.bf16.msra.mxu0 %v1163
  %4092 = vmatprep.subr.bf16.mxu0 %v1156
  %4093 = vmatpush1.bf16.msra.mxu0 %v1155
  %4094 = vmatprep.subr.bf16.mxu0 %v1276
  %4095 = vmatpush2.bf16.msra.mxu0 %v1275
  %4096 = vmatprep.subr.bf16.mxu0 %v1268
  %4097 = vmatpush2.bf16.msra.mxu0 %v1267
  %4098 = vmatprep.subr.bf16.mxu0 %v1260
  %4099 = vmatpush2.bf16.msra.mxu0 %v1259
  %4100 = vmatprep.subr.bf16.mxu0 %v1252
  %4101 = vmatpush2.bf16.msra.mxu0 %v1251
  %4102 = vmatprep.subr.bf16.mxu0 %v1244
  %4103 = vmatpush2.bf16.msra.mxu0 %v1243
  %4104 = vmatprep.subr.bf16.mxu0 %v1236
  %4105 = vmatpush2.bf16.msra.mxu0 %v1235
  %4106 = vmatprep.subr.bf16.mxu0 %v1228
  %4107 = vmatpush2.bf16.msra.mxu0 %v1227
  %4108 = vmatprep.subr.bf16.mxu0 %v1220
  %4109 = vmatpush2.bf16.msra.mxu0 %v1219
  %4110 = vmatprep.mubr.bf16.mxu0 %v3995
  %4111 = vmatmul.mubr.bf16.gmra.mxu0 %v3994
  %v4112 = vpop.f32.mrf.mxu0
  %v4113 = vadd.f32 0.0, %v4112
  %v4114 = vpop.f32.mrf.mxu0
  %v4115 = vadd.f32 0.0, %v4114
  %v4116 = vpop.f32.mrf.mxu0
  %v4117 = vpop.f32.mrf.mxu0
  %4118 = vdwg.mxu0
  %4119 = vmatprep.subr.bf16.mxu0 %v1214
  %4120 = vmatpush1.bf16.msra.mxu0 %v1213
  %4121 = vmatprep.subr.bf16.mxu0 %v1206
  %4122 = vmatpush1.bf16.msra.mxu0 %v1205
  %4123 = vmatprep.subr.bf16.mxu0 %v1198
  %4124 = vmatpush1.bf16.msra.mxu0 %v1197
  %4125 = vmatprep.subr.bf16.mxu0 %v1190
  %4126 = vmatpush1.bf16.msra.mxu0 %v1189
  %4127 = vmatprep.subr.bf16.mxu0 %v1182
  %4128 = vmatpush1.bf16.msra.mxu0 %v1181
  %4129 = vmatprep.subr.bf16.mxu0 %v1174
  %4130 = vmatpush1.bf16.msra.mxu0 %v1173
  %4131 = vmatprep.subr.bf16.mxu0 %v1166
  %4132 = vmatpush1.bf16.msra.mxu0 %v1165
  %4133 = vmatprep.subr.bf16.mxu0 %v1158
  %4134 = vmatpush1.bf16.msra.mxu0 %v1157
  %4135 = vmatprep.subr.bf16.mxu0 %v1278
  %4136 = vmatpush2.bf16.msra.mxu0 %v1277
  %4137 = vmatprep.subr.bf16.mxu0 %v1270
  %4138 = vmatpush2.bf16.msra.mxu0 %v1269
  %4139 = vmatprep.subr.bf16.mxu0 %v1262
  %4140 = vmatpush2.bf16.msra.mxu0 %v1261
  %4141 = vmatprep.subr.bf16.mxu0 %v1254
  %4142 = vmatpush2.bf16.msra.mxu0 %v1253
  %4143 = vmatprep.subr.bf16.mxu0 %v1246
  %4144 = vmatpush2.bf16.msra.mxu0 %v1245
  %4145 = vmatprep.subr.bf16.mxu0 %v1238
  %4146 = vmatpush2.bf16.msra.mxu0 %v1237
  %4147 = vmatprep.subr.bf16.mxu0 %v1230
  %4148 = vmatpush2.bf16.msra.mxu0 %v1229
  %4149 = vmatprep.subr.bf16.mxu0 %v1222
  %4150 = vmatpush2.bf16.msra.mxu0 %v1221
  %4151 = vmatprep.mubr.bf16.mxu0 %v3995
  %4152 = vmatmul.mubr.bf16.gmra.mxu0 %v3994
  %v4153 = vpop.f32.mrf.mxu0
  %v4154 = vadd.f32 0.0, %v4153
  %v4155 = vpop.f32.mrf.mxu0
  %v4156 = vadd.f32 0.0, %v4155
  %v4157 = vpop.f32.mrf.mxu0
  %v4158 = vpop.f32.mrf.mxu0
  %4159 = vdwg.mxu0
  %v4160 = vld [vmem:[#allocation2 + $0x1a0] sm:$0xff]
  %v4161 = vld [vmem:[#allocation2 + $0x1a8] sm:$0xff]
  %v4162 = vld [vmem:[#allocation2 + $0x1b0] sm:$0xff]
  %v4163 = vld [vmem:[#allocation2 + $0x1b8] sm:$0xff]
  %v4164 = vadd.f32 %v4031, %v4160
  %v4165 = vadd.f32 %v4033, %v4161
  %v4166 = vadd.f32 %v4072, %v4162
  %v4167 = vadd.f32 %v4074, %v4163
  %v4168 = vadd.f32 %v4113, %v1583
  %v4169 = vadd.f32 %v4115, %v1587
  %v4170 = vadd.f32 %v4154, %v1591
  %v4171 = vadd.f32 %v4156, %v1595
  %v4172 = vmul.f32 %v4164, 0.5
  %v4173 = vtanh.pop %v4172
  %v4174 = vadd.f32 %v4173, 1.0
  %v4175 = vmul.f32 %v4174, 0.5
  %v4176 = vmul.f32 %v4165, 0.5
  %v4177 = vtanh.pop %v4176
  %v4178 = vadd.f32 %v4177, 1.0
  %v4179 = vmul.f32 %v4178, 0.5
  %v4180 = vtanh.pop %v4166
  %v4181 = vmul.f32 %v4167, 0.5
  %v4182 = vtanh.pop %v4181
  %v4183 = vadd.f32 %v4182, 1.0
  %v4184 = vmul.f32 %v4183, 0.5
  %v4185 = vmul.f32 %v4179, %v3973
  %v4186 = vmul.f32 %v4175, %v4180
  %v4187 = vadd.f32 %v4185, %v4186
  %v4188 = vtanh.pop %v4187
  %v4189 = vmul.f32 %v4184, %v4188
  %v4190 = vmul.f32 %v4168, 0.5
  %v4191 = vtanh.pop %v4190
  %v4192 = vadd.f32 %v4191, 1.0
  %v4193 = vmul.f32 %v4192, 0.5
  %v4194 = vmul.f32 %v4169, 0.5
  %v4195 = vtanh.pop %v4194
  %v4196 = vadd.f32 %v4195, 1.0
  %v4197 = vmul.f32 %v4196, 0.5
  %v4198 = vtanh.pop %v4170
  %v4199 = vmul.f32 %v4171, 0.5
  %v4200 = vtanh.pop %v4199
  %v4201 = vadd.f32 %v4200, 1.0
  %v4202 = vmul.f32 %v4201, 0.5
  %v4203 = vmul.f32 %v4197, %v3991
  %v4204 = vmul.f32 %v4193, %v4198
  %v4205 = vadd.f32 %v4203, %v4204
  %v4206 = vtanh.pop %v4205
  %v4207 = vmul.f32 %v4202, %v4206
  %v4208 = vpack.c.bf16 %v4189, %v4189
  %v4209 = vpack.c.bf16 %v4207, %v4207
  %4210 = vmatprep.subr.bf16.mxu0 %v1208
  %4211 = vmatpush1.bf16.msra.mxu0 %v1207
  %4212 = vmatprep.subr.bf16.mxu0 %v1200
  %4213 = vmatpush1.bf16.msra.mxu0 %v1199
  %4214 = vmatprep.subr.bf16.mxu0 %v1192
  %4215 = vmatpush1.bf16.msra.mxu0 %v1191
  %4216 = vmatprep.subr.bf16.mxu0 %v1184
  %4217 = vmatpush1.bf16.msra.mxu0 %v1183
  %4218 = vmatprep.subr.bf16.mxu0 %v1176
  %4219 = vmatpush1.bf16.msra.mxu0 %v1175
  %4220 = vmatprep.subr.bf16.mxu0 %v1168
  %4221 = vmatpush1.bf16.msra.mxu0 %v1167
  %4222 = vmatprep.subr.bf16.mxu0 %v1160
  %4223 = vmatpush1.bf16.msra.mxu0 %v1159
  %4224 = vmatprep.subr.bf16.mxu0 %v1152
  %4225 = vmatpush1.bf16.msra.mxu0 %v1151
  %4226 = vmatprep.subr.bf16.mxu0 %v1272
  %4227 = vmatpush2.bf16.msra.mxu0 %v1271
  %4228 = vmatprep.subr.bf16.mxu0 %v1264
  %4229 = vmatpush2.bf16.msra.mxu0 %v1263
  %4230 = vmatprep.subr.bf16.mxu0 %v1256
  %4231 = vmatpush2.bf16.msra.mxu0 %v1255
  %4232 = vmatprep.subr.bf16.mxu0 %v1248
  %4233 = vmatpush2.bf16.msra.mxu0 %v1247
  %4234 = vmatprep.subr.bf16.mxu0 %v1240
  %4235 = vmatpush2.bf16.msra.mxu0 %v1239
  %4236 = vmatprep.subr.bf16.mxu0 %v1232
  %4237 = vmatpush2.bf16.msra.mxu0 %v1231
  %4238 = vmatprep.subr.bf16.mxu0 %v1224
  %4239 = vmatpush2.bf16.msra.mxu0 %v1223
  %4240 = vmatprep.subr.bf16.mxu0 %v1216
  %4241 = vmatpush2.bf16.msra.mxu0 %v1215
  %4242 = vmatprep.mubr.bf16.mxu0 %v4209
  %4243 = vmatmul.mubr.bf16.gmra.mxu0 %v4208
  %v4244 = vpop.f32.mrf.mxu0
  %v4245 = vadd.f32 0.0, %v4244
  %v4246 = vpop.f32.mrf.mxu0
  %v4247 = vadd.f32 0.0, %v4246
  %v4248 = vpop.f32.mrf.mxu0
  %v4249 = vpop.f32.mrf.mxu0
  %4250 = vdwg.mxu0
  %4251 = vmatprep.subr.bf16.mxu0 %v1210
  %4252 = vmatpush1.bf16.msra.mxu0 %v1209
  %4253 = vmatprep.subr.bf16.mxu0 %v1202
  %4254 = vmatpush1.bf16.msra.mxu0 %v1201
  %4255 = vmatprep.subr.bf16.mxu0 %v1194
  %4256 = vmatpush1.bf16.msra.mxu0 %v1193
  %4257 = vmatprep.subr.bf16.mxu0 %v1186
  %4258 = vmatpush1.bf16.msra.mxu0 %v1185
  %4259 = vmatprep.subr.bf16.mxu0 %v1178
  %4260 = vmatpush1.bf16.msra.mxu0 %v1177
  %4261 = vmatprep.subr.bf16.mxu0 %v1170
  %4262 = vmatpush1.bf16.msra.mxu0 %v1169
  %4263 = vmatprep.subr.bf16.mxu0 %v1162
  %4264 = vmatpush1.bf16.msra.mxu0 %v1161
  %4265 = vmatprep.subr.bf16.mxu0 %v1154
  %4266 = vmatpush1.bf16.msra.mxu0 %v1153
  %4267 = vmatprep.subr.bf16.mxu0 %v1274
  %4268 = vmatpush2.bf16.msra.mxu0 %v1273
  %4269 = vmatprep.subr.bf16.mxu0 %v1266
  %4270 = vmatpush2.bf16.msra.mxu0 %v1265
  %4271 = vmatprep.subr.bf16.mxu0 %v1258
  %4272 = vmatpush2.bf16.msra.mxu0 %v1257
  %4273 = vmatprep.subr.bf16.mxu0 %v1250
  %4274 = vmatpush2.bf16.msra.mxu0 %v1249
  %4275 = vmatprep.subr.bf16.mxu0 %v1242
  %4276 = vmatpush2.bf16.msra.mxu0 %v1241
  %4277 = vmatprep.subr.bf16.mxu0 %v1234
  %4278 = vmatpush2.bf16.msra.mxu0 %v1233
  %4279 = vmatprep.subr.bf16.mxu0 %v1226
  %4280 = vmatpush2.bf16.msra.mxu0 %v1225
  %4281 = vmatprep.subr.bf16.mxu0 %v1218
  %4282 = vmatpush2.bf16.msra.mxu0 %v1217
  %4283 = vmatprep.mubr.bf16.mxu0 %v4209
  %4284 = vmatmul.mubr.bf16.gmra.mxu0 %v4208
  %v4285 = vpop.f32.mrf.mxu0
  %v4286 = vadd.f32 0.0, %v4285
  %v4287 = vpop.f32.mrf.mxu0
  %v4288 = vadd.f32 0.0, %v4287
  %v4289 = vpop.f32.mrf.mxu0
  %v4290 = vpop.f32.mrf.mxu0
  %4291 = vdwg.mxu0
  %4292 = vmatprep.subr.bf16.mxu0 %v1212
  %4293 = vmatpush1.bf16.msra.mxu0 %v1211
  %4294 = vmatprep.subr.bf16.mxu0 %v1204
  %4295 = vmatpush1.bf16.msra.mxu0 %v1203
  %4296 = vmatprep.subr.bf16.mxu0 %v1196
  %4297 = vmatpush1.bf16.msra.mxu0 %v1195
  %4298 = vmatprep.subr.bf16.mxu0 %v1188
  %4299 = vmatpush1.bf16.msra.mxu0 %v1187
  %4300 = vmatprep.subr.bf16.mxu0 %v1180
  %4301 = vmatpush1.bf16.msra.mxu0 %v1179
  %4302 = vmatprep.subr.bf16.mxu0 %v1172
  %4303 = vmatpush1.bf16.msra.mxu0 %v1171
  %4304 = vmatprep.subr.bf16.mxu0 %v1164
  %4305 = vmatpush1.bf16.msra.mxu0 %v1163
  %4306 = vmatprep.subr.bf16.mxu0 %v1156
  %4307 = vmatpush1.bf16.msra.mxu0 %v1155
  %4308 = vmatprep.subr.bf16.mxu0 %v1276
  %4309 = vmatpush2.bf16.msra.mxu0 %v1275
  %4310 = vmatprep.subr.bf16.mxu0 %v1268
  %4311 = vmatpush2.bf16.msra.mxu0 %v1267
  %4312 = vmatprep.subr.bf16.mxu0 %v1260
  %4313 = vmatpush2.bf16.msra.mxu0 %v1259
  %4314 = vmatprep.subr.bf16.mxu0 %v1252
  %4315 = vmatpush2.bf16.msra.mxu0 %v1251
  %4316 = vmatprep.subr.bf16.mxu0 %v1244
  %4317 = vmatpush2.bf16.msra.mxu0 %v1243
  %4318 = vmatprep.subr.bf16.mxu0 %v1236
  %4319 = vmatpush2.bf16.msra.mxu0 %v1235
  %4320 = vmatprep.subr.bf16.mxu0 %v1228
  %4321 = vmatpush2.bf16.msra.mxu0 %v1227
  %4322 = vmatprep.subr.bf16.mxu0 %v1220
  %4323 = vmatpush2.bf16.msra.mxu0 %v1219
  %4324 = vmatprep.mubr.bf16.mxu0 %v4209
  %4325 = vmatmul.mubr.bf16.gmra.mxu0 %v4208
  %v4326 = vpop.f32.mrf.mxu0
  %v4327 = vadd.f32 0.0, %v4326
  %v4328 = vpop.f32.mrf.mxu0
  %v4329 = vadd.f32 0.0, %v4328
  %v4330 = vpop.f32.mrf.mxu0
  %v4331 = vpop.f32.mrf.mxu0
  %4332 = vdwg.mxu0
  %4333 = vmatprep.subr.bf16.mxu0 %v1214
  %4334 = vmatpush1.bf16.msra.mxu0 %v1213
  %4335 = vmatprep.subr.bf16.mxu0 %v1206
  %4336 = vmatpush1.bf16.msra.mxu0 %v1205
  %4337 = vmatprep.subr.bf16.mxu0 %v1198
  %4338 = vmatpush1.bf16.msra.mxu0 %v1197
  %4339 = vmatprep.subr.bf16.mxu0 %v1190
  %4340 = vmatpush1.bf16.msra.mxu0 %v1189
  %4341 = vmatprep.subr.bf16.mxu0 %v1182
  %4342 = vmatpush1.bf16.msra.mxu0 %v1181
  %4343 = vmatprep.subr.bf16.mxu0 %v1174
  %4344 = vmatpush1.bf16.msra.mxu0 %v1173
  %4345 = vmatprep.subr.bf16.mxu0 %v1166
  %4346 = vmatpush1.bf16.msra.mxu0 %v1165
  %4347 = vmatprep.subr.bf16.mxu0 %v1158
  %4348 = vmatpush1.bf16.msra.mxu0 %v1157
  %4349 = vmatprep.subr.bf16.mxu0 %v1278
  %4350 = vmatpush2.bf16.msra.mxu0 %v1277
  %4351 = vmatprep.subr.bf16.mxu0 %v1270
  %4352 = vmatpush2.bf16.msra.mxu0 %v1269
  %4353 = vmatprep.subr.bf16.mxu0 %v1262
  %4354 = vmatpush2.bf16.msra.mxu0 %v1261
  %4355 = vmatprep.subr.bf16.mxu0 %v1254
  %4356 = vmatpush2.bf16.msra.mxu0 %v1253
  %4357 = vmatprep.subr.bf16.mxu0 %v1246
  %4358 = vmatpush2.bf16.msra.mxu0 %v1245
  %4359 = vmatprep.subr.bf16.mxu0 %v1238
  %4360 = vmatpush2.bf16.msra.mxu0 %v1237
  %4361 = vmatprep.subr.bf16.mxu0 %v1230
  %4362 = vmatpush2.bf16.msra.mxu0 %v1229
  %4363 = vmatprep.subr.bf16.mxu0 %v1222
  %4364 = vmatpush2.bf16.msra.mxu0 %v1221
  %4365 = vmatprep.mubr.bf16.mxu0 %v4209
  %4366 = vmatmul.mubr.bf16.gmra.mxu0 %v4208
  %v4367 = vpop.f32.mrf.mxu0
  %v4368 = vadd.f32 0.0, %v4367
  %v4369 = vpop.f32.mrf.mxu0
  %v4370 = vadd.f32 0.0, %v4369
  %v4371 = vpop.f32.mrf.mxu0
  %v4372 = vpop.f32.mrf.mxu0
  %4373 = vdwg.mxu0
  %v4374 = vld [vmem:[#allocation2 + $0x1c0] sm:$0xff]
  %v4375 = vld [vmem:[#allocation2 + $0x1c8] sm:$0xff]
  %v4376 = vld [vmem:[#allocation2 + $0x1d0] sm:$0xff]
  %v4377 = vld [vmem:[#allocation2 + $0x1d8] sm:$0xff]
  %v4378 = vadd.f32 %v4245, %v4374
  %v4379 = vadd.f32 %v4247, %v4375
  %v4380 = vadd.f32 %v4286, %v4376
  %v4381 = vadd.f32 %v4288, %v4377
  %v4382 = vadd.f32 %v4327, %v1583
  %v4383 = vadd.f32 %v4329, %v1587
  %v4384 = vadd.f32 %v4368, %v1591
  %v4385 = vadd.f32 %v4370, %v1595
  %v4386 = vmul.f32 %v4378, 0.5
  %v4387 = vtanh.pop %v4386
  %v4388 = vadd.f32 %v4387, 1.0
  %v4389 = vmul.f32 %v4388, 0.5
  %v4390 = vmul.f32 %v4379, 0.5
  %v4391 = vtanh.pop %v4390
  %v4392 = vadd.f32 %v4391, 1.0
  %v4393 = vmul.f32 %v4392, 0.5
  %v4394 = vtanh.pop %v4380
  %v4395 = vmul.f32 %v4381, 0.5
  %v4396 = vtanh.pop %v4395
  %v4397 = vadd.f32 %v4396, 1.0
  %v4398 = vmul.f32 %v4397, 0.5
  %v4399 = vmul.f32 %v4393, %v4187
  %v4400 = vmul.f32 %v4389, %v4394
  %v4401 = vadd.f32 %v4399, %v4400
  %v4402 = vtanh.pop %v4401
  %v4403 = vmul.f32 %v4398, %v4402
  %v4404 = vmul.f32 %v4382, 0.5
  %v4405 = vtanh.pop %v4404
  %v4406 = vadd.f32 %v4405, 1.0
  %v4407 = vmul.f32 %v4406, 0.5
  %v4408 = vmul.f32 %v4383, 0.5
  %v4409 = vtanh.pop %v4408
  %v4410 = vadd.f32 %v4409, 1.0
  %v4411 = vmul.f32 %v4410, 0.5
  %v4412 = vtanh.pop %v4384
  %v4413 = vmul.f32 %v4385, 0.5
  %v4414 = vtanh.pop %v4413
  %v4415 = vadd.f32 %v4414, 1.0
  %v4416 = vmul.f32 %v4415, 0.5
  %v4417 = vmul.f32 %v4411, %v4205
  %v4418 = vmul.f32 %v4407, %v4412
  %v4419 = vadd.f32 %v4417, %v4418
  %v4420 = vtanh.pop %v4419
  %v4421 = vmul.f32 %v4416, %v4420
  %v4422 = vpack.c.bf16 %v4403, %v4403
  %v4423 = vpack.c.bf16 %v4421, %v4421
  %4424 = vmatprep.subr.bf16.mxu0 %v1208
  %4425 = vmatpush1.bf16.msra.mxu0 %v1207
  %4426 = vmatprep.subr.bf16.mxu0 %v1200
  %4427 = vmatpush1.bf16.msra.mxu0 %v1199
  %4428 = vmatprep.subr.bf16.mxu0 %v1192
  %4429 = vmatpush1.bf16.msra.mxu0 %v1191
  %4430 = vmatprep.subr.bf16.mxu0 %v1184
  %4431 = vmatpush1.bf16.msra.mxu0 %v1183
  %4432 = vmatprep.subr.bf16.mxu0 %v1176
  %4433 = vmatpush1.bf16.msra.mxu0 %v1175
  %4434 = vmatprep.subr.bf16.mxu0 %v1168
  %4435 = vmatpush1.bf16.msra.mxu0 %v1167
  %4436 = vmatprep.subr.bf16.mxu0 %v1160
  %4437 = vmatpush1.bf16.msra.mxu0 %v1159
  %4438 = vmatprep.subr.bf16.mxu0 %v1152
  %4439 = vmatpush1.bf16.msra.mxu0 %v1151
  %4440 = vmatprep.subr.bf16.mxu0 %v1272
  %4441 = vmatpush2.bf16.msra.mxu0 %v1271
  %4442 = vmatprep.subr.bf16.mxu0 %v1264
  %4443 = vmatpush2.bf16.msra.mxu0 %v1263
  %4444 = vmatprep.subr.bf16.mxu0 %v1256
  %4445 = vmatpush2.bf16.msra.mxu0 %v1255
  %4446 = vmatprep.subr.bf16.mxu0 %v1248
  %4447 = vmatpush2.bf16.msra.mxu0 %v1247
  %4448 = vmatprep.subr.bf16.mxu0 %v1240
  %4449 = vmatpush2.bf16.msra.mxu0 %v1239
  %4450 = vmatprep.subr.bf16.mxu0 %v1232
  %4451 = vmatpush2.bf16.msra.mxu0 %v1231
  %4452 = vmatprep.subr.bf16.mxu0 %v1224
  %4453 = vmatpush2.bf16.msra.mxu0 %v1223
  %4454 = vmatprep.subr.bf16.mxu0 %v1216
  %4455 = vmatpush2.bf16.msra.mxu0 %v1215
  %4456 = vmatprep.mubr.bf16.mxu0 %v4423
  %4457 = vmatmul.mubr.bf16.gmra.mxu0 %v4422
  %v4458 = vpop.f32.mrf.mxu0
  %v4459 = vadd.f32 0.0, %v4458
  %v4460 = vpop.f32.mrf.mxu0
  %v4461 = vadd.f32 0.0, %v4460
  %v4462 = vpop.f32.mrf.mxu0
  %v4463 = vpop.f32.mrf.mxu0
  %4464 = vdwg.mxu0
  %4465 = vmatprep.subr.bf16.mxu0 %v1210
  %4466 = vmatpush1.bf16.msra.mxu0 %v1209
  %4467 = vmatprep.subr.bf16.mxu0 %v1202
  %4468 = vmatpush1.bf16.msra.mxu0 %v1201
  %4469 = vmatprep.subr.bf16.mxu0 %v1194
  %4470 = vmatpush1.bf16.msra.mxu0 %v1193
  %4471 = vmatprep.subr.bf16.mxu0 %v1186
  %4472 = vmatpush1.bf16.msra.mxu0 %v1185
  %4473 = vmatprep.subr.bf16.mxu0 %v1178
  %4474 = vmatpush1.bf16.msra.mxu0 %v1177
  %4475 = vmatprep.subr.bf16.mxu0 %v1170
  %4476 = vmatpush1.bf16.msra.mxu0 %v1169
  %4477 = vmatprep.subr.bf16.mxu0 %v1162
  %4478 = vmatpush1.bf16.msra.mxu0 %v1161
  %4479 = vmatprep.subr.bf16.mxu0 %v1154
  %4480 = vmatpush1.bf16.msra.mxu0 %v1153
  %4481 = vmatprep.subr.bf16.mxu0 %v1274
  %4482 = vmatpush2.bf16.msra.mxu0 %v1273
  %4483 = vmatprep.subr.bf16.mxu0 %v1266
  %4484 = vmatpush2.bf16.msra.mxu0 %v1265
  %4485 = vmatprep.subr.bf16.mxu0 %v1258
  %4486 = vmatpush2.bf16.msra.mxu0 %v1257
  %4487 = vmatprep.subr.bf16.mxu0 %v1250
  %4488 = vmatpush2.bf16.msra.mxu0 %v1249
  %4489 = vmatprep.subr.bf16.mxu0 %v1242
  %4490 = vmatpush2.bf16.msra.mxu0 %v1241
  %4491 = vmatprep.subr.bf16.mxu0 %v1234
  %4492 = vmatpush2.bf16.msra.mxu0 %v1233
  %4493 = vmatprep.subr.bf16.mxu0 %v1226
  %4494 = vmatpush2.bf16.msra.mxu0 %v1225
  %4495 = vmatprep.subr.bf16.mxu0 %v1218
  %4496 = vmatpush2.bf16.msra.mxu0 %v1217
  %4497 = vmatprep.mubr.bf16.mxu0 %v4423
  %4498 = vmatmul.mubr.bf16.gmra.mxu0 %v4422
  %v4499 = vpop.f32.mrf.mxu0
  %v4500 = vadd.f32 0.0, %v4499
  %v4501 = vpop.f32.mrf.mxu0
  %v4502 = vadd.f32 0.0, %v4501
  %v4503 = vpop.f32.mrf.mxu0
  %v4504 = vpop.f32.mrf.mxu0
  %4505 = vdwg.mxu0
  %4506 = vmatprep.subr.bf16.mxu0 %v1212
  %4507 = vmatpush1.bf16.msra.mxu0 %v1211
  %4508 = vmatprep.subr.bf16.mxu0 %v1204
  %4509 = vmatpush1.bf16.msra.mxu0 %v1203
  %4510 = vmatprep.subr.bf16.mxu0 %v1196
  %4511 = vmatpush1.bf16.msra.mxu0 %v1195
  %4512 = vmatprep.subr.bf16.mxu0 %v1188
  %4513 = vmatpush1.bf16.msra.mxu0 %v1187
  %4514 = vmatprep.subr.bf16.mxu0 %v1180
  %4515 = vmatpush1.bf16.msra.mxu0 %v1179
  %4516 = vmatprep.subr.bf16.mxu0 %v1172
  %4517 = vmatpush1.bf16.msra.mxu0 %v1171
  %4518 = vmatprep.subr.bf16.mxu0 %v1164
  %4519 = vmatpush1.bf16.msra.mxu0 %v1163
  %4520 = vmatprep.subr.bf16.mxu0 %v1156
  %4521 = vmatpush1.bf16.msra.mxu0 %v1155
  %4522 = vmatprep.subr.bf16.mxu0 %v1276
  %4523 = vmatpush2.bf16.msra.mxu0 %v1275
  %4524 = vmatprep.subr.bf16.mxu0 %v1268
  %4525 = vmatpush2.bf16.msra.mxu0 %v1267
  %4526 = vmatprep.subr.bf16.mxu0 %v1260
  %4527 = vmatpush2.bf16.msra.mxu0 %v1259
  %4528 = vmatprep.subr.bf16.mxu0 %v1252
  %4529 = vmatpush2.bf16.msra.mxu0 %v1251
  %4530 = vmatprep.subr.bf16.mxu0 %v1244
  %4531 = vmatpush2.bf16.msra.mxu0 %v1243
  %4532 = vmatprep.subr.bf16.mxu0 %v1236
  %4533 = vmatpush2.bf16.msra.mxu0 %v1235
  %4534 = vmatprep.subr.bf16.mxu0 %v1228
  %4535 = vmatpush2.bf16.msra.mxu0 %v1227
  %4536 = vmatprep.subr.bf16.mxu0 %v1220
  %4537 = vmatpush2.bf16.msra.mxu0 %v1219
  %4538 = vmatprep.mubr.bf16.mxu0 %v4423
  %4539 = vmatmul.mubr.bf16.gmra.mxu0 %v4422
  %v4540 = vpop.f32.mrf.mxu0
  %v4541 = vadd.f32 0.0, %v4540
  %v4542 = vpop.f32.mrf.mxu0
  %v4543 = vadd.f32 0.0, %v4542
  %v4544 = vpop.f32.mrf.mxu0
  %v4545 = vpop.f32.mrf.mxu0
  %4546 = vdwg.mxu0
  %4547 = vmatprep.subr.bf16.mxu0 %v1214
  %4548 = vmatpush1.bf16.msra.mxu0 %v1213
  %4549 = vmatprep.subr.bf16.mxu0 %v1206
  %4550 = vmatpush1.bf16.msra.mxu0 %v1205
  %4551 = vmatprep.subr.bf16.mxu0 %v1198
  %4552 = vmatpush1.bf16.msra.mxu0 %v1197
  %4553 = vmatprep.subr.bf16.mxu0 %v1190
  %4554 = vmatpush1.bf16.msra.mxu0 %v1189
  %4555 = vmatprep.subr.bf16.mxu0 %v1182
  %4556 = vmatpush1.bf16.msra.mxu0 %v1181
  %4557 = vmatprep.subr.bf16.mxu0 %v1174
  %4558 = vmatpush1.bf16.msra.mxu0 %v1173
  %4559 = vmatprep.subr.bf16.mxu0 %v1166
  %4560 = vmatpush1.bf16.msra.mxu0 %v1165
  %4561 = vmatprep.subr.bf16.mxu0 %v1158
  %4562 = vmatpush1.bf16.msra.mxu0 %v1157
  %4563 = vmatprep.subr.bf16.mxu0 %v1278
  %4564 = vmatpush2.bf16.msra.mxu0 %v1277
  %4565 = vmatprep.subr.bf16.mxu0 %v1270
  %4566 = vmatpush2.bf16.msra.mxu0 %v1269
  %4567 = vmatprep.subr.bf16.mxu0 %v1262
  %4568 = vmatpush2.bf16.msra.mxu0 %v1261
  %4569 = vmatprep.subr.bf16.mxu0 %v1254
  %4570 = vmatpush2.bf16.msra.mxu0 %v1253
  %4571 = vmatprep.subr.bf16.mxu0 %v1246
  %4572 = vmatpush2.bf16.msra.mxu0 %v1245
  %4573 = vmatprep.subr.bf16.mxu0 %v1238
  %4574 = vmatpush2.bf16.msra.mxu0 %v1237
  %4575 = vmatprep.subr.bf16.mxu0 %v1230
  %4576 = vmatpush2.bf16.msra.mxu0 %v1229
  %4577 = vmatprep.subr.bf16.mxu0 %v1222
  %4578 = vmatpush2.bf16.msra.mxu0 %v1221
  %4579 = vmatprep.mubr.bf16.mxu0 %v4423
  %4580 = vmatmul.mubr.bf16.gmra.mxu0 %v4422
  %v4581 = vpop.f32.mrf.mxu0
  %v4582 = vadd.f32 0.0, %v4581
  %v4583 = vpop.f32.mrf.mxu0
  %v4584 = vadd.f32 0.0, %v4583
  %v4585 = vpop.f32.mrf.mxu0
  %v4586 = vpop.f32.mrf.mxu0
  %4587 = vdwg.mxu0
  %v4588 = vld [vmem:[#allocation2 + $0x1e0] sm:$0xff]
  %v4589 = vld [vmem:[#allocation2 + $0x1e8] sm:$0xff]
  %v4590 = vld [vmem:[#allocation2 + $0x1f0] sm:$0xff]
  %v4591 = vld [vmem:[#allocation2 + $0x1f8] sm:$0xff]
  %v4592 = vadd.f32 %v4459, %v4588
  %v4593 = vadd.f32 %v4461, %v4589
  %v4594 = vadd.f32 %v4500, %v4590
  %v4595 = vadd.f32 %v4502, %v4591
  %v4596 = vadd.f32 %v4541, %v1583
  %v4597 = vadd.f32 %v4543, %v1587
  %v4598 = vadd.f32 %v4582, %v1591
  %v4599 = vadd.f32 %v4584, %v1595
  %v4600 = vmul.f32 %v4592, 0.5
  %v4601 = vtanh.pop %v4600
  %v4602 = vadd.f32 %v4601, 1.0
  %v4603 = vmul.f32 %v4602, 0.5
  %v4604 = vmul.f32 %v4593, 0.5
  %v4605 = vtanh.pop %v4604
  %v4606 = vadd.f32 %v4605, 1.0
  %v4607 = vmul.f32 %v4606, 0.5
  %v4608 = vtanh.pop %v4594
  %v4609 = vmul.f32 %v4595, 0.5
  %v4610 = vtanh.pop %v4609
  %v4611 = vadd.f32 %v4610, 1.0
  %v4612 = vmul.f32 %v4611, 0.5
  %v4613 = vmul.f32 %v4607, %v4401
  %v4614 = vmul.f32 %v4603, %v4608
  %v4615 = vadd.f32 %v4613, %v4614
  %v4616 = vtanh.pop %v4615
  %v4617 = vmul.f32 %v4612, %v4616
  %v4618 = vmul.f32 %v4596, 0.5
  %v4619 = vtanh.pop %v4618
  %v4620 = vadd.f32 %v4619, 1.0
  %v4621 = vmul.f32 %v4620, 0.5
  %v4622 = vmul.f32 %v4597, 0.5
  %v4623 = vtanh.pop %v4622
  %v4624 = vadd.f32 %v4623, 1.0
  %v4625 = vmul.f32 %v4624, 0.5
  %v4626 = vtanh.pop %v4598
  %v4627 = vmul.f32 %v4599, 0.5
  %v4628 = vtanh.pop %v4627
  %v4629 = vadd.f32 %v4628, 1.0
  %v4630 = vmul.f32 %v4629, 0.5
  %v4631 = vmul.f32 %v4625, %v4419
  %v4632 = vmul.f32 %v4621, %v4626
  %v4633 = vadd.f32 %v4631, %v4632
  %v4634 = vtanh.pop %v4633
  %v4635 = vmul.f32 %v4630, %v4634
  %v4636 = vpack.c.bf16 %v4617, %v4617
  %v4637 = vpack.c.bf16 %v4635, %v4635
  %4638 = vmatprep.subr.bf16.mxu0 %v1208
  %4639 = vmatpush1.bf16.msra.mxu0 %v1207
  %4640 = vmatprep.subr.bf16.mxu0 %v1200
  %4641 = vmatpush1.bf16.msra.mxu0 %v1199
  %4642 = vmatprep.subr.bf16.mxu0 %v1192
  %4643 = vmatpush1.bf16.msra.mxu0 %v1191
  %4644 = vmatprep.subr.bf16.mxu0 %v1184
  %4645 = vmatpush1.bf16.msra.mxu0 %v1183
  %4646 = vmatprep.subr.bf16.mxu0 %v1176
  %4647 = vmatpush1.bf16.msra.mxu0 %v1175
  %4648 = vmatprep.subr.bf16.mxu0 %v1168
  %4649 = vmatpush1.bf16.msra.mxu0 %v1167
  %4650 = vmatprep.subr.bf16.mxu0 %v1160
  %4651 = vmatpush1.bf16.msra.mxu0 %v1159
  %4652 = vmatprep.subr.bf16.mxu0 %v1152
  %4653 = vmatpush1.bf16.msra.mxu0 %v1151
  %4654 = vmatprep.subr.bf16.mxu0 %v1272
  %4655 = vmatpush2.bf16.msra.mxu0 %v1271
  %4656 = vmatprep.subr.bf16.mxu0 %v1264
  %4657 = vmatpush2.bf16.msra.mxu0 %v1263
  %4658 = vmatprep.subr.bf16.mxu0 %v1256
  %4659 = vmatpush2.bf16.msra.mxu0 %v1255
  %4660 = vmatprep.subr.bf16.mxu0 %v1248
  %4661 = vmatpush2.bf16.msra.mxu0 %v1247
  %4662 = vmatprep.subr.bf16.mxu0 %v1240
  %4663 = vmatpush2.bf16.msra.mxu0 %v1239
  %4664 = vmatprep.subr.bf16.mxu0 %v1232
  %4665 = vmatpush2.bf16.msra.mxu0 %v1231
  %4666 = vmatprep.subr.bf16.mxu0 %v1224
  %4667 = vmatpush2.bf16.msra.mxu0 %v1223
  %4668 = vmatprep.subr.bf16.mxu0 %v1216
  %4669 = vmatpush2.bf16.msra.mxu0 %v1215
  %4670 = vmatprep.mubr.bf16.mxu0 %v4637
  %4671 = vmatmul.mubr.bf16.gmra.mxu0 %v4636
  %v4672 = vpop.f32.mrf.mxu0
  %v4673 = vadd.f32 0.0, %v4672
  %v4674 = vpop.f32.mrf.mxu0
  %v4675 = vadd.f32 0.0, %v4674
  %v4676 = vpop.f32.mrf.mxu0
  %v4677 = vpop.f32.mrf.mxu0
  %4678 = vdwg.mxu0
  %4679 = vmatprep.subr.bf16.mxu0 %v1210
  %4680 = vmatpush1.bf16.msra.mxu0 %v1209
  %4681 = vmatprep.subr.bf16.mxu0 %v1202
  %4682 = vmatpush1.bf16.msra.mxu0 %v1201
  %4683 = vmatprep.subr.bf16.mxu0 %v1194
  %4684 = vmatpush1.bf16.msra.mxu0 %v1193
  %4685 = vmatprep.subr.bf16.mxu0 %v1186
  %4686 = vmatpush1.bf16.msra.mxu0 %v1185
  %4687 = vmatprep.subr.bf16.mxu0 %v1178
  %4688 = vmatpush1.bf16.msra.mxu0 %v1177
  %4689 = vmatprep.subr.bf16.mxu0 %v1170
  %4690 = vmatpush1.bf16.msra.mxu0 %v1169
  %4691 = vmatprep.subr.bf16.mxu0 %v1162
  %4692 = vmatpush1.bf16.msra.mxu0 %v1161
  %4693 = vmatprep.subr.bf16.mxu0 %v1154
  %4694 = vmatpush1.bf16.msra.mxu0 %v1153
  %4695 = vmatprep.subr.bf16.mxu0 %v1274
  %4696 = vmatpush2.bf16.msra.mxu0 %v1273
  %4697 = vmatprep.subr.bf16.mxu0 %v1266
  %4698 = vmatpush2.bf16.msra.mxu0 %v1265
  %4699 = vmatprep.subr.bf16.mxu0 %v1258
  %4700 = vmatpush2.bf16.msra.mxu0 %v1257
  %4701 = vmatprep.subr.bf16.mxu0 %v1250
  %4702 = vmatpush2.bf16.msra.mxu0 %v1249
  %4703 = vmatprep.subr.bf16.mxu0 %v1242
  %4704 = vmatpush2.bf16.msra.mxu0 %v1241
  %4705 = vmatprep.subr.bf16.mxu0 %v1234
  %4706 = vmatpush2.bf16.msra.mxu0 %v1233
  %4707 = vmatprep.subr.bf16.mxu0 %v1226
  %4708 = vmatpush2.bf16.msra.mxu0 %v1225
  %4709 = vmatprep.subr.bf16.mxu0 %v1218
  %4710 = vmatpush2.bf16.msra.mxu0 %v1217
  %4711 = vmatprep.mubr.bf16.mxu0 %v4637
  %4712 = vmatmul.mubr.bf16.gmra.mxu0 %v4636
  %v4713 = vpop.f32.mrf.mxu0
  %v4714 = vadd.f32 0.0, %v4713
  %v4715 = vpop.f32.mrf.mxu0
  %v4716 = vadd.f32 0.0, %v4715
  %v4717 = vpop.f32.mrf.mxu0
  %v4718 = vpop.f32.mrf.mxu0
  %4719 = vdwg.mxu0
  %4720 = vmatprep.subr.bf16.mxu0 %v1212
  %4721 = vmatpush1.bf16.msra.mxu0 %v1211
  %4722 = vmatprep.subr.bf16.mxu0 %v1204
  %4723 = vmatpush1.bf16.msra.mxu0 %v1203
  %4724 = vmatprep.subr.bf16.mxu0 %v1196
  %4725 = vmatpush1.bf16.msra.mxu0 %v1195
  %4726 = vmatprep.subr.bf16.mxu0 %v1188
  %4727 = vmatpush1.bf16.msra.mxu0 %v1187
  %4728 = vmatprep.subr.bf16.mxu0 %v1180
  %4729 = vmatpush1.bf16.msra.mxu0 %v1179
  %4730 = vmatprep.subr.bf16.mxu0 %v1172
  %4731 = vmatpush1.bf16.msra.mxu0 %v1171
  %4732 = vmatprep.subr.bf16.mxu0 %v1164
  %4733 = vmatpush1.bf16.msra.mxu0 %v1163
  %4734 = vmatprep.subr.bf16.mxu0 %v1156
  %4735 = vmatpush1.bf16.msra.mxu0 %v1155
  %4736 = vmatprep.subr.bf16.mxu0 %v1276
  %4737 = vmatpush2.bf16.msra.mxu0 %v1275
  %4738 = vmatprep.subr.bf16.mxu0 %v1268
  %4739 = vmatpush2.bf16.msra.mxu0 %v1267
  %4740 = vmatprep.subr.bf16.mxu0 %v1260
  %4741 = vmatpush2.bf16.msra.mxu0 %v1259
  %4742 = vmatprep.subr.bf16.mxu0 %v1252
  %4743 = vmatpush2.bf16.msra.mxu0 %v1251
  %4744 = vmatprep.subr.bf16.mxu0 %v1244
  %4745 = vmatpush2.bf16.msra.mxu0 %v1243
  %4746 = vmatprep.subr.bf16.mxu0 %v1236
  %4747 = vmatpush2.bf16.msra.mxu0 %v1235
  %4748 = vmatprep.subr.bf16.mxu0 %v1228
  %4749 = vmatpush2.bf16.msra.mxu0 %v1227
  %4750 = vmatprep.subr.bf16.mxu0 %v1220
  %4751 = vmatpush2.bf16.msra.mxu0 %v1219
  %4752 = vmatprep.mubr.bf16.mxu0 %v4637
  %4753 = vmatmul.mubr.bf16.gmra.mxu0 %v4636
  %v4754 = vpop.f32.mrf.mxu0
  %v4755 = vadd.f32 0.0, %v4754
  %v4756 = vpop.f32.mrf.mxu0
  %v4757 = vadd.f32 0.0, %v4756
  %v4758 = vpop.f32.mrf.mxu0
  %v4759 = vpop.f32.mrf.mxu0
  %4760 = vdwg.mxu0
  %4761 = vmatprep.subr.bf16.mxu0 %v1214
  %4762 = vmatpush1.bf16.msra.mxu0 %v1213
  %4763 = vmatprep.subr.bf16.mxu0 %v1206
  %4764 = vmatpush1.bf16.msra.mxu0 %v1205
  %4765 = vmatprep.subr.bf16.mxu0 %v1198
  %4766 = vmatpush1.bf16.msra.mxu0 %v1197
  %4767 = vmatprep.subr.bf16.mxu0 %v1190
  %4768 = vmatpush1.bf16.msra.mxu0 %v1189
  %4769 = vmatprep.subr.bf16.mxu0 %v1182
  %4770 = vmatpush1.bf16.msra.mxu0 %v1181
  %4771 = vmatprep.subr.bf16.mxu0 %v1174
  %4772 = vmatpush1.bf16.msra.mxu0 %v1173
  %4773 = vmatprep.subr.bf16.mxu0 %v1166
  %4774 = vmatpush1.bf16.msra.mxu0 %v1165
  %4775 = vmatprep.subr.bf16.mxu0 %v1158
  %4776 = vmatpush1.bf16.msra.mxu0 %v1157
  %4777 = vmatprep.subr.bf16.mxu0 %v1278
  %4778 = vmatpush2.bf16.msra.mxu0 %v1277
  %4779 = vmatprep.subr.bf16.mxu0 %v1270
  %4780 = vmatpush2.bf16.msra.mxu0 %v1269
  %4781 = vmatprep.subr.bf16.mxu0 %v1262
  %4782 = vmatpush2.bf16.msra.mxu0 %v1261
  %4783 = vmatprep.subr.bf16.mxu0 %v1254
  %4784 = vmatpush2.bf16.msra.mxu0 %v1253
  %4785 = vmatprep.subr.bf16.mxu0 %v1246
  %4786 = vmatpush2.bf16.msra.mxu0 %v1245
  %4787 = vmatprep.subr.bf16.mxu0 %v1238
  %4788 = vmatpush2.bf16.msra.mxu0 %v1237
  %4789 = vmatprep.subr.bf16.mxu0 %v1230
  %4790 = vmatpush2.bf16.msra.mxu0 %v1229
  %4791 = vmatprep.subr.bf16.mxu0 %v1222
  %4792 = vmatpush2.bf16.msra.mxu0 %v1221
  %4793 = vmatprep.mubr.bf16.mxu0 %v4637
  %4794 = vmatmul.mubr.bf16.gmra.mxu0 %v4636
  %v4795 = vpop.f32.mrf.mxu0
  %v4796 = vadd.f32 0.0, %v4795
  %v4797 = vpop.f32.mrf.mxu0
  %v4798 = vadd.f32 0.0, %v4797
  %v4799 = vpop.f32.mrf.mxu0
  %v4800 = vpop.f32.mrf.mxu0
  %4801 = vdwg.mxu0
  %v4802 = vld [vmem:[#allocation2 + $0x200] sm:$0xff]
  %v4803 = vld [vmem:[#allocation2 + $0x208] sm:$0xff]
  %v4804 = vld [vmem:[#allocation2 + $0x210] sm:$0xff]
  %v4805 = vld [vmem:[#allocation2 + $0x218] sm:$0xff]
  %v4806 = vadd.f32 %v4673, %v4802
  %v4807 = vadd.f32 %v4675, %v4803
  %v4808 = vadd.f32 %v4714, %v4804
  %v4809 = vadd.f32 %v4716, %v4805
  %v4810 = vadd.f32 %v4755, %v1583
  %v4811 = vadd.f32 %v4757, %v1587
  %v4812 = vadd.f32 %v4796, %v1591
  %v4813 = vadd.f32 %v4798, %v1595
  %v4814 = vmul.f32 %v4806, 0.5
  %v4815 = vtanh.pop %v4814
  %v4816 = vadd.f32 %v4815, 1.0
  %v4817 = vmul.f32 %v4816, 0.5
  %v4818 = vmul.f32 %v4807, 0.5
  %v4819 = vtanh.pop %v4818
  %v4820 = vadd.f32 %v4819, 1.0
  %v4821 = vmul.f32 %v4820, 0.5
  %v4822 = vtanh.pop %v4808
  %v4823 = vmul.f32 %v4809, 0.5
  %v4824 = vtanh.pop %v4823
  %v4825 = vadd.f32 %v4824, 1.0
  %v4826 = vmul.f32 %v4825, 0.5
  %v4827 = vmul.f32 %v4821, %v4615
  %v4828 = vmul.f32 %v4817, %v4822
  %v4829 = vadd.f32 %v4827, %v4828
  %v4830 = vtanh.pop %v4829
  %v4831 = vmul.f32 %v4826, %v4830
  %v4832 = vmul.f32 %v4810, 0.5
  %v4833 = vtanh.pop %v4832
  %v4834 = vadd.f32 %v4833, 1.0
  %v4835 = vmul.f32 %v4834, 0.5
  %v4836 = vmul.f32 %v4811, 0.5
  %v4837 = vtanh.pop %v4836
  %v4838 = vadd.f32 %v4837, 1.0
  %v4839 = vmul.f32 %v4838, 0.5
  %v4840 = vtanh.pop %v4812
  %v4841 = vmul.f32 %v4813, 0.5
  %v4842 = vtanh.pop %v4841
  %v4843 = vadd.f32 %v4842, 1.0
  %v4844 = vmul.f32 %v4843, 0.5
  %v4845 = vmul.f32 %v4839, %v4633
  %v4846 = vmul.f32 %v4835, %v4840
  %v4847 = vadd.f32 %v4845, %v4846
  %v4848 = vtanh.pop %v4847
  %v4849 = vmul.f32 %v4844, %v4848
  %v4850 = vpack.c.bf16 %v4831, %v4831
  %v4851 = vpack.c.bf16 %v4849, %v4849
  %4852 = vmatprep.subr.bf16.mxu0 %v1208
  %4853 = vmatpush1.bf16.msra.mxu0 %v1207
  %4854 = vmatprep.subr.bf16.mxu0 %v1200
  %4855 = vmatpush1.bf16.msra.mxu0 %v1199
  %4856 = vmatprep.subr.bf16.mxu0 %v1192
  %4857 = vmatpush1.bf16.msra.mxu0 %v1191
  %4858 = vmatprep.subr.bf16.mxu0 %v1184
  %4859 = vmatpush1.bf16.msra.mxu0 %v1183
  %4860 = vmatprep.subr.bf16.mxu0 %v1176
  %4861 = vmatpush1.bf16.msra.mxu0 %v1175
  %4862 = vmatprep.subr.bf16.mxu0 %v1168
  %4863 = vmatpush1.bf16.msra.mxu0 %v1167
  %4864 = vmatprep.subr.bf16.mxu0 %v1160
  %4865 = vmatpush1.bf16.msra.mxu0 %v1159
  %4866 = vmatprep.subr.bf16.mxu0 %v1152
  %4867 = vmatpush1.bf16.msra.mxu0 %v1151
  %4868 = vmatprep.subr.bf16.mxu0 %v1272
  %4869 = vmatpush2.bf16.msra.mxu0 %v1271
  %4870 = vmatprep.subr.bf16.mxu0 %v1264
  %4871 = vmatpush2.bf16.msra.mxu0 %v1263
  %4872 = vmatprep.subr.bf16.mxu0 %v1256
  %4873 = vmatpush2.bf16.msra.mxu0 %v1255
  %4874 = vmatprep.subr.bf16.mxu0 %v1248
  %4875 = vmatpush2.bf16.msra.mxu0 %v1247
  %4876 = vmatprep.subr.bf16.mxu0 %v1240
  %4877 = vmatpush2.bf16.msra.mxu0 %v1239
  %4878 = vmatprep.subr.bf16.mxu0 %v1232
  %4879 = vmatpush2.bf16.msra.mxu0 %v1231
  %4880 = vmatprep.subr.bf16.mxu0 %v1224
  %4881 = vmatpush2.bf16.msra.mxu0 %v1223
  %4882 = vmatprep.subr.bf16.mxu0 %v1216
  %4883 = vmatpush2.bf16.msra.mxu0 %v1215
  %4884 = vmatprep.mubr.bf16.mxu0 %v4851
  %4885 = vmatmul.mubr.bf16.gmra.mxu0 %v4850
  %v4886 = vpop.f32.mrf.mxu0
  %v4887 = vadd.f32 0.0, %v4886
  %v4888 = vpop.f32.mrf.mxu0
  %v4889 = vadd.f32 0.0, %v4888
  %v4890 = vpop.f32.mrf.mxu0
  %v4891 = vpop.f32.mrf.mxu0
  %4892 = vdwg.mxu0
  %4893 = vmatprep.subr.bf16.mxu0 %v1210
  %4894 = vmatpush1.bf16.msra.mxu0 %v1209
  %4895 = vmatprep.subr.bf16.mxu0 %v1202
  %4896 = vmatpush1.bf16.msra.mxu0 %v1201
  %4897 = vmatprep.subr.bf16.mxu0 %v1194
  %4898 = vmatpush1.bf16.msra.mxu0 %v1193
  %4899 = vmatprep.subr.bf16.mxu0 %v1186
  %4900 = vmatpush1.bf16.msra.mxu0 %v1185
  %4901 = vmatprep.subr.bf16.mxu0 %v1178
  %4902 = vmatpush1.bf16.msra.mxu0 %v1177
  %4903 = vmatprep.subr.bf16.mxu0 %v1170
  %4904 = vmatpush1.bf16.msra.mxu0 %v1169
  %4905 = vmatprep.subr.bf16.mxu0 %v1162
  %4906 = vmatpush1.bf16.msra.mxu0 %v1161
  %4907 = vmatprep.subr.bf16.mxu0 %v1154
  %4908 = vmatpush1.bf16.msra.mxu0 %v1153
  %4909 = vmatprep.subr.bf16.mxu0 %v1274
  %4910 = vmatpush2.bf16.msra.mxu0 %v1273
  %4911 = vmatprep.subr.bf16.mxu0 %v1266
  %4912 = vmatpush2.bf16.msra.mxu0 %v1265
  %4913 = vmatprep.subr.bf16.mxu0 %v1258
  %4914 = vmatpush2.bf16.msra.mxu0 %v1257
  %4915 = vmatprep.subr.bf16.mxu0 %v1250
  %4916 = vmatpush2.bf16.msra.mxu0 %v1249
  %4917 = vmatprep.subr.bf16.mxu0 %v1242
  %4918 = vmatpush2.bf16.msra.mxu0 %v1241
  %4919 = vmatprep.subr.bf16.mxu0 %v1234
  %4920 = vmatpush2.bf16.msra.mxu0 %v1233
  %4921 = vmatprep.subr.bf16.mxu0 %v1226
  %4922 = vmatpush2.bf16.msra.mxu0 %v1225
  %4923 = vmatprep.subr.bf16.mxu0 %v1218
  %4924 = vmatpush2.bf16.msra.mxu0 %v1217
  %4925 = vmatprep.mubr.bf16.mxu0 %v4851
  %4926 = vmatmul.mubr.bf16.gmra.mxu0 %v4850
  %v4927 = vpop.f32.mrf.mxu0
  %v4928 = vadd.f32 0.0, %v4927
  %v4929 = vpop.f32.mrf.mxu0
  %v4930 = vadd.f32 0.0, %v4929
  %v4931 = vpop.f32.mrf.mxu0
  %v4932 = vpop.f32.mrf.mxu0
  %4933 = vdwg.mxu0
  %4934 = vmatprep.subr.bf16.mxu0 %v1212
  %4935 = vmatpush1.bf16.msra.mxu0 %v1211
  %4936 = vmatprep.subr.bf16.mxu0 %v1204
  %4937 = vmatpush1.bf16.msra.mxu0 %v1203
  %4938 = vmatprep.subr.bf16.mxu0 %v1196
  %4939 = vmatpush1.bf16.msra.mxu0 %v1195
  %4940 = vmatprep.subr.bf16.mxu0 %v1188
  %4941 = vmatpush1.bf16.msra.mxu0 %v1187
  %4942 = vmatprep.subr.bf16.mxu0 %v1180
  %4943 = vmatpush1.bf16.msra.mxu0 %v1179
  %4944 = vmatprep.subr.bf16.mxu0 %v1172
  %4945 = vmatpush1.bf16.msra.mxu0 %v1171
  %4946 = vmatprep.subr.bf16.mxu0 %v1164
  %4947 = vmatpush1.bf16.msra.mxu0 %v1163
  %4948 = vmatprep.subr.bf16.mxu0 %v1156
  %4949 = vmatpush1.bf16.msra.mxu0 %v1155
  %4950 = vmatprep.subr.bf16.mxu0 %v1276
  %4951 = vmatpush2.bf16.msra.mxu0 %v1275
  %4952 = vmatprep.subr.bf16.mxu0 %v1268
  %4953 = vmatpush2.bf16.msra.mxu0 %v1267
  %4954 = vmatprep.subr.bf16.mxu0 %v1260
  %4955 = vmatpush2.bf16.msra.mxu0 %v1259
  %4956 = vmatprep.subr.bf16.mxu0 %v1252
  %4957 = vmatpush2.bf16.msra.mxu0 %v1251
  %4958 = vmatprep.subr.bf16.mxu0 %v1244
  %4959 = vmatpush2.bf16.msra.mxu0 %v1243
  %4960 = vmatprep.subr.bf16.mxu0 %v1236
  %4961 = vmatpush2.bf16.msra.mxu0 %v1235
  %4962 = vmatprep.subr.bf16.mxu0 %v1228
  %4963 = vmatpush2.bf16.msra.mxu0 %v1227
  %4964 = vmatprep.subr.bf16.mxu0 %v1220
  %4965 = vmatpush2.bf16.msra.mxu0 %v1219
  %4966 = vmatprep.mubr.bf16.mxu0 %v4851
  %4967 = vmatmul.mubr.bf16.gmra.mxu0 %v4850
  %v4968 = vpop.f32.mrf.mxu0
  %v4969 = vadd.f32 0.0, %v4968
  %v4970 = vpop.f32.mrf.mxu0
  %v4971 = vadd.f32 0.0, %v4970
  %v4972 = vpop.f32.mrf.mxu0
  %v4973 = vpop.f32.mrf.mxu0
  %4974 = vdwg.mxu0
  %4975 = vmatprep.subr.bf16.mxu0 %v1214
  %4976 = vmatpush1.bf16.msra.mxu0 %v1213
  %4977 = vmatprep.subr.bf16.mxu0 %v1206
  %4978 = vmatpush1.bf16.msra.mxu0 %v1205
  %4979 = vmatprep.subr.bf16.mxu0 %v1198
  %4980 = vmatpush1.bf16.msra.mxu0 %v1197
  %4981 = vmatprep.subr.bf16.mxu0 %v1190
  %4982 = vmatpush1.bf16.msra.mxu0 %v1189
  %4983 = vmatprep.subr.bf16.mxu0 %v1182
  %4984 = vmatpush1.bf16.msra.mxu0 %v1181
  %4985 = vmatprep.subr.bf16.mxu0 %v1174
  %4986 = vmatpush1.bf16.msra.mxu0 %v1173
  %4987 = vmatprep.subr.bf16.mxu0 %v1166
  %4988 = vmatpush1.bf16.msra.mxu0 %v1165
  %4989 = vmatprep.subr.bf16.mxu0 %v1158
  %4990 = vmatpush1.bf16.msra.mxu0 %v1157
  %4991 = vmatprep.subr.bf16.mxu0 %v1278
  %4992 = vmatpush2.bf16.msra.mxu0 %v1277
  %4993 = vmatprep.subr.bf16.mxu0 %v1270
  %4994 = vmatpush2.bf16.msra.mxu0 %v1269
  %4995 = vmatprep.subr.bf16.mxu0 %v1262
  %4996 = vmatpush2.bf16.msra.mxu0 %v1261
  %4997 = vmatprep.subr.bf16.mxu0 %v1254
  %4998 = vmatpush2.bf16.msra.mxu0 %v1253
  %4999 = vmatprep.subr.bf16.mxu0 %v1246
  %5000 = vmatpush2.bf16.msra.mxu0 %v1245
  %5001 = vmatprep.subr.bf16.mxu0 %v1238
  %5002 = vmatpush2.bf16.msra.mxu0 %v1237
  %5003 = vmatprep.subr.bf16.mxu0 %v1230
  %5004 = vmatpush2.bf16.msra.mxu0 %v1229
  %5005 = vmatprep.subr.bf16.mxu0 %v1222
  %5006 = vmatpush2.bf16.msra.mxu0 %v1221
  %5007 = vmatprep.mubr.bf16.mxu0 %v4851
  %5008 = vmatmul.mubr.bf16.gmra.mxu0 %v4850
  %v5009 = vpop.f32.mrf.mxu0
  %v5010 = vadd.f32 0.0, %v5009
  %v5011 = vpop.f32.mrf.mxu0
  %v5012 = vadd.f32 0.0, %v5011
  %v5013 = vpop.f32.mrf.mxu0
  %v5014 = vpop.f32.mrf.mxu0
  %5015 = vdwg.mxu0
  %v5016 = vld [vmem:[#allocation2 + $0x220] sm:$0xff]
  %v5017 = vld [vmem:[#allocation2 + $0x228] sm:$0xff]
  %v5018 = vld [vmem:[#allocation2 + $0x230] sm:$0xff]
  %v5019 = vld [vmem:[#allocation2 + $0x238] sm:$0xff]
  %v5020 = vadd.f32 %v4887, %v5016
  %v5021 = vadd.f32 %v4889, %v5017
  %v5022 = vadd.f32 %v4928, %v5018
  %v5023 = vadd.f32 %v4930, %v5019
  %v5024 = vadd.f32 %v4969, %v1583
  %v5025 = vadd.f32 %v4971, %v1587
  %v5026 = vadd.f32 %v5010, %v1591
  %v5027 = vadd.f32 %v5012, %v1595
  %v5028 = vmul.f32 %v5020, 0.5
  %v5029 = vtanh.pop %v5028
  %v5030 = vadd.f32 %v5029, 1.0
  %v5031 = vmul.f32 %v5030, 0.5
  %v5032 = vmul.f32 %v5021, 0.5
  %v5033 = vtanh.pop %v5032
  %v5034 = vadd.f32 %v5033, 1.0
  %v5035 = vmul.f32 %v5034, 0.5
  %v5036 = vtanh.pop %v5022
  %v5037 = vmul.f32 %v5023, 0.5
  %v5038 = vtanh.pop %v5037
  %v5039 = vadd.f32 %v5038, 1.0
  %v5040 = vmul.f32 %v5039, 0.5
  %v5041 = vmul.f32 %v5035, %v4829
  %v5042 = vmul.f32 %v5031, %v5036
  %v5043 = vadd.f32 %v5041, %v5042
  %v5044 = vtanh.pop %v5043
  %v5045 = vmul.f32 %v5040, %v5044
  %v5046 = vmul.f32 %v5024, 0.5
  %v5047 = vtanh.pop %v5046
  %v5048 = vadd.f32 %v5047, 1.0
  %v5049 = vmul.f32 %v5048, 0.5
  %v5050 = vmul.f32 %v5025, 0.5
  %v5051 = vtanh.pop %v5050
  %v5052 = vadd.f32 %v5051, 1.0
  %v5053 = vmul.f32 %v5052, 0.5
  %v5054 = vtanh.pop %v5026
  %v5055 = vmul.f32 %v5027, 0.5
  %v5056 = vtanh.pop %v5055
  %v5057 = vadd.f32 %v5056, 1.0
  %v5058 = vmul.f32 %v5057, 0.5
  %v5059 = vmul.f32 %v5053, %v4847
  %v5060 = vmul.f32 %v5049, %v5054
  %v5061 = vadd.f32 %v5059, %v5060
  %v5062 = vtanh.pop %v5061
  %v5063 = vmul.f32 %v5058, %v5062
  %v5064 = vpack.c.bf16 %v5045, %v5045
  %v5065 = vpack.c.bf16 %v5063, %v5063
  %5066 = vmatprep.subr.bf16.mxu0 %v1208
  %5067 = vmatpush1.bf16.msra.mxu0 %v1207
  %5068 = vmatprep.subr.bf16.mxu0 %v1200
  %5069 = vmatpush1.bf16.msra.mxu0 %v1199
  %5070 = vmatprep.subr.bf16.mxu0 %v1192
  %5071 = vmatpush1.bf16.msra.mxu0 %v1191
  %5072 = vmatprep.subr.bf16.mxu0 %v1184
  %5073 = vmatpush1.bf16.msra.mxu0 %v1183
  %5074 = vmatprep.subr.bf16.mxu0 %v1176
  %5075 = vmatpush1.bf16.msra.mxu0 %v1175
  %5076 = vmatprep.subr.bf16.mxu0 %v1168
  %5077 = vmatpush1.bf16.msra.mxu0 %v1167
  %5078 = vmatprep.subr.bf16.mxu0 %v1160
  %5079 = vmatpush1.bf16.msra.mxu0 %v1159
  %5080 = vmatprep.subr.bf16.mxu0 %v1152
  %5081 = vmatpush1.bf16.msra.mxu0 %v1151
  %5082 = vmatprep.subr.bf16.mxu0 %v1272
  %5083 = vmatpush2.bf16.msra.mxu0 %v1271
  %5084 = vmatprep.subr.bf16.mxu0 %v1264
  %5085 = vmatpush2.bf16.msra.mxu0 %v1263
  %5086 = vmatprep.subr.bf16.mxu0 %v1256
  %5087 = vmatpush2.bf16.msra.mxu0 %v1255
  %5088 = vmatprep.subr.bf16.mxu0 %v1248
  %5089 = vmatpush2.bf16.msra.mxu0 %v1247
  %5090 = vmatprep.subr.bf16.mxu0 %v1240
  %5091 = vmatpush2.bf16.msra.mxu0 %v1239
  %5092 = vmatprep.subr.bf16.mxu0 %v1232
  %5093 = vmatpush2.bf16.msra.mxu0 %v1231
  %5094 = vmatprep.subr.bf16.mxu0 %v1224
  %5095 = vmatpush2.bf16.msra.mxu0 %v1223
  %5096 = vmatprep.subr.bf16.mxu0 %v1216
  %5097 = vmatpush2.bf16.msra.mxu0 %v1215
  %5098 = vmatprep.mubr.bf16.mxu0 %v5065
  %5099 = vmatmul.mubr.bf16.gmra.mxu0 %v5064
  %v5100 = vpop.f32.mrf.mxu0
  %v5101 = vadd.f32 0.0, %v5100
  %v5102 = vpop.f32.mrf.mxu0
  %v5103 = vadd.f32 0.0, %v5102
  %v5104 = vpop.f32.mrf.mxu0
  %v5105 = vpop.f32.mrf.mxu0
  %5106 = vdwg.mxu0
  %5107 = vmatprep.subr.bf16.mxu0 %v1210
  %5108 = vmatpush1.bf16.msra.mxu0 %v1209
  %5109 = vmatprep.subr.bf16.mxu0 %v1202
  %5110 = vmatpush1.bf16.msra.mxu0 %v1201
  %5111 = vmatprep.subr.bf16.mxu0 %v1194
  %5112 = vmatpush1.bf16.msra.mxu0 %v1193
  %5113 = vmatprep.subr.bf16.mxu0 %v1186
  %5114 = vmatpush1.bf16.msra.mxu0 %v1185
  %5115 = vmatprep.subr.bf16.mxu0 %v1178
  %5116 = vmatpush1.bf16.msra.mxu0 %v1177
  %5117 = vmatprep.subr.bf16.mxu0 %v1170
  %5118 = vmatpush1.bf16.msra.mxu0 %v1169
  %5119 = vmatprep.subr.bf16.mxu0 %v1162
  %5120 = vmatpush1.bf16.msra.mxu0 %v1161
  %5121 = vmatprep.subr.bf16.mxu0 %v1154
  %5122 = vmatpush1.bf16.msra.mxu0 %v1153
  %5123 = vmatprep.subr.bf16.mxu0 %v1274
  %5124 = vmatpush2.bf16.msra.mxu0 %v1273
  %5125 = vmatprep.subr.bf16.mxu0 %v1266
  %5126 = vmatpush2.bf16.msra.mxu0 %v1265
  %5127 = vmatprep.subr.bf16.mxu0 %v1258
  %5128 = vmatpush2.bf16.msra.mxu0 %v1257
  %5129 = vmatprep.subr.bf16.mxu0 %v1250
  %5130 = vmatpush2.bf16.msra.mxu0 %v1249
  %5131 = vmatprep.subr.bf16.mxu0 %v1242
  %5132 = vmatpush2.bf16.msra.mxu0 %v1241
  %5133 = vmatprep.subr.bf16.mxu0 %v1234
  %5134 = vmatpush2.bf16.msra.mxu0 %v1233
  %5135 = vmatprep.subr.bf16.mxu0 %v1226
  %5136 = vmatpush2.bf16.msra.mxu0 %v1225
  %5137 = vmatprep.subr.bf16.mxu0 %v1218
  %5138 = vmatpush2.bf16.msra.mxu0 %v1217
  %5139 = vmatprep.mubr.bf16.mxu0 %v5065
  %5140 = vmatmul.mubr.bf16.gmra.mxu0 %v5064
  %v5141 = vpop.f32.mrf.mxu0
  %v5142 = vadd.f32 0.0, %v5141
  %v5143 = vpop.f32.mrf.mxu0
  %v5144 = vadd.f32 0.0, %v5143
  %v5145 = vpop.f32.mrf.mxu0
  %v5146 = vpop.f32.mrf.mxu0
  %5147 = vdwg.mxu0
  %5148 = vmatprep.subr.bf16.mxu0 %v1212
  %5149 = vmatpush1.bf16.msra.mxu0 %v1211
  %5150 = vmatprep.subr.bf16.mxu0 %v1204
  %5151 = vmatpush1.bf16.msra.mxu0 %v1203
  %5152 = vmatprep.subr.bf16.mxu0 %v1196
  %5153 = vmatpush1.bf16.msra.mxu0 %v1195
  %5154 = vmatprep.subr.bf16.mxu0 %v1188
  %5155 = vmatpush1.bf16.msra.mxu0 %v1187
  %5156 = vmatprep.subr.bf16.mxu0 %v1180
  %5157 = vmatpush1.bf16.msra.mxu0 %v1179
  %5158 = vmatprep.subr.bf16.mxu0 %v1172
  %5159 = vmatpush1.bf16.msra.mxu0 %v1171
  %5160 = vmatprep.subr.bf16.mxu0 %v1164
  %5161 = vmatpush1.bf16.msra.mxu0 %v1163
  %5162 = vmatprep.subr.bf16.mxu0 %v1156
  %5163 = vmatpush1.bf16.msra.mxu0 %v1155
  %5164 = vmatprep.subr.bf16.mxu0 %v1276
  %5165 = vmatpush2.bf16.msra.mxu0 %v1275
  %5166 = vmatprep.subr.bf16.mxu0 %v1268
  %5167 = vmatpush2.bf16.msra.mxu0 %v1267
  %5168 = vmatprep.subr.bf16.mxu0 %v1260
  %5169 = vmatpush2.bf16.msra.mxu0 %v1259
  %5170 = vmatprep.subr.bf16.mxu0 %v1252
  %5171 = vmatpush2.bf16.msra.mxu0 %v1251
  %5172 = vmatprep.subr.bf16.mxu0 %v1244
  %5173 = vmatpush2.bf16.msra.mxu0 %v1243
  %5174 = vmatprep.subr.bf16.mxu0 %v1236
  %5175 = vmatpush2.bf16.msra.mxu0 %v1235
  %5176 = vmatprep.subr.bf16.mxu0 %v1228
  %5177 = vmatpush2.bf16.msra.mxu0 %v1227
  %5178 = vmatprep.subr.bf16.mxu0 %v1220
  %5179 = vmatpush2.bf16.msra.mxu0 %v1219
  %5180 = vmatprep.mubr.bf16.mxu0 %v5065
  %5181 = vmatmul.mubr.bf16.gmra.mxu0 %v5064
  %v5182 = vpop.f32.mrf.mxu0
  %v5183 = vadd.f32 0.0, %v5182
  %v5184 = vpop.f32.mrf.mxu0
  %v5185 = vadd.f32 0.0, %v5184
  %v5186 = vpop.f32.mrf.mxu0
  %v5187 = vpop.f32.mrf.mxu0
  %5188 = vdwg.mxu0
  %5189 = vmatprep.subr.bf16.mxu0 %v1214
  %5190 = vmatpush1.bf16.msra.mxu0 %v1213
  %5191 = vmatprep.subr.bf16.mxu0 %v1206
  %5192 = vmatpush1.bf16.msra.mxu0 %v1205
  %5193 = vmatprep.subr.bf16.mxu0 %v1198
  %5194 = vmatpush1.bf16.msra.mxu0 %v1197
  %5195 = vmatprep.subr.bf16.mxu0 %v1190
  %5196 = vmatpush1.bf16.msra.mxu0 %v1189
  %5197 = vmatprep.subr.bf16.mxu0 %v1182
  %5198 = vmatpush1.bf16.msra.mxu0 %v1181
  %5199 = vmatprep.subr.bf16.mxu0 %v1174
  %5200 = vmatpush1.bf16.msra.mxu0 %v1173
  %5201 = vmatprep.subr.bf16.mxu0 %v1166
  %5202 = vmatpush1.bf16.msra.mxu0 %v1165
  %5203 = vmatprep.subr.bf16.mxu0 %v1158
  %5204 = vmatpush1.bf16.msra.mxu0 %v1157
  %5205 = vmatprep.subr.bf16.mxu0 %v1278
  %5206 = vmatpush2.bf16.msra.mxu0 %v1277
  %5207 = vmatprep.subr.bf16.mxu0 %v1270
  %5208 = vmatpush2.bf16.msra.mxu0 %v1269
  %5209 = vmatprep.subr.bf16.mxu0 %v1262
  %5210 = vmatpush2.bf16.msra.mxu0 %v1261
  %5211 = vmatprep.subr.bf16.mxu0 %v1254
  %5212 = vmatpush2.bf16.msra.mxu0 %v1253
  %5213 = vmatprep.subr.bf16.mxu0 %v1246
  %5214 = vmatpush2.bf16.msra.mxu0 %v1245
  %5215 = vmatprep.subr.bf16.mxu0 %v1238
  %5216 = vmatpush2.bf16.msra.mxu0 %v1237
  %5217 = vmatprep.subr.bf16.mxu0 %v1230
  %5218 = vmatpush2.bf16.msra.mxu0 %v1229
  %5219 = vmatprep.subr.bf16.mxu0 %v1222
  %5220 = vmatpush2.bf16.msra.mxu0 %v1221
  %5221 = vmatprep.mubr.bf16.mxu0 %v5065
  %5222 = vmatmul.mubr.bf16.gmra.mxu0 %v5064
  %v5223 = vpop.f32.mrf.mxu0
  %v5224 = vadd.f32 0.0, %v5223
  %v5225 = vpop.f32.mrf.mxu0
  %v5226 = vadd.f32 0.0, %v5225
  %v5227 = vpop.f32.mrf.mxu0
  %v5228 = vpop.f32.mrf.mxu0
  %5229 = vdwg.mxu0
  %v5230 = vld [vmem:[#allocation2 + $0x240] sm:$0xff]
  %v5231 = vld [vmem:[#allocation2 + $0x248] sm:$0xff]
  %v5232 = vld [vmem:[#allocation2 + $0x250] sm:$0xff]
  %v5233 = vld [vmem:[#allocation2 + $0x258] sm:$0xff]
  %v5234 = vadd.f32 %v5101, %v5230
  %v5235 = vadd.f32 %v5103, %v5231
  %v5236 = vadd.f32 %v5142, %v5232
  %v5237 = vadd.f32 %v5144, %v5233
  %v5238 = vadd.f32 %v5183, %v1583
  %v5239 = vadd.f32 %v5185, %v1587
  %v5240 = vadd.f32 %v5224, %v1591
  %v5241 = vadd.f32 %v5226, %v1595
  %v5242 = vmul.f32 %v5234, 0.5
  %v5243 = vtanh.pop %v5242
  %v5244 = vadd.f32 %v5243, 1.0
  %v5245 = vmul.f32 %v5244, 0.5
  %v5246 = vmul.f32 %v5235, 0.5
  %v5247 = vtanh.pop %v5246
  %v5248 = vadd.f32 %v5247, 1.0
  %v5249 = vmul.f32 %v5248, 0.5
  %v5250 = vtanh.pop %v5236
  %v5251 = vmul.f32 %v5237, 0.5
  %v5252 = vtanh.pop %v5251
  %v5253 = vadd.f32 %v5252, 1.0
  %v5254 = vmul.f32 %v5253, 0.5
  %v5255 = vmul.f32 %v5249, %v5043
  %v5256 = vmul.f32 %v5245, %v5250
  %v5257 = vadd.f32 %v5255, %v5256
  %v5258 = vtanh.pop %v5257
  %v5259 = vmul.f32 %v5254, %v5258
  %v5260 = vmul.f32 %v5238, 0.5
  %v5261 = vtanh.pop %v5260
  %v5262 = vadd.f32 %v5261, 1.0
  %v5263 = vmul.f32 %v5262, 0.5
  %v5264 = vmul.f32 %v5239, 0.5
  %v5265 = vtanh.pop %v5264
  %v5266 = vadd.f32 %v5265, 1.0
  %v5267 = vmul.f32 %v5266, 0.5
  %v5268 = vtanh.pop %v5240
  %v5269 = vmul.f32 %v5241, 0.5
  %v5270 = vtanh.pop %v5269
  %v5271 = vadd.f32 %v5270, 1.0
  %v5272 = vmul.f32 %v5271, 0.5
  %v5273 = vmul.f32 %v5267, %v5061
  %v5274 = vmul.f32 %v5263, %v5268
  %v5275 = vadd.f32 %v5273, %v5274
  %v5276 = vtanh.pop %v5275
  %v5277 = vmul.f32 %v5272, %v5276
  %v5278 = vpack.c.bf16 %v5259, %v5259
  %v5279 = vpack.c.bf16 %v5277, %v5277
  %5280 = vmatprep.subr.bf16.mxu0 %v1208
  %5281 = vmatpush1.bf16.msra.mxu0 %v1207
  %5282 = vmatprep.subr.bf16.mxu0 %v1200
  %5283 = vmatpush1.bf16.msra.mxu0 %v1199
  %5284 = vmatprep.subr.bf16.mxu0 %v1192
  %5285 = vmatpush1.bf16.msra.mxu0 %v1191
  %5286 = vmatprep.subr.bf16.mxu0 %v1184
  %5287 = vmatpush1.bf16.msra.mxu0 %v1183
  %5288 = vmatprep.subr.bf16.mxu0 %v1176
  %5289 = vmatpush1.bf16.msra.mxu0 %v1175
  %5290 = vmatprep.subr.bf16.mxu0 %v1168
  %5291 = vmatpush1.bf16.msra.mxu0 %v1167
  %5292 = vmatprep.subr.bf16.mxu0 %v1160
  %5293 = vmatpush1.bf16.msra.mxu0 %v1159
  %5294 = vmatprep.subr.bf16.mxu0 %v1152
  %5295 = vmatpush1.bf16.msra.mxu0 %v1151
  %5296 = vmatprep.subr.bf16.mxu0 %v1272
  %5297 = vmatpush2.bf16.msra.mxu0 %v1271
  %5298 = vmatprep.subr.bf16.mxu0 %v1264
  %5299 = vmatpush2.bf16.msra.mxu0 %v1263
  %5300 = vmatprep.subr.bf16.mxu0 %v1256
  %5301 = vmatpush2.bf16.msra.mxu0 %v1255
  %5302 = vmatprep.subr.bf16.mxu0 %v1248
  %5303 = vmatpush2.bf16.msra.mxu0 %v1247
  %5304 = vmatprep.subr.bf16.mxu0 %v1240
  %5305 = vmatpush2.bf16.msra.mxu0 %v1239
  %5306 = vmatprep.subr.bf16.mxu0 %v1232
  %5307 = vmatpush2.bf16.msra.mxu0 %v1231
  %5308 = vmatprep.subr.bf16.mxu0 %v1224
  %5309 = vmatpush2.bf16.msra.mxu0 %v1223
  %5310 = vmatprep.subr.bf16.mxu0 %v1216
  %5311 = vmatpush2.bf16.msra.mxu0 %v1215
  %5312 = vmatprep.mubr.bf16.mxu0 %v5279
  %5313 = vmatmul.mubr.bf16.gmra.mxu0 %v5278
  %v5314 = vpop.f32.mrf.mxu0
  %v5315 = vadd.f32 0.0, %v5314
  %v5316 = vpop.f32.mrf.mxu0
  %v5317 = vadd.f32 0.0, %v5316
  %v5318 = vpop.f32.mrf.mxu0
  %v5319 = vpop.f32.mrf.mxu0
  %5320 = vdwg.mxu0
  %5321 = vmatprep.subr.bf16.mxu0 %v1210
  %5322 = vmatpush1.bf16.msra.mxu0 %v1209
  %5323 = vmatprep.subr.bf16.mxu0 %v1202
  %5324 = vmatpush1.bf16.msra.mxu0 %v1201
  %5325 = vmatprep.subr.bf16.mxu0 %v1194
  %5326 = vmatpush1.bf16.msra.mxu0 %v1193
  %5327 = vmatprep.subr.bf16.mxu0 %v1186
  %5328 = vmatpush1.bf16.msra.mxu0 %v1185
  %5329 = vmatprep.subr.bf16.mxu0 %v1178
  %5330 = vmatpush1.bf16.msra.mxu0 %v1177
  %5331 = vmatprep.subr.bf16.mxu0 %v1170
  %5332 = vmatpush1.bf16.msra.mxu0 %v1169
  %5333 = vmatprep.subr.bf16.mxu0 %v1162
  %5334 = vmatpush1.bf16.msra.mxu0 %v1161
  %5335 = vmatprep.subr.bf16.mxu0 %v1154
  %5336 = vmatpush1.bf16.msra.mxu0 %v1153
  %5337 = vmatprep.subr.bf16.mxu0 %v1274
  %5338 = vmatpush2.bf16.msra.mxu0 %v1273
  %5339 = vmatprep.subr.bf16.mxu0 %v1266
  %5340 = vmatpush2.bf16.msra.mxu0 %v1265
  %5341 = vmatprep.subr.bf16.mxu0 %v1258
  %5342 = vmatpush2.bf16.msra.mxu0 %v1257
  %5343 = vmatprep.subr.bf16.mxu0 %v1250
  %5344 = vmatpush2.bf16.msra.mxu0 %v1249
  %5345 = vmatprep.subr.bf16.mxu0 %v1242
  %5346 = vmatpush2.bf16.msra.mxu0 %v1241
  %5347 = vmatprep.subr.bf16.mxu0 %v1234
  %5348 = vmatpush2.bf16.msra.mxu0 %v1233
  %5349 = vmatprep.subr.bf16.mxu0 %v1226
  %5350 = vmatpush2.bf16.msra.mxu0 %v1225
  %5351 = vmatprep.subr.bf16.mxu0 %v1218
  %5352 = vmatpush2.bf16.msra.mxu0 %v1217
  %5353 = vmatprep.mubr.bf16.mxu0 %v5279
  %5354 = vmatmul.mubr.bf16.gmra.mxu0 %v5278
  %v5355 = vpop.f32.mrf.mxu0
  %v5356 = vadd.f32 0.0, %v5355
  %v5357 = vpop.f32.mrf.mxu0
  %v5358 = vadd.f32 0.0, %v5357
  %v5359 = vpop.f32.mrf.mxu0
  %v5360 = vpop.f32.mrf.mxu0
  %5361 = vdwg.mxu0
  %5362 = vmatprep.subr.bf16.mxu0 %v1212
  %5363 = vmatpush1.bf16.msra.mxu0 %v1211
  %5364 = vmatprep.subr.bf16.mxu0 %v1204
  %5365 = vmatpush1.bf16.msra.mxu0 %v1203
  %5366 = vmatprep.subr.bf16.mxu0 %v1196
  %5367 = vmatpush1.bf16.msra.mxu0 %v1195
  %5368 = vmatprep.subr.bf16.mxu0 %v1188
  %5369 = vmatpush1.bf16.msra.mxu0 %v1187
  %5370 = vmatprep.subr.bf16.mxu0 %v1180
  %5371 = vmatpush1.bf16.msra.mxu0 %v1179
  %5372 = vmatprep.subr.bf16.mxu0 %v1172
  %5373 = vmatpush1.bf16.msra.mxu0 %v1171
  %5374 = vmatprep.subr.bf16.mxu0 %v1164
  %5375 = vmatpush1.bf16.msra.mxu0 %v1163
  %5376 = vmatprep.subr.bf16.mxu0 %v1156
  %5377 = vmatpush1.bf16.msra.mxu0 %v1155
  %5378 = vmatprep.subr.bf16.mxu0 %v1276
  %5379 = vmatpush2.bf16.msra.mxu0 %v1275
  %5380 = vmatprep.subr.bf16.mxu0 %v1268
  %5381 = vmatpush2.bf16.msra.mxu0 %v1267
  %5382 = vmatprep.subr.bf16.mxu0 %v1260
  %5383 = vmatpush2.bf16.msra.mxu0 %v1259
  %5384 = vmatprep.subr.bf16.mxu0 %v1252
  %5385 = vmatpush2.bf16.msra.mxu0 %v1251
  %5386 = vmatprep.subr.bf16.mxu0 %v1244
  %5387 = vmatpush2.bf16.msra.mxu0 %v1243
  %5388 = vmatprep.subr.bf16.mxu0 %v1236
  %5389 = vmatpush2.bf16.msra.mxu0 %v1235
  %5390 = vmatprep.subr.bf16.mxu0 %v1228
  %5391 = vmatpush2.bf16.msra.mxu0 %v1227
  %5392 = vmatprep.subr.bf16.mxu0 %v1220
  %5393 = vmatpush2.bf16.msra.mxu0 %v1219
  %5394 = vmatprep.mubr.bf16.mxu0 %v5279
  %5395 = vmatmul.mubr.bf16.gmra.mxu0 %v5278
  %v5396 = vpop.f32.mrf.mxu0
  %v5397 = vadd.f32 0.0, %v5396
  %v5398 = vpop.f32.mrf.mxu0
  %v5399 = vadd.f32 0.0, %v5398
  %v5400 = vpop.f32.mrf.mxu0
  %v5401 = vpop.f32.mrf.mxu0
  %5402 = vdwg.mxu0
  %5403 = vmatprep.subr.bf16.mxu0 %v1214
  %5404 = vmatpush1.bf16.msra.mxu0 %v1213
  %5405 = vmatprep.subr.bf16.mxu0 %v1206
  %5406 = vmatpush1.bf16.msra.mxu0 %v1205
  %5407 = vmatprep.subr.bf16.mxu0 %v1198
  %5408 = vmatpush1.bf16.msra.mxu0 %v1197
  %5409 = vmatprep.subr.bf16.mxu0 %v1190
  %5410 = vmatpush1.bf16.msra.mxu0 %v1189
  %5411 = vmatprep.subr.bf16.mxu0 %v1182
  %5412 = vmatpush1.bf16.msra.mxu0 %v1181
  %5413 = vmatprep.subr.bf16.mxu0 %v1174
  %5414 = vmatpush1.bf16.msra.mxu0 %v1173
  %5415 = vmatprep.subr.bf16.mxu0 %v1166
  %5416 = vmatpush1.bf16.msra.mxu0 %v1165
  %5417 = vmatprep.subr.bf16.mxu0 %v1158
  %5418 = vmatpush1.bf16.msra.mxu0 %v1157
  %5419 = vmatprep.subr.bf16.mxu0 %v1278
  %5420 = vmatpush2.bf16.msra.mxu0 %v1277
  %5421 = vmatprep.subr.bf16.mxu0 %v1270
  %5422 = vmatpush2.bf16.msra.mxu0 %v1269
  %5423 = vmatprep.subr.bf16.mxu0 %v1262
  %5424 = vmatpush2.bf16.msra.mxu0 %v1261
  %5425 = vmatprep.subr.bf16.mxu0 %v1254
  %5426 = vmatpush2.bf16.msra.mxu0 %v1253
  %5427 = vmatprep.subr.bf16.mxu0 %v1246
  %5428 = vmatpush2.bf16.msra.mxu0 %v1245
  %5429 = vmatprep.subr.bf16.mxu0 %v1238
  %5430 = vmatpush2.bf16.msra.mxu0 %v1237
  %5431 = vmatprep.subr.bf16.mxu0 %v1230
  %5432 = vmatpush2.bf16.msra.mxu0 %v1229
  %5433 = vmatprep.subr.bf16.mxu0 %v1222
  %5434 = vmatpush2.bf16.msra.mxu0 %v1221
  %5435 = vmatprep.mubr.bf16.mxu0 %v5279
  %5436 = vmatmul.mubr.bf16.gmra.mxu0 %v5278
  %v5437 = vpop.f32.mrf.mxu0
  %v5438 = vadd.f32 0.0, %v5437
  %v5439 = vpop.f32.mrf.mxu0
  %v5440 = vadd.f32 0.0, %v5439
  %v5441 = vpop.f32.mrf.mxu0
  %v5442 = vpop.f32.mrf.mxu0
  %5443 = vdwg.mxu0
  %v5444 = vld [vmem:[#allocation2 + $0x260] sm:$0xff]
  %v5445 = vld [vmem:[#allocation2 + $0x268] sm:$0xff]
  %v5446 = vld [vmem:[#allocation2 + $0x270] sm:$0xff]
  %v5447 = vld [vmem:[#allocation2 + $0x278] sm:$0xff]
  %v5448 = vadd.f32 %v5315, %v5444
  %v5449 = vadd.f32 %v5317, %v5445
  %v5450 = vadd.f32 %v5356, %v5446
  %v5451 = vadd.f32 %v5358, %v5447
  %v5452 = vadd.f32 %v5397, %v1583
  %v5453 = vadd.f32 %v5399, %v1587
  %v5454 = vadd.f32 %v5438, %v1591
  %v5455 = vadd.f32 %v5440, %v1595
  %v5456 = vmul.f32 %v5448, 0.5
  %v5457 = vtanh.pop %v5456
  %v5458 = vadd.f32 %v5457, 1.0
  %v5459 = vmul.f32 %v5458, 0.5
  %v5460 = vmul.f32 %v5449, 0.5
  %v5461 = vtanh.pop %v5460
  %v5462 = vadd.f32 %v5461, 1.0
  %v5463 = vmul.f32 %v5462, 0.5
  %v5464 = vtanh.pop %v5450
  %v5465 = vmul.f32 %v5451, 0.5
  %v5466 = vtanh.pop %v5465
  %v5467 = vadd.f32 %v5466, 1.0
  %v5468 = vmul.f32 %v5467, 0.5
  %v5469 = vmul.f32 %v5463, %v5257
  %v5470 = vmul.f32 %v5459, %v5464
  %v5471 = vadd.f32 %v5469, %v5470
  %v5472 = vtanh.pop %v5471
  %v5473 = vmul.f32 %v5468, %v5472
  %v5474 = vmul.f32 %v5452, 0.5
  %v5475 = vtanh.pop %v5474
  %v5476 = vadd.f32 %v5475, 1.0
  %v5477 = vmul.f32 %v5476, 0.5
  %v5478 = vmul.f32 %v5453, 0.5
  %v5479 = vtanh.pop %v5478
  %v5480 = vadd.f32 %v5479, 1.0
  %v5481 = vmul.f32 %v5480, 0.5
  %v5482 = vtanh.pop %v5454
  %v5483 = vmul.f32 %v5455, 0.5
  %v5484 = vtanh.pop %v5483
  %v5485 = vadd.f32 %v5484, 1.0
  %v5486 = vmul.f32 %v5485, 0.5
  %v5487 = vmul.f32 %v5481, %v5275
  %v5488 = vmul.f32 %v5477, %v5482
  %v5489 = vadd.f32 %v5487, %v5488
  %v5490 = vtanh.pop %v5489
  %v5491 = vmul.f32 %v5486, %v5490
  %v5492 = vpack.c.bf16 %v5473, %v5473
  %v5493 = vpack.c.bf16 %v5491, %v5491
  %5494 = vmatprep.subr.bf16.mxu0 %v1212
  %5495 = vmatpush1.bf16.msra.mxu0 %v1211
  %5496 = vmatprep.subr.bf16.mxu0 %v1204
  %5497 = vmatpush1.bf16.msra.mxu0 %v1203
  %5498 = vmatprep.subr.bf16.mxu0 %v1196
  %5499 = vmatpush1.bf16.msra.mxu0 %v1195
  %5500 = vmatprep.subr.bf16.mxu0 %v1188
  %5501 = vmatpush1.bf16.msra.mxu0 %v1187
  %5502 = vmatprep.subr.bf16.mxu0 %v1180
  %5503 = vmatpush1.bf16.msra.mxu0 %v1179
  %5504 = vmatprep.subr.bf16.mxu0 %v1172
  %5505 = vmatpush1.bf16.msra.mxu0 %v1171
  %5506 = vmatprep.subr.bf16.mxu0 %v1164
  %5507 = vmatpush1.bf16.msra.mxu0 %v1163
  %5508 = vmatprep.subr.bf16.mxu0 %v1156
  %5509 = vmatpush1.bf16.msra.mxu0 %v1155
  %5510 = vmatprep.subr.bf16.mxu0 %v1276
  %5511 = vmatpush2.bf16.msra.mxu0 %v1275
  %5512 = vmatprep.subr.bf16.mxu0 %v1268
  %5513 = vmatpush2.bf16.msra.mxu0 %v1267
  %5514 = vmatprep.subr.bf16.mxu0 %v1260
  %5515 = vmatpush2.bf16.msra.mxu0 %v1259
  %5516 = vmatprep.subr.bf16.mxu0 %v1252
  %5517 = vmatpush2.bf16.msra.mxu0 %v1251
  %5518 = vmatprep.subr.bf16.mxu0 %v1244
  %5519 = vmatpush2.bf16.msra.mxu0 %v1243
  %5520 = vmatprep.subr.bf16.mxu0 %v1236
  %5521 = vmatpush2.bf16.msra.mxu0 %v1235
  %5522 = vmatprep.subr.bf16.mxu0 %v1228
  %5523 = vmatpush2.bf16.msra.mxu0 %v1227
  %5524 = vmatprep.subr.bf16.mxu0 %v1220
  %5525 = vmatpush2.bf16.msra.mxu0 %v1219
  %5526 = vmatprep.mubr.bf16.mxu0 %v5493
  %5527 = vmatmul.mubr.bf16.gmra.mxu0 %v5492
  %v5528 = vpop.f32.mrf.mxu0
  %v5529 = vadd.f32 0.0, %v5528
  %v5530 = vpop.f32.mrf.mxu0
  %v5531 = vadd.f32 0.0, %v5530
  %v5532 = vpop.f32.mrf.mxu0
  %v5533 = vpop.f32.mrf.mxu0
  %5534 = vdwg.mxu0
  %5535 = vmatprep.subr.bf16.mxu0 %v1214
  %5536 = vmatpush1.bf16.msra.mxu0 %v1213
  %5537 = vmatprep.subr.bf16.mxu0 %v1206
  %5538 = vmatpush1.bf16.msra.mxu0 %v1205
  %5539 = vmatprep.subr.bf16.mxu0 %v1198
  %5540 = vmatpush1.bf16.msra.mxu0 %v1197
  %5541 = vmatprep.subr.bf16.mxu0 %v1190
  %5542 = vmatpush1.bf16.msra.mxu0 %v1189
  %5543 = vmatprep.subr.bf16.mxu0 %v1182
  %5544 = vmatpush1.bf16.msra.mxu0 %v1181
  %5545 = vmatprep.subr.bf16.mxu0 %v1174
  %5546 = vmatpush1.bf16.msra.mxu0 %v1173
  %5547 = vmatprep.subr.bf16.mxu0 %v1166
  %5548 = vmatpush1.bf16.msra.mxu0 %v1165
  %5549 = vmatprep.subr.bf16.mxu0 %v1158
  %5550 = vmatpush1.bf16.msra.mxu0 %v1157
  %5551 = vmatprep.subr.bf16.mxu0 %v1278
  %5552 = vmatpush2.bf16.msra.mxu0 %v1277
  %5553 = vmatprep.subr.bf16.mxu0 %v1270
  %5554 = vmatpush2.bf16.msra.mxu0 %v1269
  %5555 = vmatprep.subr.bf16.mxu0 %v1262
  %5556 = vmatpush2.bf16.msra.mxu0 %v1261
  %5557 = vmatprep.subr.bf16.mxu0 %v1254
  %5558 = vmatpush2.bf16.msra.mxu0 %v1253
  %5559 = vmatprep.subr.bf16.mxu0 %v1246
  %5560 = vmatpush2.bf16.msra.mxu0 %v1245
  %5561 = vmatprep.subr.bf16.mxu0 %v1238
  %5562 = vmatpush2.bf16.msra.mxu0 %v1237
  %5563 = vmatprep.subr.bf16.mxu0 %v1230
  %5564 = vmatpush2.bf16.msra.mxu0 %v1229
  %5565 = vmatprep.subr.bf16.mxu0 %v1222
  %5566 = vmatpush2.bf16.msra.mxu0 %v1221
  %5567 = vmatprep.mubr.bf16.mxu0 %v5493
  %5568 = vmatmul.mubr.bf16.gmra.mxu0 %v5492
  %v5569 = vpop.f32.mrf.mxu0
  %v5570 = vadd.f32 0.0, %v5569
  %v5571 = vpop.f32.mrf.mxu0
  %v5572 = vadd.f32 0.0, %v5571
  %v5573 = vpop.f32.mrf.mxu0
  %v5574 = vpop.f32.mrf.mxu0
  %5575 = vdwg.mxu0
  %v5576 = vadd.f32 %v5529, %v1583
  %v5577 = vadd.f32 %v5531, %v1587
  %v5578 = vadd.f32 %v5570, %v1591
  %v5579 = vadd.f32 %v5572, %v1595
  %v5580 = vmul.f32 %v5576, 0.5
  %v5581 = vtanh.pop %v5580
  %v5582 = vadd.f32 %v5581, 1.0
  %v5583 = vmul.f32 %v5582, 0.5
  %v5584 = vmul.f32 %v5577, 0.5
  %v5585 = vtanh.pop %v5584
  %v5586 = vadd.f32 %v5585, 1.0
  %v5587 = vmul.f32 %v5586, 0.5
  %v5588 = vtanh.pop %v5578
  %v5589 = vmul.f32 %v5579, 0.5
  %v5590 = vtanh.pop %v5589
  %v5591 = vadd.f32 %v5590, 1.0
  %v5592 = vmul.f32 %v5591, 0.5
  %v5593 = vmul.f32 %v5587, %v5489
  %v5594 = vmul.f32 %v5583, %v5588
  %v5595 = vadd.f32 %v5593, %v5594
  %v5596 = vtanh.pop %v5595
  %v5597 = vmul.f32 %v5592, %v5596
  %v5598 = vld [vmem:[%s5] sm:$0x1]
  %v5600 = vlaneseq
  %v5601 = vshrl.u32 %v5600, 7
  %v5602 = vsub.s32 0, %v5601
  %v5603 = vrot.slane %v5598, %v5602
  %v5605 = vmul.f32 %v5597, %v5603
  %v5606 = vld [vmem:[%s6] sm:$0x1]
  %v5608 = vlaneseq
  %v5609 = vshrl.u32 %v5608, 7
  %v5610 = vsub.s32 0, %v5609
  %v5611 = vrot.slane %v5606, %v5610
  %v5613 = vadd.f32 %v5605, %v5611
  %v5614 = vld [vmem:[%s7] sm:$0xff]
  %v5615 = vld [vmem:[%s7 + $0x8] sm:$0xff]
  %v5616 = vld [vmem:[%s7 + $0x10] sm:$0xff]
  %v5617 = vld [vmem:[%s7 + $0x18] sm:$0xff]
  %v5618 = vld [vmem:[%s7 + $0x20] sm:$0xff]
  %v5619 = vld [vmem:[%s7 + $0x28] sm:$0xff]
  %v5620 = vld [vmem:[%s7 + $0x30] sm:$0xff]
  %v5621 = vld [vmem:[%s7 + $0x38] sm:$0xff]
  %v5622 = vld [vmem:[%s7 + $0x40] sm:$0xff]
  %v5623 = vld [vmem:[%s7 + $0x48] sm:$0xff]
  %v5624 = vld [vmem:[%s7 + $0x50] sm:$0xff]
  %v5625 = vld [vmem:[%s7 + $0x58] sm:$0xff]
  %v5626 = vld [vmem:[%s7 + $0x60] sm:$0xff]
  %v5627 = vld [vmem:[%s7 + $0x68] sm:$0xff]
  %v5628 = vld [vmem:[%s7 + $0x70] sm:$0xff]
  %v5629 = vld [vmem:[%s7 + $0x78] sm:$0xff]
  %v5630 = vld [vmem:[%s8] sm:$0x1]
  %v5632 = vlaneseq
  %v5633 = vshrl.u32 %v5632, 7
  %v5634 = vsub.s32 0, %v5633
  %v5635 = vrot.slane %v5630, %v5634
  %5637 = vmatprep.subr.mxu0 0.0
  %5638 = vmatpush1.msra.mxu0 %v5629
  %5639 = vmatprep.subr.mxu0 0.0
  %5640 = vmatpush1.msra.mxu0 %v5628
  %5641 = vmatprep.subr.mxu0 0.0
  %5642 = vmatpush1.msra.mxu0 %v5627
  %5643 = vmatprep.subr.mxu0 0.0
  %5644 = vmatpush1.msra.mxu0 %v5626
  %5645 = vmatprep.subr.mxu0 0.0
  %5646 = vmatpush1.msra.mxu0 %v5625
  %5647 = vmatprep.subr.mxu0 0.0
  %5648 = vmatpush1.msra.mxu0 %v5624
  %5649 = vmatprep.subr.mxu0 0.0
  %5650 = vmatpush1.msra.mxu0 %v5623
  %5651 = vmatprep.subr.mxu0 0.0
  %5652 = vmatpush1.msra.mxu0 %v5622
  %5653 = vmatprep.subr.mxu0 0.0
  %5654 = vmatpush1.msra.mxu0 %v5621
  %5655 = vmatprep.subr.mxu0 0.0
  %5656 = vmatpush1.msra.mxu0 %v5620
  %5657 = vmatprep.subr.mxu0 0.0
  %5658 = vmatpush1.msra.mxu0 %v5619
  %5659 = vmatprep.subr.mxu0 0.0
  %5660 = vmatpush1.msra.mxu0 %v5618
  %5661 = vmatprep.subr.mxu0 0.0
  %5662 = vmatpush1.msra.mxu0 %v5617
  %5663 = vmatprep.subr.mxu0 0.0
  %5664 = vmatpush1.msra.mxu0 %v5616
  %5665 = vmatprep.subr.mxu0 0.0
  %5666 = vmatpush1.msra.mxu0 %v5615
  %5667 = vmatprep.subr.mxu0 0.0
  %5668 = vmatpush1.msra.mxu0 %v5614
  %5669 = vmatprep.subr.mxu0 0.0
  %5670 = vmatpush2.msra.mxu0 0.0
  %5671 = vmatprep.subr.mxu0 0.0
  %5672 = vmatpush2.msra.mxu0 0.0
  %5673 = vmatprep.subr.mxu0 0.0
  %5674 = vmatpush2.msra.mxu0 0.0
  %5675 = vmatprep.subr.mxu0 0.0
  %5676 = vmatpush2.msra.mxu0 0.0
  %5677 = vmatprep.subr.mxu0 0.0
  %5678 = vmatpush2.msra.mxu0 0.0
  %5679 = vmatprep.subr.mxu0 0.0
  %5680 = vmatpush2.msra.mxu0 0.0
  %5681 = vmatprep.subr.mxu0 0.0
  %5682 = vmatpush2.msra.mxu0 0.0
  %5683 = vmatprep.subr.mxu0 0.0
  %5684 = vmatpush2.msra.mxu0 0.0
  %5685 = vmatprep.subr.mxu0 0.0
  %5686 = vmatpush2.msra.mxu0 0.0
  %5687 = vmatprep.subr.mxu0 0.0
  %5688 = vmatpush2.msra.mxu0 0.0
  %5689 = vmatprep.subr.mxu0 0.0
  %5690 = vmatpush2.msra.mxu0 0.0
  %5691 = vmatprep.subr.mxu0 0.0
  %5692 = vmatpush2.msra.mxu0 0.0
  %5693 = vmatprep.subr.mxu0 0.0
  %5694 = vmatpush2.msra.mxu0 0.0
  %5695 = vmatprep.subr.mxu0 0.0
  %5696 = vmatpush2.msra.mxu0 0.0
  %5697 = vmatprep.subr.mxu0 0.0
  %5698 = vmatpush2.msra.mxu0 0.0
  %5699 = vmatprep.subr.mxu0 0.0
  %5700 = vmatpush2.msra.mxu0 0.0
  %5701 = vmatprep.mubr.f32.mxu0 0.0
  %5702 = vmatmul.mubr.f32.gmra.mxu0 %v5613
  %v5703 = vpop.f32.mrf.mxu0
  %v5704 = vadd.f32 %v5635, %v5703
  %v5705 = vpop.f32.mrf.mxu0
  %5706 = vdwg.mxu0
  %v5707 = vld [vmem:[%s9] sm:$0x1]
  %v5709 = vlaneseq
  %v5710 = vshrl.u32 %v5709, 7
  %v5711 = vsub.s32 0, %v5710
  %v5712 = vrot.slane %v5707, %v5711
  %v5714 = vmul.f32 %v5704, %v5712
  %v5715 = vld [vmem:[%s10] sm:$0x1]
  %v5717 = vlaneseq
  %v5718 = vshrl.u32 %v5717, 7
  %v5719 = vsub.s32 0, %v5718
  %v5720 = vrot.slane %v5715, %v5719
  %v5722 = vadd.f32 %v5714, %v5720
  %v5723 = vmax.f32 %v5722, 0.0
  %v5724 = vld [vmem:[%s11] sm:$0xff]
  %v5725 = vld [vmem:[%s11 + $0x8] sm:$0xff]
  %v5726 = vld [vmem:[%s11 + $0x10] sm:$0xff]
  %v5727 = vld [vmem:[%s11 + $0x18] sm:$0xff]
  %v5728 = vld [vmem:[%s11 + $0x20] sm:$0xff]
  %v5729 = vld [vmem:[%s11 + $0x28] sm:$0xff]
  %v5730 = vld [vmem:[%s11 + $0x30] sm:$0xff]
  %v5731 = vld [vmem:[%s11 + $0x38] sm:$0xff]
  %v5732 = vld [vmem:[%s11 + $0x40] sm:$0xff]
  %v5733 = vld [vmem:[%s11 + $0x48] sm:$0xff]
  %v5734 = vld [vmem:[%s11 + $0x50] sm:$0xff]
  %v5735 = vld [vmem:[%s11 + $0x58] sm:$0xff]
  %v5736 = vld [vmem:[%s11 + $0x60] sm:$0xff]
  %v5737 = vld [vmem:[%s11 + $0x68] sm:$0xff]
  %v5738 = vld [vmem:[%s11 + $0x70] sm:$0xff]
  %v5739 = vld [vmem:[%s11 + $0x78] sm:$0xff]
  %v5740 = vld [vmem:[%s12] sm:$0x1]
  %v5742 = vlaneseq
  %v5743 = vshrl.u32 %v5742, 7
  %v5744 = vsub.s32 0, %v5743
  %v5745 = vrot.slane %v5740, %v5744
  %5747 = vmatprep.subr.mxu0 0.0
  %5748 = vmatpush1.msra.mxu0 %v5739
  %5749 = vmatprep.subr.mxu0 0.0
  %5750 = vmatpush1.msra.mxu0 %v5738
  %5751 = vmatprep.subr.mxu0 0.0
  %5752 = vmatpush1.msra.mxu0 %v5737
  %5753 = vmatprep.subr.mxu0 0.0
  %5754 = vmatpush1.msra.mxu0 %v5736
  %5755 = vmatprep.subr.mxu0 0.0
  %5756 = vmatpush1.msra.mxu0 %v5735
  %5757 = vmatprep.subr.mxu0 0.0
  %5758 = vmatpush1.msra.mxu0 %v5734
  %5759 = vmatprep.subr.mxu0 0.0
  %5760 = vmatpush1.msra.mxu0 %v5733
  %5761 = vmatprep.subr.mxu0 0.0
  %5762 = vmatpush1.msra.mxu0 %v5732
  %5763 = vmatprep.subr.mxu0 0.0
  %5764 = vmatpush1.msra.mxu0 %v5731
  %5765 = vmatprep.subr.mxu0 0.0
  %5766 = vmatpush1.msra.mxu0 %v5730
  %5767 = vmatprep.subr.mxu0 0.0
  %5768 = vmatpush1.msra.mxu0 %v5729
  %5769 = vmatprep.subr.mxu0 0.0
  %5770 = vmatpush1.msra.mxu0 %v5728
  %5771 = vmatprep.subr.mxu0 0.0
  %5772 = vmatpush1.msra.mxu0 %v5727
  %5773 = vmatprep.subr.mxu0 0.0
  %5774 = vmatpush1.msra.mxu0 %v5726
  %5775 = vmatprep.subr.mxu0 0.0
  %5776 = vmatpush1.msra.mxu0 %v5725
  %5777 = vmatprep.subr.mxu0 0.0
  %5778 = vmatpush1.msra.mxu0 %v5724
  %5779 = vmatprep.subr.mxu0 0.0
  %5780 = vmatpush2.msra.mxu0 0.0
  %5781 = vmatprep.subr.mxu0 0.0
  %5782 = vmatpush2.msra.mxu0 0.0
  %5783 = vmatprep.subr.mxu0 0.0
  %5784 = vmatpush2.msra.mxu0 0.0
  %5785 = vmatprep.subr.mxu0 0.0
  %5786 = vmatpush2.msra.mxu0 0.0
  %5787 = vmatprep.subr.mxu0 0.0
  %5788 = vmatpush2.msra.mxu0 0.0
  %5789 = vmatprep.subr.mxu0 0.0
  %5790 = vmatpush2.msra.mxu0 0.0
  %5791 = vmatprep.subr.mxu0 0.0
  %5792 = vmatpush2.msra.mxu0 0.0
  %5793 = vmatprep.subr.mxu0 0.0
  %5794 = vmatpush2.msra.mxu0 0.0
  %5795 = vmatprep.subr.mxu0 0.0
  %5796 = vmatpush2.msra.mxu0 0.0
  %5797 = vmatprep.subr.mxu0 0.0
  %5798 = vmatpush2.msra.mxu0 0.0
  %5799 = vmatprep.subr.mxu0 0.0
  %5800 = vmatpush2.msra.mxu0 0.0
  %5801 = vmatprep.subr.mxu0 0.0
  %5802 = vmatpush2.msra.mxu0 0.0
  %5803 = vmatprep.subr.mxu0 0.0
  %5804 = vmatpush2.msra.mxu0 0.0
  %5805 = vmatprep.subr.mxu0 0.0
  %5806 = vmatpush2.msra.mxu0 0.0
  %5807 = vmatprep.subr.mxu0 0.0
  %5808 = vmatpush2.msra.mxu0 0.0
  %5809 = vmatprep.subr.mxu0 0.0
  %5810 = vmatpush2.msra.mxu0 0.0
  %5811 = vmatprep.mubr.f32.mxu0 0.0
  %5812 = vmatmul.mubr.f32.gmra.mxu0 %v5723
  %v5813 = vpop.f32.mrf.mxu0
  %v5814 = vadd.f32 %v5745, %v5813
  %v5815 = vpop.f32.mrf.mxu0
  %5816 = vdwg.mxu0
  %vm5817 = vcmask 23552
  %5818 = vst.msk [vmem:[%s13] sm:$0xff] %vm5817, %v5814
  // Predicated region
  $region54: #{pattern_nn_forward.1} parent=0 // pred_check
    _
  $region55: #{pattern_nn_forward.1} parent=0 // pred_check_branch
    %5820 = sbr.rel (0) target = $region57
  $region56: #{pattern_nn_forward.1} parent=0 // pred_region
    _
  $region57: #{pattern_nn_forward.1} parent=0 // pred_fallthru
    _
  // Predicated region
  $region58: #{pattern_nn_forward.1} parent=0 // pred_check
    _
  $region59: #{pattern_nn_forward.1} parent=0 // pred_check_branch
    %5822 = sbr.rel (0) target = $region61
  $region60: #{pattern_nn_forward.1} parent=0 // pred_region
    _
  $region61: #{pattern_nn_forward.1} parent=0 // pred_fallthru
    _

</llo_original>
